<compile_context>
chip_gen: v6e
topology: v6e:2x2x1
jax: 0.10.0
libtpu: 0.0.40
codegen_flags: <defaults>
</compile_context>

<pallas_src>
import jax
import jax.numpy as jnp
from jax.experimental import pallas as pl
from jax.experimental.pallas import tpu as pltpu


def _make_kernel(C, H, W, dilated):
    """Build the fused non_bottleneck_1d kernel body (static shapes / dilation)."""
    HW = H * W

    def mxu_dot(w, a):
        # (Cout, Cin) @ (Cin, HW) on the MXU, f32 accumulation.
        return jnp.dot(w, a, preferred_element_type=jnp.float32,
                       precision=jax.lax.Precision.HIGHEST)

    def shift_flat(a, off):
        # out[:, p] = a[:, p + off], zero where p + off is outside [0, HW).
        if off == 0:
            return a
        z = jnp.zeros((a.shape[0], abs(off)), a.dtype)
        if off > 0:
            return jnp.concatenate([a[:, off:], z], axis=1)
        return jnp.concatenate([z, a[:, :HW + off]], axis=1)

    def conv_h(a, w_ref, d):
        # (3x1) conv along H: taps k=0,1,2 <-> row offsets -d, 0, +d.
        # A row shift by `off` is a flat lane shift by off*W (no row mask needed).
        acc = mxu_dot(w_ref[1], a)
        for k, off in ((0, -d), (2, d)):
            acc += mxu_dot(w_ref[k], shift_flat(a, off * W))
        return acc

    def conv_w(a, w_ref, d, col):
        # (1x3) conv along W: flat lane shift by off, masked at row boundaries.
        acc = mxu_dot(w_ref[1], a)
        for k, off in ((0, -d), (2, d)):
            valid = jnp.logical_and(col + off >= 0.0, col + off <= W - 1.0)
            acc += mxu_dot(w_ref[k], jnp.where(valid, shift_flat(a, off), 0.0))
        return acc

    def kernel(x_ref, col_ref, w1_ref, b1_ref, w2_ref, s1_ref, t1_ref,
               w3_ref, b3_ref, w4_ref, s2_ref, t2_ref, o_ref):
        x = x_ref[0]           # (C, HW) float32
        col = col_ref[...]     # (1, HW) float32, value = w-coordinate of lane

        # conv3x1_1 + bias -> relu
        y = jnp.maximum(conv_h(x, w1_ref, 1) + b1_ref[...], 0.0)
        # conv1x3_1 -> bn1 (conv bias folded into shift) -> relu
        y = jnp.maximum(conv_w(y, w2_ref, 1, col) * s1_ref[...] + t1_ref[...], 0.0)
        # conv3x1_2 (dilated) + bias -> relu
        y = jnp.maximum(conv_h(y, w3_ref, dilated) + b3_ref[...], 0.0)
        # conv1x3_2 (dilated) -> bn2 (conv bias folded into shift)
        y = conv_w(y, w4_ref, dilated, col) * s2_ref[...] + t2_ref[...]
        # dropout: p == 0 -> branch skipped (matches the module)
        o_ref[0] = jnp.maximum(y + x, 0.0)

    return kernel


def non_bottleneck_1d_forward(x, params, dilated):
    N, C, H, W = x.shape
    HW = H * W
    Cp = ((C + 7) // 8) * 8          # sublane-align the channel dim
    eps = 1e-3
    f32 = jnp.float32

    def prep_w(w):
        # torch (Co, Ci, 3, 1) or (Co, Ci, 1, 3) -> (3, Co, Ci), zero-padded to Cp.
        w = jnp.asarray(w, f32).reshape(C, C, 3)
        w = jnp.transpose(w, (2, 0, 1))
        return jnp.pad(w, ((0, 0), (0, Cp - C), (0, Cp - C)))

    def prep_c(v):
        # per-channel vector -> (Cp, 1) lane-broadcastable column.
        return jnp.pad(jnp.asarray(v, f32), (0, Cp - C))[:, None]

    # Fold eval-mode BN and the preceding 1x3 conv bias into scale/shift.
    s1 = params["bn1_gamma"] * jax.lax.rsqrt(params["bn1_var"] + eps)
    t1 = params["bn1_beta"] + (params["b13_1"] - params["bn1_mean"]) * s1
    s2 = params["bn2_gamma"] * jax.lax.rsqrt(params["bn2_var"] + eps)
    t2 = params["bn2_beta"] + (params["b13_2"] - params["bn2_mean"]) * s2

    # Column index of every flattened spatial position (for 1x3 row-boundary mask).
    col = jnp.tile(jnp.arange(W, dtype=f32), H).reshape(1, HW)

    # Lane-dense activation layout: (N, Cp, H*W).
    x_flat = jnp.pad(jnp.asarray(x, f32).reshape(N, C, HW),
                     ((0, 0), (0, Cp - C), (0, 0)))

    args = (x_flat, col,
            prep_w(params["w31_1"]), prep_c(params["b31_1"]),
            prep_w(params["w13_1"]), prep_c(s1), prep_c(t1),
            prep_w(params["w31_2"]), prep_c(params["b31_2"]),
            prep_w(params["w13_2"]), prep_c(s2), prep_c(t2))

    def const_spec(shape):
        r = len(shape)
        return pl.BlockSpec(shape, lambda n, _r=r: (0,) * _r)

    in_specs = [pl.BlockSpec((1, Cp, HW), lambda n: (n, 0, 0))]
    in_specs += [const_spec(a.shape) for a in args[1:]]

    out = pl.pallas_call(
        _make_kernel(Cp, H, W, dilated),
        out_shape=jax.ShapeDtypeStruct((N, Cp, HW), f32),
        grid=(N,),
        in_specs=in_specs,
        out_specs=pl.BlockSpec((1, Cp, HW), lambda n: (n, 0, 0)),
        compiler_params=pltpu.CompilerParams(
            dimension_semantics=("parallel",),
            vmem_limit_bytes=64 * 1024 * 1024),
    )(*args)

    return out[:, :C, :].reshape(N, C, H, W)


# ---------------- pure-JAX reference (for verification) ----------------

def _ref_conv(x, w, b, pad_hw, dil_hw):
    y = jax.lax.conv_general_dilated(
        x, w, window_strides=(1, 1),
        padding=((pad_hw[0], pad_hw[0]), (pad_hw[1], pad_hw[1])),
        rhs_dilation=dil_hw,
        dimension_numbers=("NCHW", "OIHW", "NCHW"),
        precision=jax.lax.Precision.HIGHEST)
    return y + b[None, :, None, None]


def _ref_bn(x, gamma, beta, mean, var, eps=1e-3):
    scale = gamma * jax.lax.rsqrt(var + eps)
    shift = beta - mean * scale
    return x * scale[None, :, None, None] + shift[None, :, None, None]


def ref_forward(x, p, dilated):
    out = jnp.maximum(_ref_conv(x, p["w31_1"], p["b31_1"], (1, 0), (1, 1)), 0.0)
    out = _ref_conv(out, p["w13_1"], p["b13_1"], (0, 1), (1, 1))
    out = jnp.maximum(_ref_bn(out, p["bn1_gamma"], p["bn1_beta"],
                              p["bn1_mean"], p["bn1_var"]), 0.0)
    out = jnp.maximum(_ref_conv(out, p["w31_2"], p["b31_2"],
                                (dilated, 0), (dilated, 1)), 0.0)
    out = _ref_conv(out, p["w13_2"], p["b13_2"], (0, dilated), (1, dilated))
    out = _ref_bn(out, p["bn2_gamma"], p["bn2_beta"], p["bn2_mean"], p["bn2_var"])
    return jnp.maximum(out + x, 0.0)


if __name__ == "__main__":
    N, C, H, W = 2, 4, 16, 16
    dilated = 2   # dropprob = 0.0 -> dropout branch skipped

    key = jax.random.PRNGKey(0)
    keys = jax.random.split(key, 20)

    def u(k, shape, lo, hi):
        return jax.random.uniform(k, shape, jnp.float32, lo, hi)

    params = {
        "w31_1": u(keys[0], (C, C, 3, 1), -0.3, 0.3),
        "b31_1": u(keys[1], (C,), -0.1, 0.1),
        "w13_1": u(keys[2], (C, C, 1, 3), -0.3, 0.3),
        "b13_1": u(keys[3], (C,), -0.1, 0.1),
        "bn1_gamma": u(keys[4], (C,), 0.5, 1.5),
        "bn1_beta": u(keys[5], (C,), -0.5, 0.5),
        "bn1_mean": u(keys[6], (C,), -0.5, 0.5),
        "bn1_var": u(keys[7], (C,), 0.5, 1.5),
        "w31_2": u(keys[8], (C, C, 3, 1), -0.3, 0.3),
        "b31_2": u(keys[9], (C,), -0.1, 0.1),
        "w13_2": u(keys[10], (C, C, 1, 3), -0.3, 0.3),
        "b13_2": u(keys[11], (C,), -0.1, 0.1),
        "bn2_gamma": u(keys[12], (C,), 0.5, 1.5),
        "bn2_beta": u(keys[13], (C,), -0.5, 0.5),
        "bn2_mean": u(keys[14], (C,), -0.5, 0.5),
        "bn2_var": u(keys[15], (C,), 0.5, 1.5),
    }

    x = jax.random.normal(keys[16], (N, C, H, W), jnp.float32)

    out = jax.block_until_ready(non_bottleneck_1d_forward(x, params, dilated))
    ref = jax.block_until_ready(ref_forward(x, params, dilated))

    max_err = float(jnp.max(jnp.abs(out - ref)))
    if not bool(jnp.allclose(out, ref, atol=1e-2, rtol=1e-2)):
        raise SystemExit(f"mismatch vs pure-JAX reference: max_abs_err={max_err}")
    print("KERNEL_OK")
</pallas_src>

<mosaic_0001>
module attributes {stable_mosaic.version = 11 : i64} {
  func.func @kernel(%arg0: i32, %arg1: memref<1x8x256xf32, #tpu.memory_space<vmem>>, %arg2: memref<1x256xf32, #tpu.memory_space<vmem>>, %arg3: memref<3x8x8xf32, #tpu.memory_space<vmem>>, %arg4: memref<8x1xf32, #tpu.memory_space<vmem>>, %arg5: memref<3x8x8xf32, #tpu.memory_space<vmem>>, %arg6: memref<8x1xf32, #tpu.memory_space<vmem>>, %arg7: memref<8x1xf32, #tpu.memory_space<vmem>>, %arg8: memref<3x8x8xf32, #tpu.memory_space<vmem>>, %arg9: memref<8x1xf32, #tpu.memory_space<vmem>>, %arg10: memref<3x8x8xf32, #tpu.memory_space<vmem>>, %arg11: memref<8x1xf32, #tpu.memory_space<vmem>>, %arg12: memref<8x1xf32, #tpu.memory_space<vmem>>, %arg13: memref<1x8x256xf32, #tpu.memory_space<vmem>>) attributes {dimension_semantics = [#tpu.dimension_semantics<parallel>], iteration_bounds = array<i64: 2>, scalar_prefetch = 0 : i64, scratch_operands = 0 : i64, tpu.core_type = #tpu.core_type<tc>, window_params = [{transform_indices = @transform_0, window_bounds = array<i64: 1, 8, 256>}, {pipeline_mode = #tpu.pipeline_mode<synchronous>, transform_indices = @transform_1, window_bounds = array<i64: 1, 256>}, {pipeline_mode = #tpu.pipeline_mode<synchronous>, transform_indices = @transform_2, window_bounds = array<i64: 3, 8, 8>}, {pipeline_mode = #tpu.pipeline_mode<synchronous>, transform_indices = @transform_3, window_bounds = array<i64: 8, 1>}, {pipeline_mode = #tpu.pipeline_mode<synchronous>, transform_indices = @transform_4, window_bounds = array<i64: 3, 8, 8>}, {pipeline_mode = #tpu.pipeline_mode<synchronous>, transform_indices = @transform_5, window_bounds = array<i64: 8, 1>}, {pipeline_mode = #tpu.pipeline_mode<synchronous>, transform_indices = @transform_6, window_bounds = array<i64: 8, 1>}, {pipeline_mode = #tpu.pipeline_mode<synchronous>, transform_indices = @transform_7, window_bounds = array<i64: 3, 8, 8>}, {pipeline_mode = #tpu.pipeline_mode<synchronous>, transform_indices = @transform_8, window_bounds = array<i64: 8, 1>}, {pipeline_mode = #tpu.pipeline_mode<synchronous>, transform_indices = @transform_9, window_bounds = array<i64: 3, 8, 8>}, {pipeline_mode = #tpu.pipeline_mode<synchronous>, transform_indices = @transform_10, window_bounds = array<i64: 8, 1>}, {pipeline_mode = #tpu.pipeline_mode<synchronous>, transform_indices = @transform_11, window_bounds = array<i64: 8, 1>}, {transform_indices = @transform_12, window_bounds = array<i64: 1, 8, 256>}]} {
    %c0 = arith.constant 0 : index
    %c0_0 = arith.constant 0 : index
    %c0_1 = arith.constant 0 : index
    %0 = vector.load %arg1[%c0, %c0_0, %c0_1] : memref<1x8x256xf32, #tpu.memory_space<vmem>>, vector<1x8x256xf32>
    %1 = vector.shape_cast %0 : vector<1x8x256xf32> to vector<8x256xf32>
    %c0_2 = arith.constant 0 : index
    %c0_3 = arith.constant 0 : index
    %2 = vector.load %arg2[%c0_2, %c0_3] : memref<1x256xf32, #tpu.memory_space<vmem>>, vector<1x256xf32>
    %c1 = arith.constant 1 : index
    %c0_4 = arith.constant 0 : index
    %c0_5 = arith.constant 0 : index
    %3 = vector.load %arg3[%c1, %c0_4, %c0_5] : memref<3x8x8xf32, #tpu.memory_space<vmem>>, vector<1x8x8xf32>
    %4 = vector.shape_cast %3 : vector<1x8x8xf32> to vector<8x8xf32>
    %cst = arith.constant dense<0.000000e+00> : vector<8x256xf32>
    %5 = tpu.matmul %4, %1, %cst {dimension_numbers = #tpu.dot_dimension_numbers<[1], [0], [0], [1], [0, 0, 1, 1], [], []>, precision = #tpu.contract_precision<fp32>} : vector<8x8xf32>, vector<8x256xf32>, vector<8x256xf32> -> vector<8x256xf32>
    %c0_6 = arith.constant 0 : index
    %c0_7 = arith.constant 0 : index
    %c0_8 = arith.constant 0 : index
    %6 = vector.load %arg3[%c0_6, %c0_7, %c0_8] : memref<3x8x8xf32, #tpu.memory_space<vmem>>, vector<1x8x8xf32>
    %7 = vector.shape_cast %6 : vector<1x8x8xf32> to vector<8x8xf32>
    %cst_9 = arith.constant 0.000000e+00 : f32
    %8 = vector.broadcast %cst_9 : f32 to vector<8x16xf32>
    %9 = vector.extract_strided_slice %1 {offsets = [0, 0], sizes = [8, 240], strides = [1, 1]} : vector<8x256xf32> to vector<8x240xf32>
    %10 = tpu.concatenate %8, %9 in 1 : vector<8x16xf32>, vector<8x240xf32> -> vector<8x256xf32>
    %cst_10 = arith.constant dense<0.000000e+00> : vector<8x256xf32>
    %11 = tpu.matmul %7, %10, %cst_10 {dimension_numbers = #tpu.dot_dimension_numbers<[1], [0], [0], [1], [0, 0, 1, 1], [], []>, precision = #tpu.contract_precision<fp32>} : vector<8x8xf32>, vector<8x256xf32>, vector<8x256xf32> -> vector<8x256xf32>
    %12 = arith.addf %5, %11 : vector<8x256xf32>
    %c2 = arith.constant 2 : index
    %c0_11 = arith.constant 0 : index
    %c0_12 = arith.constant 0 : index
    %13 = vector.load %arg3[%c2, %c0_11, %c0_12] : memref<3x8x8xf32, #tpu.memory_space<vmem>>, vector<1x8x8xf32>
    %14 = vector.shape_cast %13 : vector<1x8x8xf32> to vector<8x8xf32>
    %cst_13 = arith.constant 0.000000e+00 : f32
    %15 = vector.broadcast %cst_13 : f32 to vector<8x16xf32>
    %16 = vector.extract_strided_slice %1 {offsets = [0, 16], sizes = [8, 240], strides = [1, 1]} : vector<8x256xf32> to vector<8x240xf32>
    %17 = tpu.concatenate %16, %15 in 1 : vector<8x240xf32>, vector<8x16xf32> -> vector<8x256xf32>
    %cst_14 = arith.constant dense<0.000000e+00> : vector<8x256xf32>
    %18 = tpu.matmul %14, %17, %cst_14 {dimension_numbers = #tpu.dot_dimension_numbers<[1], [0], [0], [1], [0, 0, 1, 1], [], []>, precision = #tpu.contract_precision<fp32>} : vector<8x8xf32>, vector<8x256xf32>, vector<8x256xf32> -> vector<8x256xf32>
    %19 = arith.addf %12, %18 : vector<8x256xf32>
    %c0_15 = arith.constant 0 : index
    %c0_16 = arith.constant 0 : index
    %20 = vector.load %arg4[%c0_15, %c0_16] : memref<8x1xf32, #tpu.memory_space<vmem>>, vector<8x1xf32>
    %21 = vector.broadcast %20 : vector<8x1xf32> to vector<8x256xf32>
    %22 = arith.addf %19, %21 : vector<8x256xf32>
    %cst_17 = arith.constant 0.000000e+00 : f32
    %23 = vector.broadcast %cst_17 : f32 to vector<8x256xf32>
    %24 = arith.maximumf %22, %23 : vector<8x256xf32>
    %c1_18 = arith.constant 1 : index
    %c0_19 = arith.constant 0 : index
    %c0_20 = arith.constant 0 : index
    %25 = vector.load %arg5[%c1_18, %c0_19, %c0_20] : memref<3x8x8xf32, #tpu.memory_space<vmem>>, vector<1x8x8xf32>
    %26 = vector.shape_cast %25 : vector<1x8x8xf32> to vector<8x8xf32>
    %cst_21 = arith.constant dense<0.000000e+00> : vector<8x256xf32>
    %27 = tpu.matmul %26, %24, %cst_21 {dimension_numbers = #tpu.dot_dimension_numbers<[1], [0], [0], [1], [0, 0, 1, 1], [], []>, precision = #tpu.contract_precision<fp32>} : vector<8x8xf32>, vector<8x256xf32>, vector<8x256xf32> -> vector<8x256xf32>
    %cst_22 = arith.constant -1.000000e+00 : f32
    %28 = vector.broadcast %cst_22 : f32 to vector<1x256xf32>
    %29 = arith.addf %2, %28 : vector<1x256xf32>
    %cst_23 = arith.constant 0.000000e+00 : f32
    %30 = vector.broadcast %cst_23 : f32 to vector<1x256xf32>
    %31 = arith.cmpf oge, %29, %30 : vector<1x256xf32>
    %cst_24 = arith.constant -1.000000e+00 : f32
    %32 = vector.broadcast %cst_24 : f32 to vector<1x256xf32>
    %33 = arith.addf %2, %32 : vector<1x256xf32>
    %cst_25 = arith.constant 1.500000e+01 : f32
    %34 = vector.broadcast %cst_25 : f32 to vector<1x256xf32>
    %35 = arith.cmpf ole, %33, %34 : vector<1x256xf32>
    %36 = arith.andi %31, %35 : vector<1x256xi1>
    %c0_26 = arith.constant 0 : index
    %c0_27 = arith.constant 0 : index
    %c0_28 = arith.constant 0 : index
    %37 = vector.load %arg5[%c0_26, %c0_27, %c0_28] : memref<3x8x8xf32, #tpu.memory_space<vmem>>, vector<1x8x8xf32>
    %38 = vector.shape_cast %37 : vector<1x8x8xf32> to vector<8x8xf32>
    %cst_29 = arith.constant 0.000000e+00 : f32
    %39 = vector.broadcast %cst_29 : f32 to vector<8x1xf32>
    %40 = vector.extract_strided_slice %24 {offsets = [0, 0], sizes = [8, 255], strides = [1, 1]} : vector<8x256xf32> to vector<8x255xf32>
    %41 = tpu.concatenate %39, %40 in 1 : vector<8x1xf32>, vector<8x255xf32> -> vector<8x256xf32>
    %cst_30 = arith.constant 0.000000e+00 : f32
    %42 = vector.shape_cast %36 : vector<1x256xi1> to vector<1x256xi1>
    %43 = vector.broadcast %42 : vector<1x256xi1> to vector<8x256xi1>
    %44 = vector.broadcast %cst_30 : f32 to vector<8x256xf32>
    %45 = arith.select %43, %41, %44 : vector<8x256xi1>, vector<8x256xf32>
    %cst_31 = arith.constant dense<0.000000e+00> : vector<8x256xf32>
    %46 = tpu.matmul %38, %45, %cst_31 {dimension_numbers = #tpu.dot_dimension_numbers<[1], [0], [0], [1], [0, 0, 1, 1], [], []>, precision = #tpu.contract_precision<fp32>} : vector<8x8xf32>, vector<8x256xf32>, vector<8x256xf32> -> vector<8x256xf32>
    %47 = arith.addf %27, %46 : vector<8x256xf32>
    %cst_32 = arith.constant 1.000000e+00 : f32
    %48 = vector.broadcast %cst_32 : f32 to vector<1x256xf32>
    %49 = arith.addf %2, %48 : vector<1x256xf32>
    %cst_33 = arith.constant 0.000000e+00 : f32
    %50 = vector.broadcast %cst_33 : f32 to vector<1x256xf32>
    %51 = arith.cmpf oge, %49, %50 : vector<1x256xf32>
    %cst_34 = arith.constant 1.000000e+00 : f32
    %52 = vector.broadcast %cst_34 : f32 to vector<1x256xf32>
    %53 = arith.addf %2, %52 : vector<1x256xf32>
    %cst_35 = arith.constant 1.500000e+01 : f32
    %54 = vector.broadcast %cst_35 : f32 to vector<1x256xf32>
    %55 = arith.cmpf ole, %53, %54 : vector<1x256xf32>
    %56 = arith.andi %51, %55 : vector<1x256xi1>
    %c2_36 = arith.constant 2 : index
    %c0_37 = arith.constant 0 : index
    %c0_38 = arith.constant 0 : index
    %57 = vector.load %arg5[%c2_36, %c0_37, %c0_38] : memref<3x8x8xf32, #tpu.memory_space<vmem>>, vector<1x8x8xf32>
    %58 = vector.shape_cast %57 : vector<1x8x8xf32> to vector<8x8xf32>
    %cst_39 = arith.constant 0.000000e+00 : f32
    %59 = vector.broadcast %cst_39 : f32 to vector<8x1xf32>
    %60 = vector.extract_strided_slice %24 {offsets = [0, 1], sizes = [8, 255], strides = [1, 1]} : vector<8x256xf32> to vector<8x255xf32>
    %61 = tpu.concatenate %60, %59 in 1 : vector<8x255xf32>, vector<8x1xf32> -> vector<8x256xf32>
    %cst_40 = arith.constant 0.000000e+00 : f32
    %62 = vector.shape_cast %56 : vector<1x256xi1> to vector<1x256xi1>
    %63 = vector.broadcast %62 : vector<1x256xi1> to vector<8x256xi1>
    %64 = vector.broadcast %cst_40 : f32 to vector<8x256xf32>
    %65 = arith.select %63, %61, %64 : vector<8x256xi1>, vector<8x256xf32>
    %cst_41 = arith.constant dense<0.000000e+00> : vector<8x256xf32>
    %66 = tpu.matmul %58, %65, %cst_41 {dimension_numbers = #tpu.dot_dimension_numbers<[1], [0], [0], [1], [0, 0, 1, 1], [], []>, precision = #tpu.contract_precision<fp32>} : vector<8x8xf32>, vector<8x256xf32>, vector<8x256xf32> -> vector<8x256xf32>
    %67 = arith.addf %47, %66 : vector<8x256xf32>
    %c0_42 = arith.constant 0 : index
    %c0_43 = arith.constant 0 : index
    %68 = vector.load %arg6[%c0_42, %c0_43] : memref<8x1xf32, #tpu.memory_space<vmem>>, vector<8x1xf32>
    %69 = vector.broadcast %68 : vector<8x1xf32> to vector<8x256xf32>
    %70 = arith.mulf %67, %69 : vector<8x256xf32>
    %c0_44 = arith.constant 0 : index
    %c0_45 = arith.constant 0 : index
    %71 = vector.load %arg7[%c0_44, %c0_45] : memref<8x1xf32, #tpu.memory_space<vmem>>, vector<8x1xf32>
    %72 = vector.broadcast %71 : vector<8x1xf32> to vector<8x256xf32>
    %73 = arith.addf %70, %72 : vector<8x256xf32>
    %cst_46 = arith.constant 0.000000e+00 : f32
    %74 = vector.broadcast %cst_46 : f32 to vector<8x256xf32>
    %75 = arith.maximumf %73, %74 : vector<8x256xf32>
    %c1_47 = arith.constant 1 : index
    %c0_48 = arith.constant 0 : index
    %c0_49 = arith.constant 0 : index
    %76 = vector.load %arg8[%c1_47, %c0_48, %c0_49] : memref<3x8x8xf32, #tpu.memory_space<vmem>>, vector<1x8x8xf32>
    %77 = vector.shape_cast %76 : vector<1x8x8xf32> to vector<8x8xf32>
    %cst_50 = arith.constant dense<0.000000e+00> : vector<8x256xf32>
    %78 = tpu.matmul %77, %75, %cst_50 {dimension_numbers = #tpu.dot_dimension_numbers<[1], [0], [0], [1], [0, 0, 1, 1], [], []>, precision = #tpu.contract_precision<fp32>} : vector<8x8xf32>, vector<8x256xf32>, vector<8x256xf32> -> vector<8x256xf32>
    %c0_51 = arith.constant 0 : index
    %c0_52 = arith.constant 0 : index
    %c0_53 = arith.constant 0 : index
    %79 = vector.load %arg8[%c0_51, %c0_52, %c0_53] : memref<3x8x8xf32, #tpu.memory_space<vmem>>, vector<1x8x8xf32>
    %80 = vector.shape_cast %79 : vector<1x8x8xf32> to vector<8x8xf32>
    %cst_54 = arith.constant 0.000000e+00 : f32
    %81 = vector.broadcast %cst_54 : f32 to vector<8x32xf32>
    %82 = vector.extract_strided_slice %75 {offsets = [0, 0], sizes = [8, 224], strides = [1, 1]} : vector<8x256xf32> to vector<8x224xf32>
    %83 = tpu.concatenate %81, %82 in 1 : vector<8x32xf32>, vector<8x224xf32> -> vector<8x256xf32>
    %cst_55 = arith.constant dense<0.000000e+00> : vector<8x256xf32>
    %84 = tpu.matmul %80, %83, %cst_55 {dimension_numbers = #tpu.dot_dimension_numbers<[1], [0], [0], [1], [0, 0, 1, 1], [], []>, precision = #tpu.contract_precision<fp32>} : vector<8x8xf32>, vector<8x256xf32>, vector<8x256xf32> -> vector<8x256xf32>
    %85 = arith.addf %78, %84 : vector<8x256xf32>
    %c2_56 = arith.constant 2 : index
    %c0_57 = arith.constant 0 : index
    %c0_58 = arith.constant 0 : index
    %86 = vector.load %arg8[%c2_56, %c0_57, %c0_58] : memref<3x8x8xf32, #tpu.memory_space<vmem>>, vector<1x8x8xf32>
    %87 = vector.shape_cast %86 : vector<1x8x8xf32> to vector<8x8xf32>
    %cst_59 = arith.constant 0.000000e+00 : f32
    %88 = vector.broadcast %cst_59 : f32 to vector<8x32xf32>
    %89 = vector.extract_strided_slice %75 {offsets = [0, 32], sizes = [8, 224], strides = [1, 1]} : vector<8x256xf32> to vector<8x224xf32>
    %90 = tpu.concatenate %89, %88 in 1 : vector<8x224xf32>, vector<8x32xf32> -> vector<8x256xf32>
    %cst_60 = arith.constant dense<0.000000e+00> : vector<8x256xf32>
    %91 = tpu.matmul %87, %90, %cst_60 {dimension_numbers = #tpu.dot_dimension_numbers<[1], [0], [0], [1], [0, 0, 1, 1], [], []>, precision = #tpu.contract_precision<fp32>} : vector<8x8xf32>, vector<8x256xf32>, vector<8x256xf32> -> vector<8x256xf32>
    %92 = arith.addf %85, %91 : vector<8x256xf32>
    %c0_61 = arith.constant 0 : index
    %c0_62 = arith.constant 0 : index
    %93 = vector.load %arg9[%c0_61, %c0_62] : memref<8x1xf32, #tpu.memory_space<vmem>>, vector<8x1xf32>
    %94 = vector.broadcast %93 : vector<8x1xf32> to vector<8x256xf32>
    %95 = arith.addf %92, %94 : vector<8x256xf32>
    %cst_63 = arith.constant 0.000000e+00 : f32
    %96 = vector.broadcast %cst_63 : f32 to vector<8x256xf32>
    %97 = arith.maximumf %95, %96 : vector<8x256xf32>
    %c1_64 = arith.constant 1 : index
    %c0_65 = arith.constant 0 : index
    %c0_66 = arith.constant 0 : index
    %98 = vector.load %arg10[%c1_64, %c0_65, %c0_66] : memref<3x8x8xf32, #tpu.memory_space<vmem>>, vector<1x8x8xf32>
    %99 = vector.shape_cast %98 : vector<1x8x8xf32> to vector<8x8xf32>
    %cst_67 = arith.constant dense<0.000000e+00> : vector<8x256xf32>
    %100 = tpu.matmul %99, %97, %cst_67 {dimension_numbers = #tpu.dot_dimension_numbers<[1], [0], [0], [1], [0, 0, 1, 1], [], []>, precision = #tpu.contract_precision<fp32>} : vector<8x8xf32>, vector<8x256xf32>, vector<8x256xf32> -> vector<8x256xf32>
    %cst_68 = arith.constant -2.000000e+00 : f32
    %101 = vector.broadcast %cst_68 : f32 to vector<1x256xf32>
    %102 = arith.addf %2, %101 : vector<1x256xf32>
    %cst_69 = arith.constant 0.000000e+00 : f32
    %103 = vector.broadcast %cst_69 : f32 to vector<1x256xf32>
    %104 = arith.cmpf oge, %102, %103 : vector<1x256xf32>
    %cst_70 = arith.constant -2.000000e+00 : f32
    %105 = vector.broadcast %cst_70 : f32 to vector<1x256xf32>
    %106 = arith.addf %2, %105 : vector<1x256xf32>
    %cst_71 = arith.constant 1.500000e+01 : f32
    %107 = vector.broadcast %cst_71 : f32 to vector<1x256xf32>
    %108 = arith.cmpf ole, %106, %107 : vector<1x256xf32>
    %109 = arith.andi %104, %108 : vector<1x256xi1>
    %c0_72 = arith.constant 0 : index
    %c0_73 = arith.constant 0 : index
    %c0_74 = arith.constant 0 : index
    %110 = vector.load %arg10[%c0_72, %c0_73, %c0_74] : memref<3x8x8xf32, #tpu.memory_space<vmem>>, vector<1x8x8xf32>
    %111 = vector.shape_cast %110 : vector<1x8x8xf32> to vector<8x8xf32>
    %cst_75 = arith.constant 0.000000e+00 : f32
    %112 = vector.broadcast %cst_75 : f32 to vector<8x2xf32>
    %113 = vector.extract_strided_slice %97 {offsets = [0, 0], sizes = [8, 254], strides = [1, 1]} : vector<8x256xf32> to vector<8x254xf32>
    %114 = tpu.concatenate %112, %113 in 1 : vector<8x2xf32>, vector<8x254xf32> -> vector<8x256xf32>
    %cst_76 = arith.constant 0.000000e+00 : f32
    %115 = vector.shape_cast %109 : vector<1x256xi1> to vector<1x256xi1>
    %116 = vector.broadcast %115 : vector<1x256xi1> to vector<8x256xi1>
    %117 = vector.broadcast %cst_76 : f32 to vector<8x256xf32>
    %118 = arith.select %116, %114, %117 : vector<8x256xi1>, vector<8x256xf32>
    %cst_77 = arith.constant dense<0.000000e+00> : vector<8x256xf32>
    %119 = tpu.matmul %111, %118, %cst_77 {dimension_numbers = #tpu.dot_dimension_numbers<[1], [0], [0], [1], [0, 0, 1, 1], [], []>, precision = #tpu.contract_precision<fp32>} : vector<8x8xf32>, vector<8x256xf32>, vector<8x256xf32> -> vector<8x256xf32>
    %120 = arith.addf %100, %119 : vector<8x256xf32>
    %cst_78 = arith.constant 2.000000e+00 : f32
    %121 = vector.broadcast %cst_78 : f32 to vector<1x256xf32>
    %122 = arith.addf %2, %121 : vector<1x256xf32>
    %cst_79 = arith.constant 0.000000e+00 : f32
    %123 = vector.broadcast %cst_79 : f32 to vector<1x256xf32>
    %124 = arith.cmpf oge, %122, %123 : vector<1x256xf32>
    %cst_80 = arith.constant 2.000000e+00 : f32
    %125 = vector.broadcast %cst_80 : f32 to vector<1x256xf32>
    %126 = arith.addf %2, %125 : vector<1x256xf32>
    %cst_81 = arith.constant 1.500000e+01 : f32
    %127 = vector.broadcast %cst_81 : f32 to vector<1x256xf32>
    %128 = arith.cmpf ole, %126, %127 : vector<1x256xf32>
    %129 = arith.andi %124, %128 : vector<1x256xi1>
    %c2_82 = arith.constant 2 : index
    %c0_83 = arith.constant 0 : index
    %c0_84 = arith.constant 0 : index
    %130 = vector.load %arg10[%c2_82, %c0_83, %c0_84] : memref<3x8x8xf32, #tpu.memory_space<vmem>>, vector<1x8x8xf32>
    %131 = vector.shape_cast %130 : vector<1x8x8xf32> to vector<8x8xf32>
    %cst_85 = arith.constant 0.000000e+00 : f32
    %132 = vector.broadcast %cst_85 : f32 to vector<8x2xf32>
    %133 = vector.extract_strided_slice %97 {offsets = [0, 2], sizes = [8, 254], strides = [1, 1]} : vector<8x256xf32> to vector<8x254xf32>
    %134 = tpu.concatenate %133, %132 in 1 : vector<8x254xf32>, vector<8x2xf32> -> vector<8x256xf32>
    %cst_86 = arith.constant 0.000000e+00 : f32
    %135 = vector.shape_cast %129 : vector<1x256xi1> to vector<1x256xi1>
    %136 = vector.broadcast %135 : vector<1x256xi1> to vector<8x256xi1>
    %137 = vector.broadcast %cst_86 : f32 to vector<8x256xf32>
    %138 = arith.select %136, %134, %137 : vector<8x256xi1>, vector<8x256xf32>
    %cst_87 = arith.constant dense<0.000000e+00> : vector<8x256xf32>
    %139 = tpu.matmul %131, %138, %cst_87 {dimension_numbers = #tpu.dot_dimension_numbers<[1], [0], [0], [1], [0, 0, 1, 1], [], []>, precision = #tpu.contract_precision<fp32>} : vector<8x8xf32>, vector<8x256xf32>, vector<8x256xf32> -> vector<8x256xf32>
    %140 = arith.addf %120, %139 : vector<8x256xf32>
    %c0_88 = arith.constant 0 : index
    %c0_89 = arith.constant 0 : index
    %141 = vector.load %arg11[%c0_88, %c0_89] : memref<8x1xf32, #tpu.memory_space<vmem>>, vector<8x1xf32>
    %142 = vector.broadcast %141 : vector<8x1xf32> to vector<8x256xf32>
    %143 = arith.mulf %140, %142 : vector<8x256xf32>
    %c0_90 = arith.constant 0 : index
    %c0_91 = arith.constant 0 : index
    %144 = vector.load %arg12[%c0_90, %c0_91] : memref<8x1xf32, #tpu.memory_space<vmem>>, vector<8x1xf32>
    %145 = vector.broadcast %144 : vector<8x1xf32> to vector<8x256xf32>
    %146 = arith.addf %143, %145 : vector<8x256xf32>
    %147 = arith.addf %146, %1 : vector<8x256xf32>
    %cst_92 = arith.constant 0.000000e+00 : f32
    %148 = vector.broadcast %cst_92 : f32 to vector<8x256xf32>
    %149 = arith.maximumf %147, %148 : vector<8x256xf32>
    %c0_93 = arith.constant 0 : index
    %c0_94 = arith.constant 0 : index
    %c0_95 = arith.constant 0 : index
    %150 = vector.load %arg13[%c0_93, %c0_94, %c0_95] : memref<1x8x256xf32, #tpu.memory_space<vmem>>, vector<1x8x256xf32>
    %151 = vector.shape_cast %150 : vector<1x8x256xf32> to vector<8x256xf32>
    %152 = vector.shape_cast %149 : vector<8x256xf32> to vector<1x8x256xf32>
    tpu.vector_store %arg13[%c0_93, %c0_94, %c0_95], %152 {strides = array<i32>} : memref<1x8x256xf32, #tpu.memory_space<vmem>>, vector<1x8x256xf32>,
    return
  }
  func.func @transform_0(%arg0: i32) -> (i32, i32, i32) {
    %c0_i32 = arith.constant 0 : i32
    %c0_i32_0 = arith.constant 0 : i32
    %c0_i32_1 = arith.constant 0 : i32
    return %arg0, %c0_i32, %c0_i32_0 : i32, i32, i32
  }
  func.func @transform_1(%arg0: i32) -> (i32, i32) {
    %c0_i32 = arith.constant 0 : i32
    %c0_i32_0 = arith.constant 0 : i32
    %c0_i32_1 = arith.constant 0 : i32
    return %c0_i32, %c0_i32_0 : i32, i32
  }
  func.func @transform_2(%arg0: i32) -> (i32, i32, i32) {
    %c0_i32 = arith.constant 0 : i32
    %c0_i32_0 = arith.constant 0 : i32
    %c0_i32_1 = arith.constant 0 : i32
    %c0_i32_2 = arith.constant 0 : i32
    return %c0_i32, %c0_i32_0, %c0_i32_1 : i32, i32, i32
  }
  func.func @transform_3(%arg0: i32) -> (i32, i32) {
    %c0_i32 = arith.constant 0 : i32
    %c0_i32_0 = arith.constant 0 : i32
    %c0_i32_1 = arith.constant 0 : i32
    return %c0_i32, %c0_i32_0 : i32, i32
  }
  func.func @transform_4(%arg0: i32) -> (i32, i32, i32) {
    %c0_i32 = arith.constant 0 : i32
    %c0_i32_0 = arith.constant 0 : i32
    %c0_i32_1 = arith.constant 0 : i32
    %c0_i32_2 = arith.constant 0 : i32
    return %c0_i32, %c0_i32_0, %c0_i32_1 : i32, i32, i32
  }
  func.func @transform_5(%arg0: i32) -> (i32, i32) {
    %c0_i32 = arith.constant 0 : i32
    %c0_i32_0 = arith.constant 0 : i32
    %c0_i32_1 = arith.constant 0 : i32
    return %c0_i32, %c0_i32_0 : i32, i32
  }
  func.func @transform_6(%arg0: i32) -> (i32, i32) {
    %c0_i32 = arith.constant 0 : i32
    %c0_i32_0 = arith.constant 0 : i32
    %c0_i32_1 = arith.constant 0 : i32
    return %c0_i32, %c0_i32_0 : i32, i32
  }
  func.func @transform_7(%arg0: i32) -> (i32, i32, i32) {
    %c0_i32 = arith.constant 0 : i32
    %c0_i32_0 = arith.constant 0 : i32
    %c0_i32_1 = arith.constant 0 : i32
    %c0_i32_2 = arith.constant 0 : i32
    return %c0_i32, %c0_i32_0, %c0_i32_1 : i32, i32, i32
  }
  func.func @transform_8(%arg0: i32) -> (i32, i32) {
    %c0_i32 = arith.constant 0 : i32
    %c0_i32_0 = arith.constant 0 : i32
    %c0_i32_1 = arith.constant 0 : i32
    return %c0_i32, %c0_i32_0 : i32, i32
  }
  func.func @transform_9(%arg0: i32) -> (i32, i32, i32) {
    %c0_i32 = arith.constant 0 : i32
    %c0_i32_0 = arith.constant 0 : i32
    %c0_i32_1 = arith.constant 0 : i32
    %c0_i32_2 = arith.constant 0 : i32
    return %c0_i32, %c0_i32_0, %c0_i32_1 : i32, i32, i32
  }
  func.func @transform_10(%arg0: i32) -> (i32, i32) {
    %c0_i32 = arith.constant 0 : i32
    %c0_i32_0 = arith.constant 0 : i32
    %c0_i32_1 = arith.constant 0 : i32
    return %c0_i32, %c0_i32_0 : i32, i32
  }
  func.func @transform_11(%arg0: i32) -> (i32, i32) {
    %c0_i32 = arith.constant 0 : i32
    %c0_i32_0 = arith.constant 0 : i32
    %c0_i32_1 = arith.constant 0 : i32
    return %c0_i32, %c0_i32_0 : i32, i32
  }
  func.func @transform_12(%arg0: i32) -> (i32, i32, i32) {
    %c0_i32 = arith.constant 0 : i32
    %c0_i32_0 = arith.constant 0 : i32
    %c0_i32_1 = arith.constant 0 : i32
    return %arg0, %c0_i32, %c0_i32_0 : i32, i32, i32
  }
}

</mosaic_0001>

<llo_original>
// kernel: tpu_custom_call.1
$region0: #{tpu_custom_call.1}
  #allocation0 [shape = 'u32[]', space=smem, size = 0x4, offset = 0x4, fixed_abs, tag = 'smem constant byte address 0x4 - core index']
  #allocation1 [shape = 'u32[144,128]{1,0:T(1,128)}', space=vmem, size = 0x12000, scoped, tag = 'internal scratch']
  %s0 = inlined_call_operand.vmem [shape: f32[2,8,256], index: 0, kind: input, shape index: {}]
  %s1 = inlined_call_operand.hbm [shape: f32[1,256], index: 1, kind: input, shape index: {}]
  %s2 = inlined_call_operand.vmem [shape: f32[3,8,8], index: 2, kind: input, shape index: {}]
  %s3 = inlined_call_operand.vmem [shape: f32[8,1], index: 3, kind: input, shape index: {}]
  %s4 = inlined_call_operand.hbm [shape: f32[3,8,8], index: 4, kind: input, shape index: {}]
  %s5 = inlined_call_operand.vmem [shape: f32[8,1], index: 5, kind: input, shape index: {}]
  %s6 = inlined_call_operand.vmem [shape: f32[8,1], index: 6, kind: input, shape index: {}]
  %s7 = inlined_call_operand.hbm [shape: f32[3,8,8], index: 7, kind: input, shape index: {}]
  %s8 = inlined_call_operand.vmem [shape: f32[8,1], index: 8, kind: input, shape index: {}]
  %s9 = inlined_call_operand.hbm [shape: f32[3,8,8], index: 9, kind: input, shape index: {}]
  %s10 = inlined_call_operand.vmem [shape: f32[8,1], index: 10, kind: input, shape index: {}]
  %s11 = inlined_call_operand.vmem [shape: f32[8,1], index: 11, kind: input, shape index: {}]
  %s12 = inlined_call_operand.hbm [shape: f32[2,8,256], index: 12, kind: output, shape index: {}]
  %s13 = sld [smem:[#allocation0]]
  $region97: #{tpu_custom_call.1} parent=0
    _
  %s15 = ssub.s32 1, %s13
  %s16 = scalar_select 0, %s15, %s13
  $region1: #{tpu_custom_call.1} parent=0
    #allocation2 [shape = 'u8[1024]{0}', space=vmem, size = 0x400, scoped, tag = 'input window, operand 1, single buffered']
    #allocation3 [shape = 's32[2]{0}', space=sflag, size = 0x8, scoped, tag = 'scoped memory for tpu_custom_call.1']
    #allocation4 [shape = 's32[2]{0}', space=sflag, size = 0x8, scoped, tag = 'scoped memory for tpu_custom_call.1']
    #allocation5 [shape = 'u8[12288]{0}', space=vmem, size = 0x3000, scoped, tag = 'input window, operand 4, single buffered']
    #allocation6 [shape = 's32[1]{0}', space=sflag, size = 0x4, scoped, tag = 'scoped memory for tpu_custom_call.1']
    #allocation7 [shape = 'u8[12288]{0}', space=vmem, size = 0x3000, scoped, tag = 'input window, operand 7, single buffered']
    #allocation8 [shape = 'u8[12288]{0}', space=vmem, size = 0x3000, scoped, tag = 'input window, operand 9, single buffered']
    #allocation9 [shape = 's32[1]{0}', space=sflag, size = 0x4, scoped, tag = 'scoped memory for tpu_custom_call.1']
    #allocation10 [shape = 'u8[16384]{0}', space=vmem, size = 0x4000, scoped, tag = 'output window, operand 0']
    %17 = vsyncpa [#allocation3], 0
    %18 = vsyncpa [#allocation6], 0
    %19 = vsyncpa [#allocation9], 0
    %20 = vsyncpa [#allocation4], 0
    %s21 = scalar_lea.sflag [#allocation4], 1
    %22 = vsyncpa %s21, 0
    loop: start=0, step=1, limit=4
    $region2: #{tpu_custom_call.1} parent=1 // loop_pre_header
      _
    $region3: #{tpu_custom_call.1} parent=1 // loop_header
      %s24 = sphi 0, %s28
      %p25 = scmp.ge.s32.totalorder %s24, 4
      %s34 = sphi 0, %s36
      %s37 = sphi 0, %s34
      %s38 = sphi 0, %s37
      %s54 = sphi 0, %s38
      %s58 = sphi 0, %s58
      %s60 = sphi 0, %s58
      %s61 = sphi 0, %s60
      %s75 = sphi 0, %s61
      %s79 = sphi 0, %s79
      %s81 = sphi 0, %s79
      %s82 = sphi 0, %s81
      %s96 = sphi 0, %s82
      %s100 = sphi 0, %s100
      %s102 = sphi 0, %s100
      %s103 = sphi 0, %s102
      %s117 = sphi 0, %s103
      %s121 = sphi 0, %s121
      %s123 = sphi 0, %s121
      %s124 = sphi 0, %s123
      %s138 = sphi 0, %s124
      %s142 = sphi 0, %s142
      %s144 = sphi 0, %s142
      %s145 = sphi 0, %s144
      %s159 = sphi 0, %s145
      %s163 = sphi 0, %s163
      %s165 = sphi 0, %s163
      %s166 = sphi 0, %s165
      %s180 = sphi 0, %s166
      %s184 = sphi 0, %s184
      %s186 = sphi 0, %s184
      %s187 = sphi 0, %s186
      %s201 = sphi 0, %s187
      %s205 = sphi 0, %s205
      %s207 = sphi 0, %s205
      %s208 = sphi 0, %s207
      %s222 = sphi 0, %s208
      %s226 = sphi 0, %s226
      %s228 = sphi 0, %s226
      %s229 = sphi 0, %s228
      %s243 = sphi 0, %s229
      %s247 = sphi 0, %s247
      %s249 = sphi 0, %s247
      %s250 = sphi 0, %s249
      %s264 = sphi 0, %s250
      %s268 = sphi 0, %s268
      %s270 = sphi 0, %s268
      %s271 = sphi 0, %s270
      %s285 = sphi 0, %s271
      %s291 = sphi 0, %s293
      %s294 = sphi 0, %s291
      %s295 = sphi 0, %s294
      %s311 = sphi 0, %s295
    $region4: #{tpu_custom_call.1} parent=1 // loop_header_branch
      %27 = sbr.rel (%p25) target = $region8
    $region5: #{tpu_custom_call.1} parent=1 // loop_body
      %s29 = ssub.s32 %s24, 1
      %s30 = ssub.s32 %s24, 2
      %s31 = sadd.s32 %s24, 1
      %s32 = ssub.s32 %s24, %s31
      %p33 = scmp.eq.s32.totalorder %s32, 0
      %s35 = sadd.s32 %s34, 1
      %s36 = scalar_select %p33, %s34, %s35
      %p39 = pneg %p33
      %p40 = scmp.eq.s32.totalorder %s24, 1
      %p41 = por %p39, %p40
      %p42 = scmp.ne.s32.totalorder %s34, %s37
      %p43 = scmp.eq.s32.totalorder %s24, 0
      %p44 = por %p42, %p43
      %p45 = scmp.ne.s32.totalorder %s34, %s37
      %p46 = scmp.eq.s32.totalorder %s29, 1
      %p47 = por %p45, %p46
      %p48 = scmp.ne.s32.totalorder %s37, %s38
      %p49 = scmp.eq.s32.totalorder %s29, 0
      %p50 = por %p48, %p49
      %p51 = scmp.ne.s32.totalorder %s37, %s38
      %p52 = scmp.eq.s32.totalorder %s30, 1
      %p53 = por %p51, %p52
      %p55 = scmp.ne.s32.totalorder %s38, %s54
      %p56 = scmp.eq.s32.totalorder %s30, 0
      %p57 = por %p55, %p56
      %s59 = sadd.s32 %s58, 1
      %p62 = scmp.eq.s32.totalorder %s24, 1
      %p63 = scmp.ne.s32.totalorder %s58, %s60
      %p64 = scmp.eq.s32.totalorder %s24, 0
      %p65 = por %p63, %p64
      %p66 = scmp.ne.s32.totalorder %s58, %s60
      %p67 = scmp.eq.s32.totalorder %s29, 1
      %p68 = por %p66, %p67
      %p69 = scmp.ne.s32.totalorder %s60, %s61
      %p70 = scmp.eq.s32.totalorder %s29, 0
      %p71 = por %p69, %p70
      %p72 = scmp.ne.s32.totalorder %s60, %s61
      %p73 = scmp.eq.s32.totalorder %s30, 1
      %p74 = por %p72, %p73
      %p76 = scmp.ne.s32.totalorder %s61, %s75
      %p77 = scmp.eq.s32.totalorder %s30, 0
      %p78 = por %p76, %p77
      %s80 = sadd.s32 %s79, 1
      %p83 = scmp.eq.s32.totalorder %s24, 1
      %p84 = scmp.ne.s32.totalorder %s79, %s81
      %p85 = scmp.eq.s32.totalorder %s24, 0
      %p86 = por %p84, %p85
      %p87 = scmp.ne.s32.totalorder %s79, %s81
      %p88 = scmp.eq.s32.totalorder %s29, 1
      %p89 = por %p87, %p88
      %p90 = scmp.ne.s32.totalorder %s81, %s82
      %p91 = scmp.eq.s32.totalorder %s29, 0
      %p92 = por %p90, %p91
      %p93 = scmp.ne.s32.totalorder %s81, %s82
      %p94 = scmp.eq.s32.totalorder %s30, 1
      %p95 = por %p93, %p94
      %p97 = scmp.ne.s32.totalorder %s82, %s96
      %p98 = scmp.eq.s32.totalorder %s30, 0
      %p99 = por %p97, %p98
      %s101 = sadd.s32 %s100, 1
      %p104 = scmp.eq.s32.totalorder %s24, 1
      %p105 = scmp.ne.s32.totalorder %s100, %s102
      %p106 = scmp.eq.s32.totalorder %s24, 0
      %p107 = por %p105, %p106
      %p108 = scmp.ne.s32.totalorder %s100, %s102
      %p109 = scmp.eq.s32.totalorder %s29, 1
      %p110 = por %p108, %p109
      %p111 = scmp.ne.s32.totalorder %s102, %s103
      %p112 = scmp.eq.s32.totalorder %s29, 0
      %p113 = por %p111, %p112
      %p114 = scmp.ne.s32.totalorder %s102, %s103
      %p115 = scmp.eq.s32.totalorder %s30, 1
      %p116 = por %p114, %p115
      %p118 = scmp.ne.s32.totalorder %s103, %s117
      %p119 = scmp.eq.s32.totalorder %s30, 0
      %p120 = por %p118, %p119
      %s122 = sadd.s32 %s121, 1
      %p125 = scmp.eq.s32.totalorder %s24, 1
      %p126 = scmp.ne.s32.totalorder %s121, %s123
      %p127 = scmp.eq.s32.totalorder %s24, 0
      %p128 = por %p126, %p127
      %p129 = scmp.ne.s32.totalorder %s121, %s123
      %p130 = scmp.eq.s32.totalorder %s29, 1
      %p131 = por %p129, %p130
      %p132 = scmp.ne.s32.totalorder %s123, %s124
      %p133 = scmp.eq.s32.totalorder %s29, 0
      %p134 = por %p132, %p133
      %p135 = scmp.ne.s32.totalorder %s123, %s124
      %p136 = scmp.eq.s32.totalorder %s30, 1
      %p137 = por %p135, %p136
      %p139 = scmp.ne.s32.totalorder %s124, %s138
      %p140 = scmp.eq.s32.totalorder %s30, 0
      %p141 = por %p139, %p140
      %s143 = sadd.s32 %s142, 1
      %p146 = scmp.eq.s32.totalorder %s24, 1
      %p147 = scmp.ne.s32.totalorder %s142, %s144
      %p148 = scmp.eq.s32.totalorder %s24, 0
      %p149 = por %p147, %p148
      %p150 = scmp.ne.s32.totalorder %s142, %s144
      %p151 = scmp.eq.s32.totalorder %s29, 1
      %p152 = por %p150, %p151
      %p153 = scmp.ne.s32.totalorder %s144, %s145
      %p154 = scmp.eq.s32.totalorder %s29, 0
      %p155 = por %p153, %p154
      %p156 = scmp.ne.s32.totalorder %s144, %s145
      %p157 = scmp.eq.s32.totalorder %s30, 1
      %p158 = por %p156, %p157
      %p160 = scmp.ne.s32.totalorder %s145, %s159
      %p161 = scmp.eq.s32.totalorder %s30, 0
      %p162 = por %p160, %p161
      %s164 = sadd.s32 %s163, 1
      %p167 = scmp.eq.s32.totalorder %s24, 1
      %p168 = scmp.ne.s32.totalorder %s163, %s165
      %p169 = scmp.eq.s32.totalorder %s24, 0
      %p170 = por %p168, %p169
      %p171 = scmp.ne.s32.totalorder %s163, %s165
      %p172 = scmp.eq.s32.totalorder %s29, 1
      %p173 = por %p171, %p172
      %p174 = scmp.ne.s32.totalorder %s165, %s166
      %p175 = scmp.eq.s32.totalorder %s29, 0
      %p176 = por %p174, %p175
      %p177 = scmp.ne.s32.totalorder %s165, %s166
      %p178 = scmp.eq.s32.totalorder %s30, 1
      %p179 = por %p177, %p178
      %p181 = scmp.ne.s32.totalorder %s166, %s180
      %p182 = scmp.eq.s32.totalorder %s30, 0
      %p183 = por %p181, %p182
      %s185 = sadd.s32 %s184, 1
      %p188 = scmp.eq.s32.totalorder %s24, 1
      %p189 = scmp.ne.s32.totalorder %s184, %s186
      %p190 = scmp.eq.s32.totalorder %s24, 0
      %p191 = por %p189, %p190
      %p192 = scmp.ne.s32.totalorder %s184, %s186
      %p193 = scmp.eq.s32.totalorder %s29, 1
      %p194 = por %p192, %p193
      %p195 = scmp.ne.s32.totalorder %s186, %s187
      %p196 = scmp.eq.s32.totalorder %s29, 0
      %p197 = por %p195, %p196
      %p198 = scmp.ne.s32.totalorder %s186, %s187
      %p199 = scmp.eq.s32.totalorder %s30, 1
      %p200 = por %p198, %p199
      %p202 = scmp.ne.s32.totalorder %s187, %s201
      %p203 = scmp.eq.s32.totalorder %s30, 0
      %p204 = por %p202, %p203
      %s206 = sadd.s32 %s205, 1
      %p209 = scmp.eq.s32.totalorder %s24, 1
      %p210 = scmp.ne.s32.totalorder %s205, %s207
      %p211 = scmp.eq.s32.totalorder %s24, 0
      %p212 = por %p210, %p211
      %p213 = scmp.ne.s32.totalorder %s205, %s207
      %p214 = scmp.eq.s32.totalorder %s29, 1
      %p215 = por %p213, %p214
      %p216 = scmp.ne.s32.totalorder %s207, %s208
      %p217 = scmp.eq.s32.totalorder %s29, 0
      %p218 = por %p216, %p217
      %p219 = scmp.ne.s32.totalorder %s207, %s208
      %p220 = scmp.eq.s32.totalorder %s30, 1
      %p221 = por %p219, %p220
      %p223 = scmp.ne.s32.totalorder %s208, %s222
      %p224 = scmp.eq.s32.totalorder %s30, 0
      %p225 = por %p223, %p224
      %s227 = sadd.s32 %s226, 1
      %p230 = scmp.eq.s32.totalorder %s24, 1
      %p231 = scmp.ne.s32.totalorder %s226, %s228
      %p232 = scmp.eq.s32.totalorder %s24, 0
      %p233 = por %p231, %p232
      %p234 = scmp.ne.s32.totalorder %s226, %s228
      %p235 = scmp.eq.s32.totalorder %s29, 1
      %p236 = por %p234, %p235
      %p237 = scmp.ne.s32.totalorder %s228, %s229
      %p238 = scmp.eq.s32.totalorder %s29, 0
      %p239 = por %p237, %p238
      %p240 = scmp.ne.s32.totalorder %s228, %s229
      %p241 = scmp.eq.s32.totalorder %s30, 1
      %p242 = por %p240, %p241
      %p244 = scmp.ne.s32.totalorder %s229, %s243
      %p245 = scmp.eq.s32.totalorder %s30, 0
      %p246 = por %p244, %p245
      %s248 = sadd.s32 %s247, 1
      %p251 = scmp.eq.s32.totalorder %s24, 1
      %p252 = scmp.ne.s32.totalorder %s247, %s249
      %p253 = scmp.eq.s32.totalorder %s24, 0
      %p254 = por %p252, %p253
      %p255 = scmp.ne.s32.totalorder %s247, %s249
      %p256 = scmp.eq.s32.totalorder %s29, 1
      %p257 = por %p255, %p256
      %p258 = scmp.ne.s32.totalorder %s249, %s250
      %p259 = scmp.eq.s32.totalorder %s29, 0
      %p260 = por %p258, %p259
      %p261 = scmp.ne.s32.totalorder %s249, %s250
      %p262 = scmp.eq.s32.totalorder %s30, 1
      %p263 = por %p261, %p262
      %p265 = scmp.ne.s32.totalorder %s250, %s264
      %p266 = scmp.eq.s32.totalorder %s30, 0
      %p267 = por %p265, %p266
      %s269 = sadd.s32 %s268, 1
      %p272 = scmp.eq.s32.totalorder %s24, 1
      %p273 = scmp.ne.s32.totalorder %s268, %s270
      %p274 = scmp.eq.s32.totalorder %s24, 0
      %p275 = por %p273, %p274
      %p276 = scmp.ne.s32.totalorder %s268, %s270
      %p277 = scmp.eq.s32.totalorder %s29, 1
      %p278 = por %p276, %p277
      %p279 = scmp.ne.s32.totalorder %s270, %s271
      %p280 = scmp.eq.s32.totalorder %s29, 0
      %p281 = por %p279, %p280
      %p282 = scmp.ne.s32.totalorder %s270, %s271
      %p283 = scmp.eq.s32.totalorder %s30, 1
      %p284 = por %p282, %p283
      %p286 = scmp.ne.s32.totalorder %s271, %s285
      %p287 = scmp.eq.s32.totalorder %s30, 0
      %p288 = por %p286, %p287
      %s289 = ssub.s32 %s24, %s31
      %p290 = scmp.eq.s32.totalorder %s289, 0
      %s292 = sadd.s32 %s291, 1
      %s293 = scalar_select %p290, %s291, %s292
      %p296 = pneg %p290
      %p297 = scmp.eq.s32.totalorder %s24, 1
      %p298 = por %p296, %p297
      %p299 = scmp.ne.s32.totalorder %s291, %s294
      %p300 = scmp.eq.s32.totalorder %s24, 0
      %p301 = por %p299, %p300
      %p302 = scmp.ne.s32.totalorder %s291, %s294
      %p303 = scmp.eq.s32.totalorder %s29, 1
      %p304 = por %p302, %p303
      %p305 = scmp.ne.s32.totalorder %s294, %s295
      %p306 = scmp.eq.s32.totalorder %s29, 0
      %p307 = por %p305, %p306
      %p308 = scmp.ne.s32.totalorder %s294, %s295
      %p309 = scmp.eq.s32.totalorder %s30, 1
      %p310 = por %p308, %p309
      %p312 = scmp.ne.s32.totalorder %s295, %s311
      %p313 = scmp.eq.s32.totalorder %s30, 0
      %p314 = por %p312, %p313
      %p315 = scmp.le.s32.totalorder 1, %s24
      %p316 = scmp.lt.s32.totalorder %s24, 3
      %p317 = pnand %p315, %p316
      %p318 = pneg %p317
      // Predicated region
      $region9: #{tpu_custom_call.1} parent=5 // pred_check
        _
      $region10: #{tpu_custom_call.1} parent=5 // pred_check_branch
        %320 = sbr.rel (%p317) target = $region12
      $region11: #{tpu_custom_call.1} parent=5 // pred_region
        %s321 = ssub.s32 %s24, 1
        // Predicated region
        $region13: #{tpu_custom_call.1} parent=11 // pred_check
          %p322 = pneg %p71
        $region14: #{tpu_custom_call.1} parent=11 // pred_check_branch
          %324 = sbr.rel (%p322) target = $region16
        $region15: #{tpu_custom_call.1} parent=11 // pred_region
          %s326 = ssub.s32 32, 32
          %327 = vsyncadd [#allocation3], %s326
          %s329 = sshll.u32 [#allocation2], 4
          %s330 = int_to_ptr.vmem [resolvable:$true] %s329
          %332 = dma.hbm_to_vmem [thread:$0]  %s1, 32, %s330, [#allocation3]
        $region16: #{tpu_custom_call.1} parent=11 // pred_fallthru
          _
        // Predicated region
        $region17: #{tpu_custom_call.1} parent=11 // pred_check
          %p333 = pneg %p92
        $region18: #{tpu_custom_call.1} parent=11 // pred_check_branch
          %335 = sbr.rel (%p333) target = $region20
        $region19: #{tpu_custom_call.1} parent=11 // pred_region
          _
        $region20: #{tpu_custom_call.1} parent=11 // pred_fallthru
          _
        // Predicated region
        $region21: #{tpu_custom_call.1} parent=11 // pred_check
          %p336 = pneg %p113
        $region22: #{tpu_custom_call.1} parent=11 // pred_check_branch
          %338 = sbr.rel (%p336) target = $region24
        $region23: #{tpu_custom_call.1} parent=11 // pred_region
          _
        $region24: #{tpu_custom_call.1} parent=11 // pred_fallthru
          _
        // Predicated region
        $region25: #{tpu_custom_call.1} parent=11 // pred_check
          %p339 = pneg %p134
        $region26: #{tpu_custom_call.1} parent=11 // pred_check_branch
          %341 = sbr.rel (%p339) target = $region28
        $region27: #{tpu_custom_call.1} parent=11 // pred_region
          %s343 = ssub.s32 384, 384
          %344 = vsyncadd [#allocation6], %s343
          %s345 = sshll.u32 [#allocation5], 4
          %s346 = int_to_ptr.vmem [resolvable:$true] %s345
          %351 = dma.hbm_to_vmem [thread:$0]  %s4, 384, %s346, [#allocation6], 128, 128, 8
        $region28: #{tpu_custom_call.1} parent=11 // pred_fallthru
          _
        // Predicated region
        $region29: #{tpu_custom_call.1} parent=11 // pred_check
          %p352 = pneg %p155
        $region30: #{tpu_custom_call.1} parent=11 // pred_check_branch
          %354 = sbr.rel (%p352) target = $region32
        $region31: #{tpu_custom_call.1} parent=11 // pred_region
          _
        $region32: #{tpu_custom_call.1} parent=11 // pred_fallthru
          _
        // Predicated region
        $region33: #{tpu_custom_call.1} parent=11 // pred_check
          %p355 = pneg %p176
        $region34: #{tpu_custom_call.1} parent=11 // pred_check_branch
          %357 = sbr.rel (%p355) target = $region36
        $region35: #{tpu_custom_call.1} parent=11 // pred_region
          _
        $region36: #{tpu_custom_call.1} parent=11 // pred_fallthru
          _
        // Predicated region
        $region37: #{tpu_custom_call.1} parent=11 // pred_check
          %p358 = pneg %p197
        $region38: #{tpu_custom_call.1} parent=11 // pred_check_branch
          %360 = sbr.rel (%p358) target = $region40
        $region39: #{tpu_custom_call.1} parent=11 // pred_region
          %s362 = ssub.s32 384, 384
          %363 = vsyncadd [#allocation6], %s362
          %s364 = sshll.u32 [#allocation7], 4
          %s365 = int_to_ptr.vmem [resolvable:$true] %s364
          %370 = dma.hbm_to_vmem [thread:$0]  %s7, 384, %s365, [#allocation6], 128, 128, 8
        $region40: #{tpu_custom_call.1} parent=11 // pred_fallthru
          _
        // Predicated region
        $region41: #{tpu_custom_call.1} parent=11 // pred_check
          %p371 = pneg %p218
        $region42: #{tpu_custom_call.1} parent=11 // pred_check_branch
          %373 = sbr.rel (%p371) target = $region44
        $region43: #{tpu_custom_call.1} parent=11 // pred_region
          _
        $region44: #{tpu_custom_call.1} parent=11 // pred_fallthru
          _
        // Predicated region
        $region45: #{tpu_custom_call.1} parent=11 // pred_check
          %p374 = pneg %p239
        $region46: #{tpu_custom_call.1} parent=11 // pred_check_branch
          %376 = sbr.rel (%p374) target = $region48
        $region47: #{tpu_custom_call.1} parent=11 // pred_region
          %s378 = ssub.s32 384, 384
          %379 = vsyncadd [#allocation9], %s378
          %s380 = sshll.u32 [#allocation8], 4
          %s381 = int_to_ptr.vmem [resolvable:$true] %s380
          %386 = dma.hbm_to_vmem [thread:$0]  %s9, 384, %s381, [#allocation9], 128, 128, 8
        $region48: #{tpu_custom_call.1} parent=11 // pred_fallthru
          _
        // Predicated region
        $region49: #{tpu_custom_call.1} parent=11 // pred_check
          %p387 = pneg %p260
        $region50: #{tpu_custom_call.1} parent=11 // pred_check_branch
          %389 = sbr.rel (%p387) target = $region52
        $region51: #{tpu_custom_call.1} parent=11 // pred_region
          _
        $region52: #{tpu_custom_call.1} parent=11 // pred_fallthru
          _
        // Predicated region
        $region53: #{tpu_custom_call.1} parent=11 // pred_check
          %p390 = pneg %p281
        $region54: #{tpu_custom_call.1} parent=11 // pred_check_branch
          %392 = sbr.rel (%p390) target = $region56
        $region55: #{tpu_custom_call.1} parent=11 // pred_region
          _
        $region56: #{tpu_custom_call.1} parent=11 // pred_fallthru
          _
      $region12: #{tpu_custom_call.1} parent=5 // pred_fallthru
        _
      %p393 = scmp.lt.s32.totalorder %s24, 2
      // Predicated region
      $region57: #{tpu_custom_call.1} parent=5 // pred_check
        %p394 = pneg %p393
      $region58: #{tpu_custom_call.1} parent=5 // pred_check_branch
        %396 = sbr.rel (%p394) target = $region60
      $region59: #{tpu_custom_call.1} parent=5 // pred_region
        // Predicated region
        $region61: #{tpu_custom_call.1} parent=59 // pred_check
          %p397 = pneg %p44
        $region62: #{tpu_custom_call.1} parent=59 // pred_check_branch
          %399 = sbr.rel (%p397) target = $region64
        $region63: #{tpu_custom_call.1} parent=59 // pred_region
          %p400 = scmp.lt.s32.totalorder %s24, 1
          %s401 = scalar_select %p400, %s24, 1
          %s402 = smul.addr %s401, 2
          %s403 = smul.addr %s402, 8
          %s404 = scalar_lea.vmem %s0, %s403
        $region64: #{tpu_custom_call.1} parent=59 // pred_fallthru
          _
      $region60: #{tpu_custom_call.1} parent=5 // pred_fallthru
        _
      %p405 = scmp.le.s32.totalorder 1, %s24
      %p406 = scmp.lt.s32.totalorder %s24, 3
      %p407 = pnand %p405, %p406
      %p408 = pneg %p407
      // Predicated region
      $region65: #{tpu_custom_call.1} parent=5 // pred_check
        _
      $region66: #{tpu_custom_call.1} parent=5 // pred_check_branch
        %410 = sbr.rel (%p407) target = $region68
      $region67: #{tpu_custom_call.1} parent=5 // pred_region
        %s411 = ssub.s32 %s24, 1
        // Predicated region
        $region69: #{tpu_custom_call.1} parent=67 // pred_check
          %p412 = pneg %p71
        $region70: #{tpu_custom_call.1} parent=67 // pred_check_branch
          %414 = sbr.rel (%p412) target = $region72
        $region71: #{tpu_custom_call.1} parent=67 // pred_region
          %415 = dma.done [#allocation3], 32
        $region72: #{tpu_custom_call.1} parent=67 // pred_fallthru
          _
        // Predicated region
        $region73: #{tpu_custom_call.1} parent=67 // pred_check
          %p416 = pneg %p134
        $region74: #{tpu_custom_call.1} parent=67 // pred_check_branch
          %418 = sbr.rel (%p416) target = $region76
        $region75: #{tpu_custom_call.1} parent=67 // pred_region
          %419 = dma.done [#allocation6], 384
        $region76: #{tpu_custom_call.1} parent=67 // pred_fallthru
          _
        // Predicated region
        $region77: #{tpu_custom_call.1} parent=67 // pred_check
          %p420 = pneg %p197
        $region78: #{tpu_custom_call.1} parent=67 // pred_check_branch
          %422 = sbr.rel (%p420) target = $region80
        $region79: #{tpu_custom_call.1} parent=67 // pred_region
          %423 = dma.done [#allocation6], 384
        $region80: #{tpu_custom_call.1} parent=67 // pred_fallthru
          _
        // Predicated region
        $region81: #{tpu_custom_call.1} parent=67 // pred_check
          %p424 = pneg %p239
        $region82: #{tpu_custom_call.1} parent=67 // pred_check_branch
          %426 = sbr.rel (%p424) target = $region84
        $region83: #{tpu_custom_call.1} parent=67 // pred_region
          %427 = dma.done [#allocation9], 384
        $region84: #{tpu_custom_call.1} parent=67 // pred_fallthru
          _
        %p428 = scmp.lt.s32.totalorder %s29, 1
        %s429 = scalar_select %p428, %s29, 1
        %s430 = smul.addr %s429, 2
        %s431 = smul.addr %s430, 8
        %s432 = scalar_lea.vmem %s0, %s431
        %p433 = pneg %p50
        %p434 = pneg %p47
        %p435 = pneg %p71
        %p436 = pneg %p68
        %p437 = pneg %p92
        %p438 = pneg %p89
        %p439 = pneg %p113
        %p440 = pneg %p110
        %p441 = pneg %p134
        %p442 = pneg %p131
        %p443 = pneg %p155
        %p444 = pneg %p152
        %p445 = pneg %p176
        %p446 = pneg %p173
        %p447 = pneg %p197
        %p448 = pneg %p194
        %p449 = pneg %p218
        %p450 = pneg %p215
        %p451 = pneg %p239
        %p452 = pneg %p236
        %p453 = pneg %p260
        %p454 = pneg %p257
        %p455 = pneg %p281
        %p456 = pneg %p278
        %p457 = pneg %p307
        %p458 = pneg %p304
        %s459 = sand.u32 %s294, 1
        %s460 = scalar_lea.sflag [#allocation4], %s459
        %s461 = sand.u32 %s294, 1
        %s462 = smul.addr %s461, 16
        %s463 = scalar_lea.vmem [#allocation10], %s462
        %p464 = scmp.lt.s32.totalorder %s29, 1
        %s465 = scalar_select %p464, %s29, 1
        %s466 = smul.addr %s465, 2
        %s467 = smul.addr %s466, 8
        %s468 = scalar_lea.vmem %s0, %s467
        %v469 = vld [vmem:[%s468] sm:$0xff]
        %v470 = vld [vmem:[%s468 + $0x8] sm:$0xff]
        %v471 = vld [vmem:[#allocation2] sm:$0x3]
        %s472 = scalar_lea.vmem %s2, 8
        %v473 = vld [vmem:[%s472] sm:$0xff]
        %v474 = vld [vmem:[%s2] sm:$0xff]
        %477 = vrot.lane.b32.xlu0 %v469, 16
        %v478 = vpop.permute.xlu0 %477
        %479 = vrot.lane.b32.xlu0 %v470, 16
        %v480 = vpop.permute.xlu0 %479
        %vm481 = vcmask 130048
        %v482 = vsel %vm481, %v478, %v480
        %v485 = vsel %vm481, 0.0, %v478
        %vm486 = vcmask 64512
        %v488 = vsel %vm486, %v474, 0
        %490 = vmatprep.subr.mxu0 0.0
        %491 = vmatpush1.msra.mxu0 0.0
        %492 = vmatprep.subr.mxu0 0.0
        %493 = vmatpush1.msra.mxu0 0.0
        %494 = vmatprep.subr.mxu0 0.0
        %495 = vmatpush1.msra.mxu0 0.0
        %496 = vmatprep.subr.mxu0 0.0
        %497 = vmatpush1.msra.mxu0 0.0
        %498 = vmatprep.subr.mxu0 0.0
        %499 = vmatpush1.msra.mxu0 0.0
        %500 = vmatprep.subr.mxu0 0.0
        %501 = vmatpush1.msra.mxu0 0.0
        %502 = vmatprep.subr.mxu0 0.0
        %503 = vmatpush1.msra.mxu0 0.0
        %504 = vmatprep.subr.mxu0 0.0
        %505 = vmatpush1.msra.mxu0 0.0
        %506 = vmatprep.subr.mxu0 0.0
        %507 = vmatpush1.msra.mxu0 0.0
        %508 = vmatprep.subr.mxu0 0.0
        %509 = vmatpush1.msra.mxu0 0.0
        %510 = vmatprep.subr.mxu0 0.0
        %511 = vmatpush1.msra.mxu0 0.0
        %512 = vmatprep.subr.mxu0 0.0
        %513 = vmatpush1.msra.mxu0 0.0
        %514 = vmatprep.subr.mxu0 0.0
        %515 = vmatpush1.msra.mxu0 0.0
        %516 = vmatprep.subr.mxu0 0.0
        %517 = vmatpush1.msra.mxu0 0.0
        %518 = vmatprep.subr.mxu0 0.0
        %519 = vmatpush1.msra.mxu0 0.0
        %v520 = vand.u32 %v482, 4294901760
        %521 = vmatprep.subr.mxu0 %v520
        %v522 = vand.u32 %v485, 4294901760
        %523 = vmatpush1.msra.mxu0 %v522
        %524 = vmatprep.subr.mxu0 0.0
        %525 = vmatpush2.msra.mxu0 0.0
        %526 = vmatprep.subr.mxu0 0.0
        %527 = vmatpush2.msra.mxu0 0.0
        %528 = vmatprep.subr.mxu0 0.0
        %529 = vmatpush2.msra.mxu0 0.0
        %530 = vmatprep.subr.mxu0 0.0
        %531 = vmatpush2.msra.mxu0 0.0
        %532 = vmatprep.subr.mxu0 0.0
        %533 = vmatpush2.msra.mxu0 0.0
        %534 = vmatprep.subr.mxu0 0.0
        %535 = vmatpush2.msra.mxu0 0.0
        %536 = vmatprep.subr.mxu0 0.0
        %537 = vmatpush2.msra.mxu0 0.0
        %538 = vmatprep.subr.mxu0 0.0
        %539 = vmatpush2.msra.mxu0 0.0
        %540 = vmatprep.subr.mxu0 0.0
        %541 = vmatpush2.msra.mxu0 0.0
        %542 = vmatprep.subr.mxu0 0.0
        %543 = vmatpush2.msra.mxu0 0.0
        %544 = vmatprep.subr.mxu0 0.0
        %545 = vmatpush2.msra.mxu0 0.0
        %546 = vmatprep.subr.mxu0 0.0
        %547 = vmatpush2.msra.mxu0 0.0
        %548 = vmatprep.subr.mxu0 0.0
        %549 = vmatpush2.msra.mxu0 0.0
        %550 = vmatprep.subr.mxu0 0.0
        %551 = vmatpush2.msra.mxu0 0.0
        %552 = vmatprep.subr.mxu0 0.0
        %553 = vmatpush2.msra.mxu0 0.0
        %554 = vmatprep.subr.mxu0 0.0
        %555 = vmatpush2.msra.mxu0 0.0
        %556 = vmatprep.mubr.f32.mxu0 0.0
        %v557 = vand.u32 %v488, 4294901760
        %v558 = vsub.f32 %v488, %v557
        %v559 = vand.u32 %v558, 4294901760
        %v560 = vsub.f32 %v558, %v559
        %v561 = vand.u32 %v560, 4294901760
        %562 = vmatmul.mubr.f32.gmra.mxu0 %v561
        %v563 = vpop.f32.mrf.mxu0
        %v564 = vadd.f32 0.0, %v563
        %v565 = vpop.f32.mrf.mxu0
        %v566 = vadd.f32 0.0, %v565
        %567 = vdwg.mxu0
        %568 = vmatprep.subr.mxu0 0.0
        %569 = vmatpush1.msra.mxu0 0.0
        %570 = vmatprep.subr.mxu0 0.0
        %571 = vmatpush1.msra.mxu0 0.0
        %572 = vmatprep.subr.mxu0 0.0
        %573 = vmatpush1.msra.mxu0 0.0
        %574 = vmatprep.subr.mxu0 0.0
        %575 = vmatpush1.msra.mxu0 0.0
        %576 = vmatprep.subr.mxu0 0.0
        %577 = vmatpush1.msra.mxu0 0.0
        %578 = vmatprep.subr.mxu0 0.0
        %579 = vmatpush1.msra.mxu0 0.0
        %580 = vmatprep.subr.mxu0 0.0
        %581 = vmatpush1.msra.mxu0 0.0
        %582 = vmatprep.subr.mxu0 0.0
        %583 = vmatpush1.msra.mxu0 0.0
        %584 = vmatprep.subr.mxu0 0.0
        %585 = vmatpush1.msra.mxu0 0.0
        %586 = vmatprep.subr.mxu0 0.0
        %587 = vmatpush1.msra.mxu0 0.0
        %588 = vmatprep.subr.mxu0 0.0
        %589 = vmatpush1.msra.mxu0 0.0
        %590 = vmatprep.subr.mxu0 0.0
        %591 = vmatpush1.msra.mxu0 0.0
        %592 = vmatprep.subr.mxu0 0.0
        %593 = vmatpush1.msra.mxu0 0.0
        %594 = vmatprep.subr.mxu0 0.0
        %595 = vmatpush1.msra.mxu0 0.0
        %596 = vmatprep.subr.mxu0 0.0
        %597 = vmatpush1.msra.mxu0 0.0
        %v598 = vand.u32 %v482, 4294901760
        %v599 = vsub.f32 %v482, %v598
        %v600 = vand.u32 %v599, 4294901760
        %v601 = vsub.f32 %v599, %v600
        %v602 = vand.u32 %v601, 4294901760
        %603 = vmatprep.subr.mxu0 %v602
        %v604 = vand.u32 %v485, 4294901760
        %v605 = vsub.f32 %v485, %v604
        %v606 = vand.u32 %v605, 4294901760
        %v607 = vsub.f32 %v605, %v606
        %v608 = vand.u32 %v607, 4294901760
        %609 = vmatpush1.msra.mxu0 %v608
        %610 = vmatprep.subr.mxu0 0.0
        %611 = vmatpush2.msra.mxu0 0.0
        %612 = vmatprep.subr.mxu0 0.0
        %613 = vmatpush2.msra.mxu0 0.0
        %614 = vmatprep.subr.mxu0 0.0
        %615 = vmatpush2.msra.mxu0 0.0
        %616 = vmatprep.subr.mxu0 0.0
        %617 = vmatpush2.msra.mxu0 0.0
        %618 = vmatprep.subr.mxu0 0.0
        %619 = vmatpush2.msra.mxu0 0.0
        %620 = vmatprep.subr.mxu0 0.0
        %621 = vmatpush2.msra.mxu0 0.0
        %622 = vmatprep.subr.mxu0 0.0
        %623 = vmatpush2.msra.mxu0 0.0
        %624 = vmatprep.subr.mxu0 0.0
        %625 = vmatpush2.msra.mxu0 0.0
        %626 = vmatprep.subr.mxu0 0.0
        %627 = vmatpush2.msra.mxu0 0.0
        %628 = vmatprep.subr.mxu0 0.0
        %629 = vmatpush2.msra.mxu0 0.0
        %630 = vmatprep.subr.mxu0 0.0
        %631 = vmatpush2.msra.mxu0 0.0
        %632 = vmatprep.subr.mxu0 0.0
        %633 = vmatpush2.msra.mxu0 0.0
        %634 = vmatprep.subr.mxu0 0.0
        %635 = vmatpush2.msra.mxu0 0.0
        %636 = vmatprep.subr.mxu0 0.0
        %637 = vmatpush2.msra.mxu0 0.0
        %638 = vmatprep.subr.mxu0 0.0
        %639 = vmatpush2.msra.mxu0 0.0
        %640 = vmatprep.subr.mxu0 0.0
        %641 = vmatpush2.msra.mxu0 0.0
        %642 = vmatprep.mubr.f32.mxu0 0.0
        %v643 = vand.u32 %v488, 4294901760
        %644 = vmatmul.mubr.f32.gmra.mxu0 %v643
        %v645 = vpop.f32.mrf.mxu0
        %v646 = vadd.f32 %v564, %v645
        %v647 = vpop.f32.mrf.mxu0
        %v648 = vadd.f32 %v566, %v647
        %649 = vdwg.mxu0
        %650 = vmatprep.subr.mxu0 0.0
        %651 = vmatpush1.msra.mxu0 0.0
        %652 = vmatprep.subr.mxu0 0.0
        %653 = vmatpush1.msra.mxu0 0.0
        %654 = vmatprep.subr.mxu0 0.0
        %655 = vmatpush1.msra.mxu0 0.0
        %656 = vmatprep.subr.mxu0 0.0
        %657 = vmatpush1.msra.mxu0 0.0
        %658 = vmatprep.subr.mxu0 0.0
        %659 = vmatpush1.msra.mxu0 0.0
        %660 = vmatprep.subr.mxu0 0.0
        %661 = vmatpush1.msra.mxu0 0.0
        %662 = vmatprep.subr.mxu0 0.0
        %663 = vmatpush1.msra.mxu0 0.0
        %664 = vmatprep.subr.mxu0 0.0
        %665 = vmatpush1.msra.mxu0 0.0
        %666 = vmatprep.subr.mxu0 0.0
        %667 = vmatpush1.msra.mxu0 0.0
        %668 = vmatprep.subr.mxu0 0.0
        %669 = vmatpush1.msra.mxu0 0.0
        %670 = vmatprep.subr.mxu0 0.0
        %671 = vmatpush1.msra.mxu0 0.0
        %672 = vmatprep.subr.mxu0 0.0
        %673 = vmatpush1.msra.mxu0 0.0
        %674 = vmatprep.subr.mxu0 0.0
        %675 = vmatpush1.msra.mxu0 0.0
        %676 = vmatprep.subr.mxu0 0.0
        %677 = vmatpush1.msra.mxu0 0.0
        %678 = vmatprep.subr.mxu0 0.0
        %679 = vmatpush1.msra.mxu0 0.0
        %v680 = vand.u32 %v482, 4294901760
        %v681 = vsub.f32 %v482, %v680
        %682 = vmatprep.subr.mxu0 %v681
        %v683 = vand.u32 %v485, 4294901760
        %v684 = vsub.f32 %v485, %v683
        %685 = vmatpush1.msra.mxu0 %v684
        %686 = vmatprep.subr.mxu0 0.0
        %687 = vmatpush2.msra.mxu0 0.0
        %688 = vmatprep.subr.mxu0 0.0
        %689 = vmatpush2.msra.mxu0 0.0
        %690 = vmatprep.subr.mxu0 0.0
        %691 = vmatpush2.msra.mxu0 0.0
        %692 = vmatprep.subr.mxu0 0.0
        %693 = vmatpush2.msra.mxu0 0.0
        %694 = vmatprep.subr.mxu0 0.0
        %695 = vmatpush2.msra.mxu0 0.0
        %696 = vmatprep.subr.mxu0 0.0
        %697 = vmatpush2.msra.mxu0 0.0
        %698 = vmatprep.subr.mxu0 0.0
        %699 = vmatpush2.msra.mxu0 0.0
        %700 = vmatprep.subr.mxu0 0.0
        %701 = vmatpush2.msra.mxu0 0.0
        %702 = vmatprep.subr.mxu0 0.0
        %703 = vmatpush2.msra.mxu0 0.0
        %704 = vmatprep.subr.mxu0 0.0
        %705 = vmatpush2.msra.mxu0 0.0
        %706 = vmatprep.subr.mxu0 0.0
        %707 = vmatpush2.msra.mxu0 0.0
        %708 = vmatprep.subr.mxu0 0.0
        %709 = vmatpush2.msra.mxu0 0.0
        %710 = vmatprep.subr.mxu0 0.0
        %711 = vmatpush2.msra.mxu0 0.0
        %712 = vmatprep.subr.mxu0 0.0
        %713 = vmatpush2.msra.mxu0 0.0
        %714 = vmatprep.subr.mxu0 0.0
        %715 = vmatpush2.msra.mxu0 0.0
        %716 = vmatprep.subr.mxu0 0.0
        %717 = vmatpush2.msra.mxu0 0.0
        %718 = vmatprep.mubr.f32.mxu0 0.0
        %v719 = vand.u32 %v488, 4294901760
        %v720 = vsub.f32 %v488, %v719
        %721 = vmatmul.mubr.f32.gmra.mxu0 %v720
        %v722 = vpop.f32.mrf.mxu0
        %v723 = vadd.f32 %v646, %v722
        %v724 = vpop.f32.mrf.mxu0
        %v725 = vadd.f32 %v648, %v724
        %726 = vdwg.mxu0
        %727 = vmatprep.subr.mxu0 0.0
        %728 = vmatpush1.msra.mxu0 0.0
        %729 = vmatprep.subr.mxu0 0.0
        %730 = vmatpush1.msra.mxu0 0.0
        %731 = vmatprep.subr.mxu0 0.0
        %732 = vmatpush1.msra.mxu0 0.0
        %733 = vmatprep.subr.mxu0 0.0
        %734 = vmatpush1.msra.mxu0 0.0
        %735 = vmatprep.subr.mxu0 0.0
        %736 = vmatpush1.msra.mxu0 0.0
        %737 = vmatprep.subr.mxu0 0.0
        %738 = vmatpush1.msra.mxu0 0.0
        %739 = vmatprep.subr.mxu0 0.0
        %740 = vmatpush1.msra.mxu0 0.0
        %741 = vmatprep.subr.mxu0 0.0
        %742 = vmatpush1.msra.mxu0 0.0
        %743 = vmatprep.subr.mxu0 0.0
        %744 = vmatpush1.msra.mxu0 0.0
        %745 = vmatprep.subr.mxu0 0.0
        %746 = vmatpush1.msra.mxu0 0.0
        %747 = vmatprep.subr.mxu0 0.0
        %748 = vmatpush1.msra.mxu0 0.0
        %749 = vmatprep.subr.mxu0 0.0
        %750 = vmatpush1.msra.mxu0 0.0
        %751 = vmatprep.subr.mxu0 0.0
        %752 = vmatpush1.msra.mxu0 0.0
        %753 = vmatprep.subr.mxu0 0.0
        %754 = vmatpush1.msra.mxu0 0.0
        %755 = vmatprep.subr.mxu0 0.0
        %756 = vmatpush1.msra.mxu0 0.0
        %v757 = vand.u32 %v482, 4294901760
        %758 = vmatprep.subr.mxu0 %v757
        %v759 = vand.u32 %v485, 4294901760
        %760 = vmatpush1.msra.mxu0 %v759
        %761 = vmatprep.subr.mxu0 0.0
        %762 = vmatpush2.msra.mxu0 0.0
        %763 = vmatprep.subr.mxu0 0.0
        %764 = vmatpush2.msra.mxu0 0.0
        %765 = vmatprep.subr.mxu0 0.0
        %766 = vmatpush2.msra.mxu0 0.0
        %767 = vmatprep.subr.mxu0 0.0
        %768 = vmatpush2.msra.mxu0 0.0
        %769 = vmatprep.subr.mxu0 0.0
        %770 = vmatpush2.msra.mxu0 0.0
        %771 = vmatprep.subr.mxu0 0.0
        %772 = vmatpush2.msra.mxu0 0.0
        %773 = vmatprep.subr.mxu0 0.0
        %774 = vmatpush2.msra.mxu0 0.0
        %775 = vmatprep.subr.mxu0 0.0
        %776 = vmatpush2.msra.mxu0 0.0
        %777 = vmatprep.subr.mxu0 0.0
        %778 = vmatpush2.msra.mxu0 0.0
        %779 = vmatprep.subr.mxu0 0.0
        %780 = vmatpush2.msra.mxu0 0.0
        %781 = vmatprep.subr.mxu0 0.0
        %782 = vmatpush2.msra.mxu0 0.0
        %783 = vmatprep.subr.mxu0 0.0
        %784 = vmatpush2.msra.mxu0 0.0
        %785 = vmatprep.subr.mxu0 0.0
        %786 = vmatpush2.msra.mxu0 0.0
        %787 = vmatprep.subr.mxu0 0.0
        %788 = vmatpush2.msra.mxu0 0.0
        %789 = vmatprep.subr.mxu0 0.0
        %790 = vmatpush2.msra.mxu0 0.0
        %791 = vmatprep.subr.mxu0 0.0
        %792 = vmatpush2.msra.mxu0 0.0
        %793 = vmatprep.mubr.f32.mxu0 0.0
        %v794 = vand.u32 %v488, 4294901760
        %v795 = vsub.f32 %v488, %v794
        %v796 = vand.u32 %v795, 4294901760
        %797 = vmatmul.mubr.f32.gmra.mxu0 %v796
        %v798 = vpop.f32.mrf.mxu0
        %v799 = vadd.f32 %v723, %v798
        %v800 = vpop.f32.mrf.mxu0
        %v801 = vadd.f32 %v725, %v800
        %802 = vdwg.mxu0
        %803 = vmatprep.subr.mxu0 0.0
        %804 = vmatpush1.msra.mxu0 0.0
        %805 = vmatprep.subr.mxu0 0.0
        %806 = vmatpush1.msra.mxu0 0.0
        %807 = vmatprep.subr.mxu0 0.0
        %808 = vmatpush1.msra.mxu0 0.0
        %809 = vmatprep.subr.mxu0 0.0
        %810 = vmatpush1.msra.mxu0 0.0
        %811 = vmatprep.subr.mxu0 0.0
        %812 = vmatpush1.msra.mxu0 0.0
        %813 = vmatprep.subr.mxu0 0.0
        %814 = vmatpush1.msra.mxu0 0.0
        %815 = vmatprep.subr.mxu0 0.0
        %816 = vmatpush1.msra.mxu0 0.0
        %817 = vmatprep.subr.mxu0 0.0
        %818 = vmatpush1.msra.mxu0 0.0
        %819 = vmatprep.subr.mxu0 0.0
        %820 = vmatpush1.msra.mxu0 0.0
        %821 = vmatprep.subr.mxu0 0.0
        %822 = vmatpush1.msra.mxu0 0.0
        %823 = vmatprep.subr.mxu0 0.0
        %824 = vmatpush1.msra.mxu0 0.0
        %825 = vmatprep.subr.mxu0 0.0
        %826 = vmatpush1.msra.mxu0 0.0
        %827 = vmatprep.subr.mxu0 0.0
        %828 = vmatpush1.msra.mxu0 0.0
        %829 = vmatprep.subr.mxu0 0.0
        %830 = vmatpush1.msra.mxu0 0.0
        %831 = vmatprep.subr.mxu0 0.0
        %832 = vmatpush1.msra.mxu0 0.0
        %v833 = vand.u32 %v482, 4294901760
        %v834 = vsub.f32 %v482, %v833
        %v835 = vand.u32 %v834, 4294901760
        %836 = vmatprep.subr.mxu0 %v835
        %v837 = vand.u32 %v485, 4294901760
        %v838 = vsub.f32 %v485, %v837
        %v839 = vand.u32 %v838, 4294901760
        %840 = vmatpush1.msra.mxu0 %v839
        %841 = vmatprep.subr.mxu0 0.0
        %842 = vmatpush2.msra.mxu0 0.0
        %843 = vmatprep.subr.mxu0 0.0
        %844 = vmatpush2.msra.mxu0 0.0
        %845 = vmatprep.subr.mxu0 0.0
        %846 = vmatpush2.msra.mxu0 0.0
        %847 = vmatprep.subr.mxu0 0.0
        %848 = vmatpush2.msra.mxu0 0.0
        %849 = vmatprep.subr.mxu0 0.0
        %850 = vmatpush2.msra.mxu0 0.0
        %851 = vmatprep.subr.mxu0 0.0
        %852 = vmatpush2.msra.mxu0 0.0
        %853 = vmatprep.subr.mxu0 0.0
        %854 = vmatpush2.msra.mxu0 0.0
        %855 = vmatprep.subr.mxu0 0.0
        %856 = vmatpush2.msra.mxu0 0.0
        %857 = vmatprep.subr.mxu0 0.0
        %858 = vmatpush2.msra.mxu0 0.0
        %859 = vmatprep.subr.mxu0 0.0
        %860 = vmatpush2.msra.mxu0 0.0
        %861 = vmatprep.subr.mxu0 0.0
        %862 = vmatpush2.msra.mxu0 0.0
        %863 = vmatprep.subr.mxu0 0.0
        %864 = vmatpush2.msra.mxu0 0.0
        %865 = vmatprep.subr.mxu0 0.0
        %866 = vmatpush2.msra.mxu0 0.0
        %867 = vmatprep.subr.mxu0 0.0
        %868 = vmatpush2.msra.mxu0 0.0
        %869 = vmatprep.subr.mxu0 0.0
        %870 = vmatpush2.msra.mxu0 0.0
        %871 = vmatprep.subr.mxu0 0.0
        %872 = vmatpush2.msra.mxu0 0.0
        %873 = vmatprep.mubr.f32.mxu0 0.0
        %v874 = vand.u32 %v488, 4294901760
        %875 = vmatmul.mubr.f32.gmra.mxu0 %v874
        %v876 = vpop.f32.mrf.mxu0
        %v877 = vadd.f32 %v799, %v876
        %v878 = vpop.f32.mrf.mxu0
        %v879 = vadd.f32 %v801, %v878
        %880 = vdwg.mxu0
        %881 = vmatprep.subr.mxu0 0.0
        %882 = vmatpush1.msra.mxu0 0.0
        %883 = vmatprep.subr.mxu0 0.0
        %884 = vmatpush1.msra.mxu0 0.0
        %885 = vmatprep.subr.mxu0 0.0
        %886 = vmatpush1.msra.mxu0 0.0
        %887 = vmatprep.subr.mxu0 0.0
        %888 = vmatpush1.msra.mxu0 0.0
        %889 = vmatprep.subr.mxu0 0.0
        %890 = vmatpush1.msra.mxu0 0.0
        %891 = vmatprep.subr.mxu0 0.0
        %892 = vmatpush1.msra.mxu0 0.0
        %893 = vmatprep.subr.mxu0 0.0
        %894 = vmatpush1.msra.mxu0 0.0
        %895 = vmatprep.subr.mxu0 0.0
        %896 = vmatpush1.msra.mxu0 0.0
        %897 = vmatprep.subr.mxu0 0.0
        %898 = vmatpush1.msra.mxu0 0.0
        %899 = vmatprep.subr.mxu0 0.0
        %900 = vmatpush1.msra.mxu0 0.0
        %901 = vmatprep.subr.mxu0 0.0
        %902 = vmatpush1.msra.mxu0 0.0
        %903 = vmatprep.subr.mxu0 0.0
        %904 = vmatpush1.msra.mxu0 0.0
        %905 = vmatprep.subr.mxu0 0.0
        %906 = vmatpush1.msra.mxu0 0.0
        %907 = vmatprep.subr.mxu0 0.0
        %908 = vmatpush1.msra.mxu0 0.0
        %909 = vmatprep.subr.mxu0 0.0
        %910 = vmatpush1.msra.mxu0 0.0
        %v911 = vand.u32 %v482, 4294901760
        %912 = vmatprep.subr.mxu0 %v911
        %v913 = vand.u32 %v485, 4294901760
        %914 = vmatpush1.msra.mxu0 %v913
        %915 = vmatprep.subr.mxu0 0.0
        %916 = vmatpush2.msra.mxu0 0.0
        %917 = vmatprep.subr.mxu0 0.0
        %918 = vmatpush2.msra.mxu0 0.0
        %919 = vmatprep.subr.mxu0 0.0
        %920 = vmatpush2.msra.mxu0 0.0
        %921 = vmatprep.subr.mxu0 0.0
        %922 = vmatpush2.msra.mxu0 0.0
        %923 = vmatprep.subr.mxu0 0.0
        %924 = vmatpush2.msra.mxu0 0.0
        %925 = vmatprep.subr.mxu0 0.0
        %926 = vmatpush2.msra.mxu0 0.0
        %927 = vmatprep.subr.mxu0 0.0
        %928 = vmatpush2.msra.mxu0 0.0
        %929 = vmatprep.subr.mxu0 0.0
        %930 = vmatpush2.msra.mxu0 0.0
        %931 = vmatprep.subr.mxu0 0.0
        %932 = vmatpush2.msra.mxu0 0.0
        %933 = vmatprep.subr.mxu0 0.0
        %934 = vmatpush2.msra.mxu0 0.0
        %935 = vmatprep.subr.mxu0 0.0
        %936 = vmatpush2.msra.mxu0 0.0
        %937 = vmatprep.subr.mxu0 0.0
        %938 = vmatpush2.msra.mxu0 0.0
        %939 = vmatprep.subr.mxu0 0.0
        %940 = vmatpush2.msra.mxu0 0.0
        %941 = vmatprep.subr.mxu0 0.0
        %942 = vmatpush2.msra.mxu0 0.0
        %943 = vmatprep.subr.mxu0 0.0
        %944 = vmatpush2.msra.mxu0 0.0
        %945 = vmatprep.subr.mxu0 0.0
        %946 = vmatpush2.msra.mxu0 0.0
        %947 = vmatprep.mubr.f32.mxu0 0.0
        %v948 = vand.u32 %v488, 4294901760
        %949 = vmatmul.mubr.f32.gmra.mxu0 %v948
        %v950 = vpop.f32.mrf.mxu0
        %v951 = vadd.f32 %v877, %v950
        %v952 = vpop.f32.mrf.mxu0
        %v953 = vadd.f32 %v879, %v952
        %954 = vdwg.mxu0
        %v956 = vsel %vm486, %v473, 0
        %958 = vmatprep.subr.mxu0 0.0
        %959 = vmatpush1.msra.mxu0 0.0
        %960 = vmatprep.subr.mxu0 0.0
        %961 = vmatpush1.msra.mxu0 0.0
        %962 = vmatprep.subr.mxu0 0.0
        %963 = vmatpush1.msra.mxu0 0.0
        %964 = vmatprep.subr.mxu0 0.0
        %965 = vmatpush1.msra.mxu0 0.0
        %966 = vmatprep.subr.mxu0 0.0
        %967 = vmatpush1.msra.mxu0 0.0
        %968 = vmatprep.subr.mxu0 0.0
        %969 = vmatpush1.msra.mxu0 0.0
        %970 = vmatprep.subr.mxu0 0.0
        %971 = vmatpush1.msra.mxu0 0.0
        %972 = vmatprep.subr.mxu0 0.0
        %973 = vmatpush1.msra.mxu0 0.0
        %974 = vmatprep.subr.mxu0 0.0
        %975 = vmatpush1.msra.mxu0 0.0
        %976 = vmatprep.subr.mxu0 0.0
        %977 = vmatpush1.msra.mxu0 0.0
        %978 = vmatprep.subr.mxu0 0.0
        %979 = vmatpush1.msra.mxu0 0.0
        %980 = vmatprep.subr.mxu0 0.0
        %981 = vmatpush1.msra.mxu0 0.0
        %982 = vmatprep.subr.mxu0 0.0
        %983 = vmatpush1.msra.mxu0 0.0
        %984 = vmatprep.subr.mxu0 0.0
        %985 = vmatpush1.msra.mxu0 0.0
        %986 = vmatprep.subr.mxu0 0.0
        %987 = vmatpush1.msra.mxu0 0.0
        %v988 = vand.u32 %v470, 4294901760
        %989 = vmatprep.subr.mxu0 %v988
        %v990 = vand.u32 %v469, 4294901760
        %991 = vmatpush1.msra.mxu0 %v990
        %992 = vmatprep.subr.mxu0 0.0
        %993 = vmatpush2.msra.mxu0 0.0
        %994 = vmatprep.subr.mxu0 0.0
        %995 = vmatpush2.msra.mxu0 0.0
        %996 = vmatprep.subr.mxu0 0.0
        %997 = vmatpush2.msra.mxu0 0.0
        %998 = vmatprep.subr.mxu0 0.0
        %999 = vmatpush2.msra.mxu0 0.0
        %1000 = vmatprep.subr.mxu0 0.0
        %1001 = vmatpush2.msra.mxu0 0.0
        %1002 = vmatprep.subr.mxu0 0.0
        %1003 = vmatpush2.msra.mxu0 0.0
        %1004 = vmatprep.subr.mxu0 0.0
        %1005 = vmatpush2.msra.mxu0 0.0
        %1006 = vmatprep.subr.mxu0 0.0
        %1007 = vmatpush2.msra.mxu0 0.0
        %1008 = vmatprep.subr.mxu0 0.0
        %1009 = vmatpush2.msra.mxu0 0.0
        %1010 = vmatprep.subr.mxu0 0.0
        %1011 = vmatpush2.msra.mxu0 0.0
        %1012 = vmatprep.subr.mxu0 0.0
        %1013 = vmatpush2.msra.mxu0 0.0
        %1014 = vmatprep.subr.mxu0 0.0
        %1015 = vmatpush2.msra.mxu0 0.0
        %1016 = vmatprep.subr.mxu0 0.0
        %1017 = vmatpush2.msra.mxu0 0.0
        %1018 = vmatprep.subr.mxu0 0.0
        %1019 = vmatpush2.msra.mxu0 0.0
        %1020 = vmatprep.subr.mxu0 0.0
        %1021 = vmatpush2.msra.mxu0 0.0
        %1022 = vmatprep.subr.mxu0 0.0
        %1023 = vmatpush2.msra.mxu0 0.0
        %1024 = vmatprep.mubr.f32.mxu0 0.0
        %v1025 = vand.u32 %v956, 4294901760
        %v1026 = vsub.f32 %v956, %v1025
        %v1027 = vand.u32 %v1026, 4294901760
        %v1028 = vsub.f32 %v1026, %v1027
        %v1029 = vand.u32 %v1028, 4294901760
        %1030 = vmatmul.mubr.f32.gmra.mxu0 %v1029
        %v1031 = vpop.f32.mrf.mxu0
        %v1032 = vadd.f32 %v951, %v1031
        %v1033 = vpop.f32.mrf.mxu0
        %v1034 = vadd.f32 %v953, %v1033
        %1035 = vdwg.mxu0
        %1036 = vmatprep.subr.mxu0 0.0
        %1037 = vmatpush1.msra.mxu0 0.0
        %1038 = vmatprep.subr.mxu0 0.0
        %1039 = vmatpush1.msra.mxu0 0.0
        %1040 = vmatprep.subr.mxu0 0.0
        %1041 = vmatpush1.msra.mxu0 0.0
        %1042 = vmatprep.subr.mxu0 0.0
        %1043 = vmatpush1.msra.mxu0 0.0
        %1044 = vmatprep.subr.mxu0 0.0
        %1045 = vmatpush1.msra.mxu0 0.0
        %1046 = vmatprep.subr.mxu0 0.0
        %1047 = vmatpush1.msra.mxu0 0.0
        %1048 = vmatprep.subr.mxu0 0.0
        %1049 = vmatpush1.msra.mxu0 0.0
        %1050 = vmatprep.subr.mxu0 0.0
        %1051 = vmatpush1.msra.mxu0 0.0
        %1052 = vmatprep.subr.mxu0 0.0
        %1053 = vmatpush1.msra.mxu0 0.0
        %1054 = vmatprep.subr.mxu0 0.0
        %1055 = vmatpush1.msra.mxu0 0.0
        %1056 = vmatprep.subr.mxu0 0.0
        %1057 = vmatpush1.msra.mxu0 0.0
        %1058 = vmatprep.subr.mxu0 0.0
        %1059 = vmatpush1.msra.mxu0 0.0
        %1060 = vmatprep.subr.mxu0 0.0
        %1061 = vmatpush1.msra.mxu0 0.0
        %1062 = vmatprep.subr.mxu0 0.0
        %1063 = vmatpush1.msra.mxu0 0.0
        %1064 = vmatprep.subr.mxu0 0.0
        %1065 = vmatpush1.msra.mxu0 0.0
        %v1066 = vand.u32 %v470, 4294901760
        %v1067 = vsub.f32 %v470, %v1066
        %v1068 = vand.u32 %v1067, 4294901760
        %v1069 = vsub.f32 %v1067, %v1068
        %v1070 = vand.u32 %v1069, 4294901760
        %1071 = vmatprep.subr.mxu0 %v1070
        %v1072 = vand.u32 %v469, 4294901760
        %v1073 = vsub.f32 %v469, %v1072
        %v1074 = vand.u32 %v1073, 4294901760
        %v1075 = vsub.f32 %v1073, %v1074
        %v1076 = vand.u32 %v1075, 4294901760
        %1077 = vmatpush1.msra.mxu0 %v1076
        %1078 = vmatprep.subr.mxu0 0.0
        %1079 = vmatpush2.msra.mxu0 0.0
        %1080 = vmatprep.subr.mxu0 0.0
        %1081 = vmatpush2.msra.mxu0 0.0
        %1082 = vmatprep.subr.mxu0 0.0
        %1083 = vmatpush2.msra.mxu0 0.0
        %1084 = vmatprep.subr.mxu0 0.0
        %1085 = vmatpush2.msra.mxu0 0.0
        %1086 = vmatprep.subr.mxu0 0.0
        %1087 = vmatpush2.msra.mxu0 0.0
        %1088 = vmatprep.subr.mxu0 0.0
        %1089 = vmatpush2.msra.mxu0 0.0
        %1090 = vmatprep.subr.mxu0 0.0
        %1091 = vmatpush2.msra.mxu0 0.0
        %1092 = vmatprep.subr.mxu0 0.0
        %1093 = vmatpush2.msra.mxu0 0.0
        %1094 = vmatprep.subr.mxu0 0.0
        %1095 = vmatpush2.msra.mxu0 0.0
        %1096 = vmatprep.subr.mxu0 0.0
        %1097 = vmatpush2.msra.mxu0 0.0
        %1098 = vmatprep.subr.mxu0 0.0
        %1099 = vmatpush2.msra.mxu0 0.0
        %1100 = vmatprep.subr.mxu0 0.0
        %1101 = vmatpush2.msra.mxu0 0.0
        %1102 = vmatprep.subr.mxu0 0.0
        %1103 = vmatpush2.msra.mxu0 0.0
        %1104 = vmatprep.subr.mxu0 0.0
        %1105 = vmatpush2.msra.mxu0 0.0
        %1106 = vmatprep.subr.mxu0 0.0
        %1107 = vmatpush2.msra.mxu0 0.0
        %1108 = vmatprep.subr.mxu0 0.0
        %1109 = vmatpush2.msra.mxu0 0.0
        %1110 = vmatprep.mubr.f32.mxu0 0.0
        %v1111 = vand.u32 %v956, 4294901760
        %1112 = vmatmul.mubr.f32.gmra.mxu0 %v1111
        %v1113 = vpop.f32.mrf.mxu0
        %v1114 = vadd.f32 %v1032, %v1113
        %v1115 = vpop.f32.mrf.mxu0
        %v1116 = vadd.f32 %v1034, %v1115
        %1117 = vdwg.mxu0
        %1118 = vmatprep.subr.mxu0 0.0
        %1119 = vmatpush1.msra.mxu0 0.0
        %1120 = vmatprep.subr.mxu0 0.0
        %1121 = vmatpush1.msra.mxu0 0.0
        %1122 = vmatprep.subr.mxu0 0.0
        %1123 = vmatpush1.msra.mxu0 0.0
        %1124 = vmatprep.subr.mxu0 0.0
        %1125 = vmatpush1.msra.mxu0 0.0
        %1126 = vmatprep.subr.mxu0 0.0
        %1127 = vmatpush1.msra.mxu0 0.0
        %1128 = vmatprep.subr.mxu0 0.0
        %1129 = vmatpush1.msra.mxu0 0.0
        %1130 = vmatprep.subr.mxu0 0.0
        %1131 = vmatpush1.msra.mxu0 0.0
        %1132 = vmatprep.subr.mxu0 0.0
        %1133 = vmatpush1.msra.mxu0 0.0
        %1134 = vmatprep.subr.mxu0 0.0
        %1135 = vmatpush1.msra.mxu0 0.0
        %1136 = vmatprep.subr.mxu0 0.0
        %1137 = vmatpush1.msra.mxu0 0.0
        %1138 = vmatprep.subr.mxu0 0.0
        %1139 = vmatpush1.msra.mxu0 0.0
        %1140 = vmatprep.subr.mxu0 0.0
        %1141 = vmatpush1.msra.mxu0 0.0
        %1142 = vmatprep.subr.mxu0 0.0
        %1143 = vmatpush1.msra.mxu0 0.0
        %1144 = vmatprep.subr.mxu0 0.0
        %1145 = vmatpush1.msra.mxu0 0.0
        %1146 = vmatprep.subr.mxu0 0.0
        %1147 = vmatpush1.msra.mxu0 0.0
        %v1148 = vand.u32 %v470, 4294901760
        %v1149 = vsub.f32 %v470, %v1148
        %1150 = vmatprep.subr.mxu0 %v1149
        %v1151 = vand.u32 %v469, 4294901760
        %v1152 = vsub.f32 %v469, %v1151
        %1153 = vmatpush1.msra.mxu0 %v1152
        %1154 = vmatprep.subr.mxu0 0.0
        %1155 = vmatpush2.msra.mxu0 0.0
        %1156 = vmatprep.subr.mxu0 0.0
        %1157 = vmatpush2.msra.mxu0 0.0
        %1158 = vmatprep.subr.mxu0 0.0
        %1159 = vmatpush2.msra.mxu0 0.0
        %1160 = vmatprep.subr.mxu0 0.0
        %1161 = vmatpush2.msra.mxu0 0.0
        %1162 = vmatprep.subr.mxu0 0.0
        %1163 = vmatpush2.msra.mxu0 0.0
        %1164 = vmatprep.subr.mxu0 0.0
        %1165 = vmatpush2.msra.mxu0 0.0
        %1166 = vmatprep.subr.mxu0 0.0
        %1167 = vmatpush2.msra.mxu0 0.0
        %1168 = vmatprep.subr.mxu0 0.0
        %1169 = vmatpush2.msra.mxu0 0.0
        %1170 = vmatprep.subr.mxu0 0.0
        %1171 = vmatpush2.msra.mxu0 0.0
        %1172 = vmatprep.subr.mxu0 0.0
        %1173 = vmatpush2.msra.mxu0 0.0
        %1174 = vmatprep.subr.mxu0 0.0
        %1175 = vmatpush2.msra.mxu0 0.0
        %1176 = vmatprep.subr.mxu0 0.0
        %1177 = vmatpush2.msra.mxu0 0.0
        %1178 = vmatprep.subr.mxu0 0.0
        %1179 = vmatpush2.msra.mxu0 0.0
        %1180 = vmatprep.subr.mxu0 0.0
        %1181 = vmatpush2.msra.mxu0 0.0
        %1182 = vmatprep.subr.mxu0 0.0
        %1183 = vmatpush2.msra.mxu0 0.0
        %1184 = vmatprep.subr.mxu0 0.0
        %1185 = vmatpush2.msra.mxu0 0.0
        %1186 = vmatprep.mubr.f32.mxu0 0.0
        %v1187 = vand.u32 %v956, 4294901760
        %v1188 = vsub.f32 %v956, %v1187
        %1189 = vmatmul.mubr.f32.gmra.mxu0 %v1188
        %v1190 = vpop.f32.mrf.mxu0
        %v1191 = vadd.f32 %v1114, %v1190
        %v1192 = vpop.f32.mrf.mxu0
        %v1193 = vadd.f32 %v1116, %v1192
        %1194 = vdwg.mxu0
        %1195 = vmatprep.subr.mxu0 0.0
        %1196 = vmatpush1.msra.mxu0 0.0
        %1197 = vmatprep.subr.mxu0 0.0
        %1198 = vmatpush1.msra.mxu0 0.0
        %1199 = vmatprep.subr.mxu0 0.0
        %1200 = vmatpush1.msra.mxu0 0.0
        %1201 = vmatprep.subr.mxu0 0.0
        %1202 = vmatpush1.msra.mxu0 0.0
        %1203 = vmatprep.subr.mxu0 0.0
        %1204 = vmatpush1.msra.mxu0 0.0
        %1205 = vmatprep.subr.mxu0 0.0
        %1206 = vmatpush1.msra.mxu0 0.0
        %1207 = vmatprep.subr.mxu0 0.0
        %1208 = vmatpush1.msra.mxu0 0.0
        %1209 = vmatprep.subr.mxu0 0.0
        %1210 = vmatpush1.msra.mxu0 0.0
        %1211 = vmatprep.subr.mxu0 0.0
        %1212 = vmatpush1.msra.mxu0 0.0
        %1213 = vmatprep.subr.mxu0 0.0
        %1214 = vmatpush1.msra.mxu0 0.0
        %1215 = vmatprep.subr.mxu0 0.0
        %1216 = vmatpush1.msra.mxu0 0.0
        %1217 = vmatprep.subr.mxu0 0.0
        %1218 = vmatpush1.msra.mxu0 0.0
        %1219 = vmatprep.subr.mxu0 0.0
        %1220 = vmatpush1.msra.mxu0 0.0
        %1221 = vmatprep.subr.mxu0 0.0
        %1222 = vmatpush1.msra.mxu0 0.0
        %1223 = vmatprep.subr.mxu0 0.0
        %1224 = vmatpush1.msra.mxu0 0.0
        %v1225 = vand.u32 %v470, 4294901760
        %1226 = vmatprep.subr.mxu0 %v1225
        %v1227 = vand.u32 %v469, 4294901760
        %1228 = vmatpush1.msra.mxu0 %v1227
        %1229 = vmatprep.subr.mxu0 0.0
        %1230 = vmatpush2.msra.mxu0 0.0
        %1231 = vmatprep.subr.mxu0 0.0
        %1232 = vmatpush2.msra.mxu0 0.0
        %1233 = vmatprep.subr.mxu0 0.0
        %1234 = vmatpush2.msra.mxu0 0.0
        %1235 = vmatprep.subr.mxu0 0.0
        %1236 = vmatpush2.msra.mxu0 0.0
        %1237 = vmatprep.subr.mxu0 0.0
        %1238 = vmatpush2.msra.mxu0 0.0
        %1239 = vmatprep.subr.mxu0 0.0
        %1240 = vmatpush2.msra.mxu0 0.0
        %1241 = vmatprep.subr.mxu0 0.0
        %1242 = vmatpush2.msra.mxu0 0.0
        %1243 = vmatprep.subr.mxu0 0.0
        %1244 = vmatpush2.msra.mxu0 0.0
        %1245 = vmatprep.subr.mxu0 0.0
        %1246 = vmatpush2.msra.mxu0 0.0
        %1247 = vmatprep.subr.mxu0 0.0
        %1248 = vmatpush2.msra.mxu0 0.0
        %1249 = vmatprep.subr.mxu0 0.0
        %1250 = vmatpush2.msra.mxu0 0.0
        %1251 = vmatprep.subr.mxu0 0.0
        %1252 = vmatpush2.msra.mxu0 0.0
        %1253 = vmatprep.subr.mxu0 0.0
        %1254 = vmatpush2.msra.mxu0 0.0
        %1255 = vmatprep.subr.mxu0 0.0
        %1256 = vmatpush2.msra.mxu0 0.0
        %1257 = vmatprep.subr.mxu0 0.0
        %1258 = vmatpush2.msra.mxu0 0.0
        %1259 = vmatprep.subr.mxu0 0.0
        %1260 = vmatpush2.msra.mxu0 0.0
        %1261 = vmatprep.mubr.f32.mxu0 0.0
        %v1262 = vand.u32 %v956, 4294901760
        %v1263 = vsub.f32 %v956, %v1262
        %v1264 = vand.u32 %v1263, 4294901760
        %1265 = vmatmul.mubr.f32.gmra.mxu0 %v1264
        %v1266 = vpop.f32.mrf.mxu0
        %v1267 = vadd.f32 %v1191, %v1266
        %v1268 = vpop.f32.mrf.mxu0
        %v1269 = vadd.f32 %v1193, %v1268
        %1270 = vdwg.mxu0
        %1271 = vmatprep.subr.mxu0 0.0
        %1272 = vmatpush1.msra.mxu0 0.0
        %1273 = vmatprep.subr.mxu0 0.0
        %1274 = vmatpush1.msra.mxu0 0.0
        %1275 = vmatprep.subr.mxu0 0.0
        %1276 = vmatpush1.msra.mxu0 0.0
        %1277 = vmatprep.subr.mxu0 0.0
        %1278 = vmatpush1.msra.mxu0 0.0
        %1279 = vmatprep.subr.mxu0 0.0
        %1280 = vmatpush1.msra.mxu0 0.0
        %1281 = vmatprep.subr.mxu0 0.0
        %1282 = vmatpush1.msra.mxu0 0.0
        %1283 = vmatprep.subr.mxu0 0.0
        %1284 = vmatpush1.msra.mxu0 0.0
        %1285 = vmatprep.subr.mxu0 0.0
        %1286 = vmatpush1.msra.mxu0 0.0
        %1287 = vmatprep.subr.mxu0 0.0
        %1288 = vmatpush1.msra.mxu0 0.0
        %1289 = vmatprep.subr.mxu0 0.0
        %1290 = vmatpush1.msra.mxu0 0.0
        %1291 = vmatprep.subr.mxu0 0.0
        %1292 = vmatpush1.msra.mxu0 0.0
        %1293 = vmatprep.subr.mxu0 0.0
        %1294 = vmatpush1.msra.mxu0 0.0
        %1295 = vmatprep.subr.mxu0 0.0
        %1296 = vmatpush1.msra.mxu0 0.0
        %1297 = vmatprep.subr.mxu0 0.0
        %1298 = vmatpush1.msra.mxu0 0.0
        %1299 = vmatprep.subr.mxu0 0.0
        %1300 = vmatpush1.msra.mxu0 0.0
        %v1301 = vand.u32 %v470, 4294901760
        %v1302 = vsub.f32 %v470, %v1301
        %v1303 = vand.u32 %v1302, 4294901760
        %1304 = vmatprep.subr.mxu0 %v1303
        %v1305 = vand.u32 %v469, 4294901760
        %v1306 = vsub.f32 %v469, %v1305
        %v1307 = vand.u32 %v1306, 4294901760
        %1308 = vmatpush1.msra.mxu0 %v1307
        %1309 = vmatprep.subr.mxu0 0.0
        %1310 = vmatpush2.msra.mxu0 0.0
        %1311 = vmatprep.subr.mxu0 0.0
        %1312 = vmatpush2.msra.mxu0 0.0
        %1313 = vmatprep.subr.mxu0 0.0
        %1314 = vmatpush2.msra.mxu0 0.0
        %1315 = vmatprep.subr.mxu0 0.0
        %1316 = vmatpush2.msra.mxu0 0.0
        %1317 = vmatprep.subr.mxu0 0.0
        %1318 = vmatpush2.msra.mxu0 0.0
        %1319 = vmatprep.subr.mxu0 0.0
        %1320 = vmatpush2.msra.mxu0 0.0
        %1321 = vmatprep.subr.mxu0 0.0
        %1322 = vmatpush2.msra.mxu0 0.0
        %1323 = vmatprep.subr.mxu0 0.0
        %1324 = vmatpush2.msra.mxu0 0.0
        %1325 = vmatprep.subr.mxu0 0.0
        %1326 = vmatpush2.msra.mxu0 0.0
        %1327 = vmatprep.subr.mxu0 0.0
        %1328 = vmatpush2.msra.mxu0 0.0
        %1329 = vmatprep.subr.mxu0 0.0
        %1330 = vmatpush2.msra.mxu0 0.0
        %1331 = vmatprep.subr.mxu0 0.0
        %1332 = vmatpush2.msra.mxu0 0.0
        %1333 = vmatprep.subr.mxu0 0.0
        %1334 = vmatpush2.msra.mxu0 0.0
        %1335 = vmatprep.subr.mxu0 0.0
        %1336 = vmatpush2.msra.mxu0 0.0
        %1337 = vmatprep.subr.mxu0 0.0
        %1338 = vmatpush2.msra.mxu0 0.0
        %1339 = vmatprep.subr.mxu0 0.0
        %1340 = vmatpush2.msra.mxu0 0.0
        %1341 = vmatprep.mubr.f32.mxu0 0.0
        %v1342 = vand.u32 %v956, 4294901760
        %1343 = vmatmul.mubr.f32.gmra.mxu0 %v1342
        %v1344 = vpop.f32.mrf.mxu0
        %v1345 = vadd.f32 %v1267, %v1344
        %v1346 = vpop.f32.mrf.mxu0
        %v1347 = vadd.f32 %v1269, %v1346
        %1348 = vdwg.mxu0
        %1349 = vmatprep.subr.mxu0 0.0
        %1350 = vmatpush1.msra.mxu0 0.0
        %1351 = vmatprep.subr.mxu0 0.0
        %1352 = vmatpush1.msra.mxu0 0.0
        %1353 = vmatprep.subr.mxu0 0.0
        %1354 = vmatpush1.msra.mxu0 0.0
        %1355 = vmatprep.subr.mxu0 0.0
        %1356 = vmatpush1.msra.mxu0 0.0
        %1357 = vmatprep.subr.mxu0 0.0
        %1358 = vmatpush1.msra.mxu0 0.0
        %1359 = vmatprep.subr.mxu0 0.0
        %1360 = vmatpush1.msra.mxu0 0.0
        %1361 = vmatprep.subr.mxu0 0.0
        %1362 = vmatpush1.msra.mxu0 0.0
        %1363 = vmatprep.subr.mxu0 0.0
        %1364 = vmatpush1.msra.mxu0 0.0
        %1365 = vmatprep.subr.mxu0 0.0
        %1366 = vmatpush1.msra.mxu0 0.0
        %1367 = vmatprep.subr.mxu0 0.0
        %1368 = vmatpush1.msra.mxu0 0.0
        %1369 = vmatprep.subr.mxu0 0.0
        %1370 = vmatpush1.msra.mxu0 0.0
        %1371 = vmatprep.subr.mxu0 0.0
        %1372 = vmatpush1.msra.mxu0 0.0
        %1373 = vmatprep.subr.mxu0 0.0
        %1374 = vmatpush1.msra.mxu0 0.0
        %1375 = vmatprep.subr.mxu0 0.0
        %1376 = vmatpush1.msra.mxu0 0.0
        %1377 = vmatprep.subr.mxu0 0.0
        %1378 = vmatpush1.msra.mxu0 0.0
        %v1379 = vand.u32 %v470, 4294901760
        %1380 = vmatprep.subr.mxu0 %v1379
        %v1381 = vand.u32 %v469, 4294901760
        %1382 = vmatpush1.msra.mxu0 %v1381
        %1383 = vmatprep.subr.mxu0 0.0
        %1384 = vmatpush2.msra.mxu0 0.0
        %1385 = vmatprep.subr.mxu0 0.0
        %1386 = vmatpush2.msra.mxu0 0.0
        %1387 = vmatprep.subr.mxu0 0.0
        %1388 = vmatpush2.msra.mxu0 0.0
        %1389 = vmatprep.subr.mxu0 0.0
        %1390 = vmatpush2.msra.mxu0 0.0
        %1391 = vmatprep.subr.mxu0 0.0
        %1392 = vmatpush2.msra.mxu0 0.0
        %1393 = vmatprep.subr.mxu0 0.0
        %1394 = vmatpush2.msra.mxu0 0.0
        %1395 = vmatprep.subr.mxu0 0.0
        %1396 = vmatpush2.msra.mxu0 0.0
        %1397 = vmatprep.subr.mxu0 0.0
        %1398 = vmatpush2.msra.mxu0 0.0
        %1399 = vmatprep.subr.mxu0 0.0
        %1400 = vmatpush2.msra.mxu0 0.0
        %1401 = vmatprep.subr.mxu0 0.0
        %1402 = vmatpush2.msra.mxu0 0.0
        %1403 = vmatprep.subr.mxu0 0.0
        %1404 = vmatpush2.msra.mxu0 0.0
        %1405 = vmatprep.subr.mxu0 0.0
        %1406 = vmatpush2.msra.mxu0 0.0
        %1407 = vmatprep.subr.mxu0 0.0
        %1408 = vmatpush2.msra.mxu0 0.0
        %1409 = vmatprep.subr.mxu0 0.0
        %1410 = vmatpush2.msra.mxu0 0.0
        %1411 = vmatprep.subr.mxu0 0.0
        %1412 = vmatpush2.msra.mxu0 0.0
        %1413 = vmatprep.subr.mxu0 0.0
        %1414 = vmatpush2.msra.mxu0 0.0
        %1415 = vmatprep.mubr.f32.mxu0 0.0
        %v1416 = vand.u32 %v956, 4294901760
        %1417 = vmatmul.mubr.f32.gmra.mxu0 %v1416
        %v1418 = vpop.f32.mrf.mxu0
        %v1419 = vadd.f32 %v1345, %v1418
        %v1420 = vpop.f32.mrf.mxu0
        %v1421 = vadd.f32 %v1347, %v1420
        %1422 = vdwg.mxu0
        %s1423 = scalar_lea.vmem %s2, 16
        %v1424 = vld [vmem:[%s1423] sm:$0xff]
        %1425 = vrot.lane.b32.xlu0 %v469, 112
        %v1426 = vpop.permute.xlu0 %1425
        %1427 = vrot.lane.b32.xlu0 %v470, 112
        %v1428 = vpop.permute.xlu0 %1427
        %vm1429 = vcmask 916480
        %v1430 = vsel %vm1429, %v1426, %v1428
        %v1433 = vsel %vm1429, %v1428, 0.0
        %v1435 = vsel %vm486, %v1424, 0
        %1437 = vmatprep.subr.mxu0 0.0
        %1438 = vmatpush1.msra.mxu0 0.0
        %1439 = vmatprep.subr.mxu0 0.0
        %1440 = vmatpush1.msra.mxu0 0.0
        %1441 = vmatprep.subr.mxu0 0.0
        %1442 = vmatpush1.msra.mxu0 0.0
        %1443 = vmatprep.subr.mxu0 0.0
        %1444 = vmatpush1.msra.mxu0 0.0
        %1445 = vmatprep.subr.mxu0 0.0
        %1446 = vmatpush1.msra.mxu0 0.0
        %1447 = vmatprep.subr.mxu0 0.0
        %1448 = vmatpush1.msra.mxu0 0.0
        %1449 = vmatprep.subr.mxu0 0.0
        %1450 = vmatpush1.msra.mxu0 0.0
        %1451 = vmatprep.subr.mxu0 0.0
        %1452 = vmatpush1.msra.mxu0 0.0
        %1453 = vmatprep.subr.mxu0 0.0
        %1454 = vmatpush1.msra.mxu0 0.0
        %1455 = vmatprep.subr.mxu0 0.0
        %1456 = vmatpush1.msra.mxu0 0.0
        %1457 = vmatprep.subr.mxu0 0.0
        %1458 = vmatpush1.msra.mxu0 0.0
        %1459 = vmatprep.subr.mxu0 0.0
        %1460 = vmatpush1.msra.mxu0 0.0
        %1461 = vmatprep.subr.mxu0 0.0
        %1462 = vmatpush1.msra.mxu0 0.0
        %1463 = vmatprep.subr.mxu0 0.0
        %1464 = vmatpush1.msra.mxu0 0.0
        %1465 = vmatprep.subr.mxu0 0.0
        %1466 = vmatpush1.msra.mxu0 0.0
        %v1467 = vand.u32 %v1433, 4294901760
        %1468 = vmatprep.subr.mxu0 %v1467
        %v1469 = vand.u32 %v1430, 4294901760
        %1470 = vmatpush1.msra.mxu0 %v1469
        %1471 = vmatprep.subr.mxu0 0.0
        %1472 = vmatpush2.msra.mxu0 0.0
        %1473 = vmatprep.subr.mxu0 0.0
        %1474 = vmatpush2.msra.mxu0 0.0
        %1475 = vmatprep.subr.mxu0 0.0
        %1476 = vmatpush2.msra.mxu0 0.0
        %1477 = vmatprep.subr.mxu0 0.0
        %1478 = vmatpush2.msra.mxu0 0.0
        %1479 = vmatprep.subr.mxu0 0.0
        %1480 = vmatpush2.msra.mxu0 0.0
        %1481 = vmatprep.subr.mxu0 0.0
        %1482 = vmatpush2.msra.mxu0 0.0
        %1483 = vmatprep.subr.mxu0 0.0
        %1484 = vmatpush2.msra.mxu0 0.0
        %1485 = vmatprep.subr.mxu0 0.0
        %1486 = vmatpush2.msra.mxu0 0.0
        %1487 = vmatprep.subr.mxu0 0.0
        %1488 = vmatpush2.msra.mxu0 0.0
        %1489 = vmatprep.subr.mxu0 0.0
        %1490 = vmatpush2.msra.mxu0 0.0
        %1491 = vmatprep.subr.mxu0 0.0
        %1492 = vmatpush2.msra.mxu0 0.0
        %1493 = vmatprep.subr.mxu0 0.0
        %1494 = vmatpush2.msra.mxu0 0.0
        %1495 = vmatprep.subr.mxu0 0.0
        %1496 = vmatpush2.msra.mxu0 0.0
        %1497 = vmatprep.subr.mxu0 0.0
        %1498 = vmatpush2.msra.mxu0 0.0
        %1499 = vmatprep.subr.mxu0 0.0
        %1500 = vmatpush2.msra.mxu0 0.0
        %1501 = vmatprep.subr.mxu0 0.0
        %1502 = vmatpush2.msra.mxu0 0.0
        %1503 = vmatprep.mubr.f32.mxu0 0.0
        %v1504 = vand.u32 %v1435, 4294901760
        %v1505 = vsub.f32 %v1435, %v1504
        %v1506 = vand.u32 %v1505, 4294901760
        %v1507 = vsub.f32 %v1505, %v1506
        %v1508 = vand.u32 %v1507, 4294901760
        %1509 = vmatmul.mubr.f32.gmra.mxu0 %v1508
        %v1510 = vpop.f32.mrf.mxu0
        %v1511 = vadd.f32 0.0, %v1510
        %v1512 = vpop.f32.mrf.mxu0
        %v1513 = vadd.f32 0.0, %v1512
        %1514 = vdwg.mxu0
        %1515 = vmatprep.subr.mxu0 0.0
        %1516 = vmatpush1.msra.mxu0 0.0
        %1517 = vmatprep.subr.mxu0 0.0
        %1518 = vmatpush1.msra.mxu0 0.0
        %1519 = vmatprep.subr.mxu0 0.0
        %1520 = vmatpush1.msra.mxu0 0.0
        %1521 = vmatprep.subr.mxu0 0.0
        %1522 = vmatpush1.msra.mxu0 0.0
        %1523 = vmatprep.subr.mxu0 0.0
        %1524 = vmatpush1.msra.mxu0 0.0
        %1525 = vmatprep.subr.mxu0 0.0
        %1526 = vmatpush1.msra.mxu0 0.0
        %1527 = vmatprep.subr.mxu0 0.0
        %1528 = vmatpush1.msra.mxu0 0.0
        %1529 = vmatprep.subr.mxu0 0.0
        %1530 = vmatpush1.msra.mxu0 0.0
        %1531 = vmatprep.subr.mxu0 0.0
        %1532 = vmatpush1.msra.mxu0 0.0
        %1533 = vmatprep.subr.mxu0 0.0
        %1534 = vmatpush1.msra.mxu0 0.0
        %1535 = vmatprep.subr.mxu0 0.0
        %1536 = vmatpush1.msra.mxu0 0.0
        %1537 = vmatprep.subr.mxu0 0.0
        %1538 = vmatpush1.msra.mxu0 0.0
        %1539 = vmatprep.subr.mxu0 0.0
        %1540 = vmatpush1.msra.mxu0 0.0
        %1541 = vmatprep.subr.mxu0 0.0
        %1542 = vmatpush1.msra.mxu0 0.0
        %1543 = vmatprep.subr.mxu0 0.0
        %1544 = vmatpush1.msra.mxu0 0.0
        %v1545 = vand.u32 %v1433, 4294901760
        %v1546 = vsub.f32 %v1433, %v1545
        %v1547 = vand.u32 %v1546, 4294901760
        %v1548 = vsub.f32 %v1546, %v1547
        %v1549 = vand.u32 %v1548, 4294901760
        %1550 = vmatprep.subr.mxu0 %v1549
        %v1551 = vand.u32 %v1430, 4294901760
        %v1552 = vsub.f32 %v1430, %v1551
        %v1553 = vand.u32 %v1552, 4294901760
        %v1554 = vsub.f32 %v1552, %v1553
        %v1555 = vand.u32 %v1554, 4294901760
        %1556 = vmatpush1.msra.mxu0 %v1555
        %1557 = vmatprep.subr.mxu0 0.0
        %1558 = vmatpush2.msra.mxu0 0.0
        %1559 = vmatprep.subr.mxu0 0.0
        %1560 = vmatpush2.msra.mxu0 0.0
        %1561 = vmatprep.subr.mxu0 0.0
        %1562 = vmatpush2.msra.mxu0 0.0
        %1563 = vmatprep.subr.mxu0 0.0
        %1564 = vmatpush2.msra.mxu0 0.0
        %1565 = vmatprep.subr.mxu0 0.0
        %1566 = vmatpush2.msra.mxu0 0.0
        %1567 = vmatprep.subr.mxu0 0.0
        %1568 = vmatpush2.msra.mxu0 0.0
        %1569 = vmatprep.subr.mxu0 0.0
        %1570 = vmatpush2.msra.mxu0 0.0
        %1571 = vmatprep.subr.mxu0 0.0
        %1572 = vmatpush2.msra.mxu0 0.0
        %1573 = vmatprep.subr.mxu0 0.0
        %1574 = vmatpush2.msra.mxu0 0.0
        %1575 = vmatprep.subr.mxu0 0.0
        %1576 = vmatpush2.msra.mxu0 0.0
        %1577 = vmatprep.subr.mxu0 0.0
        %1578 = vmatpush2.msra.mxu0 0.0
        %1579 = vmatprep.subr.mxu0 0.0
        %1580 = vmatpush2.msra.mxu0 0.0
        %1581 = vmatprep.subr.mxu0 0.0
        %1582 = vmatpush2.msra.mxu0 0.0
        %1583 = vmatprep.subr.mxu0 0.0
        %1584 = vmatpush2.msra.mxu0 0.0
        %1585 = vmatprep.subr.mxu0 0.0
        %1586 = vmatpush2.msra.mxu0 0.0
        %1587 = vmatprep.subr.mxu0 0.0
        %1588 = vmatpush2.msra.mxu0 0.0
        %1589 = vmatprep.mubr.f32.mxu0 0.0
        %v1590 = vand.u32 %v1435, 4294901760
        %1591 = vmatmul.mubr.f32.gmra.mxu0 %v1590
        %v1592 = vpop.f32.mrf.mxu0
        %v1593 = vadd.f32 %v1511, %v1592
        %v1594 = vpop.f32.mrf.mxu0
        %v1595 = vadd.f32 %v1513, %v1594
        %1596 = vdwg.mxu0
        %1597 = vmatprep.subr.mxu0 0.0
        %1598 = vmatpush1.msra.mxu0 0.0
        %1599 = vmatprep.subr.mxu0 0.0
        %1600 = vmatpush1.msra.mxu0 0.0
        %1601 = vmatprep.subr.mxu0 0.0
        %1602 = vmatpush1.msra.mxu0 0.0
        %1603 = vmatprep.subr.mxu0 0.0
        %1604 = vmatpush1.msra.mxu0 0.0
        %1605 = vmatprep.subr.mxu0 0.0
        %1606 = vmatpush1.msra.mxu0 0.0
        %1607 = vmatprep.subr.mxu0 0.0
        %1608 = vmatpush1.msra.mxu0 0.0
        %1609 = vmatprep.subr.mxu0 0.0
        %1610 = vmatpush1.msra.mxu0 0.0
        %1611 = vmatprep.subr.mxu0 0.0
        %1612 = vmatpush1.msra.mxu0 0.0
        %1613 = vmatprep.subr.mxu0 0.0
        %1614 = vmatpush1.msra.mxu0 0.0
        %1615 = vmatprep.subr.mxu0 0.0
        %1616 = vmatpush1.msra.mxu0 0.0
        %1617 = vmatprep.subr.mxu0 0.0
        %1618 = vmatpush1.msra.mxu0 0.0
        %1619 = vmatprep.subr.mxu0 0.0
        %1620 = vmatpush1.msra.mxu0 0.0
        %1621 = vmatprep.subr.mxu0 0.0
        %1622 = vmatpush1.msra.mxu0 0.0
        %1623 = vmatprep.subr.mxu0 0.0
        %1624 = vmatpush1.msra.mxu0 0.0
        %1625 = vmatprep.subr.mxu0 0.0
        %1626 = vmatpush1.msra.mxu0 0.0
        %v1627 = vand.u32 %v1433, 4294901760
        %v1628 = vsub.f32 %v1433, %v1627
        %1629 = vmatprep.subr.mxu0 %v1628
        %v1630 = vand.u32 %v1430, 4294901760
        %v1631 = vsub.f32 %v1430, %v1630
        %1632 = vmatpush1.msra.mxu0 %v1631
        %1633 = vmatprep.subr.mxu0 0.0
        %1634 = vmatpush2.msra.mxu0 0.0
        %1635 = vmatprep.subr.mxu0 0.0
        %1636 = vmatpush2.msra.mxu0 0.0
        %1637 = vmatprep.subr.mxu0 0.0
        %1638 = vmatpush2.msra.mxu0 0.0
        %1639 = vmatprep.subr.mxu0 0.0
        %1640 = vmatpush2.msra.mxu0 0.0
        %1641 = vmatprep.subr.mxu0 0.0
        %1642 = vmatpush2.msra.mxu0 0.0
        %1643 = vmatprep.subr.mxu0 0.0
        %1644 = vmatpush2.msra.mxu0 0.0
        %1645 = vmatprep.subr.mxu0 0.0
        %1646 = vmatpush2.msra.mxu0 0.0
        %1647 = vmatprep.subr.mxu0 0.0
        %1648 = vmatpush2.msra.mxu0 0.0
        %1649 = vmatprep.subr.mxu0 0.0
        %1650 = vmatpush2.msra.mxu0 0.0
        %1651 = vmatprep.subr.mxu0 0.0
        %1652 = vmatpush2.msra.mxu0 0.0
        %1653 = vmatprep.subr.mxu0 0.0
        %1654 = vmatpush2.msra.mxu0 0.0
        %1655 = vmatprep.subr.mxu0 0.0
        %1656 = vmatpush2.msra.mxu0 0.0
        %1657 = vmatprep.subr.mxu0 0.0
        %1658 = vmatpush2.msra.mxu0 0.0
        %1659 = vmatprep.subr.mxu0 0.0
        %1660 = vmatpush2.msra.mxu0 0.0
        %1661 = vmatprep.subr.mxu0 0.0
        %1662 = vmatpush2.msra.mxu0 0.0
        %1663 = vmatprep.subr.mxu0 0.0
        %1664 = vmatpush2.msra.mxu0 0.0
        %1665 = vmatprep.mubr.f32.mxu0 0.0
        %v1666 = vand.u32 %v1435, 4294901760
        %v1667 = vsub.f32 %v1435, %v1666
        %1668 = vmatmul.mubr.f32.gmra.mxu0 %v1667
        %v1669 = vpop.f32.mrf.mxu0
        %v1670 = vadd.f32 %v1593, %v1669
        %v1671 = vpop.f32.mrf.mxu0
        %v1672 = vadd.f32 %v1595, %v1671
        %1673 = vdwg.mxu0
        %1674 = vmatprep.subr.mxu0 0.0
        %1675 = vmatpush1.msra.mxu0 0.0
        %1676 = vmatprep.subr.mxu0 0.0
        %1677 = vmatpush1.msra.mxu0 0.0
        %1678 = vmatprep.subr.mxu0 0.0
        %1679 = vmatpush1.msra.mxu0 0.0
        %1680 = vmatprep.subr.mxu0 0.0
        %1681 = vmatpush1.msra.mxu0 0.0
        %1682 = vmatprep.subr.mxu0 0.0
        %1683 = vmatpush1.msra.mxu0 0.0
        %1684 = vmatprep.subr.mxu0 0.0
        %1685 = vmatpush1.msra.mxu0 0.0
        %1686 = vmatprep.subr.mxu0 0.0
        %1687 = vmatpush1.msra.mxu0 0.0
        %1688 = vmatprep.subr.mxu0 0.0
        %1689 = vmatpush1.msra.mxu0 0.0
        %1690 = vmatprep.subr.mxu0 0.0
        %1691 = vmatpush1.msra.mxu0 0.0
        %1692 = vmatprep.subr.mxu0 0.0
        %1693 = vmatpush1.msra.mxu0 0.0
        %1694 = vmatprep.subr.mxu0 0.0
        %1695 = vmatpush1.msra.mxu0 0.0
        %1696 = vmatprep.subr.mxu0 0.0
        %1697 = vmatpush1.msra.mxu0 0.0
        %1698 = vmatprep.subr.mxu0 0.0
        %1699 = vmatpush1.msra.mxu0 0.0
        %1700 = vmatprep.subr.mxu0 0.0
        %1701 = vmatpush1.msra.mxu0 0.0
        %1702 = vmatprep.subr.mxu0 0.0
        %1703 = vmatpush1.msra.mxu0 0.0
        %v1704 = vand.u32 %v1433, 4294901760
        %1705 = vmatprep.subr.mxu0 %v1704
        %v1706 = vand.u32 %v1430, 4294901760
        %1707 = vmatpush1.msra.mxu0 %v1706
        %1708 = vmatprep.subr.mxu0 0.0
        %1709 = vmatpush2.msra.mxu0 0.0
        %1710 = vmatprep.subr.mxu0 0.0
        %1711 = vmatpush2.msra.mxu0 0.0
        %1712 = vmatprep.subr.mxu0 0.0
        %1713 = vmatpush2.msra.mxu0 0.0
        %1714 = vmatprep.subr.mxu0 0.0
        %1715 = vmatpush2.msra.mxu0 0.0
        %1716 = vmatprep.subr.mxu0 0.0
        %1717 = vmatpush2.msra.mxu0 0.0
        %1718 = vmatprep.subr.mxu0 0.0
        %1719 = vmatpush2.msra.mxu0 0.0
        %1720 = vmatprep.subr.mxu0 0.0
        %1721 = vmatpush2.msra.mxu0 0.0
        %1722 = vmatprep.subr.mxu0 0.0
        %1723 = vmatpush2.msra.mxu0 0.0
        %1724 = vmatprep.subr.mxu0 0.0
        %1725 = vmatpush2.msra.mxu0 0.0
        %1726 = vmatprep.subr.mxu0 0.0
        %1727 = vmatpush2.msra.mxu0 0.0
        %1728 = vmatprep.subr.mxu0 0.0
        %1729 = vmatpush2.msra.mxu0 0.0
        %1730 = vmatprep.subr.mxu0 0.0
        %1731 = vmatpush2.msra.mxu0 0.0
        %1732 = vmatprep.subr.mxu0 0.0
        %1733 = vmatpush2.msra.mxu0 0.0
        %1734 = vmatprep.subr.mxu0 0.0
        %1735 = vmatpush2.msra.mxu0 0.0
        %1736 = vmatprep.subr.mxu0 0.0
        %1737 = vmatpush2.msra.mxu0 0.0
        %1738 = vmatprep.subr.mxu0 0.0
        %1739 = vmatpush2.msra.mxu0 0.0
        %1740 = vmatprep.mubr.f32.mxu0 0.0
        %v1741 = vand.u32 %v1435, 4294901760
        %v1742 = vsub.f32 %v1435, %v1741
        %v1743 = vand.u32 %v1742, 4294901760
        %1744 = vmatmul.mubr.f32.gmra.mxu0 %v1743
        %v1745 = vpop.f32.mrf.mxu0
        %v1746 = vadd.f32 %v1670, %v1745
        %v1747 = vpop.f32.mrf.mxu0
        %v1748 = vadd.f32 %v1672, %v1747
        %1749 = vdwg.mxu0
        %1750 = vmatprep.subr.mxu0 0.0
        %1751 = vmatpush1.msra.mxu0 0.0
        %1752 = vmatprep.subr.mxu0 0.0
        %1753 = vmatpush1.msra.mxu0 0.0
        %1754 = vmatprep.subr.mxu0 0.0
        %1755 = vmatpush1.msra.mxu0 0.0
        %1756 = vmatprep.subr.mxu0 0.0
        %1757 = vmatpush1.msra.mxu0 0.0
        %1758 = vmatprep.subr.mxu0 0.0
        %1759 = vmatpush1.msra.mxu0 0.0
        %1760 = vmatprep.subr.mxu0 0.0
        %1761 = vmatpush1.msra.mxu0 0.0
        %1762 = vmatprep.subr.mxu0 0.0
        %1763 = vmatpush1.msra.mxu0 0.0
        %1764 = vmatprep.subr.mxu0 0.0
        %1765 = vmatpush1.msra.mxu0 0.0
        %1766 = vmatprep.subr.mxu0 0.0
        %1767 = vmatpush1.msra.mxu0 0.0
        %1768 = vmatprep.subr.mxu0 0.0
        %1769 = vmatpush1.msra.mxu0 0.0
        %1770 = vmatprep.subr.mxu0 0.0
        %1771 = vmatpush1.msra.mxu0 0.0
        %1772 = vmatprep.subr.mxu0 0.0
        %1773 = vmatpush1.msra.mxu0 0.0
        %1774 = vmatprep.subr.mxu0 0.0
        %1775 = vmatpush1.msra.mxu0 0.0
        %1776 = vmatprep.subr.mxu0 0.0
        %1777 = vmatpush1.msra.mxu0 0.0
        %1778 = vmatprep.subr.mxu0 0.0
        %1779 = vmatpush1.msra.mxu0 0.0
        %v1780 = vand.u32 %v1433, 4294901760
        %v1781 = vsub.f32 %v1433, %v1780
        %v1782 = vand.u32 %v1781, 4294901760
        %1783 = vmatprep.subr.mxu0 %v1782
        %v1784 = vand.u32 %v1430, 4294901760
        %v1785 = vsub.f32 %v1430, %v1784
        %v1786 = vand.u32 %v1785, 4294901760
        %1787 = vmatpush1.msra.mxu0 %v1786
        %1788 = vmatprep.subr.mxu0 0.0
        %1789 = vmatpush2.msra.mxu0 0.0
        %1790 = vmatprep.subr.mxu0 0.0
        %1791 = vmatpush2.msra.mxu0 0.0
        %1792 = vmatprep.subr.mxu0 0.0
        %1793 = vmatpush2.msra.mxu0 0.0
        %1794 = vmatprep.subr.mxu0 0.0
        %1795 = vmatpush2.msra.mxu0 0.0
        %1796 = vmatprep.subr.mxu0 0.0
        %1797 = vmatpush2.msra.mxu0 0.0
        %1798 = vmatprep.subr.mxu0 0.0
        %1799 = vmatpush2.msra.mxu0 0.0
        %1800 = vmatprep.subr.mxu0 0.0
        %1801 = vmatpush2.msra.mxu0 0.0
        %1802 = vmatprep.subr.mxu0 0.0
        %1803 = vmatpush2.msra.mxu0 0.0
        %1804 = vmatprep.subr.mxu0 0.0
        %1805 = vmatpush2.msra.mxu0 0.0
        %1806 = vmatprep.subr.mxu0 0.0
        %1807 = vmatpush2.msra.mxu0 0.0
        %1808 = vmatprep.subr.mxu0 0.0
        %1809 = vmatpush2.msra.mxu0 0.0
        %1810 = vmatprep.subr.mxu0 0.0
        %1811 = vmatpush2.msra.mxu0 0.0
        %1812 = vmatprep.subr.mxu0 0.0
        %1813 = vmatpush2.msra.mxu0 0.0
        %1814 = vmatprep.subr.mxu0 0.0
        %1815 = vmatpush2.msra.mxu0 0.0
        %1816 = vmatprep.subr.mxu0 0.0
        %1817 = vmatpush2.msra.mxu0 0.0
        %1818 = vmatprep.subr.mxu0 0.0
        %1819 = vmatpush2.msra.mxu0 0.0
        %1820 = vmatprep.mubr.f32.mxu0 0.0
        %v1821 = vand.u32 %v1435, 4294901760
        %1822 = vmatmul.mubr.f32.gmra.mxu0 %v1821
        %v1823 = vpop.f32.mrf.mxu0
        %v1824 = vadd.f32 %v1746, %v1823
        %v1825 = vpop.f32.mrf.mxu0
        %v1826 = vadd.f32 %v1748, %v1825
        %1827 = vdwg.mxu0
        %1828 = vmatprep.subr.mxu0 0.0
        %1829 = vmatpush1.msra.mxu0 0.0
        %1830 = vmatprep.subr.mxu0 0.0
        %1831 = vmatpush1.msra.mxu0 0.0
        %1832 = vmatprep.subr.mxu0 0.0
        %1833 = vmatpush1.msra.mxu0 0.0
        %1834 = vmatprep.subr.mxu0 0.0
        %1835 = vmatpush1.msra.mxu0 0.0
        %1836 = vmatprep.subr.mxu0 0.0
        %1837 = vmatpush1.msra.mxu0 0.0
        %1838 = vmatprep.subr.mxu0 0.0
        %1839 = vmatpush1.msra.mxu0 0.0
        %1840 = vmatprep.subr.mxu0 0.0
        %1841 = vmatpush1.msra.mxu0 0.0
        %1842 = vmatprep.subr.mxu0 0.0
        %1843 = vmatpush1.msra.mxu0 0.0
        %1844 = vmatprep.subr.mxu0 0.0
        %1845 = vmatpush1.msra.mxu0 0.0
        %1846 = vmatprep.subr.mxu0 0.0
        %1847 = vmatpush1.msra.mxu0 0.0
        %1848 = vmatprep.subr.mxu0 0.0
        %1849 = vmatpush1.msra.mxu0 0.0
        %1850 = vmatprep.subr.mxu0 0.0
        %1851 = vmatpush1.msra.mxu0 0.0
        %1852 = vmatprep.subr.mxu0 0.0
        %1853 = vmatpush1.msra.mxu0 0.0
        %1854 = vmatprep.subr.mxu0 0.0
        %1855 = vmatpush1.msra.mxu0 0.0
        %1856 = vmatprep.subr.mxu0 0.0
        %1857 = vmatpush1.msra.mxu0 0.0
        %v1858 = vand.u32 %v1433, 4294901760
        %1859 = vmatprep.subr.mxu0 %v1858
        %v1860 = vand.u32 %v1430, 4294901760
        %1861 = vmatpush1.msra.mxu0 %v1860
        %1862 = vmatprep.subr.mxu0 0.0
        %1863 = vmatpush2.msra.mxu0 0.0
        %1864 = vmatprep.subr.mxu0 0.0
        %1865 = vmatpush2.msra.mxu0 0.0
        %1866 = vmatprep.subr.mxu0 0.0
        %1867 = vmatpush2.msra.mxu0 0.0
        %1868 = vmatprep.subr.mxu0 0.0
        %1869 = vmatpush2.msra.mxu0 0.0
        %1870 = vmatprep.subr.mxu0 0.0
        %1871 = vmatpush2.msra.mxu0 0.0
        %1872 = vmatprep.subr.mxu0 0.0
        %1873 = vmatpush2.msra.mxu0 0.0
        %1874 = vmatprep.subr.mxu0 0.0
        %1875 = vmatpush2.msra.mxu0 0.0
        %1876 = vmatprep.subr.mxu0 0.0
        %1877 = vmatpush2.msra.mxu0 0.0
        %1878 = vmatprep.subr.mxu0 0.0
        %1879 = vmatpush2.msra.mxu0 0.0
        %1880 = vmatprep.subr.mxu0 0.0
        %1881 = vmatpush2.msra.mxu0 0.0
        %1882 = vmatprep.subr.mxu0 0.0
        %1883 = vmatpush2.msra.mxu0 0.0
        %1884 = vmatprep.subr.mxu0 0.0
        %1885 = vmatpush2.msra.mxu0 0.0
        %1886 = vmatprep.subr.mxu0 0.0
        %1887 = vmatpush2.msra.mxu0 0.0
        %1888 = vmatprep.subr.mxu0 0.0
        %1889 = vmatpush2.msra.mxu0 0.0
        %1890 = vmatprep.subr.mxu0 0.0
        %1891 = vmatpush2.msra.mxu0 0.0
        %1892 = vmatprep.subr.mxu0 0.0
        %1893 = vmatpush2.msra.mxu0 0.0
        %1894 = vmatprep.mubr.f32.mxu0 0.0
        %v1895 = vand.u32 %v1435, 4294901760
        %1896 = vmatmul.mubr.f32.gmra.mxu0 %v1895
        %v1897 = vpop.f32.mrf.mxu0
        %v1898 = vadd.f32 %v1824, %v1897
        %v1899 = vpop.f32.mrf.mxu0
        %v1900 = vadd.f32 %v1826, %v1899
        %1901 = vdwg.mxu0
        %v1902 = vadd.f32 %v1419, %v1898
        %v1903 = vadd.f32 %v1421, %v1900
        %v1904 = vld [vmem:[%s3] sm:$0xff]
        %1906 = vset.pattern.permute.xlu0 0
        %1907 = vperm.xlu0 %1906, %v1904
        %v1908 = vpop.permute.xlu0 %1907
        %v1910 = vadd.f32 %v1902, %v1908
        %v1911 = vadd.f32 %v1903, %v1908
        %v1912 = vmax.f32 %v1910, 0.0
        %v1913 = vmax.f32 %v1911, 0.0
        %s1914 = scalar_lea.vmem [#allocation5], 8
        %v1915 = vld [vmem:[%s1914] sm:$0xff]
        %v1916 = vadd.f32 %v471, -1.0
        %vm1917 = vcmp.ge.f32.partialorder %v1916, 0.0
        %vm1918 = vcmp.le.f32.partialorder %v1916, 15.0
        %vm1919 = vmand %vm1917, %vm1918
        %v1920 = vld [vmem:[#allocation5] sm:$0xff]
        %1923 = vrot.lane.b32.xlu0 %v1912, 1
        %v1924 = vpop.permute.xlu0 %1923
        %1925 = vrot.lane.b32.xlu0 %v1913, 1
        %v1926 = vpop.permute.xlu0 %1925
        %vm1927 = vcmask 7168
        %v1928 = vsel %vm1927, %v1924, %v1926
        %v1931 = vsel %vm1927, 0.0, %v1924
        %v1932 = vsel %vm1919, 1, 0
        %v1933 = vlaneseq
        %v1934 = vshrl.u32 %v1933, 7
        %v1935 = vsub.s32 0, %v1934
        %v1936 = vrot.slane %v1932, %v1935
        %v1937 = vlaneseq
        %v1938 = vshrl.u32 %v1937, 7
        %v1939 = vsub.s32 1, %v1938
        %v1940 = vrot.slane %v1932, %v1939
        %vm1941 = vcmp.eq.s32.totalorder %v1936, 1
        %vm1942 = vcmp.eq.s32.totalorder %v1940, 1
        %v1943 = vsel %vm1941, %v1931, 0.0
        %v1944 = vsel %vm1942, %v1928, 0.0
        %v1946 = vsel %vm486, %v1920, 0
        %1948 = vmatprep.subr.mxu0 0.0
        %1949 = vmatpush1.msra.mxu0 0.0
        %1950 = vmatprep.subr.mxu0 0.0
        %1951 = vmatpush1.msra.mxu0 0.0
        %1952 = vmatprep.subr.mxu0 0.0
        %1953 = vmatpush1.msra.mxu0 0.0
        %1954 = vmatprep.subr.mxu0 0.0
        %1955 = vmatpush1.msra.mxu0 0.0
        %1956 = vmatprep.subr.mxu0 0.0
        %1957 = vmatpush1.msra.mxu0 0.0
        %1958 = vmatprep.subr.mxu0 0.0
        %1959 = vmatpush1.msra.mxu0 0.0
        %1960 = vmatprep.subr.mxu0 0.0
        %1961 = vmatpush1.msra.mxu0 0.0
        %1962 = vmatprep.subr.mxu0 0.0
        %1963 = vmatpush1.msra.mxu0 0.0
        %1964 = vmatprep.subr.mxu0 0.0
        %1965 = vmatpush1.msra.mxu0 0.0
        %1966 = vmatprep.subr.mxu0 0.0
        %1967 = vmatpush1.msra.mxu0 0.0
        %1968 = vmatprep.subr.mxu0 0.0
        %1969 = vmatpush1.msra.mxu0 0.0
        %1970 = vmatprep.subr.mxu0 0.0
        %1971 = vmatpush1.msra.mxu0 0.0
        %1972 = vmatprep.subr.mxu0 0.0
        %1973 = vmatpush1.msra.mxu0 0.0
        %1974 = vmatprep.subr.mxu0 0.0
        %1975 = vmatpush1.msra.mxu0 0.0
        %1976 = vmatprep.subr.mxu0 0.0
        %1977 = vmatpush1.msra.mxu0 0.0
        %v1978 = vand.u32 %v1944, 4294901760
        %1979 = vmatprep.subr.mxu0 %v1978
        %v1980 = vand.u32 %v1943, 4294901760
        %1981 = vmatpush1.msra.mxu0 %v1980
        %1982 = vmatprep.subr.mxu0 0.0
        %1983 = vmatpush2.msra.mxu0 0.0
        %1984 = vmatprep.subr.mxu0 0.0
        %1985 = vmatpush2.msra.mxu0 0.0
        %1986 = vmatprep.subr.mxu0 0.0
        %1987 = vmatpush2.msra.mxu0 0.0
        %1988 = vmatprep.subr.mxu0 0.0
        %1989 = vmatpush2.msra.mxu0 0.0
        %1990 = vmatprep.subr.mxu0 0.0
        %1991 = vmatpush2.msra.mxu0 0.0
        %1992 = vmatprep.subr.mxu0 0.0
        %1993 = vmatpush2.msra.mxu0 0.0
        %1994 = vmatprep.subr.mxu0 0.0
        %1995 = vmatpush2.msra.mxu0 0.0
        %1996 = vmatprep.subr.mxu0 0.0
        %1997 = vmatpush2.msra.mxu0 0.0
        %1998 = vmatprep.subr.mxu0 0.0
        %1999 = vmatpush2.msra.mxu0 0.0
        %2000 = vmatprep.subr.mxu0 0.0
        %2001 = vmatpush2.msra.mxu0 0.0
        %2002 = vmatprep.subr.mxu0 0.0
        %2003 = vmatpush2.msra.mxu0 0.0
        %2004 = vmatprep.subr.mxu0 0.0
        %2005 = vmatpush2.msra.mxu0 0.0
        %2006 = vmatprep.subr.mxu0 0.0
        %2007 = vmatpush2.msra.mxu0 0.0
        %2008 = vmatprep.subr.mxu0 0.0
        %2009 = vmatpush2.msra.mxu0 0.0
        %2010 = vmatprep.subr.mxu0 0.0
        %2011 = vmatpush2.msra.mxu0 0.0
        %2012 = vmatprep.subr.mxu0 0.0
        %2013 = vmatpush2.msra.mxu0 0.0
        %2014 = vmatprep.mubr.f32.mxu0 0.0
        %v2015 = vand.u32 %v1946, 4294901760
        %v2016 = vsub.f32 %v1946, %v2015
        %v2017 = vand.u32 %v2016, 4294901760
        %v2018 = vsub.f32 %v2016, %v2017
        %v2019 = vand.u32 %v2018, 4294901760
        %2020 = vmatmul.mubr.f32.gmra.mxu0 %v2019
        %v2021 = vpop.f32.mrf.mxu0
        %v2022 = vadd.f32 0.0, %v2021
        %v2023 = vpop.f32.mrf.mxu0
        %v2024 = vadd.f32 0.0, %v2023
        %2025 = vdwg.mxu0
        %2026 = vmatprep.subr.mxu0 0.0
        %2027 = vmatpush1.msra.mxu0 0.0
        %2028 = vmatprep.subr.mxu0 0.0
        %2029 = vmatpush1.msra.mxu0 0.0
        %2030 = vmatprep.subr.mxu0 0.0
        %2031 = vmatpush1.msra.mxu0 0.0
        %2032 = vmatprep.subr.mxu0 0.0
        %2033 = vmatpush1.msra.mxu0 0.0
        %2034 = vmatprep.subr.mxu0 0.0
        %2035 = vmatpush1.msra.mxu0 0.0
        %2036 = vmatprep.subr.mxu0 0.0
        %2037 = vmatpush1.msra.mxu0 0.0
        %2038 = vmatprep.subr.mxu0 0.0
        %2039 = vmatpush1.msra.mxu0 0.0
        %2040 = vmatprep.subr.mxu0 0.0
        %2041 = vmatpush1.msra.mxu0 0.0
        %2042 = vmatprep.subr.mxu0 0.0
        %2043 = vmatpush1.msra.mxu0 0.0
        %2044 = vmatprep.subr.mxu0 0.0
        %2045 = vmatpush1.msra.mxu0 0.0
        %2046 = vmatprep.subr.mxu0 0.0
        %2047 = vmatpush1.msra.mxu0 0.0
        %2048 = vmatprep.subr.mxu0 0.0
        %2049 = vmatpush1.msra.mxu0 0.0
        %2050 = vmatprep.subr.mxu0 0.0
        %2051 = vmatpush1.msra.mxu0 0.0
        %2052 = vmatprep.subr.mxu0 0.0
        %2053 = vmatpush1.msra.mxu0 0.0
        %2054 = vmatprep.subr.mxu0 0.0
        %2055 = vmatpush1.msra.mxu0 0.0
        %v2056 = vand.u32 %v1944, 4294901760
        %v2057 = vsub.f32 %v1944, %v2056
        %v2058 = vand.u32 %v2057, 4294901760
        %v2059 = vsub.f32 %v2057, %v2058
        %v2060 = vand.u32 %v2059, 4294901760
        %2061 = vmatprep.subr.mxu0 %v2060
        %v2062 = vand.u32 %v1943, 4294901760
        %v2063 = vsub.f32 %v1943, %v2062
        %v2064 = vand.u32 %v2063, 4294901760
        %v2065 = vsub.f32 %v2063, %v2064
        %v2066 = vand.u32 %v2065, 4294901760
        %2067 = vmatpush1.msra.mxu0 %v2066
        %2068 = vmatprep.subr.mxu0 0.0
        %2069 = vmatpush2.msra.mxu0 0.0
        %2070 = vmatprep.subr.mxu0 0.0
        %2071 = vmatpush2.msra.mxu0 0.0
        %2072 = vmatprep.subr.mxu0 0.0
        %2073 = vmatpush2.msra.mxu0 0.0
        %2074 = vmatprep.subr.mxu0 0.0
        %2075 = vmatpush2.msra.mxu0 0.0
        %2076 = vmatprep.subr.mxu0 0.0
        %2077 = vmatpush2.msra.mxu0 0.0
        %2078 = vmatprep.subr.mxu0 0.0
        %2079 = vmatpush2.msra.mxu0 0.0
        %2080 = vmatprep.subr.mxu0 0.0
        %2081 = vmatpush2.msra.mxu0 0.0
        %2082 = vmatprep.subr.mxu0 0.0
        %2083 = vmatpush2.msra.mxu0 0.0
        %2084 = vmatprep.subr.mxu0 0.0
        %2085 = vmatpush2.msra.mxu0 0.0
        %2086 = vmatprep.subr.mxu0 0.0
        %2087 = vmatpush2.msra.mxu0 0.0
        %2088 = vmatprep.subr.mxu0 0.0
        %2089 = vmatpush2.msra.mxu0 0.0
        %2090 = vmatprep.subr.mxu0 0.0
        %2091 = vmatpush2.msra.mxu0 0.0
        %2092 = vmatprep.subr.mxu0 0.0
        %2093 = vmatpush2.msra.mxu0 0.0
        %2094 = vmatprep.subr.mxu0 0.0
        %2095 = vmatpush2.msra.mxu0 0.0
        %2096 = vmatprep.subr.mxu0 0.0
        %2097 = vmatpush2.msra.mxu0 0.0
        %2098 = vmatprep.subr.mxu0 0.0
        %2099 = vmatpush2.msra.mxu0 0.0
        %2100 = vmatprep.mubr.f32.mxu0 0.0
        %v2101 = vand.u32 %v1946, 4294901760
        %2102 = vmatmul.mubr.f32.gmra.mxu0 %v2101
        %v2103 = vpop.f32.mrf.mxu0
        %v2104 = vadd.f32 %v2022, %v2103
        %v2105 = vpop.f32.mrf.mxu0
        %v2106 = vadd.f32 %v2024, %v2105
        %2107 = vdwg.mxu0
        %2108 = vmatprep.subr.mxu0 0.0
        %2109 = vmatpush1.msra.mxu0 0.0
        %2110 = vmatprep.subr.mxu0 0.0
        %2111 = vmatpush1.msra.mxu0 0.0
        %2112 = vmatprep.subr.mxu0 0.0
        %2113 = vmatpush1.msra.mxu0 0.0
        %2114 = vmatprep.subr.mxu0 0.0
        %2115 = vmatpush1.msra.mxu0 0.0
        %2116 = vmatprep.subr.mxu0 0.0
        %2117 = vmatpush1.msra.mxu0 0.0
        %2118 = vmatprep.subr.mxu0 0.0
        %2119 = vmatpush1.msra.mxu0 0.0
        %2120 = vmatprep.subr.mxu0 0.0
        %2121 = vmatpush1.msra.mxu0 0.0
        %2122 = vmatprep.subr.mxu0 0.0
        %2123 = vmatpush1.msra.mxu0 0.0
        %2124 = vmatprep.subr.mxu0 0.0
        %2125 = vmatpush1.msra.mxu0 0.0
        %2126 = vmatprep.subr.mxu0 0.0
        %2127 = vmatpush1.msra.mxu0 0.0
        %2128 = vmatprep.subr.mxu0 0.0
        %2129 = vmatpush1.msra.mxu0 0.0
        %2130 = vmatprep.subr.mxu0 0.0
        %2131 = vmatpush1.msra.mxu0 0.0
        %2132 = vmatprep.subr.mxu0 0.0
        %2133 = vmatpush1.msra.mxu0 0.0
        %2134 = vmatprep.subr.mxu0 0.0
        %2135 = vmatpush1.msra.mxu0 0.0
        %2136 = vmatprep.subr.mxu0 0.0
        %2137 = vmatpush1.msra.mxu0 0.0
        %v2138 = vand.u32 %v1944, 4294901760
        %v2139 = vsub.f32 %v1944, %v2138
        %2140 = vmatprep.subr.mxu0 %v2139
        %v2141 = vand.u32 %v1943, 4294901760
        %v2142 = vsub.f32 %v1943, %v2141
        %2143 = vmatpush1.msra.mxu0 %v2142
        %2144 = vmatprep.subr.mxu0 0.0
        %2145 = vmatpush2.msra.mxu0 0.0
        %2146 = vmatprep.subr.mxu0 0.0
        %2147 = vmatpush2.msra.mxu0 0.0
        %2148 = vmatprep.subr.mxu0 0.0
        %2149 = vmatpush2.msra.mxu0 0.0
        %2150 = vmatprep.subr.mxu0 0.0
        %2151 = vmatpush2.msra.mxu0 0.0
        %2152 = vmatprep.subr.mxu0 0.0
        %2153 = vmatpush2.msra.mxu0 0.0
        %2154 = vmatprep.subr.mxu0 0.0
        %2155 = vmatpush2.msra.mxu0 0.0
        %2156 = vmatprep.subr.mxu0 0.0
        %2157 = vmatpush2.msra.mxu0 0.0
        %2158 = vmatprep.subr.mxu0 0.0
        %2159 = vmatpush2.msra.mxu0 0.0
        %2160 = vmatprep.subr.mxu0 0.0
        %2161 = vmatpush2.msra.mxu0 0.0
        %2162 = vmatprep.subr.mxu0 0.0
        %2163 = vmatpush2.msra.mxu0 0.0
        %2164 = vmatprep.subr.mxu0 0.0
        %2165 = vmatpush2.msra.mxu0 0.0
        %2166 = vmatprep.subr.mxu0 0.0
        %2167 = vmatpush2.msra.mxu0 0.0
        %2168 = vmatprep.subr.mxu0 0.0
        %2169 = vmatpush2.msra.mxu0 0.0
        %2170 = vmatprep.subr.mxu0 0.0
        %2171 = vmatpush2.msra.mxu0 0.0
        %2172 = vmatprep.subr.mxu0 0.0
        %2173 = vmatpush2.msra.mxu0 0.0
        %2174 = vmatprep.subr.mxu0 0.0
        %2175 = vmatpush2.msra.mxu0 0.0
        %2176 = vmatprep.mubr.f32.mxu0 0.0
        %v2177 = vand.u32 %v1946, 4294901760
        %v2178 = vsub.f32 %v1946, %v2177
        %2179 = vmatmul.mubr.f32.gmra.mxu0 %v2178
        %v2180 = vpop.f32.mrf.mxu0
        %v2181 = vadd.f32 %v2104, %v2180
        %v2182 = vpop.f32.mrf.mxu0
        %v2183 = vadd.f32 %v2106, %v2182
        %2184 = vdwg.mxu0
        %2185 = vmatprep.subr.mxu0 0.0
        %2186 = vmatpush1.msra.mxu0 0.0
        %2187 = vmatprep.subr.mxu0 0.0
        %2188 = vmatpush1.msra.mxu0 0.0
        %2189 = vmatprep.subr.mxu0 0.0
        %2190 = vmatpush1.msra.mxu0 0.0
        %2191 = vmatprep.subr.mxu0 0.0
        %2192 = vmatpush1.msra.mxu0 0.0
        %2193 = vmatprep.subr.mxu0 0.0
        %2194 = vmatpush1.msra.mxu0 0.0
        %2195 = vmatprep.subr.mxu0 0.0
        %2196 = vmatpush1.msra.mxu0 0.0
        %2197 = vmatprep.subr.mxu0 0.0
        %2198 = vmatpush1.msra.mxu0 0.0
        %2199 = vmatprep.subr.mxu0 0.0
        %2200 = vmatpush1.msra.mxu0 0.0
        %2201 = vmatprep.subr.mxu0 0.0
        %2202 = vmatpush1.msra.mxu0 0.0
        %2203 = vmatprep.subr.mxu0 0.0
        %2204 = vmatpush1.msra.mxu0 0.0
        %2205 = vmatprep.subr.mxu0 0.0
        %2206 = vmatpush1.msra.mxu0 0.0
        %2207 = vmatprep.subr.mxu0 0.0
        %2208 = vmatpush1.msra.mxu0 0.0
        %2209 = vmatprep.subr.mxu0 0.0
        %2210 = vmatpush1.msra.mxu0 0.0
        %2211 = vmatprep.subr.mxu0 0.0
        %2212 = vmatpush1.msra.mxu0 0.0
        %2213 = vmatprep.subr.mxu0 0.0
        %2214 = vmatpush1.msra.mxu0 0.0
        %v2215 = vand.u32 %v1944, 4294901760
        %2216 = vmatprep.subr.mxu0 %v2215
        %v2217 = vand.u32 %v1943, 4294901760
        %2218 = vmatpush1.msra.mxu0 %v2217
        %2219 = vmatprep.subr.mxu0 0.0
        %2220 = vmatpush2.msra.mxu0 0.0
        %2221 = vmatprep.subr.mxu0 0.0
        %2222 = vmatpush2.msra.mxu0 0.0
        %2223 = vmatprep.subr.mxu0 0.0
        %2224 = vmatpush2.msra.mxu0 0.0
        %2225 = vmatprep.subr.mxu0 0.0
        %2226 = vmatpush2.msra.mxu0 0.0
        %2227 = vmatprep.subr.mxu0 0.0
        %2228 = vmatpush2.msra.mxu0 0.0
        %2229 = vmatprep.subr.mxu0 0.0
        %2230 = vmatpush2.msra.mxu0 0.0
        %2231 = vmatprep.subr.mxu0 0.0
        %2232 = vmatpush2.msra.mxu0 0.0
        %2233 = vmatprep.subr.mxu0 0.0
        %2234 = vmatpush2.msra.mxu0 0.0
        %2235 = vmatprep.subr.mxu0 0.0
        %2236 = vmatpush2.msra.mxu0 0.0
        %2237 = vmatprep.subr.mxu0 0.0
        %2238 = vmatpush2.msra.mxu0 0.0
        %2239 = vmatprep.subr.mxu0 0.0
        %2240 = vmatpush2.msra.mxu0 0.0
        %2241 = vmatprep.subr.mxu0 0.0
        %2242 = vmatpush2.msra.mxu0 0.0
        %2243 = vmatprep.subr.mxu0 0.0
        %2244 = vmatpush2.msra.mxu0 0.0
        %2245 = vmatprep.subr.mxu0 0.0
        %2246 = vmatpush2.msra.mxu0 0.0
        %2247 = vmatprep.subr.mxu0 0.0
        %2248 = vmatpush2.msra.mxu0 0.0
        %2249 = vmatprep.subr.mxu0 0.0
        %2250 = vmatpush2.msra.mxu0 0.0
        %2251 = vmatprep.mubr.f32.mxu0 0.0
        %v2252 = vand.u32 %v1946, 4294901760
        %v2253 = vsub.f32 %v1946, %v2252
        %v2254 = vand.u32 %v2253, 4294901760
        %2255 = vmatmul.mubr.f32.gmra.mxu0 %v2254
        %v2256 = vpop.f32.mrf.mxu0
        %v2257 = vadd.f32 %v2181, %v2256
        %v2258 = vpop.f32.mrf.mxu0
        %v2259 = vadd.f32 %v2183, %v2258
        %2260 = vdwg.mxu0
        %2261 = vmatprep.subr.mxu0 0.0
        %2262 = vmatpush1.msra.mxu0 0.0
        %2263 = vmatprep.subr.mxu0 0.0
        %2264 = vmatpush1.msra.mxu0 0.0
        %2265 = vmatprep.subr.mxu0 0.0
        %2266 = vmatpush1.msra.mxu0 0.0
        %2267 = vmatprep.subr.mxu0 0.0
        %2268 = vmatpush1.msra.mxu0 0.0
        %2269 = vmatprep.subr.mxu0 0.0
        %2270 = vmatpush1.msra.mxu0 0.0
        %2271 = vmatprep.subr.mxu0 0.0
        %2272 = vmatpush1.msra.mxu0 0.0
        %2273 = vmatprep.subr.mxu0 0.0
        %2274 = vmatpush1.msra.mxu0 0.0
        %2275 = vmatprep.subr.mxu0 0.0
        %2276 = vmatpush1.msra.mxu0 0.0
        %2277 = vmatprep.subr.mxu0 0.0
        %2278 = vmatpush1.msra.mxu0 0.0
        %2279 = vmatprep.subr.mxu0 0.0
        %2280 = vmatpush1.msra.mxu0 0.0
        %2281 = vmatprep.subr.mxu0 0.0
        %2282 = vmatpush1.msra.mxu0 0.0
        %2283 = vmatprep.subr.mxu0 0.0
        %2284 = vmatpush1.msra.mxu0 0.0
        %2285 = vmatprep.subr.mxu0 0.0
        %2286 = vmatpush1.msra.mxu0 0.0
        %2287 = vmatprep.subr.mxu0 0.0
        %2288 = vmatpush1.msra.mxu0 0.0
        %2289 = vmatprep.subr.mxu0 0.0
        %2290 = vmatpush1.msra.mxu0 0.0
        %v2291 = vand.u32 %v1944, 4294901760
        %v2292 = vsub.f32 %v1944, %v2291
        %v2293 = vand.u32 %v2292, 4294901760
        %2294 = vmatprep.subr.mxu0 %v2293
        %v2295 = vand.u32 %v1943, 4294901760
        %v2296 = vsub.f32 %v1943, %v2295
        %v2297 = vand.u32 %v2296, 4294901760
        %2298 = vmatpush1.msra.mxu0 %v2297
        %2299 = vmatprep.subr.mxu0 0.0
        %2300 = vmatpush2.msra.mxu0 0.0
        %2301 = vmatprep.subr.mxu0 0.0
        %2302 = vmatpush2.msra.mxu0 0.0
        %2303 = vmatprep.subr.mxu0 0.0
        %2304 = vmatpush2.msra.mxu0 0.0
        %2305 = vmatprep.subr.mxu0 0.0
        %2306 = vmatpush2.msra.mxu0 0.0
        %2307 = vmatprep.subr.mxu0 0.0
        %2308 = vmatpush2.msra.mxu0 0.0
        %2309 = vmatprep.subr.mxu0 0.0
        %2310 = vmatpush2.msra.mxu0 0.0
        %2311 = vmatprep.subr.mxu0 0.0
        %2312 = vmatpush2.msra.mxu0 0.0
        %2313 = vmatprep.subr.mxu0 0.0
        %2314 = vmatpush2.msra.mxu0 0.0
        %2315 = vmatprep.subr.mxu0 0.0
        %2316 = vmatpush2.msra.mxu0 0.0
        %2317 = vmatprep.subr.mxu0 0.0
        %2318 = vmatpush2.msra.mxu0 0.0
        %2319 = vmatprep.subr.mxu0 0.0
        %2320 = vmatpush2.msra.mxu0 0.0
        %2321 = vmatprep.subr.mxu0 0.0
        %2322 = vmatpush2.msra.mxu0 0.0
        %2323 = vmatprep.subr.mxu0 0.0
        %2324 = vmatpush2.msra.mxu0 0.0
        %2325 = vmatprep.subr.mxu0 0.0
        %2326 = vmatpush2.msra.mxu0 0.0
        %2327 = vmatprep.subr.mxu0 0.0
        %2328 = vmatpush2.msra.mxu0 0.0
        %2329 = vmatprep.subr.mxu0 0.0
        %2330 = vmatpush2.msra.mxu0 0.0
        %2331 = vmatprep.mubr.f32.mxu0 0.0
        %v2332 = vand.u32 %v1946, 4294901760
        %2333 = vmatmul.mubr.f32.gmra.mxu0 %v2332
        %v2334 = vpop.f32.mrf.mxu0
        %v2335 = vadd.f32 %v2257, %v2334
        %v2336 = vpop.f32.mrf.mxu0
        %v2337 = vadd.f32 %v2259, %v2336
        %2338 = vdwg.mxu0
        %2339 = vmatprep.subr.mxu0 0.0
        %2340 = vmatpush1.msra.mxu0 0.0
        %2341 = vmatprep.subr.mxu0 0.0
        %2342 = vmatpush1.msra.mxu0 0.0
        %2343 = vmatprep.subr.mxu0 0.0
        %2344 = vmatpush1.msra.mxu0 0.0
        %2345 = vmatprep.subr.mxu0 0.0
        %2346 = vmatpush1.msra.mxu0 0.0
        %2347 = vmatprep.subr.mxu0 0.0
        %2348 = vmatpush1.msra.mxu0 0.0
        %2349 = vmatprep.subr.mxu0 0.0
        %2350 = vmatpush1.msra.mxu0 0.0
        %2351 = vmatprep.subr.mxu0 0.0
        %2352 = vmatpush1.msra.mxu0 0.0
        %2353 = vmatprep.subr.mxu0 0.0
        %2354 = vmatpush1.msra.mxu0 0.0
        %2355 = vmatprep.subr.mxu0 0.0
        %2356 = vmatpush1.msra.mxu0 0.0
        %2357 = vmatprep.subr.mxu0 0.0
        %2358 = vmatpush1.msra.mxu0 0.0
        %2359 = vmatprep.subr.mxu0 0.0
        %2360 = vmatpush1.msra.mxu0 0.0
        %2361 = vmatprep.subr.mxu0 0.0
        %2362 = vmatpush1.msra.mxu0 0.0
        %2363 = vmatprep.subr.mxu0 0.0
        %2364 = vmatpush1.msra.mxu0 0.0
        %2365 = vmatprep.subr.mxu0 0.0
        %2366 = vmatpush1.msra.mxu0 0.0
        %2367 = vmatprep.subr.mxu0 0.0
        %2368 = vmatpush1.msra.mxu0 0.0
        %v2369 = vand.u32 %v1944, 4294901760
        %2370 = vmatprep.subr.mxu0 %v2369
        %v2371 = vand.u32 %v1943, 4294901760
        %2372 = vmatpush1.msra.mxu0 %v2371
        %2373 = vmatprep.subr.mxu0 0.0
        %2374 = vmatpush2.msra.mxu0 0.0
        %2375 = vmatprep.subr.mxu0 0.0
        %2376 = vmatpush2.msra.mxu0 0.0
        %2377 = vmatprep.subr.mxu0 0.0
        %2378 = vmatpush2.msra.mxu0 0.0
        %2379 = vmatprep.subr.mxu0 0.0
        %2380 = vmatpush2.msra.mxu0 0.0
        %2381 = vmatprep.subr.mxu0 0.0
        %2382 = vmatpush2.msra.mxu0 0.0
        %2383 = vmatprep.subr.mxu0 0.0
        %2384 = vmatpush2.msra.mxu0 0.0
        %2385 = vmatprep.subr.mxu0 0.0
        %2386 = vmatpush2.msra.mxu0 0.0
        %2387 = vmatprep.subr.mxu0 0.0
        %2388 = vmatpush2.msra.mxu0 0.0
        %2389 = vmatprep.subr.mxu0 0.0
        %2390 = vmatpush2.msra.mxu0 0.0
        %2391 = vmatprep.subr.mxu0 0.0
        %2392 = vmatpush2.msra.mxu0 0.0
        %2393 = vmatprep.subr.mxu0 0.0
        %2394 = vmatpush2.msra.mxu0 0.0
        %2395 = vmatprep.subr.mxu0 0.0
        %2396 = vmatpush2.msra.mxu0 0.0
        %2397 = vmatprep.subr.mxu0 0.0
        %2398 = vmatpush2.msra.mxu0 0.0
        %2399 = vmatprep.subr.mxu0 0.0
        %2400 = vmatpush2.msra.mxu0 0.0
        %2401 = vmatprep.subr.mxu0 0.0
        %2402 = vmatpush2.msra.mxu0 0.0
        %2403 = vmatprep.subr.mxu0 0.0
        %2404 = vmatpush2.msra.mxu0 0.0
        %2405 = vmatprep.mubr.f32.mxu0 0.0
        %v2406 = vand.u32 %v1946, 4294901760
        %2407 = vmatmul.mubr.f32.gmra.mxu0 %v2406
        %v2408 = vpop.f32.mrf.mxu0
        %v2409 = vadd.f32 %v2335, %v2408
        %v2410 = vpop.f32.mrf.mxu0
        %v2411 = vadd.f32 %v2337, %v2410
        %2412 = vdwg.mxu0
        %v2414 = vsel %vm486, %v1915, 0
        %2416 = vmatprep.subr.mxu0 0.0
        %2417 = vmatpush1.msra.mxu0 0.0
        %2418 = vmatprep.subr.mxu0 0.0
        %2419 = vmatpush1.msra.mxu0 0.0
        %2420 = vmatprep.subr.mxu0 0.0
        %2421 = vmatpush1.msra.mxu0 0.0
        %2422 = vmatprep.subr.mxu0 0.0
        %2423 = vmatpush1.msra.mxu0 0.0
        %2424 = vmatprep.subr.mxu0 0.0
        %2425 = vmatpush1.msra.mxu0 0.0
        %2426 = vmatprep.subr.mxu0 0.0
        %2427 = vmatpush1.msra.mxu0 0.0
        %2428 = vmatprep.subr.mxu0 0.0
        %2429 = vmatpush1.msra.mxu0 0.0
        %2430 = vmatprep.subr.mxu0 0.0
        %2431 = vmatpush1.msra.mxu0 0.0
        %2432 = vmatprep.subr.mxu0 0.0
        %2433 = vmatpush1.msra.mxu0 0.0
        %2434 = vmatprep.subr.mxu0 0.0
        %2435 = vmatpush1.msra.mxu0 0.0
        %2436 = vmatprep.subr.mxu0 0.0
        %2437 = vmatpush1.msra.mxu0 0.0
        %2438 = vmatprep.subr.mxu0 0.0
        %2439 = vmatpush1.msra.mxu0 0.0
        %2440 = vmatprep.subr.mxu0 0.0
        %2441 = vmatpush1.msra.mxu0 0.0
        %2442 = vmatprep.subr.mxu0 0.0
        %2443 = vmatpush1.msra.mxu0 0.0
        %2444 = vmatprep.subr.mxu0 0.0
        %2445 = vmatpush1.msra.mxu0 0.0
        %v2446 = vand.u32 %v1913, 4294901760
        %2447 = vmatprep.subr.mxu0 %v2446
        %v2448 = vand.u32 %v1912, 4294901760
        %2449 = vmatpush1.msra.mxu0 %v2448
        %2450 = vmatprep.subr.mxu0 0.0
        %2451 = vmatpush2.msra.mxu0 0.0
        %2452 = vmatprep.subr.mxu0 0.0
        %2453 = vmatpush2.msra.mxu0 0.0
        %2454 = vmatprep.subr.mxu0 0.0
        %2455 = vmatpush2.msra.mxu0 0.0
        %2456 = vmatprep.subr.mxu0 0.0
        %2457 = vmatpush2.msra.mxu0 0.0
        %2458 = vmatprep.subr.mxu0 0.0
        %2459 = vmatpush2.msra.mxu0 0.0
        %2460 = vmatprep.subr.mxu0 0.0
        %2461 = vmatpush2.msra.mxu0 0.0
        %2462 = vmatprep.subr.mxu0 0.0
        %2463 = vmatpush2.msra.mxu0 0.0
        %2464 = vmatprep.subr.mxu0 0.0
        %2465 = vmatpush2.msra.mxu0 0.0
        %2466 = vmatprep.subr.mxu0 0.0
        %2467 = vmatpush2.msra.mxu0 0.0
        %2468 = vmatprep.subr.mxu0 0.0
        %2469 = vmatpush2.msra.mxu0 0.0
        %2470 = vmatprep.subr.mxu0 0.0
        %2471 = vmatpush2.msra.mxu0 0.0
        %2472 = vmatprep.subr.mxu0 0.0
        %2473 = vmatpush2.msra.mxu0 0.0
        %2474 = vmatprep.subr.mxu0 0.0
        %2475 = vmatpush2.msra.mxu0 0.0
        %2476 = vmatprep.subr.mxu0 0.0
        %2477 = vmatpush2.msra.mxu0 0.0
        %2478 = vmatprep.subr.mxu0 0.0
        %2479 = vmatpush2.msra.mxu0 0.0
        %2480 = vmatprep.subr.mxu0 0.0
        %2481 = vmatpush2.msra.mxu0 0.0
        %2482 = vmatprep.mubr.f32.mxu0 0.0
        %v2483 = vand.u32 %v2414, 4294901760
        %v2484 = vsub.f32 %v2414, %v2483
        %v2485 = vand.u32 %v2484, 4294901760
        %v2486 = vsub.f32 %v2484, %v2485
        %v2487 = vand.u32 %v2486, 4294901760
        %2488 = vmatmul.mubr.f32.gmra.mxu0 %v2487
        %v2489 = vpop.f32.mrf.mxu0
        %v2490 = vadd.f32 %v2409, %v2489
        %v2491 = vpop.f32.mrf.mxu0
        %v2492 = vadd.f32 %v2411, %v2491
        %2493 = vdwg.mxu0
        %2494 = vmatprep.subr.mxu0 0.0
        %2495 = vmatpush1.msra.mxu0 0.0
        %2496 = vmatprep.subr.mxu0 0.0
        %2497 = vmatpush1.msra.mxu0 0.0
        %2498 = vmatprep.subr.mxu0 0.0
        %2499 = vmatpush1.msra.mxu0 0.0
        %2500 = vmatprep.subr.mxu0 0.0
        %2501 = vmatpush1.msra.mxu0 0.0
        %2502 = vmatprep.subr.mxu0 0.0
        %2503 = vmatpush1.msra.mxu0 0.0
        %2504 = vmatprep.subr.mxu0 0.0
        %2505 = vmatpush1.msra.mxu0 0.0
        %2506 = vmatprep.subr.mxu0 0.0
        %2507 = vmatpush1.msra.mxu0 0.0
        %2508 = vmatprep.subr.mxu0 0.0
        %2509 = vmatpush1.msra.mxu0 0.0
        %2510 = vmatprep.subr.mxu0 0.0
        %2511 = vmatpush1.msra.mxu0 0.0
        %2512 = vmatprep.subr.mxu0 0.0
        %2513 = vmatpush1.msra.mxu0 0.0
        %2514 = vmatprep.subr.mxu0 0.0
        %2515 = vmatpush1.msra.mxu0 0.0
        %2516 = vmatprep.subr.mxu0 0.0
        %2517 = vmatpush1.msra.mxu0 0.0
        %2518 = vmatprep.subr.mxu0 0.0
        %2519 = vmatpush1.msra.mxu0 0.0
        %2520 = vmatprep.subr.mxu0 0.0
        %2521 = vmatpush1.msra.mxu0 0.0
        %2522 = vmatprep.subr.mxu0 0.0
        %2523 = vmatpush1.msra.mxu0 0.0
        %v2524 = vand.u32 %v1913, 4294901760
        %v2525 = vsub.f32 %v1913, %v2524
        %v2526 = vand.u32 %v2525, 4294901760
        %v2527 = vsub.f32 %v2525, %v2526
        %v2528 = vand.u32 %v2527, 4294901760
        %2529 = vmatprep.subr.mxu0 %v2528
        %v2530 = vand.u32 %v1912, 4294901760
        %v2531 = vsub.f32 %v1912, %v2530
        %v2532 = vand.u32 %v2531, 4294901760
        %v2533 = vsub.f32 %v2531, %v2532
        %v2534 = vand.u32 %v2533, 4294901760
        %2535 = vmatpush1.msra.mxu0 %v2534
        %2536 = vmatprep.subr.mxu0 0.0
        %2537 = vmatpush2.msra.mxu0 0.0
        %2538 = vmatprep.subr.mxu0 0.0
        %2539 = vmatpush2.msra.mxu0 0.0
        %2540 = vmatprep.subr.mxu0 0.0
        %2541 = vmatpush2.msra.mxu0 0.0
        %2542 = vmatprep.subr.mxu0 0.0
        %2543 = vmatpush2.msra.mxu0 0.0
        %2544 = vmatprep.subr.mxu0 0.0
        %2545 = vmatpush2.msra.mxu0 0.0
        %2546 = vmatprep.subr.mxu0 0.0
        %2547 = vmatpush2.msra.mxu0 0.0
        %2548 = vmatprep.subr.mxu0 0.0
        %2549 = vmatpush2.msra.mxu0 0.0
        %2550 = vmatprep.subr.mxu0 0.0
        %2551 = vmatpush2.msra.mxu0 0.0
        %2552 = vmatprep.subr.mxu0 0.0
        %2553 = vmatpush2.msra.mxu0 0.0
        %2554 = vmatprep.subr.mxu0 0.0
        %2555 = vmatpush2.msra.mxu0 0.0
        %2556 = vmatprep.subr.mxu0 0.0
        %2557 = vmatpush2.msra.mxu0 0.0
        %2558 = vmatprep.subr.mxu0 0.0
        %2559 = vmatpush2.msra.mxu0 0.0
        %2560 = vmatprep.subr.mxu0 0.0
        %2561 = vmatpush2.msra.mxu0 0.0
        %2562 = vmatprep.subr.mxu0 0.0
        %2563 = vmatpush2.msra.mxu0 0.0
        %2564 = vmatprep.subr.mxu0 0.0
        %2565 = vmatpush2.msra.mxu0 0.0
        %2566 = vmatprep.subr.mxu0 0.0
        %2567 = vmatpush2.msra.mxu0 0.0
        %2568 = vmatprep.mubr.f32.mxu0 0.0
        %v2569 = vand.u32 %v2414, 4294901760
        %2570 = vmatmul.mubr.f32.gmra.mxu0 %v2569
        %v2571 = vpop.f32.mrf.mxu0
        %v2572 = vadd.f32 %v2490, %v2571
        %v2573 = vpop.f32.mrf.mxu0
        %v2574 = vadd.f32 %v2492, %v2573
        %2575 = vdwg.mxu0
        %2576 = vmatprep.subr.mxu0 0.0
        %2577 = vmatpush1.msra.mxu0 0.0
        %2578 = vmatprep.subr.mxu0 0.0
        %2579 = vmatpush1.msra.mxu0 0.0
        %2580 = vmatprep.subr.mxu0 0.0
        %2581 = vmatpush1.msra.mxu0 0.0
        %2582 = vmatprep.subr.mxu0 0.0
        %2583 = vmatpush1.msra.mxu0 0.0
        %2584 = vmatprep.subr.mxu0 0.0
        %2585 = vmatpush1.msra.mxu0 0.0
        %2586 = vmatprep.subr.mxu0 0.0
        %2587 = vmatpush1.msra.mxu0 0.0
        %2588 = vmatprep.subr.mxu0 0.0
        %2589 = vmatpush1.msra.mxu0 0.0
        %2590 = vmatprep.subr.mxu0 0.0
        %2591 = vmatpush1.msra.mxu0 0.0
        %2592 = vmatprep.subr.mxu0 0.0
        %2593 = vmatpush1.msra.mxu0 0.0
        %2594 = vmatprep.subr.mxu0 0.0
        %2595 = vmatpush1.msra.mxu0 0.0
        %2596 = vmatprep.subr.mxu0 0.0
        %2597 = vmatpush1.msra.mxu0 0.0
        %2598 = vmatprep.subr.mxu0 0.0
        %2599 = vmatpush1.msra.mxu0 0.0
        %2600 = vmatprep.subr.mxu0 0.0
        %2601 = vmatpush1.msra.mxu0 0.0
        %2602 = vmatprep.subr.mxu0 0.0
        %2603 = vmatpush1.msra.mxu0 0.0
        %2604 = vmatprep.subr.mxu0 0.0
        %2605 = vmatpush1.msra.mxu0 0.0
        %v2606 = vand.u32 %v1913, 4294901760
        %v2607 = vsub.f32 %v1913, %v2606
        %2608 = vmatprep.subr.mxu0 %v2607
        %v2609 = vand.u32 %v1912, 4294901760
        %v2610 = vsub.f32 %v1912, %v2609
        %2611 = vmatpush1.msra.mxu0 %v2610
        %2612 = vmatprep.subr.mxu0 0.0
        %2613 = vmatpush2.msra.mxu0 0.0
        %2614 = vmatprep.subr.mxu0 0.0
        %2615 = vmatpush2.msra.mxu0 0.0
        %2616 = vmatprep.subr.mxu0 0.0
        %2617 = vmatpush2.msra.mxu0 0.0
        %2618 = vmatprep.subr.mxu0 0.0
        %2619 = vmatpush2.msra.mxu0 0.0
        %2620 = vmatprep.subr.mxu0 0.0
        %2621 = vmatpush2.msra.mxu0 0.0
        %2622 = vmatprep.subr.mxu0 0.0
        %2623 = vmatpush2.msra.mxu0 0.0
        %2624 = vmatprep.subr.mxu0 0.0
        %2625 = vmatpush2.msra.mxu0 0.0
        %2626 = vmatprep.subr.mxu0 0.0
        %2627 = vmatpush2.msra.mxu0 0.0
        %2628 = vmatprep.subr.mxu0 0.0
        %2629 = vmatpush2.msra.mxu0 0.0
        %2630 = vmatprep.subr.mxu0 0.0
        %2631 = vmatpush2.msra.mxu0 0.0
        %2632 = vmatprep.subr.mxu0 0.0
        %2633 = vmatpush2.msra.mxu0 0.0
        %2634 = vmatprep.subr.mxu0 0.0
        %2635 = vmatpush2.msra.mxu0 0.0
        %2636 = vmatprep.subr.mxu0 0.0
        %2637 = vmatpush2.msra.mxu0 0.0
        %2638 = vmatprep.subr.mxu0 0.0
        %2639 = vmatpush2.msra.mxu0 0.0
        %2640 = vmatprep.subr.mxu0 0.0
        %2641 = vmatpush2.msra.mxu0 0.0
        %2642 = vmatprep.subr.mxu0 0.0
        %2643 = vmatpush2.msra.mxu0 0.0
        %2644 = vmatprep.mubr.f32.mxu0 0.0
        %v2645 = vand.u32 %v2414, 4294901760
        %v2646 = vsub.f32 %v2414, %v2645
        %2647 = vmatmul.mubr.f32.gmra.mxu0 %v2646
        %v2648 = vpop.f32.mrf.mxu0
        %v2649 = vadd.f32 %v2572, %v2648
        %v2650 = vpop.f32.mrf.mxu0
        %v2651 = vadd.f32 %v2574, %v2650
        %2652 = vdwg.mxu0
        %2653 = vmatprep.subr.mxu0 0.0
        %2654 = vmatpush1.msra.mxu0 0.0
        %2655 = vmatprep.subr.mxu0 0.0
        %2656 = vmatpush1.msra.mxu0 0.0
        %2657 = vmatprep.subr.mxu0 0.0
        %2658 = vmatpush1.msra.mxu0 0.0
        %2659 = vmatprep.subr.mxu0 0.0
        %2660 = vmatpush1.msra.mxu0 0.0
        %2661 = vmatprep.subr.mxu0 0.0
        %2662 = vmatpush1.msra.mxu0 0.0
        %2663 = vmatprep.subr.mxu0 0.0
        %2664 = vmatpush1.msra.mxu0 0.0
        %2665 = vmatprep.subr.mxu0 0.0
        %2666 = vmatpush1.msra.mxu0 0.0
        %2667 = vmatprep.subr.mxu0 0.0
        %2668 = vmatpush1.msra.mxu0 0.0
        %2669 = vmatprep.subr.mxu0 0.0
        %2670 = vmatpush1.msra.mxu0 0.0
        %2671 = vmatprep.subr.mxu0 0.0
        %2672 = vmatpush1.msra.mxu0 0.0
        %2673 = vmatprep.subr.mxu0 0.0
        %2674 = vmatpush1.msra.mxu0 0.0
        %2675 = vmatprep.subr.mxu0 0.0
        %2676 = vmatpush1.msra.mxu0 0.0
        %2677 = vmatprep.subr.mxu0 0.0
        %2678 = vmatpush1.msra.mxu0 0.0
        %2679 = vmatprep.subr.mxu0 0.0
        %2680 = vmatpush1.msra.mxu0 0.0
        %2681 = vmatprep.subr.mxu0 0.0
        %2682 = vmatpush1.msra.mxu0 0.0
        %v2683 = vand.u32 %v1913, 4294901760
        %2684 = vmatprep.subr.mxu0 %v2683
        %v2685 = vand.u32 %v1912, 4294901760
        %2686 = vmatpush1.msra.mxu0 %v2685
        %2687 = vmatprep.subr.mxu0 0.0
        %2688 = vmatpush2.msra.mxu0 0.0
        %2689 = vmatprep.subr.mxu0 0.0
        %2690 = vmatpush2.msra.mxu0 0.0
        %2691 = vmatprep.subr.mxu0 0.0
        %2692 = vmatpush2.msra.mxu0 0.0
        %2693 = vmatprep.subr.mxu0 0.0
        %2694 = vmatpush2.msra.mxu0 0.0
        %2695 = vmatprep.subr.mxu0 0.0
        %2696 = vmatpush2.msra.mxu0 0.0
        %2697 = vmatprep.subr.mxu0 0.0
        %2698 = vmatpush2.msra.mxu0 0.0
        %2699 = vmatprep.subr.mxu0 0.0
        %2700 = vmatpush2.msra.mxu0 0.0
        %2701 = vmatprep.subr.mxu0 0.0
        %2702 = vmatpush2.msra.mxu0 0.0
        %2703 = vmatprep.subr.mxu0 0.0
        %2704 = vmatpush2.msra.mxu0 0.0
        %2705 = vmatprep.subr.mxu0 0.0
        %2706 = vmatpush2.msra.mxu0 0.0
        %2707 = vmatprep.subr.mxu0 0.0
        %2708 = vmatpush2.msra.mxu0 0.0
        %2709 = vmatprep.subr.mxu0 0.0
        %2710 = vmatpush2.msra.mxu0 0.0
        %2711 = vmatprep.subr.mxu0 0.0
        %2712 = vmatpush2.msra.mxu0 0.0
        %2713 = vmatprep.subr.mxu0 0.0
        %2714 = vmatpush2.msra.mxu0 0.0
        %2715 = vmatprep.subr.mxu0 0.0
        %2716 = vmatpush2.msra.mxu0 0.0
        %2717 = vmatprep.subr.mxu0 0.0
        %2718 = vmatpush2.msra.mxu0 0.0
        %2719 = vmatprep.mubr.f32.mxu0 0.0
        %v2720 = vand.u32 %v2414, 4294901760
        %v2721 = vsub.f32 %v2414, %v2720
        %v2722 = vand.u32 %v2721, 4294901760
        %2723 = vmatmul.mubr.f32.gmra.mxu0 %v2722
        %v2724 = vpop.f32.mrf.mxu0
        %v2725 = vadd.f32 %v2649, %v2724
        %v2726 = vpop.f32.mrf.mxu0
        %v2727 = vadd.f32 %v2651, %v2726
        %2728 = vdwg.mxu0
        %2729 = vmatprep.subr.mxu0 0.0
        %2730 = vmatpush1.msra.mxu0 0.0
        %2731 = vmatprep.subr.mxu0 0.0
        %2732 = vmatpush1.msra.mxu0 0.0
        %2733 = vmatprep.subr.mxu0 0.0
        %2734 = vmatpush1.msra.mxu0 0.0
        %2735 = vmatprep.subr.mxu0 0.0
        %2736 = vmatpush1.msra.mxu0 0.0
        %2737 = vmatprep.subr.mxu0 0.0
        %2738 = vmatpush1.msra.mxu0 0.0
        %2739 = vmatprep.subr.mxu0 0.0
        %2740 = vmatpush1.msra.mxu0 0.0
        %2741 = vmatprep.subr.mxu0 0.0
        %2742 = vmatpush1.msra.mxu0 0.0
        %2743 = vmatprep.subr.mxu0 0.0
        %2744 = vmatpush1.msra.mxu0 0.0
        %2745 = vmatprep.subr.mxu0 0.0
        %2746 = vmatpush1.msra.mxu0 0.0
        %2747 = vmatprep.subr.mxu0 0.0
        %2748 = vmatpush1.msra.mxu0 0.0
        %2749 = vmatprep.subr.mxu0 0.0
        %2750 = vmatpush1.msra.mxu0 0.0
        %2751 = vmatprep.subr.mxu0 0.0
        %2752 = vmatpush1.msra.mxu0 0.0
        %2753 = vmatprep.subr.mxu0 0.0
        %2754 = vmatpush1.msra.mxu0 0.0
        %2755 = vmatprep.subr.mxu0 0.0
        %2756 = vmatpush1.msra.mxu0 0.0
        %2757 = vmatprep.subr.mxu0 0.0
        %2758 = vmatpush1.msra.mxu0 0.0
        %v2759 = vand.u32 %v1913, 4294901760
        %v2760 = vsub.f32 %v1913, %v2759
        %v2761 = vand.u32 %v2760, 4294901760
        %2762 = vmatprep.subr.mxu0 %v2761
        %v2763 = vand.u32 %v1912, 4294901760
        %v2764 = vsub.f32 %v1912, %v2763
        %v2765 = vand.u32 %v2764, 4294901760
        %2766 = vmatpush1.msra.mxu0 %v2765
        %2767 = vmatprep.subr.mxu0 0.0
        %2768 = vmatpush2.msra.mxu0 0.0
        %2769 = vmatprep.subr.mxu0 0.0
        %2770 = vmatpush2.msra.mxu0 0.0
        %2771 = vmatprep.subr.mxu0 0.0
        %2772 = vmatpush2.msra.mxu0 0.0
        %2773 = vmatprep.subr.mxu0 0.0
        %2774 = vmatpush2.msra.mxu0 0.0
        %2775 = vmatprep.subr.mxu0 0.0
        %2776 = vmatpush2.msra.mxu0 0.0
        %2777 = vmatprep.subr.mxu0 0.0
        %2778 = vmatpush2.msra.mxu0 0.0
        %2779 = vmatprep.subr.mxu0 0.0
        %2780 = vmatpush2.msra.mxu0 0.0
        %2781 = vmatprep.subr.mxu0 0.0
        %2782 = vmatpush2.msra.mxu0 0.0
        %2783 = vmatprep.subr.mxu0 0.0
        %2784 = vmatpush2.msra.mxu0 0.0
        %2785 = vmatprep.subr.mxu0 0.0
        %2786 = vmatpush2.msra.mxu0 0.0
        %2787 = vmatprep.subr.mxu0 0.0
        %2788 = vmatpush2.msra.mxu0 0.0
        %2789 = vmatprep.subr.mxu0 0.0
        %2790 = vmatpush2.msra.mxu0 0.0
        %2791 = vmatprep.subr.mxu0 0.0
        %2792 = vmatpush2.msra.mxu0 0.0
        %2793 = vmatprep.subr.mxu0 0.0
        %2794 = vmatpush2.msra.mxu0 0.0
        %2795 = vmatprep.subr.mxu0 0.0
        %2796 = vmatpush2.msra.mxu0 0.0
        %2797 = vmatprep.subr.mxu0 0.0
        %2798 = vmatpush2.msra.mxu0 0.0
        %2799 = vmatprep.mubr.f32.mxu0 0.0
        %v2800 = vand.u32 %v2414, 4294901760
        %2801 = vmatmul.mubr.f32.gmra.mxu0 %v2800
        %v2802 = vpop.f32.mrf.mxu0
        %v2803 = vadd.f32 %v2725, %v2802
        %v2804 = vpop.f32.mrf.mxu0
        %v2805 = vadd.f32 %v2727, %v2804
        %2806 = vdwg.mxu0
        %2807 = vmatprep.subr.mxu0 0.0
        %2808 = vmatpush1.msra.mxu0 0.0
        %2809 = vmatprep.subr.mxu0 0.0
        %2810 = vmatpush1.msra.mxu0 0.0
        %2811 = vmatprep.subr.mxu0 0.0
        %2812 = vmatpush1.msra.mxu0 0.0
        %2813 = vmatprep.subr.mxu0 0.0
        %2814 = vmatpush1.msra.mxu0 0.0
        %2815 = vmatprep.subr.mxu0 0.0
        %2816 = vmatpush1.msra.mxu0 0.0
        %2817 = vmatprep.subr.mxu0 0.0
        %2818 = vmatpush1.msra.mxu0 0.0
        %2819 = vmatprep.subr.mxu0 0.0
        %2820 = vmatpush1.msra.mxu0 0.0
        %2821 = vmatprep.subr.mxu0 0.0
        %2822 = vmatpush1.msra.mxu0 0.0
        %2823 = vmatprep.subr.mxu0 0.0
        %2824 = vmatpush1.msra.mxu0 0.0
        %2825 = vmatprep.subr.mxu0 0.0
        %2826 = vmatpush1.msra.mxu0 0.0
        %2827 = vmatprep.subr.mxu0 0.0
        %2828 = vmatpush1.msra.mxu0 0.0
        %2829 = vmatprep.subr.mxu0 0.0
        %2830 = vmatpush1.msra.mxu0 0.0
        %2831 = vmatprep.subr.mxu0 0.0
        %2832 = vmatpush1.msra.mxu0 0.0
        %2833 = vmatprep.subr.mxu0 0.0
        %2834 = vmatpush1.msra.mxu0 0.0
        %2835 = vmatprep.subr.mxu0 0.0
        %2836 = vmatpush1.msra.mxu0 0.0
        %v2837 = vand.u32 %v1913, 4294901760
        %2838 = vmatprep.subr.mxu0 %v2837
        %v2839 = vand.u32 %v1912, 4294901760
        %2840 = vmatpush1.msra.mxu0 %v2839
        %2841 = vmatprep.subr.mxu0 0.0
        %2842 = vmatpush2.msra.mxu0 0.0
        %2843 = vmatprep.subr.mxu0 0.0
        %2844 = vmatpush2.msra.mxu0 0.0
        %2845 = vmatprep.subr.mxu0 0.0
        %2846 = vmatpush2.msra.mxu0 0.0
        %2847 = vmatprep.subr.mxu0 0.0
        %2848 = vmatpush2.msra.mxu0 0.0
        %2849 = vmatprep.subr.mxu0 0.0
        %2850 = vmatpush2.msra.mxu0 0.0
        %2851 = vmatprep.subr.mxu0 0.0
        %2852 = vmatpush2.msra.mxu0 0.0
        %2853 = vmatprep.subr.mxu0 0.0
        %2854 = vmatpush2.msra.mxu0 0.0
        %2855 = vmatprep.subr.mxu0 0.0
        %2856 = vmatpush2.msra.mxu0 0.0
        %2857 = vmatprep.subr.mxu0 0.0
        %2858 = vmatpush2.msra.mxu0 0.0
        %2859 = vmatprep.subr.mxu0 0.0
        %2860 = vmatpush2.msra.mxu0 0.0
        %2861 = vmatprep.subr.mxu0 0.0
        %2862 = vmatpush2.msra.mxu0 0.0
        %2863 = vmatprep.subr.mxu0 0.0
        %2864 = vmatpush2.msra.mxu0 0.0
        %2865 = vmatprep.subr.mxu0 0.0
        %2866 = vmatpush2.msra.mxu0 0.0
        %2867 = vmatprep.subr.mxu0 0.0
        %2868 = vmatpush2.msra.mxu0 0.0
        %2869 = vmatprep.subr.mxu0 0.0
        %2870 = vmatpush2.msra.mxu0 0.0
        %2871 = vmatprep.subr.mxu0 0.0
        %2872 = vmatpush2.msra.mxu0 0.0
        %2873 = vmatprep.mubr.f32.mxu0 0.0
        %v2874 = vand.u32 %v2414, 4294901760
        %2875 = vmatmul.mubr.f32.gmra.mxu0 %v2874
        %v2876 = vpop.f32.mrf.mxu0
        %v2877 = vadd.f32 %v2803, %v2876
        %v2878 = vpop.f32.mrf.mxu0
        %v2879 = vadd.f32 %v2805, %v2878
        %2880 = vdwg.mxu0
        %v2881 = vadd.f32 %v471, 1.0
        %vm2882 = vcmp.ge.f32.partialorder %v2881, 0.0
        %vm2883 = vcmp.le.f32.partialorder %v2881, 15.0
        %vm2884 = vmand %vm2882, %vm2883
        %s2885 = scalar_lea.vmem [#allocation5], 16
        %v2886 = vld [vmem:[%s2885] sm:$0xff]
        %2887 = vrot.lane.b32.xlu0 %v1912, 127
        %v2888 = vpop.permute.xlu0 %2887
        %2889 = vrot.lane.b32.xlu0 %v1913, 127
        %v2890 = vpop.permute.xlu0 %2889
        %vm2891 = vcmask 1039360
        %v2892 = vsel %vm2891, %v2888, %v2890
        %v2895 = vsel %vm2891, %v2890, 0.0
        %v2896 = vsel %vm2884, 1, 0
        %v2897 = vlaneseq
        %v2898 = vshrl.u32 %v2897, 7
        %v2899 = vsub.s32 0, %v2898
        %v2900 = vrot.slane %v2896, %v2899
        %v2901 = vlaneseq
        %v2902 = vshrl.u32 %v2901, 7
        %v2903 = vsub.s32 1, %v2902
        %v2904 = vrot.slane %v2896, %v2903
        %vm2905 = vcmp.eq.s32.totalorder %v2900, 1
        %vm2906 = vcmp.eq.s32.totalorder %v2904, 1
        %v2907 = vsel %vm2905, %v2892, 0.0
        %v2908 = vsel %vm2906, %v2895, 0.0
        %v2910 = vsel %vm486, %v2886, 0
        %2912 = vmatprep.subr.mxu0 0.0
        %2913 = vmatpush1.msra.mxu0 0.0
        %2914 = vmatprep.subr.mxu0 0.0
        %2915 = vmatpush1.msra.mxu0 0.0
        %2916 = vmatprep.subr.mxu0 0.0
        %2917 = vmatpush1.msra.mxu0 0.0
        %2918 = vmatprep.subr.mxu0 0.0
        %2919 = vmatpush1.msra.mxu0 0.0
        %2920 = vmatprep.subr.mxu0 0.0
        %2921 = vmatpush1.msra.mxu0 0.0
        %2922 = vmatprep.subr.mxu0 0.0
        %2923 = vmatpush1.msra.mxu0 0.0
        %2924 = vmatprep.subr.mxu0 0.0
        %2925 = vmatpush1.msra.mxu0 0.0
        %2926 = vmatprep.subr.mxu0 0.0
        %2927 = vmatpush1.msra.mxu0 0.0
        %2928 = vmatprep.subr.mxu0 0.0
        %2929 = vmatpush1.msra.mxu0 0.0
        %2930 = vmatprep.subr.mxu0 0.0
        %2931 = vmatpush1.msra.mxu0 0.0
        %2932 = vmatprep.subr.mxu0 0.0
        %2933 = vmatpush1.msra.mxu0 0.0
        %2934 = vmatprep.subr.mxu0 0.0
        %2935 = vmatpush1.msra.mxu0 0.0
        %2936 = vmatprep.subr.mxu0 0.0
        %2937 = vmatpush1.msra.mxu0 0.0
        %2938 = vmatprep.subr.mxu0 0.0
        %2939 = vmatpush1.msra.mxu0 0.0
        %2940 = vmatprep.subr.mxu0 0.0
        %2941 = vmatpush1.msra.mxu0 0.0
        %v2942 = vand.u32 %v2908, 4294901760
        %2943 = vmatprep.subr.mxu0 %v2942
        %v2944 = vand.u32 %v2907, 4294901760
        %2945 = vmatpush1.msra.mxu0 %v2944
        %2946 = vmatprep.subr.mxu0 0.0
        %2947 = vmatpush2.msra.mxu0 0.0
        %2948 = vmatprep.subr.mxu0 0.0
        %2949 = vmatpush2.msra.mxu0 0.0
        %2950 = vmatprep.subr.mxu0 0.0
        %2951 = vmatpush2.msra.mxu0 0.0
        %2952 = vmatprep.subr.mxu0 0.0
        %2953 = vmatpush2.msra.mxu0 0.0
        %2954 = vmatprep.subr.mxu0 0.0
        %2955 = vmatpush2.msra.mxu0 0.0
        %2956 = vmatprep.subr.mxu0 0.0
        %2957 = vmatpush2.msra.mxu0 0.0
        %2958 = vmatprep.subr.mxu0 0.0
        %2959 = vmatpush2.msra.mxu0 0.0
        %2960 = vmatprep.subr.mxu0 0.0
        %2961 = vmatpush2.msra.mxu0 0.0
        %2962 = vmatprep.subr.mxu0 0.0
        %2963 = vmatpush2.msra.mxu0 0.0
        %2964 = vmatprep.subr.mxu0 0.0
        %2965 = vmatpush2.msra.mxu0 0.0
        %2966 = vmatprep.subr.mxu0 0.0
        %2967 = vmatpush2.msra.mxu0 0.0
        %2968 = vmatprep.subr.mxu0 0.0
        %2969 = vmatpush2.msra.mxu0 0.0
        %2970 = vmatprep.subr.mxu0 0.0
        %2971 = vmatpush2.msra.mxu0 0.0
        %2972 = vmatprep.subr.mxu0 0.0
        %2973 = vmatpush2.msra.mxu0 0.0
        %2974 = vmatprep.subr.mxu0 0.0
        %2975 = vmatpush2.msra.mxu0 0.0
        %2976 = vmatprep.subr.mxu0 0.0
        %2977 = vmatpush2.msra.mxu0 0.0
        %2978 = vmatprep.mubr.f32.mxu0 0.0
        %v2979 = vand.u32 %v2910, 4294901760
        %v2980 = vsub.f32 %v2910, %v2979
        %v2981 = vand.u32 %v2980, 4294901760
        %v2982 = vsub.f32 %v2980, %v2981
        %v2983 = vand.u32 %v2982, 4294901760
        %2984 = vmatmul.mubr.f32.gmra.mxu0 %v2983
        %v2985 = vpop.f32.mrf.mxu0
        %v2986 = vadd.f32 0.0, %v2985
        %v2987 = vpop.f32.mrf.mxu0
        %v2988 = vadd.f32 0.0, %v2987
        %2989 = vdwg.mxu0
        %2990 = vmatprep.subr.mxu0 0.0
        %2991 = vmatpush1.msra.mxu0 0.0
        %2992 = vmatprep.subr.mxu0 0.0
        %2993 = vmatpush1.msra.mxu0 0.0
        %2994 = vmatprep.subr.mxu0 0.0
        %2995 = vmatpush1.msra.mxu0 0.0
        %2996 = vmatprep.subr.mxu0 0.0
        %2997 = vmatpush1.msra.mxu0 0.0
        %2998 = vmatprep.subr.mxu0 0.0
        %2999 = vmatpush1.msra.mxu0 0.0
        %3000 = vmatprep.subr.mxu0 0.0
        %3001 = vmatpush1.msra.mxu0 0.0
        %3002 = vmatprep.subr.mxu0 0.0
        %3003 = vmatpush1.msra.mxu0 0.0
        %3004 = vmatprep.subr.mxu0 0.0
        %3005 = vmatpush1.msra.mxu0 0.0
        %3006 = vmatprep.subr.mxu0 0.0
        %3007 = vmatpush1.msra.mxu0 0.0
        %3008 = vmatprep.subr.mxu0 0.0
        %3009 = vmatpush1.msra.mxu0 0.0
        %3010 = vmatprep.subr.mxu0 0.0
        %3011 = vmatpush1.msra.mxu0 0.0
        %3012 = vmatprep.subr.mxu0 0.0
        %3013 = vmatpush1.msra.mxu0 0.0
        %3014 = vmatprep.subr.mxu0 0.0
        %3015 = vmatpush1.msra.mxu0 0.0
        %3016 = vmatprep.subr.mxu0 0.0
        %3017 = vmatpush1.msra.mxu0 0.0
        %3018 = vmatprep.subr.mxu0 0.0
        %3019 = vmatpush1.msra.mxu0 0.0
        %v3020 = vand.u32 %v2908, 4294901760
        %v3021 = vsub.f32 %v2908, %v3020
        %v3022 = vand.u32 %v3021, 4294901760
        %v3023 = vsub.f32 %v3021, %v3022
        %v3024 = vand.u32 %v3023, 4294901760
        %3025 = vmatprep.subr.mxu0 %v3024
        %v3026 = vand.u32 %v2907, 4294901760
        %v3027 = vsub.f32 %v2907, %v3026
        %v3028 = vand.u32 %v3027, 4294901760
        %v3029 = vsub.f32 %v3027, %v3028
        %v3030 = vand.u32 %v3029, 4294901760
        %3031 = vmatpush1.msra.mxu0 %v3030
        %3032 = vmatprep.subr.mxu0 0.0
        %3033 = vmatpush2.msra.mxu0 0.0
        %3034 = vmatprep.subr.mxu0 0.0
        %3035 = vmatpush2.msra.mxu0 0.0
        %3036 = vmatprep.subr.mxu0 0.0
        %3037 = vmatpush2.msra.mxu0 0.0
        %3038 = vmatprep.subr.mxu0 0.0
        %3039 = vmatpush2.msra.mxu0 0.0
        %3040 = vmatprep.subr.mxu0 0.0
        %3041 = vmatpush2.msra.mxu0 0.0
        %3042 = vmatprep.subr.mxu0 0.0
        %3043 = vmatpush2.msra.mxu0 0.0
        %3044 = vmatprep.subr.mxu0 0.0
        %3045 = vmatpush2.msra.mxu0 0.0
        %3046 = vmatprep.subr.mxu0 0.0
        %3047 = vmatpush2.msra.mxu0 0.0
        %3048 = vmatprep.subr.mxu0 0.0
        %3049 = vmatpush2.msra.mxu0 0.0
        %3050 = vmatprep.subr.mxu0 0.0
        %3051 = vmatpush2.msra.mxu0 0.0
        %3052 = vmatprep.subr.mxu0 0.0
        %3053 = vmatpush2.msra.mxu0 0.0
        %3054 = vmatprep.subr.mxu0 0.0
        %3055 = vmatpush2.msra.mxu0 0.0
        %3056 = vmatprep.subr.mxu0 0.0
        %3057 = vmatpush2.msra.mxu0 0.0
        %3058 = vmatprep.subr.mxu0 0.0
        %3059 = vmatpush2.msra.mxu0 0.0
        %3060 = vmatprep.subr.mxu0 0.0
        %3061 = vmatpush2.msra.mxu0 0.0
        %3062 = vmatprep.subr.mxu0 0.0
        %3063 = vmatpush2.msra.mxu0 0.0
        %3064 = vmatprep.mubr.f32.mxu0 0.0
        %v3065 = vand.u32 %v2910, 4294901760
        %3066 = vmatmul.mubr.f32.gmra.mxu0 %v3065
        %v3067 = vpop.f32.mrf.mxu0
        %v3068 = vadd.f32 %v2986, %v3067
        %v3069 = vpop.f32.mrf.mxu0
        %v3070 = vadd.f32 %v2988, %v3069
        %3071 = vdwg.mxu0
        %3072 = vmatprep.subr.mxu0 0.0
        %3073 = vmatpush1.msra.mxu0 0.0
        %3074 = vmatprep.subr.mxu0 0.0
        %3075 = vmatpush1.msra.mxu0 0.0
        %3076 = vmatprep.subr.mxu0 0.0
        %3077 = vmatpush1.msra.mxu0 0.0
        %3078 = vmatprep.subr.mxu0 0.0
        %3079 = vmatpush1.msra.mxu0 0.0
        %3080 = vmatprep.subr.mxu0 0.0
        %3081 = vmatpush1.msra.mxu0 0.0
        %3082 = vmatprep.subr.mxu0 0.0
        %3083 = vmatpush1.msra.mxu0 0.0
        %3084 = vmatprep.subr.mxu0 0.0
        %3085 = vmatpush1.msra.mxu0 0.0
        %3086 = vmatprep.subr.mxu0 0.0
        %3087 = vmatpush1.msra.mxu0 0.0
        %3088 = vmatprep.subr.mxu0 0.0
        %3089 = vmatpush1.msra.mxu0 0.0
        %3090 = vmatprep.subr.mxu0 0.0
        %3091 = vmatpush1.msra.mxu0 0.0
        %3092 = vmatprep.subr.mxu0 0.0
        %3093 = vmatpush1.msra.mxu0 0.0
        %3094 = vmatprep.subr.mxu0 0.0
        %3095 = vmatpush1.msra.mxu0 0.0
        %3096 = vmatprep.subr.mxu0 0.0
        %3097 = vmatpush1.msra.mxu0 0.0
        %3098 = vmatprep.subr.mxu0 0.0
        %3099 = vmatpush1.msra.mxu0 0.0
        %3100 = vmatprep.subr.mxu0 0.0
        %3101 = vmatpush1.msra.mxu0 0.0
        %v3102 = vand.u32 %v2908, 4294901760
        %v3103 = vsub.f32 %v2908, %v3102
        %3104 = vmatprep.subr.mxu0 %v3103
        %v3105 = vand.u32 %v2907, 4294901760
        %v3106 = vsub.f32 %v2907, %v3105
        %3107 = vmatpush1.msra.mxu0 %v3106
        %3108 = vmatprep.subr.mxu0 0.0
        %3109 = vmatpush2.msra.mxu0 0.0
        %3110 = vmatprep.subr.mxu0 0.0
        %3111 = vmatpush2.msra.mxu0 0.0
        %3112 = vmatprep.subr.mxu0 0.0
        %3113 = vmatpush2.msra.mxu0 0.0
        %3114 = vmatprep.subr.mxu0 0.0
        %3115 = vmatpush2.msra.mxu0 0.0
        %3116 = vmatprep.subr.mxu0 0.0
        %3117 = vmatpush2.msra.mxu0 0.0
        %3118 = vmatprep.subr.mxu0 0.0
        %3119 = vmatpush2.msra.mxu0 0.0
        %3120 = vmatprep.subr.mxu0 0.0
        %3121 = vmatpush2.msra.mxu0 0.0
        %3122 = vmatprep.subr.mxu0 0.0
        %3123 = vmatpush2.msra.mxu0 0.0
        %3124 = vmatprep.subr.mxu0 0.0
        %3125 = vmatpush2.msra.mxu0 0.0
        %3126 = vmatprep.subr.mxu0 0.0
        %3127 = vmatpush2.msra.mxu0 0.0
        %3128 = vmatprep.subr.mxu0 0.0
        %3129 = vmatpush2.msra.mxu0 0.0
        %3130 = vmatprep.subr.mxu0 0.0
        %3131 = vmatpush2.msra.mxu0 0.0
        %3132 = vmatprep.subr.mxu0 0.0
        %3133 = vmatpush2.msra.mxu0 0.0
        %3134 = vmatprep.subr.mxu0 0.0
        %3135 = vmatpush2.msra.mxu0 0.0
        %3136 = vmatprep.subr.mxu0 0.0
        %3137 = vmatpush2.msra.mxu0 0.0
        %3138 = vmatprep.subr.mxu0 0.0
        %3139 = vmatpush2.msra.mxu0 0.0
        %3140 = vmatprep.mubr.f32.mxu0 0.0
        %v3141 = vand.u32 %v2910, 4294901760
        %v3142 = vsub.f32 %v2910, %v3141
        %3143 = vmatmul.mubr.f32.gmra.mxu0 %v3142
        %v3144 = vpop.f32.mrf.mxu0
        %v3145 = vadd.f32 %v3068, %v3144
        %v3146 = vpop.f32.mrf.mxu0
        %v3147 = vadd.f32 %v3070, %v3146
        %3148 = vdwg.mxu0
        %3149 = vmatprep.subr.mxu0 0.0
        %3150 = vmatpush1.msra.mxu0 0.0
        %3151 = vmatprep.subr.mxu0 0.0
        %3152 = vmatpush1.msra.mxu0 0.0
        %3153 = vmatprep.subr.mxu0 0.0
        %3154 = vmatpush1.msra.mxu0 0.0
        %3155 = vmatprep.subr.mxu0 0.0
        %3156 = vmatpush1.msra.mxu0 0.0
        %3157 = vmatprep.subr.mxu0 0.0
        %3158 = vmatpush1.msra.mxu0 0.0
        %3159 = vmatprep.subr.mxu0 0.0
        %3160 = vmatpush1.msra.mxu0 0.0
        %3161 = vmatprep.subr.mxu0 0.0
        %3162 = vmatpush1.msra.mxu0 0.0
        %3163 = vmatprep.subr.mxu0 0.0
        %3164 = vmatpush1.msra.mxu0 0.0
        %3165 = vmatprep.subr.mxu0 0.0
        %3166 = vmatpush1.msra.mxu0 0.0
        %3167 = vmatprep.subr.mxu0 0.0
        %3168 = vmatpush1.msra.mxu0 0.0
        %3169 = vmatprep.subr.mxu0 0.0
        %3170 = vmatpush1.msra.mxu0 0.0
        %3171 = vmatprep.subr.mxu0 0.0
        %3172 = vmatpush1.msra.mxu0 0.0
        %3173 = vmatprep.subr.mxu0 0.0
        %3174 = vmatpush1.msra.mxu0 0.0
        %3175 = vmatprep.subr.mxu0 0.0
        %3176 = vmatpush1.msra.mxu0 0.0
        %3177 = vmatprep.subr.mxu0 0.0
        %3178 = vmatpush1.msra.mxu0 0.0
        %v3179 = vand.u32 %v2908, 4294901760
        %3180 = vmatprep.subr.mxu0 %v3179
        %v3181 = vand.u32 %v2907, 4294901760
        %3182 = vmatpush1.msra.mxu0 %v3181
        %3183 = vmatprep.subr.mxu0 0.0
        %3184 = vmatpush2.msra.mxu0 0.0
        %3185 = vmatprep.subr.mxu0 0.0
        %3186 = vmatpush2.msra.mxu0 0.0
        %3187 = vmatprep.subr.mxu0 0.0
        %3188 = vmatpush2.msra.mxu0 0.0
        %3189 = vmatprep.subr.mxu0 0.0
        %3190 = vmatpush2.msra.mxu0 0.0
        %3191 = vmatprep.subr.mxu0 0.0
        %3192 = vmatpush2.msra.mxu0 0.0
        %3193 = vmatprep.subr.mxu0 0.0
        %3194 = vmatpush2.msra.mxu0 0.0
        %3195 = vmatprep.subr.mxu0 0.0
        %3196 = vmatpush2.msra.mxu0 0.0
        %3197 = vmatprep.subr.mxu0 0.0
        %3198 = vmatpush2.msra.mxu0 0.0
        %3199 = vmatprep.subr.mxu0 0.0
        %3200 = vmatpush2.msra.mxu0 0.0
        %3201 = vmatprep.subr.mxu0 0.0
        %3202 = vmatpush2.msra.mxu0 0.0
        %3203 = vmatprep.subr.mxu0 0.0
        %3204 = vmatpush2.msra.mxu0 0.0
        %3205 = vmatprep.subr.mxu0 0.0
        %3206 = vmatpush2.msra.mxu0 0.0
        %3207 = vmatprep.subr.mxu0 0.0
        %3208 = vmatpush2.msra.mxu0 0.0
        %3209 = vmatprep.subr.mxu0 0.0
        %3210 = vmatpush2.msra.mxu0 0.0
        %3211 = vmatprep.subr.mxu0 0.0
        %3212 = vmatpush2.msra.mxu0 0.0
        %3213 = vmatprep.subr.mxu0 0.0
        %3214 = vmatpush2.msra.mxu0 0.0
        %3215 = vmatprep.mubr.f32.mxu0 0.0
        %v3216 = vand.u32 %v2910, 4294901760
        %v3217 = vsub.f32 %v2910, %v3216
        %v3218 = vand.u32 %v3217, 4294901760
        %3219 = vmatmul.mubr.f32.gmra.mxu0 %v3218
        %v3220 = vpop.f32.mrf.mxu0
        %v3221 = vadd.f32 %v3145, %v3220
        %v3222 = vpop.f32.mrf.mxu0
        %v3223 = vadd.f32 %v3147, %v3222
        %3224 = vdwg.mxu0
        %3225 = vmatprep.subr.mxu0 0.0
        %3226 = vmatpush1.msra.mxu0 0.0
        %3227 = vmatprep.subr.mxu0 0.0
        %3228 = vmatpush1.msra.mxu0 0.0
        %3229 = vmatprep.subr.mxu0 0.0
        %3230 = vmatpush1.msra.mxu0 0.0
        %3231 = vmatprep.subr.mxu0 0.0
        %3232 = vmatpush1.msra.mxu0 0.0
        %3233 = vmatprep.subr.mxu0 0.0
        %3234 = vmatpush1.msra.mxu0 0.0
        %3235 = vmatprep.subr.mxu0 0.0
        %3236 = vmatpush1.msra.mxu0 0.0
        %3237 = vmatprep.subr.mxu0 0.0
        %3238 = vmatpush1.msra.mxu0 0.0
        %3239 = vmatprep.subr.mxu0 0.0
        %3240 = vmatpush1.msra.mxu0 0.0
        %3241 = vmatprep.subr.mxu0 0.0
        %3242 = vmatpush1.msra.mxu0 0.0
        %3243 = vmatprep.subr.mxu0 0.0
        %3244 = vmatpush1.msra.mxu0 0.0
        %3245 = vmatprep.subr.mxu0 0.0
        %3246 = vmatpush1.msra.mxu0 0.0
        %3247 = vmatprep.subr.mxu0 0.0
        %3248 = vmatpush1.msra.mxu0 0.0
        %3249 = vmatprep.subr.mxu0 0.0
        %3250 = vmatpush1.msra.mxu0 0.0
        %3251 = vmatprep.subr.mxu0 0.0
        %3252 = vmatpush1.msra.mxu0 0.0
        %3253 = vmatprep.subr.mxu0 0.0
        %3254 = vmatpush1.msra.mxu0 0.0
        %v3255 = vand.u32 %v2908, 4294901760
        %v3256 = vsub.f32 %v2908, %v3255
        %v3257 = vand.u32 %v3256, 4294901760
        %3258 = vmatprep.subr.mxu0 %v3257
        %v3259 = vand.u32 %v2907, 4294901760
        %v3260 = vsub.f32 %v2907, %v3259
        %v3261 = vand.u32 %v3260, 4294901760
        %3262 = vmatpush1.msra.mxu0 %v3261
        %3263 = vmatprep.subr.mxu0 0.0
        %3264 = vmatpush2.msra.mxu0 0.0
        %3265 = vmatprep.subr.mxu0 0.0
        %3266 = vmatpush2.msra.mxu0 0.0
        %3267 = vmatprep.subr.mxu0 0.0
        %3268 = vmatpush2.msra.mxu0 0.0
        %3269 = vmatprep.subr.mxu0 0.0
        %3270 = vmatpush2.msra.mxu0 0.0
        %3271 = vmatprep.subr.mxu0 0.0
        %3272 = vmatpush2.msra.mxu0 0.0
        %3273 = vmatprep.subr.mxu0 0.0
        %3274 = vmatpush2.msra.mxu0 0.0
        %3275 = vmatprep.subr.mxu0 0.0
        %3276 = vmatpush2.msra.mxu0 0.0
        %3277 = vmatprep.subr.mxu0 0.0
        %3278 = vmatpush2.msra.mxu0 0.0
        %3279 = vmatprep.subr.mxu0 0.0
        %3280 = vmatpush2.msra.mxu0 0.0
        %3281 = vmatprep.subr.mxu0 0.0
        %3282 = vmatpush2.msra.mxu0 0.0
        %3283 = vmatprep.subr.mxu0 0.0
        %3284 = vmatpush2.msra.mxu0 0.0
        %3285 = vmatprep.subr.mxu0 0.0
        %3286 = vmatpush2.msra.mxu0 0.0
        %3287 = vmatprep.subr.mxu0 0.0
        %3288 = vmatpush2.msra.mxu0 0.0
        %3289 = vmatprep.subr.mxu0 0.0
        %3290 = vmatpush2.msra.mxu0 0.0
        %3291 = vmatprep.subr.mxu0 0.0
        %3292 = vmatpush2.msra.mxu0 0.0
        %3293 = vmatprep.subr.mxu0 0.0
        %3294 = vmatpush2.msra.mxu0 0.0
        %3295 = vmatprep.mubr.f32.mxu0 0.0
        %v3296 = vand.u32 %v2910, 4294901760
        %3297 = vmatmul.mubr.f32.gmra.mxu0 %v3296
        %v3298 = vpop.f32.mrf.mxu0
        %v3299 = vadd.f32 %v3221, %v3298
        %v3300 = vpop.f32.mrf.mxu0
        %v3301 = vadd.f32 %v3223, %v3300
        %3302 = vdwg.mxu0
        %3303 = vmatprep.subr.mxu0 0.0
        %3304 = vmatpush1.msra.mxu0 0.0
        %3305 = vmatprep.subr.mxu0 0.0
        %3306 = vmatpush1.msra.mxu0 0.0
        %3307 = vmatprep.subr.mxu0 0.0
        %3308 = vmatpush1.msra.mxu0 0.0
        %3309 = vmatprep.subr.mxu0 0.0
        %3310 = vmatpush1.msra.mxu0 0.0
        %3311 = vmatprep.subr.mxu0 0.0
        %3312 = vmatpush1.msra.mxu0 0.0
        %3313 = vmatprep.subr.mxu0 0.0
        %3314 = vmatpush1.msra.mxu0 0.0
        %3315 = vmatprep.subr.mxu0 0.0
        %3316 = vmatpush1.msra.mxu0 0.0
        %3317 = vmatprep.subr.mxu0 0.0
        %3318 = vmatpush1.msra.mxu0 0.0
        %3319 = vmatprep.subr.mxu0 0.0
        %3320 = vmatpush1.msra.mxu0 0.0
        %3321 = vmatprep.subr.mxu0 0.0
        %3322 = vmatpush1.msra.mxu0 0.0
        %3323 = vmatprep.subr.mxu0 0.0
        %3324 = vmatpush1.msra.mxu0 0.0
        %3325 = vmatprep.subr.mxu0 0.0
        %3326 = vmatpush1.msra.mxu0 0.0
        %3327 = vmatprep.subr.mxu0 0.0
        %3328 = vmatpush1.msra.mxu0 0.0
        %3329 = vmatprep.subr.mxu0 0.0
        %3330 = vmatpush1.msra.mxu0 0.0
        %3331 = vmatprep.subr.mxu0 0.0
        %3332 = vmatpush1.msra.mxu0 0.0
        %v3333 = vand.u32 %v2908, 4294901760
        %3334 = vmatprep.subr.mxu0 %v3333
        %v3335 = vand.u32 %v2907, 4294901760
        %3336 = vmatpush1.msra.mxu0 %v3335
        %3337 = vmatprep.subr.mxu0 0.0
        %3338 = vmatpush2.msra.mxu0 0.0
        %3339 = vmatprep.subr.mxu0 0.0
        %3340 = vmatpush2.msra.mxu0 0.0
        %3341 = vmatprep.subr.mxu0 0.0
        %3342 = vmatpush2.msra.mxu0 0.0
        %3343 = vmatprep.subr.mxu0 0.0
        %3344 = vmatpush2.msra.mxu0 0.0
        %3345 = vmatprep.subr.mxu0 0.0
        %3346 = vmatpush2.msra.mxu0 0.0
        %3347 = vmatprep.subr.mxu0 0.0
        %3348 = vmatpush2.msra.mxu0 0.0
        %3349 = vmatprep.subr.mxu0 0.0
        %3350 = vmatpush2.msra.mxu0 0.0
        %3351 = vmatprep.subr.mxu0 0.0
        %3352 = vmatpush2.msra.mxu0 0.0
        %3353 = vmatprep.subr.mxu0 0.0
        %3354 = vmatpush2.msra.mxu0 0.0
        %3355 = vmatprep.subr.mxu0 0.0
        %3356 = vmatpush2.msra.mxu0 0.0
        %3357 = vmatprep.subr.mxu0 0.0
        %3358 = vmatpush2.msra.mxu0 0.0
        %3359 = vmatprep.subr.mxu0 0.0
        %3360 = vmatpush2.msra.mxu0 0.0
        %3361 = vmatprep.subr.mxu0 0.0
        %3362 = vmatpush2.msra.mxu0 0.0
        %3363 = vmatprep.subr.mxu0 0.0
        %3364 = vmatpush2.msra.mxu0 0.0
        %3365 = vmatprep.subr.mxu0 0.0
        %3366 = vmatpush2.msra.mxu0 0.0
        %3367 = vmatprep.subr.mxu0 0.0
        %3368 = vmatpush2.msra.mxu0 0.0
        %3369 = vmatprep.mubr.f32.mxu0 0.0
        %v3370 = vand.u32 %v2910, 4294901760
        %3371 = vmatmul.mubr.f32.gmra.mxu0 %v3370
        %v3372 = vpop.f32.mrf.mxu0
        %v3373 = vadd.f32 %v3299, %v3372
        %v3374 = vpop.f32.mrf.mxu0
        %v3375 = vadd.f32 %v3301, %v3374
        %3376 = vdwg.mxu0
        %v3377 = vadd.f32 %v2877, %v3373
        %v3378 = vadd.f32 %v2879, %v3375
        %v3379 = vld [vmem:[%s5] sm:$0xff]
        %3381 = vset.pattern.permute.xlu0 0
        %3382 = vperm.xlu0 %3381, %v3379
        %v3383 = vpop.permute.xlu0 %3382
        %v3385 = vmul.f32 %v3377, %v3383
        %v3386 = vmul.f32 %v3378, %v3383
        %v3387 = vld [vmem:[%s6] sm:$0xff]
        %3389 = vset.pattern.permute.xlu0 0
        %3390 = vperm.xlu0 %3389, %v3387
        %v3391 = vpop.permute.xlu0 %3390
        %v3393 = vadd.f32 %v3385, %v3391
        %v3394 = vadd.f32 %v3386, %v3391
        %v3395 = vmax.f32 %v3393, 0.0
        %v3396 = vmax.f32 %v3394, 0.0
        %s3397 = scalar_lea.vmem [#allocation7], 8
        %v3398 = vld [vmem:[%s3397] sm:$0xff]
        %v3399 = vld [vmem:[#allocation7] sm:$0xff]
        %3402 = vrot.lane.b32.xlu0 %v3395, 32
        %v3403 = vpop.permute.xlu0 %3402
        %3404 = vrot.lane.b32.xlu0 %v3396, 32
        %v3405 = vpop.permute.xlu0 %3404
        %vm3406 = vcmask 261120
        %v3407 = vsel %vm3406, %v3403, %v3405
        %v3410 = vsel %vm3406, 0.0, %v3403
        %v3412 = vsel %vm486, %v3399, 0
        %3414 = vmatprep.subr.mxu0 0.0
        %3415 = vmatpush1.msra.mxu0 0.0
        %3416 = vmatprep.subr.mxu0 0.0
        %3417 = vmatpush1.msra.mxu0 0.0
        %3418 = vmatprep.subr.mxu0 0.0
        %3419 = vmatpush1.msra.mxu0 0.0
        %3420 = vmatprep.subr.mxu0 0.0
        %3421 = vmatpush1.msra.mxu0 0.0
        %3422 = vmatprep.subr.mxu0 0.0
        %3423 = vmatpush1.msra.mxu0 0.0
        %3424 = vmatprep.subr.mxu0 0.0
        %3425 = vmatpush1.msra.mxu0 0.0
        %3426 = vmatprep.subr.mxu0 0.0
        %3427 = vmatpush1.msra.mxu0 0.0
        %3428 = vmatprep.subr.mxu0 0.0
        %3429 = vmatpush1.msra.mxu0 0.0
        %3430 = vmatprep.subr.mxu0 0.0
        %3431 = vmatpush1.msra.mxu0 0.0
        %3432 = vmatprep.subr.mxu0 0.0
        %3433 = vmatpush1.msra.mxu0 0.0
        %3434 = vmatprep.subr.mxu0 0.0
        %3435 = vmatpush1.msra.mxu0 0.0
        %3436 = vmatprep.subr.mxu0 0.0
        %3437 = vmatpush1.msra.mxu0 0.0
        %3438 = vmatprep.subr.mxu0 0.0
        %3439 = vmatpush1.msra.mxu0 0.0
        %3440 = vmatprep.subr.mxu0 0.0
        %3441 = vmatpush1.msra.mxu0 0.0
        %3442 = vmatprep.subr.mxu0 0.0
        %3443 = vmatpush1.msra.mxu0 0.0
        %v3444 = vand.u32 %v3407, 4294901760
        %3445 = vmatprep.subr.mxu0 %v3444
        %v3446 = vand.u32 %v3410, 4294901760
        %3447 = vmatpush1.msra.mxu0 %v3446
        %3448 = vmatprep.subr.mxu0 0.0
        %3449 = vmatpush2.msra.mxu0 0.0
        %3450 = vmatprep.subr.mxu0 0.0
        %3451 = vmatpush2.msra.mxu0 0.0
        %3452 = vmatprep.subr.mxu0 0.0
        %3453 = vmatpush2.msra.mxu0 0.0
        %3454 = vmatprep.subr.mxu0 0.0
        %3455 = vmatpush2.msra.mxu0 0.0
        %3456 = vmatprep.subr.mxu0 0.0
        %3457 = vmatpush2.msra.mxu0 0.0
        %3458 = vmatprep.subr.mxu0 0.0
        %3459 = vmatpush2.msra.mxu0 0.0
        %3460 = vmatprep.subr.mxu0 0.0
        %3461 = vmatpush2.msra.mxu0 0.0
        %3462 = vmatprep.subr.mxu0 0.0
        %3463 = vmatpush2.msra.mxu0 0.0
        %3464 = vmatprep.subr.mxu0 0.0
        %3465 = vmatpush2.msra.mxu0 0.0
        %3466 = vmatprep.subr.mxu0 0.0
        %3467 = vmatpush2.msra.mxu0 0.0
        %3468 = vmatprep.subr.mxu0 0.0
        %3469 = vmatpush2.msra.mxu0 0.0
        %3470 = vmatprep.subr.mxu0 0.0
        %3471 = vmatpush2.msra.mxu0 0.0
        %3472 = vmatprep.subr.mxu0 0.0
        %3473 = vmatpush2.msra.mxu0 0.0
        %3474 = vmatprep.subr.mxu0 0.0
        %3475 = vmatpush2.msra.mxu0 0.0
        %3476 = vmatprep.subr.mxu0 0.0
        %3477 = vmatpush2.msra.mxu0 0.0
        %3478 = vmatprep.subr.mxu0 0.0
        %3479 = vmatpush2.msra.mxu0 0.0
        %3480 = vmatprep.mubr.f32.mxu0 0.0
        %v3481 = vand.u32 %v3412, 4294901760
        %v3482 = vsub.f32 %v3412, %v3481
        %v3483 = vand.u32 %v3482, 4294901760
        %v3484 = vsub.f32 %v3482, %v3483
        %v3485 = vand.u32 %v3484, 4294901760
        %3486 = vmatmul.mubr.f32.gmra.mxu0 %v3485
        %v3487 = vpop.f32.mrf.mxu0
        %v3488 = vadd.f32 0.0, %v3487
        %v3489 = vpop.f32.mrf.mxu0
        %v3490 = vadd.f32 0.0, %v3489
        %3491 = vdwg.mxu0
        %3492 = vmatprep.subr.mxu0 0.0
        %3493 = vmatpush1.msra.mxu0 0.0
        %3494 = vmatprep.subr.mxu0 0.0
        %3495 = vmatpush1.msra.mxu0 0.0
        %3496 = vmatprep.subr.mxu0 0.0
        %3497 = vmatpush1.msra.mxu0 0.0
        %3498 = vmatprep.subr.mxu0 0.0
        %3499 = vmatpush1.msra.mxu0 0.0
        %3500 = vmatprep.subr.mxu0 0.0
        %3501 = vmatpush1.msra.mxu0 0.0
        %3502 = vmatprep.subr.mxu0 0.0
        %3503 = vmatpush1.msra.mxu0 0.0
        %3504 = vmatprep.subr.mxu0 0.0
        %3505 = vmatpush1.msra.mxu0 0.0
        %3506 = vmatprep.subr.mxu0 0.0
        %3507 = vmatpush1.msra.mxu0 0.0
        %3508 = vmatprep.subr.mxu0 0.0
        %3509 = vmatpush1.msra.mxu0 0.0
        %3510 = vmatprep.subr.mxu0 0.0
        %3511 = vmatpush1.msra.mxu0 0.0
        %3512 = vmatprep.subr.mxu0 0.0
        %3513 = vmatpush1.msra.mxu0 0.0
        %3514 = vmatprep.subr.mxu0 0.0
        %3515 = vmatpush1.msra.mxu0 0.0
        %3516 = vmatprep.subr.mxu0 0.0
        %3517 = vmatpush1.msra.mxu0 0.0
        %3518 = vmatprep.subr.mxu0 0.0
        %3519 = vmatpush1.msra.mxu0 0.0
        %3520 = vmatprep.subr.mxu0 0.0
        %3521 = vmatpush1.msra.mxu0 0.0
        %v3522 = vand.u32 %v3407, 4294901760
        %v3523 = vsub.f32 %v3407, %v3522
        %v3524 = vand.u32 %v3523, 4294901760
        %v3525 = vsub.f32 %v3523, %v3524
        %v3526 = vand.u32 %v3525, 4294901760
        %3527 = vmatprep.subr.mxu0 %v3526
        %v3528 = vand.u32 %v3410, 4294901760
        %v3529 = vsub.f32 %v3410, %v3528
        %v3530 = vand.u32 %v3529, 4294901760
        %v3531 = vsub.f32 %v3529, %v3530
        %v3532 = vand.u32 %v3531, 4294901760
        %3533 = vmatpush1.msra.mxu0 %v3532
        %3534 = vmatprep.subr.mxu0 0.0
        %3535 = vmatpush2.msra.mxu0 0.0
        %3536 = vmatprep.subr.mxu0 0.0
        %3537 = vmatpush2.msra.mxu0 0.0
        %3538 = vmatprep.subr.mxu0 0.0
        %3539 = vmatpush2.msra.mxu0 0.0
        %3540 = vmatprep.subr.mxu0 0.0
        %3541 = vmatpush2.msra.mxu0 0.0
        %3542 = vmatprep.subr.mxu0 0.0
        %3543 = vmatpush2.msra.mxu0 0.0
        %3544 = vmatprep.subr.mxu0 0.0
        %3545 = vmatpush2.msra.mxu0 0.0
        %3546 = vmatprep.subr.mxu0 0.0
        %3547 = vmatpush2.msra.mxu0 0.0
        %3548 = vmatprep.subr.mxu0 0.0
        %3549 = vmatpush2.msra.mxu0 0.0
        %3550 = vmatprep.subr.mxu0 0.0
        %3551 = vmatpush2.msra.mxu0 0.0
        %3552 = vmatprep.subr.mxu0 0.0
        %3553 = vmatpush2.msra.mxu0 0.0
        %3554 = vmatprep.subr.mxu0 0.0
        %3555 = vmatpush2.msra.mxu0 0.0
        %3556 = vmatprep.subr.mxu0 0.0
        %3557 = vmatpush2.msra.mxu0 0.0
        %3558 = vmatprep.subr.mxu0 0.0
        %3559 = vmatpush2.msra.mxu0 0.0
        %3560 = vmatprep.subr.mxu0 0.0
        %3561 = vmatpush2.msra.mxu0 0.0
        %3562 = vmatprep.subr.mxu0 0.0
        %3563 = vmatpush2.msra.mxu0 0.0
        %3564 = vmatprep.subr.mxu0 0.0
        %3565 = vmatpush2.msra.mxu0 0.0
        %3566 = vmatprep.mubr.f32.mxu0 0.0
        %v3567 = vand.u32 %v3412, 4294901760
        %3568 = vmatmul.mubr.f32.gmra.mxu0 %v3567
        %v3569 = vpop.f32.mrf.mxu0
        %v3570 = vadd.f32 %v3488, %v3569
        %v3571 = vpop.f32.mrf.mxu0
        %v3572 = vadd.f32 %v3490, %v3571
        %3573 = vdwg.mxu0
        %3574 = vmatprep.subr.mxu0 0.0
        %3575 = vmatpush1.msra.mxu0 0.0
        %3576 = vmatprep.subr.mxu0 0.0
        %3577 = vmatpush1.msra.mxu0 0.0
        %3578 = vmatprep.subr.mxu0 0.0
        %3579 = vmatpush1.msra.mxu0 0.0
        %3580 = vmatprep.subr.mxu0 0.0
        %3581 = vmatpush1.msra.mxu0 0.0
        %3582 = vmatprep.subr.mxu0 0.0
        %3583 = vmatpush1.msra.mxu0 0.0
        %3584 = vmatprep.subr.mxu0 0.0
        %3585 = vmatpush1.msra.mxu0 0.0
        %3586 = vmatprep.subr.mxu0 0.0
        %3587 = vmatpush1.msra.mxu0 0.0
        %3588 = vmatprep.subr.mxu0 0.0
        %3589 = vmatpush1.msra.mxu0 0.0
        %3590 = vmatprep.subr.mxu0 0.0
        %3591 = vmatpush1.msra.mxu0 0.0
        %3592 = vmatprep.subr.mxu0 0.0
        %3593 = vmatpush1.msra.mxu0 0.0
        %3594 = vmatprep.subr.mxu0 0.0
        %3595 = vmatpush1.msra.mxu0 0.0
        %3596 = vmatprep.subr.mxu0 0.0
        %3597 = vmatpush1.msra.mxu0 0.0
        %3598 = vmatprep.subr.mxu0 0.0
        %3599 = vmatpush1.msra.mxu0 0.0
        %3600 = vmatprep.subr.mxu0 0.0
        %3601 = vmatpush1.msra.mxu0 0.0
        %3602 = vmatprep.subr.mxu0 0.0
        %3603 = vmatpush1.msra.mxu0 0.0
        %v3604 = vand.u32 %v3407, 4294901760
        %v3605 = vsub.f32 %v3407, %v3604
        %3606 = vmatprep.subr.mxu0 %v3605
        %v3607 = vand.u32 %v3410, 4294901760
        %v3608 = vsub.f32 %v3410, %v3607
        %3609 = vmatpush1.msra.mxu0 %v3608
        %3610 = vmatprep.subr.mxu0 0.0
        %3611 = vmatpush2.msra.mxu0 0.0
        %3612 = vmatprep.subr.mxu0 0.0
        %3613 = vmatpush2.msra.mxu0 0.0
        %3614 = vmatprep.subr.mxu0 0.0
        %3615 = vmatpush2.msra.mxu0 0.0
        %3616 = vmatprep.subr.mxu0 0.0
        %3617 = vmatpush2.msra.mxu0 0.0
        %3618 = vmatprep.subr.mxu0 0.0
        %3619 = vmatpush2.msra.mxu0 0.0
        %3620 = vmatprep.subr.mxu0 0.0
        %3621 = vmatpush2.msra.mxu0 0.0
        %3622 = vmatprep.subr.mxu0 0.0
        %3623 = vmatpush2.msra.mxu0 0.0
        %3624 = vmatprep.subr.mxu0 0.0
        %3625 = vmatpush2.msra.mxu0 0.0
        %3626 = vmatprep.subr.mxu0 0.0
        %3627 = vmatpush2.msra.mxu0 0.0
        %3628 = vmatprep.subr.mxu0 0.0
        %3629 = vmatpush2.msra.mxu0 0.0
        %3630 = vmatprep.subr.mxu0 0.0
        %3631 = vmatpush2.msra.mxu0 0.0
        %3632 = vmatprep.subr.mxu0 0.0
        %3633 = vmatpush2.msra.mxu0 0.0
        %3634 = vmatprep.subr.mxu0 0.0
        %3635 = vmatpush2.msra.mxu0 0.0
        %3636 = vmatprep.subr.mxu0 0.0
        %3637 = vmatpush2.msra.mxu0 0.0
        %3638 = vmatprep.subr.mxu0 0.0
        %3639 = vmatpush2.msra.mxu0 0.0
        %3640 = vmatprep.subr.mxu0 0.0
        %3641 = vmatpush2.msra.mxu0 0.0
        %3642 = vmatprep.mubr.f32.mxu0 0.0
        %v3643 = vand.u32 %v3412, 4294901760
        %v3644 = vsub.f32 %v3412, %v3643
        %3645 = vmatmul.mubr.f32.gmra.mxu0 %v3644
        %v3646 = vpop.f32.mrf.mxu0
        %v3647 = vadd.f32 %v3570, %v3646
        %v3648 = vpop.f32.mrf.mxu0
        %v3649 = vadd.f32 %v3572, %v3648
        %3650 = vdwg.mxu0
        %3651 = vmatprep.subr.mxu0 0.0
        %3652 = vmatpush1.msra.mxu0 0.0
        %3653 = vmatprep.subr.mxu0 0.0
        %3654 = vmatpush1.msra.mxu0 0.0
        %3655 = vmatprep.subr.mxu0 0.0
        %3656 = vmatpush1.msra.mxu0 0.0
        %3657 = vmatprep.subr.mxu0 0.0
        %3658 = vmatpush1.msra.mxu0 0.0
        %3659 = vmatprep.subr.mxu0 0.0
        %3660 = vmatpush1.msra.mxu0 0.0
        %3661 = vmatprep.subr.mxu0 0.0
        %3662 = vmatpush1.msra.mxu0 0.0
        %3663 = vmatprep.subr.mxu0 0.0
        %3664 = vmatpush1.msra.mxu0 0.0
        %3665 = vmatprep.subr.mxu0 0.0
        %3666 = vmatpush1.msra.mxu0 0.0
        %3667 = vmatprep.subr.mxu0 0.0
        %3668 = vmatpush1.msra.mxu0 0.0
        %3669 = vmatprep.subr.mxu0 0.0
        %3670 = vmatpush1.msra.mxu0 0.0
        %3671 = vmatprep.subr.mxu0 0.0
        %3672 = vmatpush1.msra.mxu0 0.0
        %3673 = vmatprep.subr.mxu0 0.0
        %3674 = vmatpush1.msra.mxu0 0.0
        %3675 = vmatprep.subr.mxu0 0.0
        %3676 = vmatpush1.msra.mxu0 0.0
        %3677 = vmatprep.subr.mxu0 0.0
        %3678 = vmatpush1.msra.mxu0 0.0
        %3679 = vmatprep.subr.mxu0 0.0
        %3680 = vmatpush1.msra.mxu0 0.0
        %v3681 = vand.u32 %v3407, 4294901760
        %3682 = vmatprep.subr.mxu0 %v3681
        %v3683 = vand.u32 %v3410, 4294901760
        %3684 = vmatpush1.msra.mxu0 %v3683
        %3685 = vmatprep.subr.mxu0 0.0
        %3686 = vmatpush2.msra.mxu0 0.0
        %3687 = vmatprep.subr.mxu0 0.0
        %3688 = vmatpush2.msra.mxu0 0.0
        %3689 = vmatprep.subr.mxu0 0.0
        %3690 = vmatpush2.msra.mxu0 0.0
        %3691 = vmatprep.subr.mxu0 0.0
        %3692 = vmatpush2.msra.mxu0 0.0
        %3693 = vmatprep.subr.mxu0 0.0
        %3694 = vmatpush2.msra.mxu0 0.0
        %3695 = vmatprep.subr.mxu0 0.0
        %3696 = vmatpush2.msra.mxu0 0.0
        %3697 = vmatprep.subr.mxu0 0.0
        %3698 = vmatpush2.msra.mxu0 0.0
        %3699 = vmatprep.subr.mxu0 0.0
        %3700 = vmatpush2.msra.mxu0 0.0
        %3701 = vmatprep.subr.mxu0 0.0
        %3702 = vmatpush2.msra.mxu0 0.0
        %3703 = vmatprep.subr.mxu0 0.0
        %3704 = vmatpush2.msra.mxu0 0.0
        %3705 = vmatprep.subr.mxu0 0.0
        %3706 = vmatpush2.msra.mxu0 0.0
        %3707 = vmatprep.subr.mxu0 0.0
        %3708 = vmatpush2.msra.mxu0 0.0
        %3709 = vmatprep.subr.mxu0 0.0
        %3710 = vmatpush2.msra.mxu0 0.0
        %3711 = vmatprep.subr.mxu0 0.0
        %3712 = vmatpush2.msra.mxu0 0.0
        %3713 = vmatprep.subr.mxu0 0.0
        %3714 = vmatpush2.msra.mxu0 0.0
        %3715 = vmatprep.subr.mxu0 0.0
        %3716 = vmatpush2.msra.mxu0 0.0
        %3717 = vmatprep.mubr.f32.mxu0 0.0
        %v3718 = vand.u32 %v3412, 4294901760
        %v3719 = vsub.f32 %v3412, %v3718
        %v3720 = vand.u32 %v3719, 4294901760
        %3721 = vmatmul.mubr.f32.gmra.mxu0 %v3720
        %v3722 = vpop.f32.mrf.mxu0
        %v3723 = vadd.f32 %v3647, %v3722
        %v3724 = vpop.f32.mrf.mxu0
        %v3725 = vadd.f32 %v3649, %v3724
        %3726 = vdwg.mxu0
        %3727 = vmatprep.subr.mxu0 0.0
        %3728 = vmatpush1.msra.mxu0 0.0
        %3729 = vmatprep.subr.mxu0 0.0
        %3730 = vmatpush1.msra.mxu0 0.0
        %3731 = vmatprep.subr.mxu0 0.0
        %3732 = vmatpush1.msra.mxu0 0.0
        %3733 = vmatprep.subr.mxu0 0.0
        %3734 = vmatpush1.msra.mxu0 0.0
        %3735 = vmatprep.subr.mxu0 0.0
        %3736 = vmatpush1.msra.mxu0 0.0
        %3737 = vmatprep.subr.mxu0 0.0
        %3738 = vmatpush1.msra.mxu0 0.0
        %3739 = vmatprep.subr.mxu0 0.0
        %3740 = vmatpush1.msra.mxu0 0.0
        %3741 = vmatprep.subr.mxu0 0.0
        %3742 = vmatpush1.msra.mxu0 0.0
        %3743 = vmatprep.subr.mxu0 0.0
        %3744 = vmatpush1.msra.mxu0 0.0
        %3745 = vmatprep.subr.mxu0 0.0
        %3746 = vmatpush1.msra.mxu0 0.0
        %3747 = vmatprep.subr.mxu0 0.0
        %3748 = vmatpush1.msra.mxu0 0.0
        %3749 = vmatprep.subr.mxu0 0.0
        %3750 = vmatpush1.msra.mxu0 0.0
        %3751 = vmatprep.subr.mxu0 0.0
        %3752 = vmatpush1.msra.mxu0 0.0
        %3753 = vmatprep.subr.mxu0 0.0
        %3754 = vmatpush1.msra.mxu0 0.0
        %3755 = vmatprep.subr.mxu0 0.0
        %3756 = vmatpush1.msra.mxu0 0.0
        %v3757 = vand.u32 %v3407, 4294901760
        %v3758 = vsub.f32 %v3407, %v3757
        %v3759 = vand.u32 %v3758, 4294901760
        %3760 = vmatprep.subr.mxu0 %v3759
        %v3761 = vand.u32 %v3410, 4294901760
        %v3762 = vsub.f32 %v3410, %v3761
        %v3763 = vand.u32 %v3762, 4294901760
        %3764 = vmatpush1.msra.mxu0 %v3763
        %3765 = vmatprep.subr.mxu0 0.0
        %3766 = vmatpush2.msra.mxu0 0.0
        %3767 = vmatprep.subr.mxu0 0.0
        %3768 = vmatpush2.msra.mxu0 0.0
        %3769 = vmatprep.subr.mxu0 0.0
        %3770 = vmatpush2.msra.mxu0 0.0
        %3771 = vmatprep.subr.mxu0 0.0
        %3772 = vmatpush2.msra.mxu0 0.0
        %3773 = vmatprep.subr.mxu0 0.0
        %3774 = vmatpush2.msra.mxu0 0.0
        %3775 = vmatprep.subr.mxu0 0.0
        %3776 = vmatpush2.msra.mxu0 0.0
        %3777 = vmatprep.subr.mxu0 0.0
        %3778 = vmatpush2.msra.mxu0 0.0
        %3779 = vmatprep.subr.mxu0 0.0
        %3780 = vmatpush2.msra.mxu0 0.0
        %3781 = vmatprep.subr.mxu0 0.0
        %3782 = vmatpush2.msra.mxu0 0.0
        %3783 = vmatprep.subr.mxu0 0.0
        %3784 = vmatpush2.msra.mxu0 0.0
        %3785 = vmatprep.subr.mxu0 0.0
        %3786 = vmatpush2.msra.mxu0 0.0
        %3787 = vmatprep.subr.mxu0 0.0
        %3788 = vmatpush2.msra.mxu0 0.0
        %3789 = vmatprep.subr.mxu0 0.0
        %3790 = vmatpush2.msra.mxu0 0.0
        %3791 = vmatprep.subr.mxu0 0.0
        %3792 = vmatpush2.msra.mxu0 0.0
        %3793 = vmatprep.subr.mxu0 0.0
        %3794 = vmatpush2.msra.mxu0 0.0
        %3795 = vmatprep.subr.mxu0 0.0
        %3796 = vmatpush2.msra.mxu0 0.0
        %3797 = vmatprep.mubr.f32.mxu0 0.0
        %v3798 = vand.u32 %v3412, 4294901760
        %3799 = vmatmul.mubr.f32.gmra.mxu0 %v3798
        %v3800 = vpop.f32.mrf.mxu0
        %v3801 = vadd.f32 %v3723, %v3800
        %v3802 = vpop.f32.mrf.mxu0
        %v3803 = vadd.f32 %v3725, %v3802
        %3804 = vdwg.mxu0
        %3805 = vmatprep.subr.mxu0 0.0
        %3806 = vmatpush1.msra.mxu0 0.0
        %3807 = vmatprep.subr.mxu0 0.0
        %3808 = vmatpush1.msra.mxu0 0.0
        %3809 = vmatprep.subr.mxu0 0.0
        %3810 = vmatpush1.msra.mxu0 0.0
        %3811 = vmatprep.subr.mxu0 0.0
        %3812 = vmatpush1.msra.mxu0 0.0
        %3813 = vmatprep.subr.mxu0 0.0
        %3814 = vmatpush1.msra.mxu0 0.0
        %3815 = vmatprep.subr.mxu0 0.0
        %3816 = vmatpush1.msra.mxu0 0.0
        %3817 = vmatprep.subr.mxu0 0.0
        %3818 = vmatpush1.msra.mxu0 0.0
        %3819 = vmatprep.subr.mxu0 0.0
        %3820 = vmatpush1.msra.mxu0 0.0
        %3821 = vmatprep.subr.mxu0 0.0
        %3822 = vmatpush1.msra.mxu0 0.0
        %3823 = vmatprep.subr.mxu0 0.0
        %3824 = vmatpush1.msra.mxu0 0.0
        %3825 = vmatprep.subr.mxu0 0.0
        %3826 = vmatpush1.msra.mxu0 0.0
        %3827 = vmatprep.subr.mxu0 0.0
        %3828 = vmatpush1.msra.mxu0 0.0
        %3829 = vmatprep.subr.mxu0 0.0
        %3830 = vmatpush1.msra.mxu0 0.0
        %3831 = vmatprep.subr.mxu0 0.0
        %3832 = vmatpush1.msra.mxu0 0.0
        %3833 = vmatprep.subr.mxu0 0.0
        %3834 = vmatpush1.msra.mxu0 0.0
        %v3835 = vand.u32 %v3407, 4294901760
        %3836 = vmatprep.subr.mxu0 %v3835
        %v3837 = vand.u32 %v3410, 4294901760
        %3838 = vmatpush1.msra.mxu0 %v3837
        %3839 = vmatprep.subr.mxu0 0.0
        %3840 = vmatpush2.msra.mxu0 0.0
        %3841 = vmatprep.subr.mxu0 0.0
        %3842 = vmatpush2.msra.mxu0 0.0
        %3843 = vmatprep.subr.mxu0 0.0
        %3844 = vmatpush2.msra.mxu0 0.0
        %3845 = vmatprep.subr.mxu0 0.0
        %3846 = vmatpush2.msra.mxu0 0.0
        %3847 = vmatprep.subr.mxu0 0.0
        %3848 = vmatpush2.msra.mxu0 0.0
        %3849 = vmatprep.subr.mxu0 0.0
        %3850 = vmatpush2.msra.mxu0 0.0
        %3851 = vmatprep.subr.mxu0 0.0
        %3852 = vmatpush2.msra.mxu0 0.0
        %3853 = vmatprep.subr.mxu0 0.0
        %3854 = vmatpush2.msra.mxu0 0.0
        %3855 = vmatprep.subr.mxu0 0.0
        %3856 = vmatpush2.msra.mxu0 0.0
        %3857 = vmatprep.subr.mxu0 0.0
        %3858 = vmatpush2.msra.mxu0 0.0
        %3859 = vmatprep.subr.mxu0 0.0
        %3860 = vmatpush2.msra.mxu0 0.0
        %3861 = vmatprep.subr.mxu0 0.0
        %3862 = vmatpush2.msra.mxu0 0.0
        %3863 = vmatprep.subr.mxu0 0.0
        %3864 = vmatpush2.msra.mxu0 0.0
        %3865 = vmatprep.subr.mxu0 0.0
        %3866 = vmatpush2.msra.mxu0 0.0
        %3867 = vmatprep.subr.mxu0 0.0
        %3868 = vmatpush2.msra.mxu0 0.0
        %3869 = vmatprep.subr.mxu0 0.0
        %3870 = vmatpush2.msra.mxu0 0.0
        %3871 = vmatprep.mubr.f32.mxu0 0.0
        %v3872 = vand.u32 %v3412, 4294901760
        %3873 = vmatmul.mubr.f32.gmra.mxu0 %v3872
        %v3874 = vpop.f32.mrf.mxu0
        %v3875 = vadd.f32 %v3801, %v3874
        %v3876 = vpop.f32.mrf.mxu0
        %v3877 = vadd.f32 %v3803, %v3876
        %3878 = vdwg.mxu0
        %v3880 = vsel %vm486, %v3398, 0
        %3882 = vmatprep.subr.mxu0 0.0
        %3883 = vmatpush1.msra.mxu0 0.0
        %3884 = vmatprep.subr.mxu0 0.0
        %3885 = vmatpush1.msra.mxu0 0.0
        %3886 = vmatprep.subr.mxu0 0.0
        %3887 = vmatpush1.msra.mxu0 0.0
        %3888 = vmatprep.subr.mxu0 0.0
        %3889 = vmatpush1.msra.mxu0 0.0
        %3890 = vmatprep.subr.mxu0 0.0
        %3891 = vmatpush1.msra.mxu0 0.0
        %3892 = vmatprep.subr.mxu0 0.0
        %3893 = vmatpush1.msra.mxu0 0.0
        %3894 = vmatprep.subr.mxu0 0.0
        %3895 = vmatpush1.msra.mxu0 0.0
        %3896 = vmatprep.subr.mxu0 0.0
        %3897 = vmatpush1.msra.mxu0 0.0
        %3898 = vmatprep.subr.mxu0 0.0
        %3899 = vmatpush1.msra.mxu0 0.0
        %3900 = vmatprep.subr.mxu0 0.0
        %3901 = vmatpush1.msra.mxu0 0.0
        %3902 = vmatprep.subr.mxu0 0.0
        %3903 = vmatpush1.msra.mxu0 0.0
        %3904 = vmatprep.subr.mxu0 0.0
        %3905 = vmatpush1.msra.mxu0 0.0
        %3906 = vmatprep.subr.mxu0 0.0
        %3907 = vmatpush1.msra.mxu0 0.0
        %3908 = vmatprep.subr.mxu0 0.0
        %3909 = vmatpush1.msra.mxu0 0.0
        %3910 = vmatprep.subr.mxu0 0.0
        %3911 = vmatpush1.msra.mxu0 0.0
        %v3912 = vand.u32 %v3396, 4294901760
        %3913 = vmatprep.subr.mxu0 %v3912
        %v3914 = vand.u32 %v3395, 4294901760
        %3915 = vmatpush1.msra.mxu0 %v3914
        %3916 = vmatprep.subr.mxu0 0.0
        %3917 = vmatpush2.msra.mxu0 0.0
        %3918 = vmatprep.subr.mxu0 0.0
        %3919 = vmatpush2.msra.mxu0 0.0
        %3920 = vmatprep.subr.mxu0 0.0
        %3921 = vmatpush2.msra.mxu0 0.0
        %3922 = vmatprep.subr.mxu0 0.0
        %3923 = vmatpush2.msra.mxu0 0.0
        %3924 = vmatprep.subr.mxu0 0.0
        %3925 = vmatpush2.msra.mxu0 0.0
        %3926 = vmatprep.subr.mxu0 0.0
        %3927 = vmatpush2.msra.mxu0 0.0
        %3928 = vmatprep.subr.mxu0 0.0
        %3929 = vmatpush2.msra.mxu0 0.0
        %3930 = vmatprep.subr.mxu0 0.0
        %3931 = vmatpush2.msra.mxu0 0.0
        %3932 = vmatprep.subr.mxu0 0.0
        %3933 = vmatpush2.msra.mxu0 0.0
        %3934 = vmatprep.subr.mxu0 0.0
        %3935 = vmatpush2.msra.mxu0 0.0
        %3936 = vmatprep.subr.mxu0 0.0
        %3937 = vmatpush2.msra.mxu0 0.0
        %3938 = vmatprep.subr.mxu0 0.0
        %3939 = vmatpush2.msra.mxu0 0.0
        %3940 = vmatprep.subr.mxu0 0.0
        %3941 = vmatpush2.msra.mxu0 0.0
        %3942 = vmatprep.subr.mxu0 0.0
        %3943 = vmatpush2.msra.mxu0 0.0
        %3944 = vmatprep.subr.mxu0 0.0
        %3945 = vmatpush2.msra.mxu0 0.0
        %3946 = vmatprep.subr.mxu0 0.0
        %3947 = vmatpush2.msra.mxu0 0.0
        %3948 = vmatprep.mubr.f32.mxu0 0.0
        %v3949 = vand.u32 %v3880, 4294901760
        %v3950 = vsub.f32 %v3880, %v3949
        %v3951 = vand.u32 %v3950, 4294901760
        %v3952 = vsub.f32 %v3950, %v3951
        %v3953 = vand.u32 %v3952, 4294901760
        %3954 = vmatmul.mubr.f32.gmra.mxu0 %v3953
        %v3955 = vpop.f32.mrf.mxu0
        %v3956 = vadd.f32 %v3875, %v3955
        %v3957 = vpop.f32.mrf.mxu0
        %v3958 = vadd.f32 %v3877, %v3957
        %3959 = vdwg.mxu0
        %3960 = vmatprep.subr.mxu0 0.0
        %3961 = vmatpush1.msra.mxu0 0.0
        %3962 = vmatprep.subr.mxu0 0.0
        %3963 = vmatpush1.msra.mxu0 0.0
        %3964 = vmatprep.subr.mxu0 0.0
        %3965 = vmatpush1.msra.mxu0 0.0
        %3966 = vmatprep.subr.mxu0 0.0
        %3967 = vmatpush1.msra.mxu0 0.0
        %3968 = vmatprep.subr.mxu0 0.0
        %3969 = vmatpush1.msra.mxu0 0.0
        %3970 = vmatprep.subr.mxu0 0.0
        %3971 = vmatpush1.msra.mxu0 0.0
        %3972 = vmatprep.subr.mxu0 0.0
        %3973 = vmatpush1.msra.mxu0 0.0
        %3974 = vmatprep.subr.mxu0 0.0
        %3975 = vmatpush1.msra.mxu0 0.0
        %3976 = vmatprep.subr.mxu0 0.0
        %3977 = vmatpush1.msra.mxu0 0.0
        %3978 = vmatprep.subr.mxu0 0.0
        %3979 = vmatpush1.msra.mxu0 0.0
        %3980 = vmatprep.subr.mxu0 0.0
        %3981 = vmatpush1.msra.mxu0 0.0
        %3982 = vmatprep.subr.mxu0 0.0
        %3983 = vmatpush1.msra.mxu0 0.0
        %3984 = vmatprep.subr.mxu0 0.0
        %3985 = vmatpush1.msra.mxu0 0.0
        %3986 = vmatprep.subr.mxu0 0.0
        %3987 = vmatpush1.msra.mxu0 0.0
        %3988 = vmatprep.subr.mxu0 0.0
        %3989 = vmatpush1.msra.mxu0 0.0
        %v3990 = vand.u32 %v3396, 4294901760
        %v3991 = vsub.f32 %v3396, %v3990
        %v3992 = vand.u32 %v3991, 4294901760
        %v3993 = vsub.f32 %v3991, %v3992
        %v3994 = vand.u32 %v3993, 4294901760
        %3995 = vmatprep.subr.mxu0 %v3994
        %v3996 = vand.u32 %v3395, 4294901760
        %v3997 = vsub.f32 %v3395, %v3996
        %v3998 = vand.u32 %v3997, 4294901760
        %v3999 = vsub.f32 %v3997, %v3998
        %v4000 = vand.u32 %v3999, 4294901760
        %4001 = vmatpush1.msra.mxu0 %v4000
        %4002 = vmatprep.subr.mxu0 0.0
        %4003 = vmatpush2.msra.mxu0 0.0
        %4004 = vmatprep.subr.mxu0 0.0
        %4005 = vmatpush2.msra.mxu0 0.0
        %4006 = vmatprep.subr.mxu0 0.0
        %4007 = vmatpush2.msra.mxu0 0.0
        %4008 = vmatprep.subr.mxu0 0.0
        %4009 = vmatpush2.msra.mxu0 0.0
        %4010 = vmatprep.subr.mxu0 0.0
        %4011 = vmatpush2.msra.mxu0 0.0
        %4012 = vmatprep.subr.mxu0 0.0
        %4013 = vmatpush2.msra.mxu0 0.0
        %4014 = vmatprep.subr.mxu0 0.0
        %4015 = vmatpush2.msra.mxu0 0.0
        %4016 = vmatprep.subr.mxu0 0.0
        %4017 = vmatpush2.msra.mxu0 0.0
        %4018 = vmatprep.subr.mxu0 0.0
        %4019 = vmatpush2.msra.mxu0 0.0
        %4020 = vmatprep.subr.mxu0 0.0
        %4021 = vmatpush2.msra.mxu0 0.0
        %4022 = vmatprep.subr.mxu0 0.0
        %4023 = vmatpush2.msra.mxu0 0.0
        %4024 = vmatprep.subr.mxu0 0.0
        %4025 = vmatpush2.msra.mxu0 0.0
        %4026 = vmatprep.subr.mxu0 0.0
        %4027 = vmatpush2.msra.mxu0 0.0
        %4028 = vmatprep.subr.mxu0 0.0
        %4029 = vmatpush2.msra.mxu0 0.0
        %4030 = vmatprep.subr.mxu0 0.0
        %4031 = vmatpush2.msra.mxu0 0.0
        %4032 = vmatprep.subr.mxu0 0.0
        %4033 = vmatpush2.msra.mxu0 0.0
        %4034 = vmatprep.mubr.f32.mxu0 0.0
        %v4035 = vand.u32 %v3880, 4294901760
        %4036 = vmatmul.mubr.f32.gmra.mxu0 %v4035
        %v4037 = vpop.f32.mrf.mxu0
        %v4038 = vadd.f32 %v3956, %v4037
        %v4039 = vpop.f32.mrf.mxu0
        %v4040 = vadd.f32 %v3958, %v4039
        %4041 = vdwg.mxu0
        %4042 = vmatprep.subr.mxu0 0.0
        %4043 = vmatpush1.msra.mxu0 0.0
        %4044 = vmatprep.subr.mxu0 0.0
        %4045 = vmatpush1.msra.mxu0 0.0
        %4046 = vmatprep.subr.mxu0 0.0
        %4047 = vmatpush1.msra.mxu0 0.0
        %4048 = vmatprep.subr.mxu0 0.0
        %4049 = vmatpush1.msra.mxu0 0.0
        %4050 = vmatprep.subr.mxu0 0.0
        %4051 = vmatpush1.msra.mxu0 0.0
        %4052 = vmatprep.subr.mxu0 0.0
        %4053 = vmatpush1.msra.mxu0 0.0
        %4054 = vmatprep.subr.mxu0 0.0
        %4055 = vmatpush1.msra.mxu0 0.0
        %4056 = vmatprep.subr.mxu0 0.0
        %4057 = vmatpush1.msra.mxu0 0.0
        %4058 = vmatprep.subr.mxu0 0.0
        %4059 = vmatpush1.msra.mxu0 0.0
        %4060 = vmatprep.subr.mxu0 0.0
        %4061 = vmatpush1.msra.mxu0 0.0
        %4062 = vmatprep.subr.mxu0 0.0
        %4063 = vmatpush1.msra.mxu0 0.0
        %4064 = vmatprep.subr.mxu0 0.0
        %4065 = vmatpush1.msra.mxu0 0.0
        %4066 = vmatprep.subr.mxu0 0.0
        %4067 = vmatpush1.msra.mxu0 0.0
        %4068 = vmatprep.subr.mxu0 0.0
        %4069 = vmatpush1.msra.mxu0 0.0
        %4070 = vmatprep.subr.mxu0 0.0
        %4071 = vmatpush1.msra.mxu0 0.0
        %v4072 = vand.u32 %v3396, 4294901760
        %v4073 = vsub.f32 %v3396, %v4072
        %4074 = vmatprep.subr.mxu0 %v4073
        %v4075 = vand.u32 %v3395, 4294901760
        %v4076 = vsub.f32 %v3395, %v4075
        %4077 = vmatpush1.msra.mxu0 %v4076
        %4078 = vmatprep.subr.mxu0 0.0
        %4079 = vmatpush2.msra.mxu0 0.0
        %4080 = vmatprep.subr.mxu0 0.0
        %4081 = vmatpush2.msra.mxu0 0.0
        %4082 = vmatprep.subr.mxu0 0.0
        %4083 = vmatpush2.msra.mxu0 0.0
        %4084 = vmatprep.subr.mxu0 0.0
        %4085 = vmatpush2.msra.mxu0 0.0
        %4086 = vmatprep.subr.mxu0 0.0
        %4087 = vmatpush2.msra.mxu0 0.0
        %4088 = vmatprep.subr.mxu0 0.0
        %4089 = vmatpush2.msra.mxu0 0.0
        %4090 = vmatprep.subr.mxu0 0.0
        %4091 = vmatpush2.msra.mxu0 0.0
        %4092 = vmatprep.subr.mxu0 0.0
        %4093 = vmatpush2.msra.mxu0 0.0
        %4094 = vmatprep.subr.mxu0 0.0
        %4095 = vmatpush2.msra.mxu0 0.0
        %4096 = vmatprep.subr.mxu0 0.0
        %4097 = vmatpush2.msra.mxu0 0.0
        %4098 = vmatprep.subr.mxu0 0.0
        %4099 = vmatpush2.msra.mxu0 0.0
        %4100 = vmatprep.subr.mxu0 0.0
        %4101 = vmatpush2.msra.mxu0 0.0
        %4102 = vmatprep.subr.mxu0 0.0
        %4103 = vmatpush2.msra.mxu0 0.0
        %4104 = vmatprep.subr.mxu0 0.0
        %4105 = vmatpush2.msra.mxu0 0.0
        %4106 = vmatprep.subr.mxu0 0.0
        %4107 = vmatpush2.msra.mxu0 0.0
        %4108 = vmatprep.subr.mxu0 0.0
        %4109 = vmatpush2.msra.mxu0 0.0
        %4110 = vmatprep.mubr.f32.mxu0 0.0
        %v4111 = vand.u32 %v3880, 4294901760
        %v4112 = vsub.f32 %v3880, %v4111
        %4113 = vmatmul.mubr.f32.gmra.mxu0 %v4112
        %v4114 = vpop.f32.mrf.mxu0
        %v4115 = vadd.f32 %v4038, %v4114
        %v4116 = vpop.f32.mrf.mxu0
        %v4117 = vadd.f32 %v4040, %v4116
        %4118 = vdwg.mxu0
        %4119 = vmatprep.subr.mxu0 0.0
        %4120 = vmatpush1.msra.mxu0 0.0
        %4121 = vmatprep.subr.mxu0 0.0
        %4122 = vmatpush1.msra.mxu0 0.0
        %4123 = vmatprep.subr.mxu0 0.0
        %4124 = vmatpush1.msra.mxu0 0.0
        %4125 = vmatprep.subr.mxu0 0.0
        %4126 = vmatpush1.msra.mxu0 0.0
        %4127 = vmatprep.subr.mxu0 0.0
        %4128 = vmatpush1.msra.mxu0 0.0
        %4129 = vmatprep.subr.mxu0 0.0
        %4130 = vmatpush1.msra.mxu0 0.0
        %4131 = vmatprep.subr.mxu0 0.0
        %4132 = vmatpush1.msra.mxu0 0.0
        %4133 = vmatprep.subr.mxu0 0.0
        %4134 = vmatpush1.msra.mxu0 0.0
        %4135 = vmatprep.subr.mxu0 0.0
        %4136 = vmatpush1.msra.mxu0 0.0
        %4137 = vmatprep.subr.mxu0 0.0
        %4138 = vmatpush1.msra.mxu0 0.0
        %4139 = vmatprep.subr.mxu0 0.0
        %4140 = vmatpush1.msra.mxu0 0.0
        %4141 = vmatprep.subr.mxu0 0.0
        %4142 = vmatpush1.msra.mxu0 0.0
        %4143 = vmatprep.subr.mxu0 0.0
        %4144 = vmatpush1.msra.mxu0 0.0
        %4145 = vmatprep.subr.mxu0 0.0
        %4146 = vmatpush1.msra.mxu0 0.0
        %4147 = vmatprep.subr.mxu0 0.0
        %4148 = vmatpush1.msra.mxu0 0.0
        %v4149 = vand.u32 %v3396, 4294901760
        %4150 = vmatprep.subr.mxu0 %v4149
        %v4151 = vand.u32 %v3395, 4294901760
        %4152 = vmatpush1.msra.mxu0 %v4151
        %4153 = vmatprep.subr.mxu0 0.0
        %4154 = vmatpush2.msra.mxu0 0.0
        %4155 = vmatprep.subr.mxu0 0.0
        %4156 = vmatpush2.msra.mxu0 0.0
        %4157 = vmatprep.subr.mxu0 0.0
        %4158 = vmatpush2.msra.mxu0 0.0
        %4159 = vmatprep.subr.mxu0 0.0
        %4160 = vmatpush2.msra.mxu0 0.0
        %4161 = vmatprep.subr.mxu0 0.0
        %4162 = vmatpush2.msra.mxu0 0.0
        %4163 = vmatprep.subr.mxu0 0.0
        %4164 = vmatpush2.msra.mxu0 0.0
        %4165 = vmatprep.subr.mxu0 0.0
        %4166 = vmatpush2.msra.mxu0 0.0
        %4167 = vmatprep.subr.mxu0 0.0
        %4168 = vmatpush2.msra.mxu0 0.0
        %4169 = vmatprep.subr.mxu0 0.0
        %4170 = vmatpush2.msra.mxu0 0.0
        %4171 = vmatprep.subr.mxu0 0.0
        %4172 = vmatpush2.msra.mxu0 0.0
        %4173 = vmatprep.subr.mxu0 0.0
        %4174 = vmatpush2.msra.mxu0 0.0
        %4175 = vmatprep.subr.mxu0 0.0
        %4176 = vmatpush2.msra.mxu0 0.0
        %4177 = vmatprep.subr.mxu0 0.0
        %4178 = vmatpush2.msra.mxu0 0.0
        %4179 = vmatprep.subr.mxu0 0.0
        %4180 = vmatpush2.msra.mxu0 0.0
        %4181 = vmatprep.subr.mxu0 0.0
        %4182 = vmatpush2.msra.mxu0 0.0
        %4183 = vmatprep.subr.mxu0 0.0
        %4184 = vmatpush2.msra.mxu0 0.0
        %4185 = vmatprep.mubr.f32.mxu0 0.0
        %v4186 = vand.u32 %v3880, 4294901760
        %v4187 = vsub.f32 %v3880, %v4186
        %v4188 = vand.u32 %v4187, 4294901760
        %4189 = vmatmul.mubr.f32.gmra.mxu0 %v4188
        %v4190 = vpop.f32.mrf.mxu0
        %v4191 = vadd.f32 %v4115, %v4190
        %v4192 = vpop.f32.mrf.mxu0
        %v4193 = vadd.f32 %v4117, %v4192
        %4194 = vdwg.mxu0
        %4195 = vmatprep.subr.mxu0 0.0
        %4196 = vmatpush1.msra.mxu0 0.0
        %4197 = vmatprep.subr.mxu0 0.0
        %4198 = vmatpush1.msra.mxu0 0.0
        %4199 = vmatprep.subr.mxu0 0.0
        %4200 = vmatpush1.msra.mxu0 0.0
        %4201 = vmatprep.subr.mxu0 0.0
        %4202 = vmatpush1.msra.mxu0 0.0
        %4203 = vmatprep.subr.mxu0 0.0
        %4204 = vmatpush1.msra.mxu0 0.0
        %4205 = vmatprep.subr.mxu0 0.0
        %4206 = vmatpush1.msra.mxu0 0.0
        %4207 = vmatprep.subr.mxu0 0.0
        %4208 = vmatpush1.msra.mxu0 0.0
        %4209 = vmatprep.subr.mxu0 0.0
        %4210 = vmatpush1.msra.mxu0 0.0
        %4211 = vmatprep.subr.mxu0 0.0
        %4212 = vmatpush1.msra.mxu0 0.0
        %4213 = vmatprep.subr.mxu0 0.0
        %4214 = vmatpush1.msra.mxu0 0.0
        %4215 = vmatprep.subr.mxu0 0.0
        %4216 = vmatpush1.msra.mxu0 0.0
        %4217 = vmatprep.subr.mxu0 0.0
        %4218 = vmatpush1.msra.mxu0 0.0
        %4219 = vmatprep.subr.mxu0 0.0
        %4220 = vmatpush1.msra.mxu0 0.0
        %4221 = vmatprep.subr.mxu0 0.0
        %4222 = vmatpush1.msra.mxu0 0.0
        %4223 = vmatprep.subr.mxu0 0.0
        %4224 = vmatpush1.msra.mxu0 0.0
        %v4225 = vand.u32 %v3396, 4294901760
        %v4226 = vsub.f32 %v3396, %v4225
        %v4227 = vand.u32 %v4226, 4294901760
        %4228 = vmatprep.subr.mxu0 %v4227
        %v4229 = vand.u32 %v3395, 4294901760
        %v4230 = vsub.f32 %v3395, %v4229
        %v4231 = vand.u32 %v4230, 4294901760
        %4232 = vmatpush1.msra.mxu0 %v4231
        %4233 = vmatprep.subr.mxu0 0.0
        %4234 = vmatpush2.msra.mxu0 0.0
        %4235 = vmatprep.subr.mxu0 0.0
        %4236 = vmatpush2.msra.mxu0 0.0
        %4237 = vmatprep.subr.mxu0 0.0
        %4238 = vmatpush2.msra.mxu0 0.0
        %4239 = vmatprep.subr.mxu0 0.0
        %4240 = vmatpush2.msra.mxu0 0.0
        %4241 = vmatprep.subr.mxu0 0.0
        %4242 = vmatpush2.msra.mxu0 0.0
        %4243 = vmatprep.subr.mxu0 0.0
        %4244 = vmatpush2.msra.mxu0 0.0
        %4245 = vmatprep.subr.mxu0 0.0
        %4246 = vmatpush2.msra.mxu0 0.0
        %4247 = vmatprep.subr.mxu0 0.0
        %4248 = vmatpush2.msra.mxu0 0.0
        %4249 = vmatprep.subr.mxu0 0.0
        %4250 = vmatpush2.msra.mxu0 0.0
        %4251 = vmatprep.subr.mxu0 0.0
        %4252 = vmatpush2.msra.mxu0 0.0
        %4253 = vmatprep.subr.mxu0 0.0
        %4254 = vmatpush2.msra.mxu0 0.0
        %4255 = vmatprep.subr.mxu0 0.0
        %4256 = vmatpush2.msra.mxu0 0.0
        %4257 = vmatprep.subr.mxu0 0.0
        %4258 = vmatpush2.msra.mxu0 0.0
        %4259 = vmatprep.subr.mxu0 0.0
        %4260 = vmatpush2.msra.mxu0 0.0
        %4261 = vmatprep.subr.mxu0 0.0
        %4262 = vmatpush2.msra.mxu0 0.0
        %4263 = vmatprep.subr.mxu0 0.0
        %4264 = vmatpush2.msra.mxu0 0.0
        %4265 = vmatprep.mubr.f32.mxu0 0.0
        %v4266 = vand.u32 %v3880, 4294901760
        %4267 = vmatmul.mubr.f32.gmra.mxu0 %v4266
        %v4268 = vpop.f32.mrf.mxu0
        %v4269 = vadd.f32 %v4191, %v4268
        %v4270 = vpop.f32.mrf.mxu0
        %v4271 = vadd.f32 %v4193, %v4270
        %4272 = vdwg.mxu0
        %4273 = vmatprep.subr.mxu0 0.0
        %4274 = vmatpush1.msra.mxu0 0.0
        %4275 = vmatprep.subr.mxu0 0.0
        %4276 = vmatpush1.msra.mxu0 0.0
        %4277 = vmatprep.subr.mxu0 0.0
        %4278 = vmatpush1.msra.mxu0 0.0
        %4279 = vmatprep.subr.mxu0 0.0
        %4280 = vmatpush1.msra.mxu0 0.0
        %4281 = vmatprep.subr.mxu0 0.0
        %4282 = vmatpush1.msra.mxu0 0.0
        %4283 = vmatprep.subr.mxu0 0.0
        %4284 = vmatpush1.msra.mxu0 0.0
        %4285 = vmatprep.subr.mxu0 0.0
        %4286 = vmatpush1.msra.mxu0 0.0
        %4287 = vmatprep.subr.mxu0 0.0
        %4288 = vmatpush1.msra.mxu0 0.0
        %4289 = vmatprep.subr.mxu0 0.0
        %4290 = vmatpush1.msra.mxu0 0.0
        %4291 = vmatprep.subr.mxu0 0.0
        %4292 = vmatpush1.msra.mxu0 0.0
        %4293 = vmatprep.subr.mxu0 0.0
        %4294 = vmatpush1.msra.mxu0 0.0
        %4295 = vmatprep.subr.mxu0 0.0
        %4296 = vmatpush1.msra.mxu0 0.0
        %4297 = vmatprep.subr.mxu0 0.0
        %4298 = vmatpush1.msra.mxu0 0.0
        %4299 = vmatprep.subr.mxu0 0.0
        %4300 = vmatpush1.msra.mxu0 0.0
        %4301 = vmatprep.subr.mxu0 0.0
        %4302 = vmatpush1.msra.mxu0 0.0
        %v4303 = vand.u32 %v3396, 4294901760
        %4304 = vmatprep.subr.mxu0 %v4303
        %v4305 = vand.u32 %v3395, 4294901760
        %4306 = vmatpush1.msra.mxu0 %v4305
        %4307 = vmatprep.subr.mxu0 0.0
        %4308 = vmatpush2.msra.mxu0 0.0
        %4309 = vmatprep.subr.mxu0 0.0
        %4310 = vmatpush2.msra.mxu0 0.0
        %4311 = vmatprep.subr.mxu0 0.0
        %4312 = vmatpush2.msra.mxu0 0.0
        %4313 = vmatprep.subr.mxu0 0.0
        %4314 = vmatpush2.msra.mxu0 0.0
        %4315 = vmatprep.subr.mxu0 0.0
        %4316 = vmatpush2.msra.mxu0 0.0
        %4317 = vmatprep.subr.mxu0 0.0
        %4318 = vmatpush2.msra.mxu0 0.0
        %4319 = vmatprep.subr.mxu0 0.0
        %4320 = vmatpush2.msra.mxu0 0.0
        %4321 = vmatprep.subr.mxu0 0.0
        %4322 = vmatpush2.msra.mxu0 0.0
        %4323 = vmatprep.subr.mxu0 0.0
        %4324 = vmatpush2.msra.mxu0 0.0
        %4325 = vmatprep.subr.mxu0 0.0
        %4326 = vmatpush2.msra.mxu0 0.0
        %4327 = vmatprep.subr.mxu0 0.0
        %4328 = vmatpush2.msra.mxu0 0.0
        %4329 = vmatprep.subr.mxu0 0.0
        %4330 = vmatpush2.msra.mxu0 0.0
        %4331 = vmatprep.subr.mxu0 0.0
        %4332 = vmatpush2.msra.mxu0 0.0
        %4333 = vmatprep.subr.mxu0 0.0
        %4334 = vmatpush2.msra.mxu0 0.0
        %4335 = vmatprep.subr.mxu0 0.0
        %4336 = vmatpush2.msra.mxu0 0.0
        %4337 = vmatprep.subr.mxu0 0.0
        %4338 = vmatpush2.msra.mxu0 0.0
        %4339 = vmatprep.mubr.f32.mxu0 0.0
        %v4340 = vand.u32 %v3880, 4294901760
        %4341 = vmatmul.mubr.f32.gmra.mxu0 %v4340
        %v4342 = vpop.f32.mrf.mxu0
        %v4343 = vadd.f32 %v4269, %v4342
        %v4344 = vpop.f32.mrf.mxu0
        %v4345 = vadd.f32 %v4271, %v4344
        %4346 = vdwg.mxu0
        %s4347 = scalar_lea.vmem [#allocation7], 16
        %v4348 = vld [vmem:[%s4347] sm:$0xff]
        %4349 = vrot.lane.b32.xlu0 %v3395, 96
        %v4350 = vpop.permute.xlu0 %4349
        %4351 = vrot.lane.b32.xlu0 %v3396, 96
        %v4352 = vpop.permute.xlu0 %4351
        %vm4353 = vcmask 785408
        %v4354 = vsel %vm4353, %v4350, %v4352
        %v4357 = vsel %vm4353, %v4352, 0.0
        %v4359 = vsel %vm486, %v4348, 0
        %4361 = vmatprep.subr.mxu0 0.0
        %4362 = vmatpush1.msra.mxu0 0.0
        %4363 = vmatprep.subr.mxu0 0.0
        %4364 = vmatpush1.msra.mxu0 0.0
        %4365 = vmatprep.subr.mxu0 0.0
        %4366 = vmatpush1.msra.mxu0 0.0
        %4367 = vmatprep.subr.mxu0 0.0
        %4368 = vmatpush1.msra.mxu0 0.0
        %4369 = vmatprep.subr.mxu0 0.0
        %4370 = vmatpush1.msra.mxu0 0.0
        %4371 = vmatprep.subr.mxu0 0.0
        %4372 = vmatpush1.msra.mxu0 0.0
        %4373 = vmatprep.subr.mxu0 0.0
        %4374 = vmatpush1.msra.mxu0 0.0
        %4375 = vmatprep.subr.mxu0 0.0
        %4376 = vmatpush1.msra.mxu0 0.0
        %4377 = vmatprep.subr.mxu0 0.0
        %4378 = vmatpush1.msra.mxu0 0.0
        %4379 = vmatprep.subr.mxu0 0.0
        %4380 = vmatpush1.msra.mxu0 0.0
        %4381 = vmatprep.subr.mxu0 0.0
        %4382 = vmatpush1.msra.mxu0 0.0
        %4383 = vmatprep.subr.mxu0 0.0
        %4384 = vmatpush1.msra.mxu0 0.0
        %4385 = vmatprep.subr.mxu0 0.0
        %4386 = vmatpush1.msra.mxu0 0.0
        %4387 = vmatprep.subr.mxu0 0.0
        %4388 = vmatpush1.msra.mxu0 0.0
        %4389 = vmatprep.subr.mxu0 0.0
        %4390 = vmatpush1.msra.mxu0 0.0
        %v4391 = vand.u32 %v4357, 4294901760
        %4392 = vmatprep.subr.mxu0 %v4391
        %v4393 = vand.u32 %v4354, 4294901760
        %4394 = vmatpush1.msra.mxu0 %v4393
        %4395 = vmatprep.subr.mxu0 0.0
        %4396 = vmatpush2.msra.mxu0 0.0
        %4397 = vmatprep.subr.mxu0 0.0
        %4398 = vmatpush2.msra.mxu0 0.0
        %4399 = vmatprep.subr.mxu0 0.0
        %4400 = vmatpush2.msra.mxu0 0.0
        %4401 = vmatprep.subr.mxu0 0.0
        %4402 = vmatpush2.msra.mxu0 0.0
        %4403 = vmatprep.subr.mxu0 0.0
        %4404 = vmatpush2.msra.mxu0 0.0
        %4405 = vmatprep.subr.mxu0 0.0
        %4406 = vmatpush2.msra.mxu0 0.0
        %4407 = vmatprep.subr.mxu0 0.0
        %4408 = vmatpush2.msra.mxu0 0.0
        %4409 = vmatprep.subr.mxu0 0.0
        %4410 = vmatpush2.msra.mxu0 0.0
        %4411 = vmatprep.subr.mxu0 0.0
        %4412 = vmatpush2.msra.mxu0 0.0
        %4413 = vmatprep.subr.mxu0 0.0
        %4414 = vmatpush2.msra.mxu0 0.0
        %4415 = vmatprep.subr.mxu0 0.0
        %4416 = vmatpush2.msra.mxu0 0.0
        %4417 = vmatprep.subr.mxu0 0.0
        %4418 = vmatpush2.msra.mxu0 0.0
        %4419 = vmatprep.subr.mxu0 0.0
        %4420 = vmatpush2.msra.mxu0 0.0
        %4421 = vmatprep.subr.mxu0 0.0
        %4422 = vmatpush2.msra.mxu0 0.0
        %4423 = vmatprep.subr.mxu0 0.0
        %4424 = vmatpush2.msra.mxu0 0.0
        %4425 = vmatprep.subr.mxu0 0.0
        %4426 = vmatpush2.msra.mxu0 0.0
        %4427 = vmatprep.mubr.f32.mxu0 0.0
        %v4428 = vand.u32 %v4359, 4294901760
        %v4429 = vsub.f32 %v4359, %v4428
        %v4430 = vand.u32 %v4429, 4294901760
        %v4431 = vsub.f32 %v4429, %v4430
        %v4432 = vand.u32 %v4431, 4294901760
        %4433 = vmatmul.mubr.f32.gmra.mxu0 %v4432
        %v4434 = vpop.f32.mrf.mxu0
        %v4435 = vadd.f32 0.0, %v4434
        %v4436 = vpop.f32.mrf.mxu0
        %v4437 = vadd.f32 0.0, %v4436
        %4438 = vdwg.mxu0
        %4439 = vmatprep.subr.mxu0 0.0
        %4440 = vmatpush1.msra.mxu0 0.0
        %4441 = vmatprep.subr.mxu0 0.0
        %4442 = vmatpush1.msra.mxu0 0.0
        %4443 = vmatprep.subr.mxu0 0.0
        %4444 = vmatpush1.msra.mxu0 0.0
        %4445 = vmatprep.subr.mxu0 0.0
        %4446 = vmatpush1.msra.mxu0 0.0
        %4447 = vmatprep.subr.mxu0 0.0
        %4448 = vmatpush1.msra.mxu0 0.0
        %4449 = vmatprep.subr.mxu0 0.0
        %4450 = vmatpush1.msra.mxu0 0.0
        %4451 = vmatprep.subr.mxu0 0.0
        %4452 = vmatpush1.msra.mxu0 0.0
        %4453 = vmatprep.subr.mxu0 0.0
        %4454 = vmatpush1.msra.mxu0 0.0
        %4455 = vmatprep.subr.mxu0 0.0
        %4456 = vmatpush1.msra.mxu0 0.0
        %4457 = vmatprep.subr.mxu0 0.0
        %4458 = vmatpush1.msra.mxu0 0.0
        %4459 = vmatprep.subr.mxu0 0.0
        %4460 = vmatpush1.msra.mxu0 0.0
        %4461 = vmatprep.subr.mxu0 0.0
        %4462 = vmatpush1.msra.mxu0 0.0
        %4463 = vmatprep.subr.mxu0 0.0
        %4464 = vmatpush1.msra.mxu0 0.0
        %4465 = vmatprep.subr.mxu0 0.0
        %4466 = vmatpush1.msra.mxu0 0.0
        %4467 = vmatprep.subr.mxu0 0.0
        %4468 = vmatpush1.msra.mxu0 0.0
        %v4469 = vand.u32 %v4357, 4294901760
        %v4470 = vsub.f32 %v4357, %v4469
        %v4471 = vand.u32 %v4470, 4294901760
        %v4472 = vsub.f32 %v4470, %v4471
        %v4473 = vand.u32 %v4472, 4294901760
        %4474 = vmatprep.subr.mxu0 %v4473
        %v4475 = vand.u32 %v4354, 4294901760
        %v4476 = vsub.f32 %v4354, %v4475
        %v4477 = vand.u32 %v4476, 4294901760
        %v4478 = vsub.f32 %v4476, %v4477
        %v4479 = vand.u32 %v4478, 4294901760
        %4480 = vmatpush1.msra.mxu0 %v4479
        %4481 = vmatprep.subr.mxu0 0.0
        %4482 = vmatpush2.msra.mxu0 0.0
        %4483 = vmatprep.subr.mxu0 0.0
        %4484 = vmatpush2.msra.mxu0 0.0
        %4485 = vmatprep.subr.mxu0 0.0
        %4486 = vmatpush2.msra.mxu0 0.0
        %4487 = vmatprep.subr.mxu0 0.0
        %4488 = vmatpush2.msra.mxu0 0.0
        %4489 = vmatprep.subr.mxu0 0.0
        %4490 = vmatpush2.msra.mxu0 0.0
        %4491 = vmatprep.subr.mxu0 0.0
        %4492 = vmatpush2.msra.mxu0 0.0
        %4493 = vmatprep.subr.mxu0 0.0
        %4494 = vmatpush2.msra.mxu0 0.0
        %4495 = vmatprep.subr.mxu0 0.0
        %4496 = vmatpush2.msra.mxu0 0.0
        %4497 = vmatprep.subr.mxu0 0.0
        %4498 = vmatpush2.msra.mxu0 0.0
        %4499 = vmatprep.subr.mxu0 0.0
        %4500 = vmatpush2.msra.mxu0 0.0
        %4501 = vmatprep.subr.mxu0 0.0
        %4502 = vmatpush2.msra.mxu0 0.0
        %4503 = vmatprep.subr.mxu0 0.0
        %4504 = vmatpush2.msra.mxu0 0.0
        %4505 = vmatprep.subr.mxu0 0.0
        %4506 = vmatpush2.msra.mxu0 0.0
        %4507 = vmatprep.subr.mxu0 0.0
        %4508 = vmatpush2.msra.mxu0 0.0
        %4509 = vmatprep.subr.mxu0 0.0
        %4510 = vmatpush2.msra.mxu0 0.0
        %4511 = vmatprep.subr.mxu0 0.0
        %4512 = vmatpush2.msra.mxu0 0.0
        %4513 = vmatprep.mubr.f32.mxu0 0.0
        %v4514 = vand.u32 %v4359, 4294901760
        %4515 = vmatmul.mubr.f32.gmra.mxu0 %v4514
        %v4516 = vpop.f32.mrf.mxu0
        %v4517 = vadd.f32 %v4435, %v4516
        %v4518 = vpop.f32.mrf.mxu0
        %v4519 = vadd.f32 %v4437, %v4518
        %4520 = vdwg.mxu0
        %4521 = vmatprep.subr.mxu0 0.0
        %4522 = vmatpush1.msra.mxu0 0.0
        %4523 = vmatprep.subr.mxu0 0.0
        %4524 = vmatpush1.msra.mxu0 0.0
        %4525 = vmatprep.subr.mxu0 0.0
        %4526 = vmatpush1.msra.mxu0 0.0
        %4527 = vmatprep.subr.mxu0 0.0
        %4528 = vmatpush1.msra.mxu0 0.0
        %4529 = vmatprep.subr.mxu0 0.0
        %4530 = vmatpush1.msra.mxu0 0.0
        %4531 = vmatprep.subr.mxu0 0.0
        %4532 = vmatpush1.msra.mxu0 0.0
        %4533 = vmatprep.subr.mxu0 0.0
        %4534 = vmatpush1.msra.mxu0 0.0
        %4535 = vmatprep.subr.mxu0 0.0
        %4536 = vmatpush1.msra.mxu0 0.0
        %4537 = vmatprep.subr.mxu0 0.0
        %4538 = vmatpush1.msra.mxu0 0.0
        %4539 = vmatprep.subr.mxu0 0.0
        %4540 = vmatpush1.msra.mxu0 0.0
        %4541 = vmatprep.subr.mxu0 0.0
        %4542 = vmatpush1.msra.mxu0 0.0
        %4543 = vmatprep.subr.mxu0 0.0
        %4544 = vmatpush1.msra.mxu0 0.0
        %4545 = vmatprep.subr.mxu0 0.0
        %4546 = vmatpush1.msra.mxu0 0.0
        %4547 = vmatprep.subr.mxu0 0.0
        %4548 = vmatpush1.msra.mxu0 0.0
        %4549 = vmatprep.subr.mxu0 0.0
        %4550 = vmatpush1.msra.mxu0 0.0
        %v4551 = vand.u32 %v4357, 4294901760
        %v4552 = vsub.f32 %v4357, %v4551
        %4553 = vmatprep.subr.mxu0 %v4552
        %v4554 = vand.u32 %v4354, 4294901760
        %v4555 = vsub.f32 %v4354, %v4554
        %4556 = vmatpush1.msra.mxu0 %v4555
        %4557 = vmatprep.subr.mxu0 0.0
        %4558 = vmatpush2.msra.mxu0 0.0
        %4559 = vmatprep.subr.mxu0 0.0
        %4560 = vmatpush2.msra.mxu0 0.0
        %4561 = vmatprep.subr.mxu0 0.0
        %4562 = vmatpush2.msra.mxu0 0.0
        %4563 = vmatprep.subr.mxu0 0.0
        %4564 = vmatpush2.msra.mxu0 0.0
        %4565 = vmatprep.subr.mxu0 0.0
        %4566 = vmatpush2.msra.mxu0 0.0
        %4567 = vmatprep.subr.mxu0 0.0
        %4568 = vmatpush2.msra.mxu0 0.0
        %4569 = vmatprep.subr.mxu0 0.0
        %4570 = vmatpush2.msra.mxu0 0.0
        %4571 = vmatprep.subr.mxu0 0.0
        %4572 = vmatpush2.msra.mxu0 0.0
        %4573 = vmatprep.subr.mxu0 0.0
        %4574 = vmatpush2.msra.mxu0 0.0
        %4575 = vmatprep.subr.mxu0 0.0
        %4576 = vmatpush2.msra.mxu0 0.0
        %4577 = vmatprep.subr.mxu0 0.0
        %4578 = vmatpush2.msra.mxu0 0.0
        %4579 = vmatprep.subr.mxu0 0.0
        %4580 = vmatpush2.msra.mxu0 0.0
        %4581 = vmatprep.subr.mxu0 0.0
        %4582 = vmatpush2.msra.mxu0 0.0
        %4583 = vmatprep.subr.mxu0 0.0
        %4584 = vmatpush2.msra.mxu0 0.0
        %4585 = vmatprep.subr.mxu0 0.0
        %4586 = vmatpush2.msra.mxu0 0.0
        %4587 = vmatprep.subr.mxu0 0.0
        %4588 = vmatpush2.msra.mxu0 0.0
        %4589 = vmatprep.mubr.f32.mxu0 0.0
        %v4590 = vand.u32 %v4359, 4294901760
        %v4591 = vsub.f32 %v4359, %v4590
        %4592 = vmatmul.mubr.f32.gmra.mxu0 %v4591
        %v4593 = vpop.f32.mrf.mxu0
        %v4594 = vadd.f32 %v4517, %v4593
        %v4595 = vpop.f32.mrf.mxu0
        %v4596 = vadd.f32 %v4519, %v4595
        %4597 = vdwg.mxu0
        %4598 = vmatprep.subr.mxu0 0.0
        %4599 = vmatpush1.msra.mxu0 0.0
        %4600 = vmatprep.subr.mxu0 0.0
        %4601 = vmatpush1.msra.mxu0 0.0
        %4602 = vmatprep.subr.mxu0 0.0
        %4603 = vmatpush1.msra.mxu0 0.0
        %4604 = vmatprep.subr.mxu0 0.0
        %4605 = vmatpush1.msra.mxu0 0.0
        %4606 = vmatprep.subr.mxu0 0.0
        %4607 = vmatpush1.msra.mxu0 0.0
        %4608 = vmatprep.subr.mxu0 0.0
        %4609 = vmatpush1.msra.mxu0 0.0
        %4610 = vmatprep.subr.mxu0 0.0
        %4611 = vmatpush1.msra.mxu0 0.0
        %4612 = vmatprep.subr.mxu0 0.0
        %4613 = vmatpush1.msra.mxu0 0.0
        %4614 = vmatprep.subr.mxu0 0.0
        %4615 = vmatpush1.msra.mxu0 0.0
        %4616 = vmatprep.subr.mxu0 0.0
        %4617 = vmatpush1.msra.mxu0 0.0
        %4618 = vmatprep.subr.mxu0 0.0
        %4619 = vmatpush1.msra.mxu0 0.0
        %4620 = vmatprep.subr.mxu0 0.0
        %4621 = vmatpush1.msra.mxu0 0.0
        %4622 = vmatprep.subr.mxu0 0.0
        %4623 = vmatpush1.msra.mxu0 0.0
        %4624 = vmatprep.subr.mxu0 0.0
        %4625 = vmatpush1.msra.mxu0 0.0
        %4626 = vmatprep.subr.mxu0 0.0
        %4627 = vmatpush1.msra.mxu0 0.0
        %v4628 = vand.u32 %v4357, 4294901760
        %4629 = vmatprep.subr.mxu0 %v4628
        %v4630 = vand.u32 %v4354, 4294901760
        %4631 = vmatpush1.msra.mxu0 %v4630
        %4632 = vmatprep.subr.mxu0 0.0
        %4633 = vmatpush2.msra.mxu0 0.0
        %4634 = vmatprep.subr.mxu0 0.0
        %4635 = vmatpush2.msra.mxu0 0.0
        %4636 = vmatprep.subr.mxu0 0.0
        %4637 = vmatpush2.msra.mxu0 0.0
        %4638 = vmatprep.subr.mxu0 0.0
        %4639 = vmatpush2.msra.mxu0 0.0
        %4640 = vmatprep.subr.mxu0 0.0
        %4641 = vmatpush2.msra.mxu0 0.0
        %4642 = vmatprep.subr.mxu0 0.0
        %4643 = vmatpush2.msra.mxu0 0.0
        %4644 = vmatprep.subr.mxu0 0.0
        %4645 = vmatpush2.msra.mxu0 0.0
        %4646 = vmatprep.subr.mxu0 0.0
        %4647 = vmatpush2.msra.mxu0 0.0
        %4648 = vmatprep.subr.mxu0 0.0
        %4649 = vmatpush2.msra.mxu0 0.0
        %4650 = vmatprep.subr.mxu0 0.0
        %4651 = vmatpush2.msra.mxu0 0.0
        %4652 = vmatprep.subr.mxu0 0.0
        %4653 = vmatpush2.msra.mxu0 0.0
        %4654 = vmatprep.subr.mxu0 0.0
        %4655 = vmatpush2.msra.mxu0 0.0
        %4656 = vmatprep.subr.mxu0 0.0
        %4657 = vmatpush2.msra.mxu0 0.0
        %4658 = vmatprep.subr.mxu0 0.0
        %4659 = vmatpush2.msra.mxu0 0.0
        %4660 = vmatprep.subr.mxu0 0.0
        %4661 = vmatpush2.msra.mxu0 0.0
        %4662 = vmatprep.subr.mxu0 0.0
        %4663 = vmatpush2.msra.mxu0 0.0
        %4664 = vmatprep.mubr.f32.mxu0 0.0
        %v4665 = vand.u32 %v4359, 4294901760
        %v4666 = vsub.f32 %v4359, %v4665
        %v4667 = vand.u32 %v4666, 4294901760
        %4668 = vmatmul.mubr.f32.gmra.mxu0 %v4667
        %v4669 = vpop.f32.mrf.mxu0
        %v4670 = vadd.f32 %v4594, %v4669
        %v4671 = vpop.f32.mrf.mxu0
        %v4672 = vadd.f32 %v4596, %v4671
        %4673 = vdwg.mxu0
        %4674 = vmatprep.subr.mxu0 0.0
        %4675 = vmatpush1.msra.mxu0 0.0
        %4676 = vmatprep.subr.mxu0 0.0
        %4677 = vmatpush1.msra.mxu0 0.0
        %4678 = vmatprep.subr.mxu0 0.0
        %4679 = vmatpush1.msra.mxu0 0.0
        %4680 = vmatprep.subr.mxu0 0.0
        %4681 = vmatpush1.msra.mxu0 0.0
        %4682 = vmatprep.subr.mxu0 0.0
        %4683 = vmatpush1.msra.mxu0 0.0
        %4684 = vmatprep.subr.mxu0 0.0
        %4685 = vmatpush1.msra.mxu0 0.0
        %4686 = vmatprep.subr.mxu0 0.0
        %4687 = vmatpush1.msra.mxu0 0.0
        %4688 = vmatprep.subr.mxu0 0.0
        %4689 = vmatpush1.msra.mxu0 0.0
        %4690 = vmatprep.subr.mxu0 0.0
        %4691 = vmatpush1.msra.mxu0 0.0
        %4692 = vmatprep.subr.mxu0 0.0
        %4693 = vmatpush1.msra.mxu0 0.0
        %4694 = vmatprep.subr.mxu0 0.0
        %4695 = vmatpush1.msra.mxu0 0.0
        %4696 = vmatprep.subr.mxu0 0.0
        %4697 = vmatpush1.msra.mxu0 0.0
        %4698 = vmatprep.subr.mxu0 0.0
        %4699 = vmatpush1.msra.mxu0 0.0
        %4700 = vmatprep.subr.mxu0 0.0
        %4701 = vmatpush1.msra.mxu0 0.0
        %4702 = vmatprep.subr.mxu0 0.0
        %4703 = vmatpush1.msra.mxu0 0.0
        %v4704 = vand.u32 %v4357, 4294901760
        %v4705 = vsub.f32 %v4357, %v4704
        %v4706 = vand.u32 %v4705, 4294901760
        %4707 = vmatprep.subr.mxu0 %v4706
        %v4708 = vand.u32 %v4354, 4294901760
        %v4709 = vsub.f32 %v4354, %v4708
        %v4710 = vand.u32 %v4709, 4294901760
        %4711 = vmatpush1.msra.mxu0 %v4710
        %4712 = vmatprep.subr.mxu0 0.0
        %4713 = vmatpush2.msra.mxu0 0.0
        %4714 = vmatprep.subr.mxu0 0.0
        %4715 = vmatpush2.msra.mxu0 0.0
        %4716 = vmatprep.subr.mxu0 0.0
        %4717 = vmatpush2.msra.mxu0 0.0
        %4718 = vmatprep.subr.mxu0 0.0
        %4719 = vmatpush2.msra.mxu0 0.0
        %4720 = vmatprep.subr.mxu0 0.0
        %4721 = vmatpush2.msra.mxu0 0.0
        %4722 = vmatprep.subr.mxu0 0.0
        %4723 = vmatpush2.msra.mxu0 0.0
        %4724 = vmatprep.subr.mxu0 0.0
        %4725 = vmatpush2.msra.mxu0 0.0
        %4726 = vmatprep.subr.mxu0 0.0
        %4727 = vmatpush2.msra.mxu0 0.0
        %4728 = vmatprep.subr.mxu0 0.0
        %4729 = vmatpush2.msra.mxu0 0.0
        %4730 = vmatprep.subr.mxu0 0.0
        %4731 = vmatpush2.msra.mxu0 0.0
        %4732 = vmatprep.subr.mxu0 0.0
        %4733 = vmatpush2.msra.mxu0 0.0
        %4734 = vmatprep.subr.mxu0 0.0
        %4735 = vmatpush2.msra.mxu0 0.0
        %4736 = vmatprep.subr.mxu0 0.0
        %4737 = vmatpush2.msra.mxu0 0.0
        %4738 = vmatprep.subr.mxu0 0.0
        %4739 = vmatpush2.msra.mxu0 0.0
        %4740 = vmatprep.subr.mxu0 0.0
        %4741 = vmatpush2.msra.mxu0 0.0
        %4742 = vmatprep.subr.mxu0 0.0
        %4743 = vmatpush2.msra.mxu0 0.0
        %4744 = vmatprep.mubr.f32.mxu0 0.0
        %v4745 = vand.u32 %v4359, 4294901760
        %4746 = vmatmul.mubr.f32.gmra.mxu0 %v4745
        %v4747 = vpop.f32.mrf.mxu0
        %v4748 = vadd.f32 %v4670, %v4747
        %v4749 = vpop.f32.mrf.mxu0
        %v4750 = vadd.f32 %v4672, %v4749
        %4751 = vdwg.mxu0
        %4752 = vmatprep.subr.mxu0 0.0
        %4753 = vmatpush1.msra.mxu0 0.0
        %4754 = vmatprep.subr.mxu0 0.0
        %4755 = vmatpush1.msra.mxu0 0.0
        %4756 = vmatprep.subr.mxu0 0.0
        %4757 = vmatpush1.msra.mxu0 0.0
        %4758 = vmatprep.subr.mxu0 0.0
        %4759 = vmatpush1.msra.mxu0 0.0
        %4760 = vmatprep.subr.mxu0 0.0
        %4761 = vmatpush1.msra.mxu0 0.0
        %4762 = vmatprep.subr.mxu0 0.0
        %4763 = vmatpush1.msra.mxu0 0.0
        %4764 = vmatprep.subr.mxu0 0.0
        %4765 = vmatpush1.msra.mxu0 0.0
        %4766 = vmatprep.subr.mxu0 0.0
        %4767 = vmatpush1.msra.mxu0 0.0
        %4768 = vmatprep.subr.mxu0 0.0
        %4769 = vmatpush1.msra.mxu0 0.0
        %4770 = vmatprep.subr.mxu0 0.0
        %4771 = vmatpush1.msra.mxu0 0.0
        %4772 = vmatprep.subr.mxu0 0.0
        %4773 = vmatpush1.msra.mxu0 0.0
        %4774 = vmatprep.subr.mxu0 0.0
        %4775 = vmatpush1.msra.mxu0 0.0
        %4776 = vmatprep.subr.mxu0 0.0
        %4777 = vmatpush1.msra.mxu0 0.0
        %4778 = vmatprep.subr.mxu0 0.0
        %4779 = vmatpush1.msra.mxu0 0.0
        %4780 = vmatprep.subr.mxu0 0.0
        %4781 = vmatpush1.msra.mxu0 0.0
        %v4782 = vand.u32 %v4357, 4294901760
        %4783 = vmatprep.subr.mxu0 %v4782
        %v4784 = vand.u32 %v4354, 4294901760
        %4785 = vmatpush1.msra.mxu0 %v4784
        %4786 = vmatprep.subr.mxu0 0.0
        %4787 = vmatpush2.msra.mxu0 0.0
        %4788 = vmatprep.subr.mxu0 0.0
        %4789 = vmatpush2.msra.mxu0 0.0
        %4790 = vmatprep.subr.mxu0 0.0
        %4791 = vmatpush2.msra.mxu0 0.0
        %4792 = vmatprep.subr.mxu0 0.0
        %4793 = vmatpush2.msra.mxu0 0.0
        %4794 = vmatprep.subr.mxu0 0.0
        %4795 = vmatpush2.msra.mxu0 0.0
        %4796 = vmatprep.subr.mxu0 0.0
        %4797 = vmatpush2.msra.mxu0 0.0
        %4798 = vmatprep.subr.mxu0 0.0
        %4799 = vmatpush2.msra.mxu0 0.0
        %4800 = vmatprep.subr.mxu0 0.0
        %4801 = vmatpush2.msra.mxu0 0.0
        %4802 = vmatprep.subr.mxu0 0.0
        %4803 = vmatpush2.msra.mxu0 0.0
        %4804 = vmatprep.subr.mxu0 0.0
        %4805 = vmatpush2.msra.mxu0 0.0
        %4806 = vmatprep.subr.mxu0 0.0
        %4807 = vmatpush2.msra.mxu0 0.0
        %4808 = vmatprep.subr.mxu0 0.0
        %4809 = vmatpush2.msra.mxu0 0.0
        %4810 = vmatprep.subr.mxu0 0.0
        %4811 = vmatpush2.msra.mxu0 0.0
        %4812 = vmatprep.subr.mxu0 0.0
        %4813 = vmatpush2.msra.mxu0 0.0
        %4814 = vmatprep.subr.mxu0 0.0
        %4815 = vmatpush2.msra.mxu0 0.0
        %4816 = vmatprep.subr.mxu0 0.0
        %4817 = vmatpush2.msra.mxu0 0.0
        %4818 = vmatprep.mubr.f32.mxu0 0.0
        %v4819 = vand.u32 %v4359, 4294901760
        %4820 = vmatmul.mubr.f32.gmra.mxu0 %v4819
        %v4821 = vpop.f32.mrf.mxu0
        %v4822 = vadd.f32 %v4748, %v4821
        %v4823 = vpop.f32.mrf.mxu0
        %v4824 = vadd.f32 %v4750, %v4823
        %4825 = vdwg.mxu0
        %v4826 = vadd.f32 %v4343, %v4822
        %v4827 = vadd.f32 %v4345, %v4824
        %v4828 = vld [vmem:[%s8] sm:$0xff]
        %4830 = vset.pattern.permute.xlu0 0
        %4831 = vperm.xlu0 %4830, %v4828
        %v4832 = vpop.permute.xlu0 %4831
        %v4834 = vadd.f32 %v4826, %v4832
        %v4835 = vadd.f32 %v4827, %v4832
        %v4836 = vmax.f32 %v4834, 0.0
        %v4837 = vmax.f32 %v4835, 0.0
        %s4838 = scalar_lea.vmem [#allocation8], 8
        %v4839 = vld [vmem:[%s4838] sm:$0xff]
        %v4840 = vadd.f32 %v471, -2.0
        %vm4841 = vcmp.ge.f32.partialorder %v4840, 0.0
        %vm4842 = vcmp.le.f32.partialorder %v4840, 15.0
        %vm4843 = vmand %vm4841, %vm4842
        %v4844 = vld [vmem:[#allocation8] sm:$0xff]
        %4847 = vrot.lane.b32.xlu0 %v4836, 2
        %v4848 = vpop.permute.xlu0 %4847
        %4849 = vrot.lane.b32.xlu0 %v4837, 2
        %v4850 = vpop.permute.xlu0 %4849
        %vm4851 = vcmask 15360
        %v4852 = vsel %vm4851, %v4848, %v4850
        %v4855 = vsel %vm4851, 0.0, %v4848
        %v4856 = vsel %vm4843, 1, 0
        %v4857 = vlaneseq
        %v4858 = vshrl.u32 %v4857, 7
        %v4859 = vsub.s32 0, %v4858
        %v4860 = vrot.slane %v4856, %v4859
        %v4861 = vlaneseq
        %v4862 = vshrl.u32 %v4861, 7
        %v4863 = vsub.s32 1, %v4862
        %v4864 = vrot.slane %v4856, %v4863
        %vm4865 = vcmp.eq.s32.totalorder %v4860, 1
        %vm4866 = vcmp.eq.s32.totalorder %v4864, 1
        %v4867 = vsel %vm4865, %v4855, 0.0
        %v4868 = vsel %vm4866, %v4852, 0.0
        %v4870 = vsel %vm486, %v4844, 0
        %4872 = vmatprep.subr.mxu0 0.0
        %4873 = vmatpush1.msra.mxu0 0.0
        %4874 = vmatprep.subr.mxu0 0.0
        %4875 = vmatpush1.msra.mxu0 0.0
        %4876 = vmatprep.subr.mxu0 0.0
        %4877 = vmatpush1.msra.mxu0 0.0
        %4878 = vmatprep.subr.mxu0 0.0
        %4879 = vmatpush1.msra.mxu0 0.0
        %4880 = vmatprep.subr.mxu0 0.0
        %4881 = vmatpush1.msra.mxu0 0.0
        %4882 = vmatprep.subr.mxu0 0.0
        %4883 = vmatpush1.msra.mxu0 0.0
        %4884 = vmatprep.subr.mxu0 0.0
        %4885 = vmatpush1.msra.mxu0 0.0
        %4886 = vmatprep.subr.mxu0 0.0
        %4887 = vmatpush1.msra.mxu0 0.0
        %4888 = vmatprep.subr.mxu0 0.0
        %4889 = vmatpush1.msra.mxu0 0.0
        %4890 = vmatprep.subr.mxu0 0.0
        %4891 = vmatpush1.msra.mxu0 0.0
        %4892 = vmatprep.subr.mxu0 0.0
        %4893 = vmatpush1.msra.mxu0 0.0
        %4894 = vmatprep.subr.mxu0 0.0
        %4895 = vmatpush1.msra.mxu0 0.0
        %4896 = vmatprep.subr.mxu0 0.0
        %4897 = vmatpush1.msra.mxu0 0.0
        %4898 = vmatprep.subr.mxu0 0.0
        %4899 = vmatpush1.msra.mxu0 0.0
        %4900 = vmatprep.subr.mxu0 0.0
        %4901 = vmatpush1.msra.mxu0 0.0
        %v4902 = vand.u32 %v4868, 4294901760
        %4903 = vmatprep.subr.mxu0 %v4902
        %v4904 = vand.u32 %v4867, 4294901760
        %4905 = vmatpush1.msra.mxu0 %v4904
        %4906 = vmatprep.subr.mxu0 0.0
        %4907 = vmatpush2.msra.mxu0 0.0
        %4908 = vmatprep.subr.mxu0 0.0
        %4909 = vmatpush2.msra.mxu0 0.0
        %4910 = vmatprep.subr.mxu0 0.0
        %4911 = vmatpush2.msra.mxu0 0.0
        %4912 = vmatprep.subr.mxu0 0.0
        %4913 = vmatpush2.msra.mxu0 0.0
        %4914 = vmatprep.subr.mxu0 0.0
        %4915 = vmatpush2.msra.mxu0 0.0
        %4916 = vmatprep.subr.mxu0 0.0
        %4917 = vmatpush2.msra.mxu0 0.0
        %4918 = vmatprep.subr.mxu0 0.0
        %4919 = vmatpush2.msra.mxu0 0.0
        %4920 = vmatprep.subr.mxu0 0.0
        %4921 = vmatpush2.msra.mxu0 0.0
        %4922 = vmatprep.subr.mxu0 0.0
        %4923 = vmatpush2.msra.mxu0 0.0
        %4924 = vmatprep.subr.mxu0 0.0
        %4925 = vmatpush2.msra.mxu0 0.0
        %4926 = vmatprep.subr.mxu0 0.0
        %4927 = vmatpush2.msra.mxu0 0.0
        %4928 = vmatprep.subr.mxu0 0.0
        %4929 = vmatpush2.msra.mxu0 0.0
        %4930 = vmatprep.subr.mxu0 0.0
        %4931 = vmatpush2.msra.mxu0 0.0
        %4932 = vmatprep.subr.mxu0 0.0
        %4933 = vmatpush2.msra.mxu0 0.0
        %4934 = vmatprep.subr.mxu0 0.0
        %4935 = vmatpush2.msra.mxu0 0.0
        %4936 = vmatprep.subr.mxu0 0.0
        %4937 = vmatpush2.msra.mxu0 0.0
        %4938 = vmatprep.mubr.f32.mxu0 0.0
        %v4939 = vand.u32 %v4870, 4294901760
        %v4940 = vsub.f32 %v4870, %v4939
        %v4941 = vand.u32 %v4940, 4294901760
        %v4942 = vsub.f32 %v4940, %v4941
        %v4943 = vand.u32 %v4942, 4294901760
        %4944 = vmatmul.mubr.f32.gmra.mxu0 %v4943
        %v4945 = vpop.f32.mrf.mxu0
        %v4946 = vadd.f32 0.0, %v4945
        %v4947 = vpop.f32.mrf.mxu0
        %v4948 = vadd.f32 0.0, %v4947
        %4949 = vdwg.mxu0
        %4950 = vmatprep.subr.mxu0 0.0
        %4951 = vmatpush1.msra.mxu0 0.0
        %4952 = vmatprep.subr.mxu0 0.0
        %4953 = vmatpush1.msra.mxu0 0.0
        %4954 = vmatprep.subr.mxu0 0.0
        %4955 = vmatpush1.msra.mxu0 0.0
        %4956 = vmatprep.subr.mxu0 0.0
        %4957 = vmatpush1.msra.mxu0 0.0
        %4958 = vmatprep.subr.mxu0 0.0
        %4959 = vmatpush1.msra.mxu0 0.0
        %4960 = vmatprep.subr.mxu0 0.0
        %4961 = vmatpush1.msra.mxu0 0.0
        %4962 = vmatprep.subr.mxu0 0.0
        %4963 = vmatpush1.msra.mxu0 0.0
        %4964 = vmatprep.subr.mxu0 0.0
        %4965 = vmatpush1.msra.mxu0 0.0
        %4966 = vmatprep.subr.mxu0 0.0
        %4967 = vmatpush1.msra.mxu0 0.0
        %4968 = vmatprep.subr.mxu0 0.0
        %4969 = vmatpush1.msra.mxu0 0.0
        %4970 = vmatprep.subr.mxu0 0.0
        %4971 = vmatpush1.msra.mxu0 0.0
        %4972 = vmatprep.subr.mxu0 0.0
        %4973 = vmatpush1.msra.mxu0 0.0
        %4974 = vmatprep.subr.mxu0 0.0
        %4975 = vmatpush1.msra.mxu0 0.0
        %4976 = vmatprep.subr.mxu0 0.0
        %4977 = vmatpush1.msra.mxu0 0.0
        %4978 = vmatprep.subr.mxu0 0.0
        %4979 = vmatpush1.msra.mxu0 0.0
        %v4980 = vand.u32 %v4868, 4294901760
        %v4981 = vsub.f32 %v4868, %v4980
        %v4982 = vand.u32 %v4981, 4294901760
        %v4983 = vsub.f32 %v4981, %v4982
        %v4984 = vand.u32 %v4983, 4294901760
        %4985 = vmatprep.subr.mxu0 %v4984
        %v4986 = vand.u32 %v4867, 4294901760
        %v4987 = vsub.f32 %v4867, %v4986
        %v4988 = vand.u32 %v4987, 4294901760
        %v4989 = vsub.f32 %v4987, %v4988
        %v4990 = vand.u32 %v4989, 4294901760
        %4991 = vmatpush1.msra.mxu0 %v4990
        %4992 = vmatprep.subr.mxu0 0.0
        %4993 = vmatpush2.msra.mxu0 0.0
        %4994 = vmatprep.subr.mxu0 0.0
        %4995 = vmatpush2.msra.mxu0 0.0
        %4996 = vmatprep.subr.mxu0 0.0
        %4997 = vmatpush2.msra.mxu0 0.0
        %4998 = vmatprep.subr.mxu0 0.0
        %4999 = vmatpush2.msra.mxu0 0.0
        %5000 = vmatprep.subr.mxu0 0.0
        %5001 = vmatpush2.msra.mxu0 0.0
        %5002 = vmatprep.subr.mxu0 0.0
        %5003 = vmatpush2.msra.mxu0 0.0
        %5004 = vmatprep.subr.mxu0 0.0
        %5005 = vmatpush2.msra.mxu0 0.0
        %5006 = vmatprep.subr.mxu0 0.0
        %5007 = vmatpush2.msra.mxu0 0.0
        %5008 = vmatprep.subr.mxu0 0.0
        %5009 = vmatpush2.msra.mxu0 0.0
        %5010 = vmatprep.subr.mxu0 0.0
        %5011 = vmatpush2.msra.mxu0 0.0
        %5012 = vmatprep.subr.mxu0 0.0
        %5013 = vmatpush2.msra.mxu0 0.0
        %5014 = vmatprep.subr.mxu0 0.0
        %5015 = vmatpush2.msra.mxu0 0.0
        %5016 = vmatprep.subr.mxu0 0.0
        %5017 = vmatpush2.msra.mxu0 0.0
        %5018 = vmatprep.subr.mxu0 0.0
        %5019 = vmatpush2.msra.mxu0 0.0
        %5020 = vmatprep.subr.mxu0 0.0
        %5021 = vmatpush2.msra.mxu0 0.0
        %5022 = vmatprep.subr.mxu0 0.0
        %5023 = vmatpush2.msra.mxu0 0.0
        %5024 = vmatprep.mubr.f32.mxu0 0.0
        %v5025 = vand.u32 %v4870, 4294901760
        %5026 = vmatmul.mubr.f32.gmra.mxu0 %v5025
        %v5027 = vpop.f32.mrf.mxu0
        %v5028 = vadd.f32 %v4946, %v5027
        %v5029 = vpop.f32.mrf.mxu0
        %v5030 = vadd.f32 %v4948, %v5029
        %5031 = vdwg.mxu0
        %5032 = vmatprep.subr.mxu0 0.0
        %5033 = vmatpush1.msra.mxu0 0.0
        %5034 = vmatprep.subr.mxu0 0.0
        %5035 = vmatpush1.msra.mxu0 0.0
        %5036 = vmatprep.subr.mxu0 0.0
        %5037 = vmatpush1.msra.mxu0 0.0
        %5038 = vmatprep.subr.mxu0 0.0
        %5039 = vmatpush1.msra.mxu0 0.0
        %5040 = vmatprep.subr.mxu0 0.0
        %5041 = vmatpush1.msra.mxu0 0.0
        %5042 = vmatprep.subr.mxu0 0.0
        %5043 = vmatpush1.msra.mxu0 0.0
        %5044 = vmatprep.subr.mxu0 0.0
        %5045 = vmatpush1.msra.mxu0 0.0
        %5046 = vmatprep.subr.mxu0 0.0
        %5047 = vmatpush1.msra.mxu0 0.0
        %5048 = vmatprep.subr.mxu0 0.0
        %5049 = vmatpush1.msra.mxu0 0.0
        %5050 = vmatprep.subr.mxu0 0.0
        %5051 = vmatpush1.msra.mxu0 0.0
        %5052 = vmatprep.subr.mxu0 0.0
        %5053 = vmatpush1.msra.mxu0 0.0
        %5054 = vmatprep.subr.mxu0 0.0
        %5055 = vmatpush1.msra.mxu0 0.0
        %5056 = vmatprep.subr.mxu0 0.0
        %5057 = vmatpush1.msra.mxu0 0.0
        %5058 = vmatprep.subr.mxu0 0.0
        %5059 = vmatpush1.msra.mxu0 0.0
        %5060 = vmatprep.subr.mxu0 0.0
        %5061 = vmatpush1.msra.mxu0 0.0
        %v5062 = vand.u32 %v4868, 4294901760
        %v5063 = vsub.f32 %v4868, %v5062
        %5064 = vmatprep.subr.mxu0 %v5063
        %v5065 = vand.u32 %v4867, 4294901760
        %v5066 = vsub.f32 %v4867, %v5065
        %5067 = vmatpush1.msra.mxu0 %v5066
        %5068 = vmatprep.subr.mxu0 0.0
        %5069 = vmatpush2.msra.mxu0 0.0
        %5070 = vmatprep.subr.mxu0 0.0
        %5071 = vmatpush2.msra.mxu0 0.0
        %5072 = vmatprep.subr.mxu0 0.0
        %5073 = vmatpush2.msra.mxu0 0.0
        %5074 = vmatprep.subr.mxu0 0.0
        %5075 = vmatpush2.msra.mxu0 0.0
        %5076 = vmatprep.subr.mxu0 0.0
        %5077 = vmatpush2.msra.mxu0 0.0
        %5078 = vmatprep.subr.mxu0 0.0
        %5079 = vmatpush2.msra.mxu0 0.0
        %5080 = vmatprep.subr.mxu0 0.0
        %5081 = vmatpush2.msra.mxu0 0.0
        %5082 = vmatprep.subr.mxu0 0.0
        %5083 = vmatpush2.msra.mxu0 0.0
        %5084 = vmatprep.subr.mxu0 0.0
        %5085 = vmatpush2.msra.mxu0 0.0
        %5086 = vmatprep.subr.mxu0 0.0
        %5087 = vmatpush2.msra.mxu0 0.0
        %5088 = vmatprep.subr.mxu0 0.0
        %5089 = vmatpush2.msra.mxu0 0.0
        %5090 = vmatprep.subr.mxu0 0.0
        %5091 = vmatpush2.msra.mxu0 0.0
        %5092 = vmatprep.subr.mxu0 0.0
        %5093 = vmatpush2.msra.mxu0 0.0
        %5094 = vmatprep.subr.mxu0 0.0
        %5095 = vmatpush2.msra.mxu0 0.0
        %5096 = vmatprep.subr.mxu0 0.0
        %5097 = vmatpush2.msra.mxu0 0.0
        %5098 = vmatprep.subr.mxu0 0.0
        %5099 = vmatpush2.msra.mxu0 0.0
        %5100 = vmatprep.mubr.f32.mxu0 0.0
        %v5101 = vand.u32 %v4870, 4294901760
        %v5102 = vsub.f32 %v4870, %v5101
        %5103 = vmatmul.mubr.f32.gmra.mxu0 %v5102
        %v5104 = vpop.f32.mrf.mxu0
        %v5105 = vadd.f32 %v5028, %v5104
        %v5106 = vpop.f32.mrf.mxu0
        %v5107 = vadd.f32 %v5030, %v5106
        %5108 = vdwg.mxu0
        %5109 = vmatprep.subr.mxu0 0.0
        %5110 = vmatpush1.msra.mxu0 0.0
        %5111 = vmatprep.subr.mxu0 0.0
        %5112 = vmatpush1.msra.mxu0 0.0
        %5113 = vmatprep.subr.mxu0 0.0
        %5114 = vmatpush1.msra.mxu0 0.0
        %5115 = vmatprep.subr.mxu0 0.0
        %5116 = vmatpush1.msra.mxu0 0.0
        %5117 = vmatprep.subr.mxu0 0.0
        %5118 = vmatpush1.msra.mxu0 0.0
        %5119 = vmatprep.subr.mxu0 0.0
        %5120 = vmatpush1.msra.mxu0 0.0
        %5121 = vmatprep.subr.mxu0 0.0
        %5122 = vmatpush1.msra.mxu0 0.0
        %5123 = vmatprep.subr.mxu0 0.0
        %5124 = vmatpush1.msra.mxu0 0.0
        %5125 = vmatprep.subr.mxu0 0.0
        %5126 = vmatpush1.msra.mxu0 0.0
        %5127 = vmatprep.subr.mxu0 0.0
        %5128 = vmatpush1.msra.mxu0 0.0
        %5129 = vmatprep.subr.mxu0 0.0
        %5130 = vmatpush1.msra.mxu0 0.0
        %5131 = vmatprep.subr.mxu0 0.0
        %5132 = vmatpush1.msra.mxu0 0.0
        %5133 = vmatprep.subr.mxu0 0.0
        %5134 = vmatpush1.msra.mxu0 0.0
        %5135 = vmatprep.subr.mxu0 0.0
        %5136 = vmatpush1.msra.mxu0 0.0
        %5137 = vmatprep.subr.mxu0 0.0
        %5138 = vmatpush1.msra.mxu0 0.0
        %v5139 = vand.u32 %v4868, 4294901760
        %5140 = vmatprep.subr.mxu0 %v5139
        %v5141 = vand.u32 %v4867, 4294901760
        %5142 = vmatpush1.msra.mxu0 %v5141
        %5143 = vmatprep.subr.mxu0 0.0
        %5144 = vmatpush2.msra.mxu0 0.0
        %5145 = vmatprep.subr.mxu0 0.0
        %5146 = vmatpush2.msra.mxu0 0.0
        %5147 = vmatprep.subr.mxu0 0.0
        %5148 = vmatpush2.msra.mxu0 0.0
        %5149 = vmatprep.subr.mxu0 0.0
        %5150 = vmatpush2.msra.mxu0 0.0
        %5151 = vmatprep.subr.mxu0 0.0
        %5152 = vmatpush2.msra.mxu0 0.0
        %5153 = vmatprep.subr.mxu0 0.0
        %5154 = vmatpush2.msra.mxu0 0.0
        %5155 = vmatprep.subr.mxu0 0.0
        %5156 = vmatpush2.msra.mxu0 0.0
        %5157 = vmatprep.subr.mxu0 0.0
        %5158 = vmatpush2.msra.mxu0 0.0
        %5159 = vmatprep.subr.mxu0 0.0
        %5160 = vmatpush2.msra.mxu0 0.0
        %5161 = vmatprep.subr.mxu0 0.0
        %5162 = vmatpush2.msra.mxu0 0.0
        %5163 = vmatprep.subr.mxu0 0.0
        %5164 = vmatpush2.msra.mxu0 0.0
        %5165 = vmatprep.subr.mxu0 0.0
        %5166 = vmatpush2.msra.mxu0 0.0
        %5167 = vmatprep.subr.mxu0 0.0
        %5168 = vmatpush2.msra.mxu0 0.0
        %5169 = vmatprep.subr.mxu0 0.0
        %5170 = vmatpush2.msra.mxu0 0.0
        %5171 = vmatprep.subr.mxu0 0.0
        %5172 = vmatpush2.msra.mxu0 0.0
        %5173 = vmatprep.subr.mxu0 0.0
        %5174 = vmatpush2.msra.mxu0 0.0
        %5175 = vmatprep.mubr.f32.mxu0 0.0
        %v5176 = vand.u32 %v4870, 4294901760
        %v5177 = vsub.f32 %v4870, %v5176
        %v5178 = vand.u32 %v5177, 4294901760
        %5179 = vmatmul.mubr.f32.gmra.mxu0 %v5178
        %v5180 = vpop.f32.mrf.mxu0
        %v5181 = vadd.f32 %v5105, %v5180
        %v5182 = vpop.f32.mrf.mxu0
        %v5183 = vadd.f32 %v5107, %v5182
        %5184 = vdwg.mxu0
        %5185 = vmatprep.subr.mxu0 0.0
        %5186 = vmatpush1.msra.mxu0 0.0
        %5187 = vmatprep.subr.mxu0 0.0
        %5188 = vmatpush1.msra.mxu0 0.0
        %5189 = vmatprep.subr.mxu0 0.0
        %5190 = vmatpush1.msra.mxu0 0.0
        %5191 = vmatprep.subr.mxu0 0.0
        %5192 = vmatpush1.msra.mxu0 0.0
        %5193 = vmatprep.subr.mxu0 0.0
        %5194 = vmatpush1.msra.mxu0 0.0
        %5195 = vmatprep.subr.mxu0 0.0
        %5196 = vmatpush1.msra.mxu0 0.0
        %5197 = vmatprep.subr.mxu0 0.0
        %5198 = vmatpush1.msra.mxu0 0.0
        %5199 = vmatprep.subr.mxu0 0.0
        %5200 = vmatpush1.msra.mxu0 0.0
        %5201 = vmatprep.subr.mxu0 0.0
        %5202 = vmatpush1.msra.mxu0 0.0
        %5203 = vmatprep.subr.mxu0 0.0
        %5204 = vmatpush1.msra.mxu0 0.0
        %5205 = vmatprep.subr.mxu0 0.0
        %5206 = vmatpush1.msra.mxu0 0.0
        %5207 = vmatprep.subr.mxu0 0.0
        %5208 = vmatpush1.msra.mxu0 0.0
        %5209 = vmatprep.subr.mxu0 0.0
        %5210 = vmatpush1.msra.mxu0 0.0
        %5211 = vmatprep.subr.mxu0 0.0
        %5212 = vmatpush1.msra.mxu0 0.0
        %5213 = vmatprep.subr.mxu0 0.0
        %5214 = vmatpush1.msra.mxu0 0.0
        %v5215 = vand.u32 %v4868, 4294901760
        %v5216 = vsub.f32 %v4868, %v5215
        %v5217 = vand.u32 %v5216, 4294901760
        %5218 = vmatprep.subr.mxu0 %v5217
        %v5219 = vand.u32 %v4867, 4294901760
        %v5220 = vsub.f32 %v4867, %v5219
        %v5221 = vand.u32 %v5220, 4294901760
        %5222 = vmatpush1.msra.mxu0 %v5221
        %5223 = vmatprep.subr.mxu0 0.0
        %5224 = vmatpush2.msra.mxu0 0.0
        %5225 = vmatprep.subr.mxu0 0.0
        %5226 = vmatpush2.msra.mxu0 0.0
        %5227 = vmatprep.subr.mxu0 0.0
        %5228 = vmatpush2.msra.mxu0 0.0
        %5229 = vmatprep.subr.mxu0 0.0
        %5230 = vmatpush2.msra.mxu0 0.0
        %5231 = vmatprep.subr.mxu0 0.0
        %5232 = vmatpush2.msra.mxu0 0.0
        %5233 = vmatprep.subr.mxu0 0.0
        %5234 = vmatpush2.msra.mxu0 0.0
        %5235 = vmatprep.subr.mxu0 0.0
        %5236 = vmatpush2.msra.mxu0 0.0
        %5237 = vmatprep.subr.mxu0 0.0
        %5238 = vmatpush2.msra.mxu0 0.0
        %5239 = vmatprep.subr.mxu0 0.0
        %5240 = vmatpush2.msra.mxu0 0.0
        %5241 = vmatprep.subr.mxu0 0.0
        %5242 = vmatpush2.msra.mxu0 0.0
        %5243 = vmatprep.subr.mxu0 0.0
        %5244 = vmatpush2.msra.mxu0 0.0
        %5245 = vmatprep.subr.mxu0 0.0
        %5246 = vmatpush2.msra.mxu0 0.0
        %5247 = vmatprep.subr.mxu0 0.0
        %5248 = vmatpush2.msra.mxu0 0.0
        %5249 = vmatprep.subr.mxu0 0.0
        %5250 = vmatpush2.msra.mxu0 0.0
        %5251 = vmatprep.subr.mxu0 0.0
        %5252 = vmatpush2.msra.mxu0 0.0
        %5253 = vmatprep.subr.mxu0 0.0
        %5254 = vmatpush2.msra.mxu0 0.0
        %5255 = vmatprep.mubr.f32.mxu0 0.0
        %v5256 = vand.u32 %v4870, 4294901760
        %5257 = vmatmul.mubr.f32.gmra.mxu0 %v5256
        %v5258 = vpop.f32.mrf.mxu0
        %v5259 = vadd.f32 %v5181, %v5258
        %v5260 = vpop.f32.mrf.mxu0
        %v5261 = vadd.f32 %v5183, %v5260
        %5262 = vdwg.mxu0
        %5263 = vmatprep.subr.mxu0 0.0
        %5264 = vmatpush1.msra.mxu0 0.0
        %5265 = vmatprep.subr.mxu0 0.0
        %5266 = vmatpush1.msra.mxu0 0.0
        %5267 = vmatprep.subr.mxu0 0.0
        %5268 = vmatpush1.msra.mxu0 0.0
        %5269 = vmatprep.subr.mxu0 0.0
        %5270 = vmatpush1.msra.mxu0 0.0
        %5271 = vmatprep.subr.mxu0 0.0
        %5272 = vmatpush1.msra.mxu0 0.0
        %5273 = vmatprep.subr.mxu0 0.0
        %5274 = vmatpush1.msra.mxu0 0.0
        %5275 = vmatprep.subr.mxu0 0.0
        %5276 = vmatpush1.msra.mxu0 0.0
        %5277 = vmatprep.subr.mxu0 0.0
        %5278 = vmatpush1.msra.mxu0 0.0
        %5279 = vmatprep.subr.mxu0 0.0
        %5280 = vmatpush1.msra.mxu0 0.0
        %5281 = vmatprep.subr.mxu0 0.0
        %5282 = vmatpush1.msra.mxu0 0.0
        %5283 = vmatprep.subr.mxu0 0.0
        %5284 = vmatpush1.msra.mxu0 0.0
        %5285 = vmatprep.subr.mxu0 0.0
        %5286 = vmatpush1.msra.mxu0 0.0
        %5287 = vmatprep.subr.mxu0 0.0
        %5288 = vmatpush1.msra.mxu0 0.0
        %5289 = vmatprep.subr.mxu0 0.0
        %5290 = vmatpush1.msra.mxu0 0.0
        %5291 = vmatprep.subr.mxu0 0.0
        %5292 = vmatpush1.msra.mxu0 0.0
        %v5293 = vand.u32 %v4868, 4294901760
        %5294 = vmatprep.subr.mxu0 %v5293
        %v5295 = vand.u32 %v4867, 4294901760
        %5296 = vmatpush1.msra.mxu0 %v5295
        %5297 = vmatprep.subr.mxu0 0.0
        %5298 = vmatpush2.msra.mxu0 0.0
        %5299 = vmatprep.subr.mxu0 0.0
        %5300 = vmatpush2.msra.mxu0 0.0
        %5301 = vmatprep.subr.mxu0 0.0
        %5302 = vmatpush2.msra.mxu0 0.0
        %5303 = vmatprep.subr.mxu0 0.0
        %5304 = vmatpush2.msra.mxu0 0.0
        %5305 = vmatprep.subr.mxu0 0.0
        %5306 = vmatpush2.msra.mxu0 0.0
        %5307 = vmatprep.subr.mxu0 0.0
        %5308 = vmatpush2.msra.mxu0 0.0
        %5309 = vmatprep.subr.mxu0 0.0
        %5310 = vmatpush2.msra.mxu0 0.0
        %5311 = vmatprep.subr.mxu0 0.0
        %5312 = vmatpush2.msra.mxu0 0.0
        %5313 = vmatprep.subr.mxu0 0.0
        %5314 = vmatpush2.msra.mxu0 0.0
        %5315 = vmatprep.subr.mxu0 0.0
        %5316 = vmatpush2.msra.mxu0 0.0
        %5317 = vmatprep.subr.mxu0 0.0
        %5318 = vmatpush2.msra.mxu0 0.0
        %5319 = vmatprep.subr.mxu0 0.0
        %5320 = vmatpush2.msra.mxu0 0.0
        %5321 = vmatprep.subr.mxu0 0.0
        %5322 = vmatpush2.msra.mxu0 0.0
        %5323 = vmatprep.subr.mxu0 0.0
        %5324 = vmatpush2.msra.mxu0 0.0
        %5325 = vmatprep.subr.mxu0 0.0
        %5326 = vmatpush2.msra.mxu0 0.0
        %5327 = vmatprep.subr.mxu0 0.0
        %5328 = vmatpush2.msra.mxu0 0.0
        %5329 = vmatprep.mubr.f32.mxu0 0.0
        %v5330 = vand.u32 %v4870, 4294901760
        %5331 = vmatmul.mubr.f32.gmra.mxu0 %v5330
        %v5332 = vpop.f32.mrf.mxu0
        %v5333 = vadd.f32 %v5259, %v5332
        %v5334 = vpop.f32.mrf.mxu0
        %v5335 = vadd.f32 %v5261, %v5334
        %5336 = vdwg.mxu0
        %v5338 = vsel %vm486, %v4839, 0
        %5340 = vmatprep.subr.mxu0 0.0
        %5341 = vmatpush1.msra.mxu0 0.0
        %5342 = vmatprep.subr.mxu0 0.0
        %5343 = vmatpush1.msra.mxu0 0.0
        %5344 = vmatprep.subr.mxu0 0.0
        %5345 = vmatpush1.msra.mxu0 0.0
        %5346 = vmatprep.subr.mxu0 0.0
        %5347 = vmatpush1.msra.mxu0 0.0
        %5348 = vmatprep.subr.mxu0 0.0
        %5349 = vmatpush1.msra.mxu0 0.0
        %5350 = vmatprep.subr.mxu0 0.0
        %5351 = vmatpush1.msra.mxu0 0.0
        %5352 = vmatprep.subr.mxu0 0.0
        %5353 = vmatpush1.msra.mxu0 0.0
        %5354 = vmatprep.subr.mxu0 0.0
        %5355 = vmatpush1.msra.mxu0 0.0
        %5356 = vmatprep.subr.mxu0 0.0
        %5357 = vmatpush1.msra.mxu0 0.0
        %5358 = vmatprep.subr.mxu0 0.0
        %5359 = vmatpush1.msra.mxu0 0.0
        %5360 = vmatprep.subr.mxu0 0.0
        %5361 = vmatpush1.msra.mxu0 0.0
        %5362 = vmatprep.subr.mxu0 0.0
        %5363 = vmatpush1.msra.mxu0 0.0
        %5364 = vmatprep.subr.mxu0 0.0
        %5365 = vmatpush1.msra.mxu0 0.0
        %5366 = vmatprep.subr.mxu0 0.0
        %5367 = vmatpush1.msra.mxu0 0.0
        %5368 = vmatprep.subr.mxu0 0.0
        %5369 = vmatpush1.msra.mxu0 0.0
        %v5370 = vand.u32 %v4837, 4294901760
        %5371 = vmatprep.subr.mxu0 %v5370
        %v5372 = vand.u32 %v4836, 4294901760
        %5373 = vmatpush1.msra.mxu0 %v5372
        %5374 = vmatprep.subr.mxu0 0.0
        %5375 = vmatpush2.msra.mxu0 0.0
        %5376 = vmatprep.subr.mxu0 0.0
        %5377 = vmatpush2.msra.mxu0 0.0
        %5378 = vmatprep.subr.mxu0 0.0
        %5379 = vmatpush2.msra.mxu0 0.0
        %5380 = vmatprep.subr.mxu0 0.0
        %5381 = vmatpush2.msra.mxu0 0.0
        %5382 = vmatprep.subr.mxu0 0.0
        %5383 = vmatpush2.msra.mxu0 0.0
        %5384 = vmatprep.subr.mxu0 0.0
        %5385 = vmatpush2.msra.mxu0 0.0
        %5386 = vmatprep.subr.mxu0 0.0
        %5387 = vmatpush2.msra.mxu0 0.0
        %5388 = vmatprep.subr.mxu0 0.0
        %5389 = vmatpush2.msra.mxu0 0.0
        %5390 = vmatprep.subr.mxu0 0.0
        %5391 = vmatpush2.msra.mxu0 0.0
        %5392 = vmatprep.subr.mxu0 0.0
        %5393 = vmatpush2.msra.mxu0 0.0
        %5394 = vmatprep.subr.mxu0 0.0
        %5395 = vmatpush2.msra.mxu0 0.0
        %5396 = vmatprep.subr.mxu0 0.0
        %5397 = vmatpush2.msra.mxu0 0.0
        %5398 = vmatprep.subr.mxu0 0.0
        %5399 = vmatpush2.msra.mxu0 0.0
        %5400 = vmatprep.subr.mxu0 0.0
        %5401 = vmatpush2.msra.mxu0 0.0
        %5402 = vmatprep.subr.mxu0 0.0
        %5403 = vmatpush2.msra.mxu0 0.0
        %5404 = vmatprep.subr.mxu0 0.0
        %5405 = vmatpush2.msra.mxu0 0.0
        %5406 = vmatprep.mubr.f32.mxu0 0.0
        %v5407 = vand.u32 %v5338, 4294901760
        %v5408 = vsub.f32 %v5338, %v5407
        %v5409 = vand.u32 %v5408, 4294901760
        %v5410 = vsub.f32 %v5408, %v5409
        %v5411 = vand.u32 %v5410, 4294901760
        %5412 = vmatmul.mubr.f32.gmra.mxu0 %v5411
        %v5413 = vpop.f32.mrf.mxu0
        %v5414 = vadd.f32 %v5333, %v5413
        %v5415 = vpop.f32.mrf.mxu0
        %v5416 = vadd.f32 %v5335, %v5415
        %5417 = vdwg.mxu0
        %5418 = vmatprep.subr.mxu0 0.0
        %5419 = vmatpush1.msra.mxu0 0.0
        %5420 = vmatprep.subr.mxu0 0.0
        %5421 = vmatpush1.msra.mxu0 0.0
        %5422 = vmatprep.subr.mxu0 0.0
        %5423 = vmatpush1.msra.mxu0 0.0
        %5424 = vmatprep.subr.mxu0 0.0
        %5425 = vmatpush1.msra.mxu0 0.0
        %5426 = vmatprep.subr.mxu0 0.0
        %5427 = vmatpush1.msra.mxu0 0.0
        %5428 = vmatprep.subr.mxu0 0.0
        %5429 = vmatpush1.msra.mxu0 0.0
        %5430 = vmatprep.subr.mxu0 0.0
        %5431 = vmatpush1.msra.mxu0 0.0
        %5432 = vmatprep.subr.mxu0 0.0
        %5433 = vmatpush1.msra.mxu0 0.0
        %5434 = vmatprep.subr.mxu0 0.0
        %5435 = vmatpush1.msra.mxu0 0.0
        %5436 = vmatprep.subr.mxu0 0.0
        %5437 = vmatpush1.msra.mxu0 0.0
        %5438 = vmatprep.subr.mxu0 0.0
        %5439 = vmatpush1.msra.mxu0 0.0
        %5440 = vmatprep.subr.mxu0 0.0
        %5441 = vmatpush1.msra.mxu0 0.0
        %5442 = vmatprep.subr.mxu0 0.0
        %5443 = vmatpush1.msra.mxu0 0.0
        %5444 = vmatprep.subr.mxu0 0.0
        %5445 = vmatpush1.msra.mxu0 0.0
        %5446 = vmatprep.subr.mxu0 0.0
        %5447 = vmatpush1.msra.mxu0 0.0
        %v5448 = vand.u32 %v4837, 4294901760
        %v5449 = vsub.f32 %v4837, %v5448
        %v5450 = vand.u32 %v5449, 4294901760
        %v5451 = vsub.f32 %v5449, %v5450
        %v5452 = vand.u32 %v5451, 4294901760
        %5453 = vmatprep.subr.mxu0 %v5452
        %v5454 = vand.u32 %v4836, 4294901760
        %v5455 = vsub.f32 %v4836, %v5454
        %v5456 = vand.u32 %v5455, 4294901760
        %v5457 = vsub.f32 %v5455, %v5456
        %v5458 = vand.u32 %v5457, 4294901760
        %5459 = vmatpush1.msra.mxu0 %v5458
        %5460 = vmatprep.subr.mxu0 0.0
        %5461 = vmatpush2.msra.mxu0 0.0
        %5462 = vmatprep.subr.mxu0 0.0
        %5463 = vmatpush2.msra.mxu0 0.0
        %5464 = vmatprep.subr.mxu0 0.0
        %5465 = vmatpush2.msra.mxu0 0.0
        %5466 = vmatprep.subr.mxu0 0.0
        %5467 = vmatpush2.msra.mxu0 0.0
        %5468 = vmatprep.subr.mxu0 0.0
        %5469 = vmatpush2.msra.mxu0 0.0
        %5470 = vmatprep.subr.mxu0 0.0
        %5471 = vmatpush2.msra.mxu0 0.0
        %5472 = vmatprep.subr.mxu0 0.0
        %5473 = vmatpush2.msra.mxu0 0.0
        %5474 = vmatprep.subr.mxu0 0.0
        %5475 = vmatpush2.msra.mxu0 0.0
        %5476 = vmatprep.subr.mxu0 0.0
        %5477 = vmatpush2.msra.mxu0 0.0
        %5478 = vmatprep.subr.mxu0 0.0
        %5479 = vmatpush2.msra.mxu0 0.0
        %5480 = vmatprep.subr.mxu0 0.0
        %5481 = vmatpush2.msra.mxu0 0.0
        %5482 = vmatprep.subr.mxu0 0.0
        %5483 = vmatpush2.msra.mxu0 0.0
        %5484 = vmatprep.subr.mxu0 0.0
        %5485 = vmatpush2.msra.mxu0 0.0
        %5486 = vmatprep.subr.mxu0 0.0
        %5487 = vmatpush2.msra.mxu0 0.0
        %5488 = vmatprep.subr.mxu0 0.0
        %5489 = vmatpush2.msra.mxu0 0.0
        %5490 = vmatprep.subr.mxu0 0.0
        %5491 = vmatpush2.msra.mxu0 0.0
        %5492 = vmatprep.mubr.f32.mxu0 0.0
        %v5493 = vand.u32 %v5338, 4294901760
        %5494 = vmatmul.mubr.f32.gmra.mxu0 %v5493
        %v5495 = vpop.f32.mrf.mxu0
        %v5496 = vadd.f32 %v5414, %v5495
        %v5497 = vpop.f32.mrf.mxu0
        %v5498 = vadd.f32 %v5416, %v5497
        %5499 = vdwg.mxu0
        %5500 = vmatprep.subr.mxu0 0.0
        %5501 = vmatpush1.msra.mxu0 0.0
        %5502 = vmatprep.subr.mxu0 0.0
        %5503 = vmatpush1.msra.mxu0 0.0
        %5504 = vmatprep.subr.mxu0 0.0
        %5505 = vmatpush1.msra.mxu0 0.0
        %5506 = vmatprep.subr.mxu0 0.0
        %5507 = vmatpush1.msra.mxu0 0.0
        %5508 = vmatprep.subr.mxu0 0.0
        %5509 = vmatpush1.msra.mxu0 0.0
        %5510 = vmatprep.subr.mxu0 0.0
        %5511 = vmatpush1.msra.mxu0 0.0
        %5512 = vmatprep.subr.mxu0 0.0
        %5513 = vmatpush1.msra.mxu0 0.0
        %5514 = vmatprep.subr.mxu0 0.0
        %5515 = vmatpush1.msra.mxu0 0.0
        %5516 = vmatprep.subr.mxu0 0.0
        %5517 = vmatpush1.msra.mxu0 0.0
        %5518 = vmatprep.subr.mxu0 0.0
        %5519 = vmatpush1.msra.mxu0 0.0
        %5520 = vmatprep.subr.mxu0 0.0
        %5521 = vmatpush1.msra.mxu0 0.0
        %5522 = vmatprep.subr.mxu0 0.0
        %5523 = vmatpush1.msra.mxu0 0.0
        %5524 = vmatprep.subr.mxu0 0.0
        %5525 = vmatpush1.msra.mxu0 0.0
        %5526 = vmatprep.subr.mxu0 0.0
        %5527 = vmatpush1.msra.mxu0 0.0
        %5528 = vmatprep.subr.mxu0 0.0
        %5529 = vmatpush1.msra.mxu0 0.0
        %v5530 = vand.u32 %v4837, 4294901760
        %v5531 = vsub.f32 %v4837, %v5530
        %5532 = vmatprep.subr.mxu0 %v5531
        %v5533 = vand.u32 %v4836, 4294901760
        %v5534 = vsub.f32 %v4836, %v5533
        %5535 = vmatpush1.msra.mxu0 %v5534
        %5536 = vmatprep.subr.mxu0 0.0
        %5537 = vmatpush2.msra.mxu0 0.0
        %5538 = vmatprep.subr.mxu0 0.0
        %5539 = vmatpush2.msra.mxu0 0.0
        %5540 = vmatprep.subr.mxu0 0.0
        %5541 = vmatpush2.msra.mxu0 0.0
        %5542 = vmatprep.subr.mxu0 0.0
        %5543 = vmatpush2.msra.mxu0 0.0
        %5544 = vmatprep.subr.mxu0 0.0
        %5545 = vmatpush2.msra.mxu0 0.0
        %5546 = vmatprep.subr.mxu0 0.0
        %5547 = vmatpush2.msra.mxu0 0.0
        %5548 = vmatprep.subr.mxu0 0.0
        %5549 = vmatpush2.msra.mxu0 0.0
        %5550 = vmatprep.subr.mxu0 0.0
        %5551 = vmatpush2.msra.mxu0 0.0
        %5552 = vmatprep.subr.mxu0 0.0
        %5553 = vmatpush2.msra.mxu0 0.0
        %5554 = vmatprep.subr.mxu0 0.0
        %5555 = vmatpush2.msra.mxu0 0.0
        %5556 = vmatprep.subr.mxu0 0.0
        %5557 = vmatpush2.msra.mxu0 0.0
        %5558 = vmatprep.subr.mxu0 0.0
        %5559 = vmatpush2.msra.mxu0 0.0
        %5560 = vmatprep.subr.mxu0 0.0
        %5561 = vmatpush2.msra.mxu0 0.0
        %5562 = vmatprep.subr.mxu0 0.0
        %5563 = vmatpush2.msra.mxu0 0.0
        %5564 = vmatprep.subr.mxu0 0.0
        %5565 = vmatpush2.msra.mxu0 0.0
        %5566 = vmatprep.subr.mxu0 0.0
        %5567 = vmatpush2.msra.mxu0 0.0
        %5568 = vmatprep.mubr.f32.mxu0 0.0
        %v5569 = vand.u32 %v5338, 4294901760
        %v5570 = vsub.f32 %v5338, %v5569
        %5571 = vmatmul.mubr.f32.gmra.mxu0 %v5570
        %v5572 = vpop.f32.mrf.mxu0
        %v5573 = vadd.f32 %v5496, %v5572
        %v5574 = vpop.f32.mrf.mxu0
        %v5575 = vadd.f32 %v5498, %v5574
        %5576 = vdwg.mxu0
        %5577 = vmatprep.subr.mxu0 0.0
        %5578 = vmatpush1.msra.mxu0 0.0
        %5579 = vmatprep.subr.mxu0 0.0
        %5580 = vmatpush1.msra.mxu0 0.0
        %5581 = vmatprep.subr.mxu0 0.0
        %5582 = vmatpush1.msra.mxu0 0.0
        %5583 = vmatprep.subr.mxu0 0.0
        %5584 = vmatpush1.msra.mxu0 0.0
        %5585 = vmatprep.subr.mxu0 0.0
        %5586 = vmatpush1.msra.mxu0 0.0
        %5587 = vmatprep.subr.mxu0 0.0
        %5588 = vmatpush1.msra.mxu0 0.0
        %5589 = vmatprep.subr.mxu0 0.0
        %5590 = vmatpush1.msra.mxu0 0.0
        %5591 = vmatprep.subr.mxu0 0.0
        %5592 = vmatpush1.msra.mxu0 0.0
        %5593 = vmatprep.subr.mxu0 0.0
        %5594 = vmatpush1.msra.mxu0 0.0
        %5595 = vmatprep.subr.mxu0 0.0
        %5596 = vmatpush1.msra.mxu0 0.0
        %5597 = vmatprep.subr.mxu0 0.0
        %5598 = vmatpush1.msra.mxu0 0.0
        %5599 = vmatprep.subr.mxu0 0.0
        %5600 = vmatpush1.msra.mxu0 0.0
        %5601 = vmatprep.subr.mxu0 0.0
        %5602 = vmatpush1.msra.mxu0 0.0
        %5603 = vmatprep.subr.mxu0 0.0
        %5604 = vmatpush1.msra.mxu0 0.0
        %5605 = vmatprep.subr.mxu0 0.0
        %5606 = vmatpush1.msra.mxu0 0.0
        %v5607 = vand.u32 %v4837, 4294901760
        %5608 = vmatprep.subr.mxu0 %v5607
        %v5609 = vand.u32 %v4836, 4294901760
        %5610 = vmatpush1.msra.mxu0 %v5609
        %5611 = vmatprep.subr.mxu0 0.0
        %5612 = vmatpush2.msra.mxu0 0.0
        %5613 = vmatprep.subr.mxu0 0.0
        %5614 = vmatpush2.msra.mxu0 0.0
        %5615 = vmatprep.subr.mxu0 0.0
        %5616 = vmatpush2.msra.mxu0 0.0
        %5617 = vmatprep.subr.mxu0 0.0
        %5618 = vmatpush2.msra.mxu0 0.0
        %5619 = vmatprep.subr.mxu0 0.0
        %5620 = vmatpush2.msra.mxu0 0.0
        %5621 = vmatprep.subr.mxu0 0.0
        %5622 = vmatpush2.msra.mxu0 0.0
        %5623 = vmatprep.subr.mxu0 0.0
        %5624 = vmatpush2.msra.mxu0 0.0
        %5625 = vmatprep.subr.mxu0 0.0
        %5626 = vmatpush2.msra.mxu0 0.0
        %5627 = vmatprep.subr.mxu0 0.0
        %5628 = vmatpush2.msra.mxu0 0.0
        %5629 = vmatprep.subr.mxu0 0.0
        %5630 = vmatpush2.msra.mxu0 0.0
        %5631 = vmatprep.subr.mxu0 0.0
        %5632 = vmatpush2.msra.mxu0 0.0
        %5633 = vmatprep.subr.mxu0 0.0
        %5634 = vmatpush2.msra.mxu0 0.0
        %5635 = vmatprep.subr.mxu0 0.0
        %5636 = vmatpush2.msra.mxu0 0.0
        %5637 = vmatprep.subr.mxu0 0.0
        %5638 = vmatpush2.msra.mxu0 0.0
        %5639 = vmatprep.subr.mxu0 0.0
        %5640 = vmatpush2.msra.mxu0 0.0
        %5641 = vmatprep.subr.mxu0 0.0
        %5642 = vmatpush2.msra.mxu0 0.0
        %5643 = vmatprep.mubr.f32.mxu0 0.0
        %v5644 = vand.u32 %v5338, 4294901760
        %v5645 = vsub.f32 %v5338, %v5644
        %v5646 = vand.u32 %v5645, 4294901760
        %5647 = vmatmul.mubr.f32.gmra.mxu0 %v5646
        %v5648 = vpop.f32.mrf.mxu0
        %v5649 = vadd.f32 %v5573, %v5648
        %v5650 = vpop.f32.mrf.mxu0
        %v5651 = vadd.f32 %v5575, %v5650
        %5652 = vdwg.mxu0
        %5653 = vmatprep.subr.mxu0 0.0
        %5654 = vmatpush1.msra.mxu0 0.0
        %5655 = vmatprep.subr.mxu0 0.0
        %5656 = vmatpush1.msra.mxu0 0.0
        %5657 = vmatprep.subr.mxu0 0.0
        %5658 = vmatpush1.msra.mxu0 0.0
        %5659 = vmatprep.subr.mxu0 0.0
        %5660 = vmatpush1.msra.mxu0 0.0
        %5661 = vmatprep.subr.mxu0 0.0
        %5662 = vmatpush1.msra.mxu0 0.0
        %5663 = vmatprep.subr.mxu0 0.0
        %5664 = vmatpush1.msra.mxu0 0.0
        %5665 = vmatprep.subr.mxu0 0.0
        %5666 = vmatpush1.msra.mxu0 0.0
        %5667 = vmatprep.subr.mxu0 0.0
        %5668 = vmatpush1.msra.mxu0 0.0
        %5669 = vmatprep.subr.mxu0 0.0
        %5670 = vmatpush1.msra.mxu0 0.0
        %5671 = vmatprep.subr.mxu0 0.0
        %5672 = vmatpush1.msra.mxu0 0.0
        %5673 = vmatprep.subr.mxu0 0.0
        %5674 = vmatpush1.msra.mxu0 0.0
        %5675 = vmatprep.subr.mxu0 0.0
        %5676 = vmatpush1.msra.mxu0 0.0
        %5677 = vmatprep.subr.mxu0 0.0
        %5678 = vmatpush1.msra.mxu0 0.0
        %5679 = vmatprep.subr.mxu0 0.0
        %5680 = vmatpush1.msra.mxu0 0.0
        %5681 = vmatprep.subr.mxu0 0.0
        %5682 = vmatpush1.msra.mxu0 0.0
        %v5683 = vand.u32 %v4837, 4294901760
        %v5684 = vsub.f32 %v4837, %v5683
        %v5685 = vand.u32 %v5684, 4294901760
        %5686 = vmatprep.subr.mxu0 %v5685
        %v5687 = vand.u32 %v4836, 4294901760
        %v5688 = vsub.f32 %v4836, %v5687
        %v5689 = vand.u32 %v5688, 4294901760
        %5690 = vmatpush1.msra.mxu0 %v5689
        %5691 = vmatprep.subr.mxu0 0.0
        %5692 = vmatpush2.msra.mxu0 0.0
        %5693 = vmatprep.subr.mxu0 0.0
        %5694 = vmatpush2.msra.mxu0 0.0
        %5695 = vmatprep.subr.mxu0 0.0
        %5696 = vmatpush2.msra.mxu0 0.0
        %5697 = vmatprep.subr.mxu0 0.0
        %5698 = vmatpush2.msra.mxu0 0.0
        %5699 = vmatprep.subr.mxu0 0.0
        %5700 = vmatpush2.msra.mxu0 0.0
        %5701 = vmatprep.subr.mxu0 0.0
        %5702 = vmatpush2.msra.mxu0 0.0
        %5703 = vmatprep.subr.mxu0 0.0
        %5704 = vmatpush2.msra.mxu0 0.0
        %5705 = vmatprep.subr.mxu0 0.0
        %5706 = vmatpush2.msra.mxu0 0.0
        %5707 = vmatprep.subr.mxu0 0.0
        %5708 = vmatpush2.msra.mxu0 0.0
        %5709 = vmatprep.subr.mxu0 0.0
        %5710 = vmatpush2.msra.mxu0 0.0
        %5711 = vmatprep.subr.mxu0 0.0
        %5712 = vmatpush2.msra.mxu0 0.0
        %5713 = vmatprep.subr.mxu0 0.0
        %5714 = vmatpush2.msra.mxu0 0.0
        %5715 = vmatprep.subr.mxu0 0.0
        %5716 = vmatpush2.msra.mxu0 0.0
        %5717 = vmatprep.subr.mxu0 0.0
        %5718 = vmatpush2.msra.mxu0 0.0
        %5719 = vmatprep.subr.mxu0 0.0
        %5720 = vmatpush2.msra.mxu0 0.0
        %5721 = vmatprep.subr.mxu0 0.0
        %5722 = vmatpush2.msra.mxu0 0.0
        %5723 = vmatprep.mubr.f32.mxu0 0.0
        %v5724 = vand.u32 %v5338, 4294901760
        %5725 = vmatmul.mubr.f32.gmra.mxu0 %v5724
        %v5726 = vpop.f32.mrf.mxu0
        %v5727 = vadd.f32 %v5649, %v5726
        %v5728 = vpop.f32.mrf.mxu0
        %v5729 = vadd.f32 %v5651, %v5728
        %5730 = vdwg.mxu0
        %5731 = vmatprep.subr.mxu0 0.0
        %5732 = vmatpush1.msra.mxu0 0.0
        %5733 = vmatprep.subr.mxu0 0.0
        %5734 = vmatpush1.msra.mxu0 0.0
        %5735 = vmatprep.subr.mxu0 0.0
        %5736 = vmatpush1.msra.mxu0 0.0
        %5737 = vmatprep.subr.mxu0 0.0
        %5738 = vmatpush1.msra.mxu0 0.0
        %5739 = vmatprep.subr.mxu0 0.0
        %5740 = vmatpush1.msra.mxu0 0.0
        %5741 = vmatprep.subr.mxu0 0.0
        %5742 = vmatpush1.msra.mxu0 0.0
        %5743 = vmatprep.subr.mxu0 0.0
        %5744 = vmatpush1.msra.mxu0 0.0
        %5745 = vmatprep.subr.mxu0 0.0
        %5746 = vmatpush1.msra.mxu0 0.0
        %5747 = vmatprep.subr.mxu0 0.0
        %5748 = vmatpush1.msra.mxu0 0.0
        %5749 = vmatprep.subr.mxu0 0.0
        %5750 = vmatpush1.msra.mxu0 0.0
        %5751 = vmatprep.subr.mxu0 0.0
        %5752 = vmatpush1.msra.mxu0 0.0
        %5753 = vmatprep.subr.mxu0 0.0
        %5754 = vmatpush1.msra.mxu0 0.0
        %5755 = vmatprep.subr.mxu0 0.0
        %5756 = vmatpush1.msra.mxu0 0.0
        %5757 = vmatprep.subr.mxu0 0.0
        %5758 = vmatpush1.msra.mxu0 0.0
        %5759 = vmatprep.subr.mxu0 0.0
        %5760 = vmatpush1.msra.mxu0 0.0
        %v5761 = vand.u32 %v4837, 4294901760
        %5762 = vmatprep.subr.mxu0 %v5761
        %v5763 = vand.u32 %v4836, 4294901760
        %5764 = vmatpush1.msra.mxu0 %v5763
        %5765 = vmatprep.subr.mxu0 0.0
        %5766 = vmatpush2.msra.mxu0 0.0
        %5767 = vmatprep.subr.mxu0 0.0
        %5768 = vmatpush2.msra.mxu0 0.0
        %5769 = vmatprep.subr.mxu0 0.0
        %5770 = vmatpush2.msra.mxu0 0.0
        %5771 = vmatprep.subr.mxu0 0.0
        %5772 = vmatpush2.msra.mxu0 0.0
        %5773 = vmatprep.subr.mxu0 0.0
        %5774 = vmatpush2.msra.mxu0 0.0
        %5775 = vmatprep.subr.mxu0 0.0
        %5776 = vmatpush2.msra.mxu0 0.0
        %5777 = vmatprep.subr.mxu0 0.0
        %5778 = vmatpush2.msra.mxu0 0.0
        %5779 = vmatprep.subr.mxu0 0.0
        %5780 = vmatpush2.msra.mxu0 0.0
        %5781 = vmatprep.subr.mxu0 0.0
        %5782 = vmatpush2.msra.mxu0 0.0
        %5783 = vmatprep.subr.mxu0 0.0
        %5784 = vmatpush2.msra.mxu0 0.0
        %5785 = vmatprep.subr.mxu0 0.0
        %5786 = vmatpush2.msra.mxu0 0.0
        %5787 = vmatprep.subr.mxu0 0.0
        %5788 = vmatpush2.msra.mxu0 0.0
        %5789 = vmatprep.subr.mxu0 0.0
        %5790 = vmatpush2.msra.mxu0 0.0
        %5791 = vmatprep.subr.mxu0 0.0
        %5792 = vmatpush2.msra.mxu0 0.0
        %5793 = vmatprep.subr.mxu0 0.0
        %5794 = vmatpush2.msra.mxu0 0.0
        %5795 = vmatprep.subr.mxu0 0.0
        %5796 = vmatpush2.msra.mxu0 0.0
        %5797 = vmatprep.mubr.f32.mxu0 0.0
        %v5798 = vand.u32 %v5338, 4294901760
        %5799 = vmatmul.mubr.f32.gmra.mxu0 %v5798
        %v5800 = vpop.f32.mrf.mxu0
        %v5801 = vadd.f32 %v5727, %v5800
        %v5802 = vpop.f32.mrf.mxu0
        %v5803 = vadd.f32 %v5729, %v5802
        %5804 = vdwg.mxu0
        %v5805 = vadd.f32 %v471, 2.0
        %vm5806 = vcmp.ge.f32.partialorder %v5805, 0.0
        %vm5807 = vcmp.le.f32.partialorder %v5805, 15.0
        %vm5808 = vmand %vm5806, %vm5807
        %s5809 = scalar_lea.vmem [#allocation8], 16
        %v5810 = vld [vmem:[%s5809] sm:$0xff]
        %5811 = vrot.lane.b32.xlu0 %v4836, 126
        %v5812 = vpop.permute.xlu0 %5811
        %5813 = vrot.lane.b32.xlu0 %v4837, 126
        %v5814 = vpop.permute.xlu0 %5813
        %vm5815 = vcmask 1031168
        %v5816 = vsel %vm5815, %v5812, %v5814
        %v5819 = vsel %vm5815, %v5814, 0.0
        %v5820 = vsel %vm5808, 1, 0
        %v5821 = vlaneseq
        %v5822 = vshrl.u32 %v5821, 7
        %v5823 = vsub.s32 0, %v5822
        %v5824 = vrot.slane %v5820, %v5823
        %v5825 = vlaneseq
        %v5826 = vshrl.u32 %v5825, 7
        %v5827 = vsub.s32 1, %v5826
        %v5828 = vrot.slane %v5820, %v5827
        %vm5829 = vcmp.eq.s32.totalorder %v5824, 1
        %vm5830 = vcmp.eq.s32.totalorder %v5828, 1
        %v5831 = vsel %vm5829, %v5816, 0.0
        %v5832 = vsel %vm5830, %v5819, 0.0
        %v5834 = vsel %vm486, %v5810, 0
        %5836 = vmatprep.subr.mxu0 0.0
        %5837 = vmatpush1.msra.mxu0 0.0
        %5838 = vmatprep.subr.mxu0 0.0
        %5839 = vmatpush1.msra.mxu0 0.0
        %5840 = vmatprep.subr.mxu0 0.0
        %5841 = vmatpush1.msra.mxu0 0.0
        %5842 = vmatprep.subr.mxu0 0.0
        %5843 = vmatpush1.msra.mxu0 0.0
        %5844 = vmatprep.subr.mxu0 0.0
        %5845 = vmatpush1.msra.mxu0 0.0
        %5846 = vmatprep.subr.mxu0 0.0
        %5847 = vmatpush1.msra.mxu0 0.0
        %5848 = vmatprep.subr.mxu0 0.0
        %5849 = vmatpush1.msra.mxu0 0.0
        %5850 = vmatprep.subr.mxu0 0.0
        %5851 = vmatpush1.msra.mxu0 0.0
        %5852 = vmatprep.subr.mxu0 0.0
        %5853 = vmatpush1.msra.mxu0 0.0
        %5854 = vmatprep.subr.mxu0 0.0
        %5855 = vmatpush1.msra.mxu0 0.0
        %5856 = vmatprep.subr.mxu0 0.0
        %5857 = vmatpush1.msra.mxu0 0.0
        %5858 = vmatprep.subr.mxu0 0.0
        %5859 = vmatpush1.msra.mxu0 0.0
        %5860 = vmatprep.subr.mxu0 0.0
        %5861 = vmatpush1.msra.mxu0 0.0
        %5862 = vmatprep.subr.mxu0 0.0
        %5863 = vmatpush1.msra.mxu0 0.0
        %5864 = vmatprep.subr.mxu0 0.0
        %5865 = vmatpush1.msra.mxu0 0.0
        %v5866 = vand.u32 %v5832, 4294901760
        %5867 = vmatprep.subr.mxu0 %v5866
        %v5868 = vand.u32 %v5831, 4294901760
        %5869 = vmatpush1.msra.mxu0 %v5868
        %5870 = vmatprep.subr.mxu0 0.0
        %5871 = vmatpush2.msra.mxu0 0.0
        %5872 = vmatprep.subr.mxu0 0.0
        %5873 = vmatpush2.msra.mxu0 0.0
        %5874 = vmatprep.subr.mxu0 0.0
        %5875 = vmatpush2.msra.mxu0 0.0
        %5876 = vmatprep.subr.mxu0 0.0
        %5877 = vmatpush2.msra.mxu0 0.0
        %5878 = vmatprep.subr.mxu0 0.0
        %5879 = vmatpush2.msra.mxu0 0.0
        %5880 = vmatprep.subr.mxu0 0.0
        %5881 = vmatpush2.msra.mxu0 0.0
        %5882 = vmatprep.subr.mxu0 0.0
        %5883 = vmatpush2.msra.mxu0 0.0
        %5884 = vmatprep.subr.mxu0 0.0
        %5885 = vmatpush2.msra.mxu0 0.0
        %5886 = vmatprep.subr.mxu0 0.0
        %5887 = vmatpush2.msra.mxu0 0.0
        %5888 = vmatprep.subr.mxu0 0.0
        %5889 = vmatpush2.msra.mxu0 0.0
        %5890 = vmatprep.subr.mxu0 0.0
        %5891 = vmatpush2.msra.mxu0 0.0
        %5892 = vmatprep.subr.mxu0 0.0
        %5893 = vmatpush2.msra.mxu0 0.0
        %5894 = vmatprep.subr.mxu0 0.0
        %5895 = vmatpush2.msra.mxu0 0.0
        %5896 = vmatprep.subr.mxu0 0.0
        %5897 = vmatpush2.msra.mxu0 0.0
        %5898 = vmatprep.subr.mxu0 0.0
        %5899 = vmatpush2.msra.mxu0 0.0
        %5900 = vmatprep.subr.mxu0 0.0
        %5901 = vmatpush2.msra.mxu0 0.0
        %5902 = vmatprep.mubr.f32.mxu0 0.0
        %v5903 = vand.u32 %v5834, 4294901760
        %v5904 = vsub.f32 %v5834, %v5903
        %v5905 = vand.u32 %v5904, 4294901760
        %v5906 = vsub.f32 %v5904, %v5905
        %v5907 = vand.u32 %v5906, 4294901760
        %5908 = vmatmul.mubr.f32.gmra.mxu0 %v5907
        %v5909 = vpop.f32.mrf.mxu0
        %v5910 = vadd.f32 0.0, %v5909
        %v5911 = vpop.f32.mrf.mxu0
        %v5912 = vadd.f32 0.0, %v5911
        %5913 = vdwg.mxu0
        %5914 = vmatprep.subr.mxu0 0.0
        %5915 = vmatpush1.msra.mxu0 0.0
        %5916 = vmatprep.subr.mxu0 0.0
        %5917 = vmatpush1.msra.mxu0 0.0
        %5918 = vmatprep.subr.mxu0 0.0
        %5919 = vmatpush1.msra.mxu0 0.0
        %5920 = vmatprep.subr.mxu0 0.0
        %5921 = vmatpush1.msra.mxu0 0.0
        %5922 = vmatprep.subr.mxu0 0.0
        %5923 = vmatpush1.msra.mxu0 0.0
        %5924 = vmatprep.subr.mxu0 0.0
        %5925 = vmatpush1.msra.mxu0 0.0
        %5926 = vmatprep.subr.mxu0 0.0
        %5927 = vmatpush1.msra.mxu0 0.0
        %5928 = vmatprep.subr.mxu0 0.0
        %5929 = vmatpush1.msra.mxu0 0.0
        %5930 = vmatprep.subr.mxu0 0.0
        %5931 = vmatpush1.msra.mxu0 0.0
        %5932 = vmatprep.subr.mxu0 0.0
        %5933 = vmatpush1.msra.mxu0 0.0
        %5934 = vmatprep.subr.mxu0 0.0
        %5935 = vmatpush1.msra.mxu0 0.0
        %5936 = vmatprep.subr.mxu0 0.0
        %5937 = vmatpush1.msra.mxu0 0.0
        %5938 = vmatprep.subr.mxu0 0.0
        %5939 = vmatpush1.msra.mxu0 0.0
        %5940 = vmatprep.subr.mxu0 0.0
        %5941 = vmatpush1.msra.mxu0 0.0
        %5942 = vmatprep.subr.mxu0 0.0
        %5943 = vmatpush1.msra.mxu0 0.0
        %v5944 = vand.u32 %v5832, 4294901760
        %v5945 = vsub.f32 %v5832, %v5944
        %v5946 = vand.u32 %v5945, 4294901760
        %v5947 = vsub.f32 %v5945, %v5946
        %v5948 = vand.u32 %v5947, 4294901760
        %5949 = vmatprep.subr.mxu0 %v5948
        %v5950 = vand.u32 %v5831, 4294901760
        %v5951 = vsub.f32 %v5831, %v5950
        %v5952 = vand.u32 %v5951, 4294901760
        %v5953 = vsub.f32 %v5951, %v5952
        %v5954 = vand.u32 %v5953, 4294901760
        %5955 = vmatpush1.msra.mxu0 %v5954
        %5956 = vmatprep.subr.mxu0 0.0
        %5957 = vmatpush2.msra.mxu0 0.0
        %5958 = vmatprep.subr.mxu0 0.0
        %5959 = vmatpush2.msra.mxu0 0.0
        %5960 = vmatprep.subr.mxu0 0.0
        %5961 = vmatpush2.msra.mxu0 0.0
        %5962 = vmatprep.subr.mxu0 0.0
        %5963 = vmatpush2.msra.mxu0 0.0
        %5964 = vmatprep.subr.mxu0 0.0
        %5965 = vmatpush2.msra.mxu0 0.0
        %5966 = vmatprep.subr.mxu0 0.0
        %5967 = vmatpush2.msra.mxu0 0.0
        %5968 = vmatprep.subr.mxu0 0.0
        %5969 = vmatpush2.msra.mxu0 0.0
        %5970 = vmatprep.subr.mxu0 0.0
        %5971 = vmatpush2.msra.mxu0 0.0
        %5972 = vmatprep.subr.mxu0 0.0
        %5973 = vmatpush2.msra.mxu0 0.0
        %5974 = vmatprep.subr.mxu0 0.0
        %5975 = vmatpush2.msra.mxu0 0.0
        %5976 = vmatprep.subr.mxu0 0.0
        %5977 = vmatpush2.msra.mxu0 0.0
        %5978 = vmatprep.subr.mxu0 0.0
        %5979 = vmatpush2.msra.mxu0 0.0
        %5980 = vmatprep.subr.mxu0 0.0
        %5981 = vmatpush2.msra.mxu0 0.0
        %5982 = vmatprep.subr.mxu0 0.0
        %5983 = vmatpush2.msra.mxu0 0.0
        %5984 = vmatprep.subr.mxu0 0.0
        %5985 = vmatpush2.msra.mxu0 0.0
        %5986 = vmatprep.subr.mxu0 0.0
        %5987 = vmatpush2.msra.mxu0 0.0
        %5988 = vmatprep.mubr.f32.mxu0 0.0
        %v5989 = vand.u32 %v5834, 4294901760
        %5990 = vmatmul.mubr.f32.gmra.mxu0 %v5989
        %v5991 = vpop.f32.mrf.mxu0
        %v5992 = vadd.f32 %v5910, %v5991
        %v5993 = vpop.f32.mrf.mxu0
        %v5994 = vadd.f32 %v5912, %v5993
        %5995 = vdwg.mxu0
        %5996 = vmatprep.subr.mxu0 0.0
        %5997 = vmatpush1.msra.mxu0 0.0
        %5998 = vmatprep.subr.mxu0 0.0
        %5999 = vmatpush1.msra.mxu0 0.0
        %6000 = vmatprep.subr.mxu0 0.0
        %6001 = vmatpush1.msra.mxu0 0.0
        %6002 = vmatprep.subr.mxu0 0.0
        %6003 = vmatpush1.msra.mxu0 0.0
        %6004 = vmatprep.subr.mxu0 0.0
        %6005 = vmatpush1.msra.mxu0 0.0
        %6006 = vmatprep.subr.mxu0 0.0
        %6007 = vmatpush1.msra.mxu0 0.0
        %6008 = vmatprep.subr.mxu0 0.0
        %6009 = vmatpush1.msra.mxu0 0.0
        %6010 = vmatprep.subr.mxu0 0.0
        %6011 = vmatpush1.msra.mxu0 0.0
        %6012 = vmatprep.subr.mxu0 0.0
        %6013 = vmatpush1.msra.mxu0 0.0
        %6014 = vmatprep.subr.mxu0 0.0
        %6015 = vmatpush1.msra.mxu0 0.0
        %6016 = vmatprep.subr.mxu0 0.0
        %6017 = vmatpush1.msra.mxu0 0.0
        %6018 = vmatprep.subr.mxu0 0.0
        %6019 = vmatpush1.msra.mxu0 0.0
        %6020 = vmatprep.subr.mxu0 0.0
        %6021 = vmatpush1.msra.mxu0 0.0
        %6022 = vmatprep.subr.mxu0 0.0
        %6023 = vmatpush1.msra.mxu0 0.0
        %6024 = vmatprep.subr.mxu0 0.0
        %6025 = vmatpush1.msra.mxu0 0.0
        %v6026 = vand.u32 %v5832, 4294901760
        %v6027 = vsub.f32 %v5832, %v6026
        %6028 = vmatprep.subr.mxu0 %v6027
        %v6029 = vand.u32 %v5831, 4294901760
        %v6030 = vsub.f32 %v5831, %v6029
        %6031 = vmatpush1.msra.mxu0 %v6030
        %6032 = vmatprep.subr.mxu0 0.0
        %6033 = vmatpush2.msra.mxu0 0.0
        %6034 = vmatprep.subr.mxu0 0.0
        %6035 = vmatpush2.msra.mxu0 0.0
        %6036 = vmatprep.subr.mxu0 0.0
        %6037 = vmatpush2.msra.mxu0 0.0
        %6038 = vmatprep.subr.mxu0 0.0
        %6039 = vmatpush2.msra.mxu0 0.0
        %6040 = vmatprep.subr.mxu0 0.0
        %6041 = vmatpush2.msra.mxu0 0.0
        %6042 = vmatprep.subr.mxu0 0.0
        %6043 = vmatpush2.msra.mxu0 0.0
        %6044 = vmatprep.subr.mxu0 0.0
        %6045 = vmatpush2.msra.mxu0 0.0
        %6046 = vmatprep.subr.mxu0 0.0
        %6047 = vmatpush2.msra.mxu0 0.0
        %6048 = vmatprep.subr.mxu0 0.0
        %6049 = vmatpush2.msra.mxu0 0.0
        %6050 = vmatprep.subr.mxu0 0.0
        %6051 = vmatpush2.msra.mxu0 0.0
        %6052 = vmatprep.subr.mxu0 0.0
        %6053 = vmatpush2.msra.mxu0 0.0
        %6054 = vmatprep.subr.mxu0 0.0
        %6055 = vmatpush2.msra.mxu0 0.0
        %6056 = vmatprep.subr.mxu0 0.0
        %6057 = vmatpush2.msra.mxu0 0.0
        %6058 = vmatprep.subr.mxu0 0.0
        %6059 = vmatpush2.msra.mxu0 0.0
        %6060 = vmatprep.subr.mxu0 0.0
        %6061 = vmatpush2.msra.mxu0 0.0
        %6062 = vmatprep.subr.mxu0 0.0
        %6063 = vmatpush2.msra.mxu0 0.0
        %6064 = vmatprep.mubr.f32.mxu0 0.0
        %v6065 = vand.u32 %v5834, 4294901760
        %v6066 = vsub.f32 %v5834, %v6065
        %6067 = vmatmul.mubr.f32.gmra.mxu0 %v6066
        %v6068 = vpop.f32.mrf.mxu0
        %v6069 = vadd.f32 %v5992, %v6068
        %v6070 = vpop.f32.mrf.mxu0
        %v6071 = vadd.f32 %v5994, %v6070
        %6072 = vdwg.mxu0
        %6073 = vmatprep.subr.mxu0 0.0
        %6074 = vmatpush1.msra.mxu0 0.0
        %6075 = vmatprep.subr.mxu0 0.0
        %6076 = vmatpush1.msra.mxu0 0.0
        %6077 = vmatprep.subr.mxu0 0.0
        %6078 = vmatpush1.msra.mxu0 0.0
        %6079 = vmatprep.subr.mxu0 0.0
        %6080 = vmatpush1.msra.mxu0 0.0
        %6081 = vmatprep.subr.mxu0 0.0
        %6082 = vmatpush1.msra.mxu0 0.0
        %6083 = vmatprep.subr.mxu0 0.0
        %6084 = vmatpush1.msra.mxu0 0.0
        %6085 = vmatprep.subr.mxu0 0.0
        %6086 = vmatpush1.msra.mxu0 0.0
        %6087 = vmatprep.subr.mxu0 0.0
        %6088 = vmatpush1.msra.mxu0 0.0
        %6089 = vmatprep.subr.mxu0 0.0
        %6090 = vmatpush1.msra.mxu0 0.0
        %6091 = vmatprep.subr.mxu0 0.0
        %6092 = vmatpush1.msra.mxu0 0.0
        %6093 = vmatprep.subr.mxu0 0.0
        %6094 = vmatpush1.msra.mxu0 0.0
        %6095 = vmatprep.subr.mxu0 0.0
        %6096 = vmatpush1.msra.mxu0 0.0
        %6097 = vmatprep.subr.mxu0 0.0
        %6098 = vmatpush1.msra.mxu0 0.0
        %6099 = vmatprep.subr.mxu0 0.0
        %6100 = vmatpush1.msra.mxu0 0.0
        %6101 = vmatprep.subr.mxu0 0.0
        %6102 = vmatpush1.msra.mxu0 0.0
        %v6103 = vand.u32 %v5832, 4294901760
        %6104 = vmatprep.subr.mxu0 %v6103
        %v6105 = vand.u32 %v5831, 4294901760
        %6106 = vmatpush1.msra.mxu0 %v6105
        %6107 = vmatprep.subr.mxu0 0.0
        %6108 = vmatpush2.msra.mxu0 0.0
        %6109 = vmatprep.subr.mxu0 0.0
        %6110 = vmatpush2.msra.mxu0 0.0
        %6111 = vmatprep.subr.mxu0 0.0
        %6112 = vmatpush2.msra.mxu0 0.0
        %6113 = vmatprep.subr.mxu0 0.0
        %6114 = vmatpush2.msra.mxu0 0.0
        %6115 = vmatprep.subr.mxu0 0.0
        %6116 = vmatpush2.msra.mxu0 0.0
        %6117 = vmatprep.subr.mxu0 0.0
        %6118 = vmatpush2.msra.mxu0 0.0
        %6119 = vmatprep.subr.mxu0 0.0
        %6120 = vmatpush2.msra.mxu0 0.0
        %6121 = vmatprep.subr.mxu0 0.0
        %6122 = vmatpush2.msra.mxu0 0.0
        %6123 = vmatprep.subr.mxu0 0.0
        %6124 = vmatpush2.msra.mxu0 0.0
        %6125 = vmatprep.subr.mxu0 0.0
        %6126 = vmatpush2.msra.mxu0 0.0
        %6127 = vmatprep.subr.mxu0 0.0
        %6128 = vmatpush2.msra.mxu0 0.0
        %6129 = vmatprep.subr.mxu0 0.0
        %6130 = vmatpush2.msra.mxu0 0.0
        %6131 = vmatprep.subr.mxu0 0.0
        %6132 = vmatpush2.msra.mxu0 0.0
        %6133 = vmatprep.subr.mxu0 0.0
        %6134 = vmatpush2.msra.mxu0 0.0
        %6135 = vmatprep.subr.mxu0 0.0
        %6136 = vmatpush2.msra.mxu0 0.0
        %6137 = vmatprep.subr.mxu0 0.0
        %6138 = vmatpush2.msra.mxu0 0.0
        %6139 = vmatprep.mubr.f32.mxu0 0.0
        %v6140 = vand.u32 %v5834, 4294901760
        %v6141 = vsub.f32 %v5834, %v6140
        %v6142 = vand.u32 %v6141, 4294901760
        %6143 = vmatmul.mubr.f32.gmra.mxu0 %v6142
        %v6144 = vpop.f32.mrf.mxu0
        %v6145 = vadd.f32 %v6069, %v6144
        %v6146 = vpop.f32.mrf.mxu0
        %v6147 = vadd.f32 %v6071, %v6146
        %6148 = vdwg.mxu0
        %6149 = vmatprep.subr.mxu0 0.0
        %6150 = vmatpush1.msra.mxu0 0.0
        %6151 = vmatprep.subr.mxu0 0.0
        %6152 = vmatpush1.msra.mxu0 0.0
        %6153 = vmatprep.subr.mxu0 0.0
        %6154 = vmatpush1.msra.mxu0 0.0
        %6155 = vmatprep.subr.mxu0 0.0
        %6156 = vmatpush1.msra.mxu0 0.0
        %6157 = vmatprep.subr.mxu0 0.0
        %6158 = vmatpush1.msra.mxu0 0.0
        %6159 = vmatprep.subr.mxu0 0.0
        %6160 = vmatpush1.msra.mxu0 0.0
        %6161 = vmatprep.subr.mxu0 0.0
        %6162 = vmatpush1.msra.mxu0 0.0
        %6163 = vmatprep.subr.mxu0 0.0
        %6164 = vmatpush1.msra.mxu0 0.0
        %6165 = vmatprep.subr.mxu0 0.0
        %6166 = vmatpush1.msra.mxu0 0.0
        %6167 = vmatprep.subr.mxu0 0.0
        %6168 = vmatpush1.msra.mxu0 0.0
        %6169 = vmatprep.subr.mxu0 0.0
        %6170 = vmatpush1.msra.mxu0 0.0
        %6171 = vmatprep.subr.mxu0 0.0
        %6172 = vmatpush1.msra.mxu0 0.0
        %6173 = vmatprep.subr.mxu0 0.0
        %6174 = vmatpush1.msra.mxu0 0.0
        %6175 = vmatprep.subr.mxu0 0.0
        %6176 = vmatpush1.msra.mxu0 0.0
        %6177 = vmatprep.subr.mxu0 0.0
        %6178 = vmatpush1.msra.mxu0 0.0
        %v6179 = vand.u32 %v5832, 4294901760
        %v6180 = vsub.f32 %v5832, %v6179
        %v6181 = vand.u32 %v6180, 4294901760
        %6182 = vmatprep.subr.mxu0 %v6181
        %v6183 = vand.u32 %v5831, 4294901760
        %v6184 = vsub.f32 %v5831, %v6183
        %v6185 = vand.u32 %v6184, 4294901760
        %6186 = vmatpush1.msra.mxu0 %v6185
        %6187 = vmatprep.subr.mxu0 0.0
        %6188 = vmatpush2.msra.mxu0 0.0
        %6189 = vmatprep.subr.mxu0 0.0
        %6190 = vmatpush2.msra.mxu0 0.0
        %6191 = vmatprep.subr.mxu0 0.0
        %6192 = vmatpush2.msra.mxu0 0.0
        %6193 = vmatprep.subr.mxu0 0.0
        %6194 = vmatpush2.msra.mxu0 0.0
        %6195 = vmatprep.subr.mxu0 0.0
        %6196 = vmatpush2.msra.mxu0 0.0
        %6197 = vmatprep.subr.mxu0 0.0
        %6198 = vmatpush2.msra.mxu0 0.0
        %6199 = vmatprep.subr.mxu0 0.0
        %6200 = vmatpush2.msra.mxu0 0.0
        %6201 = vmatprep.subr.mxu0 0.0
        %6202 = vmatpush2.msra.mxu0 0.0
        %6203 = vmatprep.subr.mxu0 0.0
        %6204 = vmatpush2.msra.mxu0 0.0
        %6205 = vmatprep.subr.mxu0 0.0
        %6206 = vmatpush2.msra.mxu0 0.0
        %6207 = vmatprep.subr.mxu0 0.0
        %6208 = vmatpush2.msra.mxu0 0.0
        %6209 = vmatprep.subr.mxu0 0.0
        %6210 = vmatpush2.msra.mxu0 0.0
        %6211 = vmatprep.subr.mxu0 0.0
        %6212 = vmatpush2.msra.mxu0 0.0
        %6213 = vmatprep.subr.mxu0 0.0
        %6214 = vmatpush2.msra.mxu0 0.0
        %6215 = vmatprep.subr.mxu0 0.0
        %6216 = vmatpush2.msra.mxu0 0.0
        %6217 = vmatprep.subr.mxu0 0.0
        %6218 = vmatpush2.msra.mxu0 0.0
        %6219 = vmatprep.mubr.f32.mxu0 0.0
        %v6220 = vand.u32 %v5834, 4294901760
        %6221 = vmatmul.mubr.f32.gmra.mxu0 %v6220
        %v6222 = vpop.f32.mrf.mxu0
        %v6223 = vadd.f32 %v6145, %v6222
        %v6224 = vpop.f32.mrf.mxu0
        %v6225 = vadd.f32 %v6147, %v6224
        %6226 = vdwg.mxu0
        %6227 = vmatprep.subr.mxu0 0.0
        %6228 = vmatpush1.msra.mxu0 0.0
        %6229 = vmatprep.subr.mxu0 0.0
        %6230 = vmatpush1.msra.mxu0 0.0
        %6231 = vmatprep.subr.mxu0 0.0
        %6232 = vmatpush1.msra.mxu0 0.0
        %6233 = vmatprep.subr.mxu0 0.0
        %6234 = vmatpush1.msra.mxu0 0.0
        %6235 = vmatprep.subr.mxu0 0.0
        %6236 = vmatpush1.msra.mxu0 0.0
        %6237 = vmatprep.subr.mxu0 0.0
        %6238 = vmatpush1.msra.mxu0 0.0
        %6239 = vmatprep.subr.mxu0 0.0
        %6240 = vmatpush1.msra.mxu0 0.0
        %6241 = vmatprep.subr.mxu0 0.0
        %6242 = vmatpush1.msra.mxu0 0.0
        %6243 = vmatprep.subr.mxu0 0.0
        %6244 = vmatpush1.msra.mxu0 0.0
        %6245 = vmatprep.subr.mxu0 0.0
        %6246 = vmatpush1.msra.mxu0 0.0
        %6247 = vmatprep.subr.mxu0 0.0
        %6248 = vmatpush1.msra.mxu0 0.0
        %6249 = vmatprep.subr.mxu0 0.0
        %6250 = vmatpush1.msra.mxu0 0.0
        %6251 = vmatprep.subr.mxu0 0.0
        %6252 = vmatpush1.msra.mxu0 0.0
        %6253 = vmatprep.subr.mxu0 0.0
        %6254 = vmatpush1.msra.mxu0 0.0
        %6255 = vmatprep.subr.mxu0 0.0
        %6256 = vmatpush1.msra.mxu0 0.0
        %v6257 = vand.u32 %v5832, 4294901760
        %6258 = vmatprep.subr.mxu0 %v6257
        %v6259 = vand.u32 %v5831, 4294901760
        %6260 = vmatpush1.msra.mxu0 %v6259
        %6261 = vmatprep.subr.mxu0 0.0
        %6262 = vmatpush2.msra.mxu0 0.0
        %6263 = vmatprep.subr.mxu0 0.0
        %6264 = vmatpush2.msra.mxu0 0.0
        %6265 = vmatprep.subr.mxu0 0.0
        %6266 = vmatpush2.msra.mxu0 0.0
        %6267 = vmatprep.subr.mxu0 0.0
        %6268 = vmatpush2.msra.mxu0 0.0
        %6269 = vmatprep.subr.mxu0 0.0
        %6270 = vmatpush2.msra.mxu0 0.0
        %6271 = vmatprep.subr.mxu0 0.0
        %6272 = vmatpush2.msra.mxu0 0.0
        %6273 = vmatprep.subr.mxu0 0.0
        %6274 = vmatpush2.msra.mxu0 0.0
        %6275 = vmatprep.subr.mxu0 0.0
        %6276 = vmatpush2.msra.mxu0 0.0
        %6277 = vmatprep.subr.mxu0 0.0
        %6278 = vmatpush2.msra.mxu0 0.0
        %6279 = vmatprep.subr.mxu0 0.0
        %6280 = vmatpush2.msra.mxu0 0.0
        %6281 = vmatprep.subr.mxu0 0.0
        %6282 = vmatpush2.msra.mxu0 0.0
        %6283 = vmatprep.subr.mxu0 0.0
        %6284 = vmatpush2.msra.mxu0 0.0
        %6285 = vmatprep.subr.mxu0 0.0
        %6286 = vmatpush2.msra.mxu0 0.0
        %6287 = vmatprep.subr.mxu0 0.0
        %6288 = vmatpush2.msra.mxu0 0.0
        %6289 = vmatprep.subr.mxu0 0.0
        %6290 = vmatpush2.msra.mxu0 0.0
        %6291 = vmatprep.subr.mxu0 0.0
        %6292 = vmatpush2.msra.mxu0 0.0
        %6293 = vmatprep.mubr.f32.mxu0 0.0
        %v6294 = vand.u32 %v5834, 4294901760
        %6295 = vmatmul.mubr.f32.gmra.mxu0 %v6294
        %v6296 = vpop.f32.mrf.mxu0
        %v6297 = vadd.f32 %v6223, %v6296
        %v6298 = vpop.f32.mrf.mxu0
        %v6299 = vadd.f32 %v6225, %v6298
        %6300 = vdwg.mxu0
        %v6301 = vadd.f32 %v5801, %v6297
        %v6302 = vadd.f32 %v5803, %v6299
        %v6303 = vld [vmem:[%s10] sm:$0xff]
        %6305 = vset.pattern.permute.xlu0 0
        %6306 = vperm.xlu0 %6305, %v6303
        %v6307 = vpop.permute.xlu0 %6306
        %v6309 = vmul.f32 %v6301, %v6307
        %v6310 = vmul.f32 %v6302, %v6307
        %v6311 = vld [vmem:[%s11] sm:$0xff]
        %6313 = vset.pattern.permute.xlu0 0
        %6314 = vperm.xlu0 %6313, %v6311
        %v6315 = vpop.permute.xlu0 %6314
        %v6317 = vadd.f32 %v6309, %v6315
        %v6318 = vadd.f32 %v6310, %v6315
        %v6319 = vadd.f32 %v6317, %v469
        %v6320 = vadd.f32 %v6318, %v470
        %v6321 = vmax.f32 %v6319, 0.0
        %v6322 = vmax.f32 %v6320, 0.0
        %6323 = vst [vmem:[%s463] sm:$0xff] %v6321
        %6324 = vst [vmem:[%s463 + $0x8] sm:$0xff] %v6322
        %s6325 = sand.u32 %s294, 1
        %s6326 = scalar_lea.sflag [#allocation4], %s6325
        %s6327 = sand.u32 %s294, 1
        %s6328 = smul.addr %s6327, 16
        %s6329 = scalar_lea.vmem [#allocation10], %s6328
        // Predicated region
        $region85: #{tpu_custom_call.1} parent=67 // pred_check
          %p6330 = pneg %p304
        $region86: #{tpu_custom_call.1} parent=67 // pred_check_branch
          %6332 = sbr.rel (%p6330) target = $region88
        $region87: #{tpu_custom_call.1} parent=67 // pred_region
          %s6334 = ssub.s32 256, 256
          %6335 = vsyncadd %s6326, %s6334
          %s6336 = smul.addr %s29, 2
          %s6337 = smul.addr %s6336, 128
          %s6338 = scalar_lea.hbm %s12, %s6337
          %s6340 = sshll.u32 %s6329, 4
          %s6341 = int_to_ptr.vmem [resolvable:$true] %s6340
          %6343 = dma.vmem_to_hbm [thread:$0]  %s6341, 256, %s6338, %s6326
        $region88: #{tpu_custom_call.1} parent=67 // pred_fallthru
          _
      $region68: #{tpu_custom_call.1} parent=5 // pred_fallthru
        _
      %p6344 = scmp.le.s32.totalorder 2, %s24
      // Predicated region
      $region89: #{tpu_custom_call.1} parent=5 // pred_check
        %p6345 = pneg %p6344
      $region90: #{tpu_custom_call.1} parent=5 // pred_check_branch
        %6347 = sbr.rel (%p6345) target = $region92
      $region91: #{tpu_custom_call.1} parent=5 // pred_region
        %s6348 = ssub.s32 %s24, 2
        // Predicated region
        $region93: #{tpu_custom_call.1} parent=91 // pred_check
          %p6349 = pneg %p310
        $region94: #{tpu_custom_call.1} parent=91 // pred_check_branch
          %6351 = sbr.rel (%p6349) target = $region96
        $region95: #{tpu_custom_call.1} parent=91 // pred_region
          %s6352 = sand.u32 %s295, 1
          %s6353 = scalar_lea.sflag [#allocation4], %s6352
          %s6354 = sand.u32 %s295, 1
          %s6355 = smul.addr %s6354, 16
          %s6356 = scalar_lea.vmem [#allocation10], %s6355
          %6357 = dma.done %s6353, 256
        $region96: #{tpu_custom_call.1} parent=91 // pred_fallthru
          _
      $region92: #{tpu_custom_call.1} parent=5 // pred_fallthru
        _
    $region6: #{tpu_custom_call.1} parent=1 // loop_footer
      %s28 = sadd.s32 1, %s24
    $region7: #{tpu_custom_call.1} parent=1 // loop_footer_branch
      %23 = sbr.rel target = $region3
    $region8: #{tpu_custom_call.1} parent=1 // loop_exit
      _
    %6358 = vsyncpa [#allocation3], 1
    %s6359 = scalar_lea.sflag [#allocation3], 1
    %6360 = vsyncpa %s6359, 1
    %6361 = vsyncpa [#allocation6], 1
    %6362 = vsyncpa [#allocation9], 1
    %6363 = vsyncpa [#allocation4], 1
    %s6364 = scalar_lea.sflag [#allocation4], 1
    %6365 = vsyncpa %s6364, 1

</llo_original>
